<compile_context>
chip_gen: v5e
topology: v5e:2x2
jax: 0.10.0
libtpu: 0.0.40
codegen_flags: <defaults>
</compile_context>

<pallas_src>
import jax
import jax.numpy as jnp
from jax.experimental import pallas as pl
from jax.experimental.pallas import tpu as pltpu

EPS = 1e-5

_COMPILER_PARAMS = pltpu.CompilerParams(
    dimension_semantics=("parallel",),
    vmem_limit_bytes=32 * 1024 * 1024,
)


# --------------------------------- kernels -----------------------------------
def _channel_stats(y):
    """Per-channel (sum, centered M2) over the row axis -> (1, 2, C).

    (sum, M2) partials let the wrapper merge tiles with Chan's parallel-variance
    formula instead of the cancellation-prone E[x^2] - mean^2.
    """
    rows = y.shape[0]
    s = jnp.sum(y, axis=0, keepdims=True)                      # (1, C)
    mu = s * (1.0 / rows)
    d = y - mu
    m2 = jnp.sum(d * d, axis=0, keepdims=True)                 # (1, C)
    return jnp.concatenate([s, m2], axis=0).reshape(1, 2, y.shape[-1])


def conv1x1_stats_kernel(x_ref, w_ref, y_ref, stats_ref):
    """y = x @ w (bf16 MXU, f32 acc); store y as bf16, stats from the f32 acc."""
    y = jnp.dot(x_ref[...].astype(jnp.bfloat16), w_ref[...],
                preferred_element_type=jnp.float32)
    y_ref[...] = y.astype(y_ref.dtype)
    stats_ref[...] = _channel_stats(y)


def bn_relu_conv1x1_stats_kernel(y_ref, scale_ref, shift_ref, w_ref, o_ref, stats_ref):
    """o = relu(bn(y)) @ w; BN/ReLU in f32 (input stored bf16), bf16 MXU operands."""
    a = jnp.maximum(
        y_ref[...].astype(jnp.float32) * scale_ref[...] + shift_ref[...], 0.0)
    o = jnp.dot(a.astype(jnp.bfloat16), w_ref[...],
                preferred_element_type=jnp.float32)
    o_ref[...] = o.astype(o_ref.dtype)
    stats_ref[...] = _channel_stats(o)


def bn_relu_conv3x3_stats_kernel(y1_ref, scale_ref, shift_ref, w_ref,
                                 y2_ref, stats_ref, pad_ref, acc_ref):
    """Per image: a1 = relu(bn1(y1)); y2 = conv3x3(a1) as 9 accumulated K=P matmuls."""
    _, h, w, p = y1_ref.shape
    pout = y2_ref.shape[-1]

    # BN/ReLU arithmetic in f32 (v5e has no bf16 VPU), stored to the scratch as bf16.
    a1 = jnp.maximum(
        y1_ref[0].astype(jnp.float32) * scale_ref[...].reshape(1, 1, p)
        + shift_ref[...].reshape(1, 1, p),
        0.0)

    # Scratch fully rewritten every step: one unmasked full-width zero store plus
    # the interior store (no per-column masked border stores).
    pad_ref[...] = jnp.zeros(pad_ref.shape, pad_ref.dtype)
    pad_ref[1:h + 1, 1:w + 1, :] = a1.astype(pad_ref.dtype)

    # 9 accumulating K=P matmuls into an f32 accumulator; no (h*w, 9P) slab.
    acc_ref[...] = jnp.zeros(acc_ref.shape, acc_ref.dtype)
    for k in range(9):                           # static unroll over the 3x3 taps
        ky, kx = k // 3, k % 3
        window = pad_ref[ky:ky + h, kx:kx + w, :].reshape(h * w, p)
        acc_ref[...] += jnp.dot(window, w_ref[k],
                                preferred_element_type=jnp.float32)

    y2 = acc_ref[...]
    y2_ref[...] = y2.reshape(1, h, w, pout).astype(y2_ref.dtype)
    stats_ref[...] = _channel_stats(y2)


def bn_add_relu_kernel(y_ref, res_ref, scale_ref, shift_ref, out_ref):
    out = (y_ref[...].astype(jnp.float32) * scale_ref[...] + shift_ref[...]
           + res_ref[...])
    out_ref[...] = jnp.maximum(out, 0.0).astype(out_ref.dtype)


# --------------------------------- wrapper -----------------------------------
def _bn_affine(partial_stats, gamma, beta, tile_count):
    """Chan-merge per-tile (sum, M2) partials into per-channel scale/shift."""
    sums = partial_stats[:, 0, :]                              # (nt, C)
    m2s = partial_stats[:, 1, :]                               # (nt, C)
    nt = sums.shape[0]
    total = nt * tile_count
    mean = jnp.sum(sums, axis=0) / total
    tile_mean = sums / tile_count
    m2 = jnp.sum(m2s, axis=0) + tile_count * jnp.sum((tile_mean - mean) ** 2, axis=0)
    var = jnp.maximum(m2 / total, 0.0)                         # biased var (BN training)
    inv = gamma * jax.lax.rsqrt(var + EPS)
    return inv.reshape(1, -1), (beta - mean * inv).reshape(1, -1)


def _choose_row_tile(m, row_bytes, budget_bytes=12 * 1024 * 1024):
    """Largest multiple-of-8 row tile dividing m that fits double-buffered VMEM,
    preferring >=2 grid steps so pipelining / megacore have work to overlap."""
    tiles = [t for t in (1024, 512, 256, 128, 64, 32, 16, 8)
             if 2 * t * row_bytes <= budget_bytes]
    for t in tiles:
        if m % t == 0 and m // t >= 2:
            return t
    for t in tiles:
        if m % t == 0:
            return t
    # TODO(synk): awkward m with no multiple-of-8 divisor -> single untiled block
    # (full generality would need a pl.cdiv grid with a masked tail).
    return m


def bottleneck_forward_nhwc(x, params):
    """NHWC in, NHWC out. params carry bf16 matmul-layout weights + f32 BN params."""
    n, h, w, cin = x.shape
    p = params["w1"].shape[1]
    cout = params["w3"].shape[1]
    assert cin == cout, "downsample=None requires inplanes == planes * 4"
    m = n * h * w
    # Worst-case per-row VMEM across the row-tiled stages (stage-1 read + stage-4 rmw).
    row_bytes = 4 * cin + 2 * p + 2 * cout + 4 * cout + 4 * cout
    tm = _choose_row_tile(m, row_bytes)
    nt = m // tm
    x2d = x.reshape(m, cin)

    # ---- stage 1: conv1 (1x1) + BN1 partial stats ----------------------------
    y1, st1 = pl.pallas_call(
        conv1x1_stats_kernel,
        grid=(nt,),
        in_specs=[pl.BlockSpec((tm, cin), lambda i: (i, 0)),
                  pl.BlockSpec((cin, p), lambda i: (0, 0))],
        out_specs=(pl.BlockSpec((tm, p), lambda i: (i, 0)),
                   pl.BlockSpec((1, 2, p), lambda i: (i, 0, 0))),
        out_shape=(jax.ShapeDtypeStruct((m, p), jnp.bfloat16),
                   jax.ShapeDtypeStruct((nt, 2, p), jnp.float32)),
        compiler_params=_COMPILER_PARAMS,
    )(x2d, params["w1"])
    scale1, shift1 = _bn_affine(st1, params["g1"], params["b1"], tm)

    # ---- stage 2: BN1+ReLU, conv2 (3x3, 9 accumulated matmuls) + BN2 stats ---
    y2, st2 = pl.pallas_call(
        bn_relu_conv3x3_stats_kernel,
        grid=(n,),
        in_specs=[pl.BlockSpec((1, h, w, p), lambda i: (i, 0, 0, 0)),
                  pl.BlockSpec((1, p), lambda i: (0, 0)),
                  pl.BlockSpec((1, p), lambda i: (0, 0)),
                  pl.BlockSpec((9, p, p), lambda i: (0, 0, 0))],
        out_specs=(pl.BlockSpec((1, h, w, p), lambda i: (i, 0, 0, 0)),
                   pl.BlockSpec((1, 2, p), lambda i: (i, 0, 0))),
        out_shape=(jax.ShapeDtypeStruct((n, h, w, p), jnp.bfloat16),
                   jax.ShapeDtypeStruct((n, 2, p), jnp.float32)),
        scratch_shapes=[pltpu.VMEM((h + 2, w + 2, p), jnp.bfloat16),
                        pltpu.VMEM((h * w, p), jnp.float32)],
        compiler_params=_COMPILER_PARAMS,
    )(y1.reshape(n, h, w, p), scale1, shift1, params["w2col"])
    scale2, shift2 = _bn_affine(st2, params["g2"], params["b2"], h * w)

    # ---- stage 3: BN2+ReLU, conv3 (1x1) + BN3 partial stats ------------------
    y3, st3 = pl.pallas_call(
        bn_relu_conv1x1_stats_kernel,
        grid=(nt,),
        in_specs=[pl.BlockSpec((tm, p), lambda i: (i, 0)),
                  pl.BlockSpec((1, p), lambda i: (0, 0)),
                  pl.BlockSpec((1, p), lambda i: (0, 0)),
                  pl.BlockSpec((p, cout), lambda i: (0, 0))],
        out_specs=(pl.BlockSpec((tm, cout), lambda i: (i, 0)),
                   pl.BlockSpec((1, 2, cout), lambda i: (i, 0, 0))),
        out_shape=(jax.ShapeDtypeStruct((m, cout), jnp.bfloat16),
                   jax.ShapeDtypeStruct((nt, 2, cout), jnp.float32)),
        compiler_params=_COMPILER_PARAMS,
    )(y2.reshape(m, p), scale2, shift2, params["w3"])
    scale3, shift3 = _bn_affine(st3, params["g3"], params["b3"], tm)

    # ---- stage 4: BN3 + residual add + ReLU ----------------------------------
    out2d = pl.pallas_call(
        bn_add_relu_kernel,
        grid=(nt,),
        in_specs=[pl.BlockSpec((tm, cout), lambda i: (i, 0)),
                  pl.BlockSpec((tm, cout), lambda i: (i, 0)),
                  pl.BlockSpec((1, cout), lambda i: (0, 0)),
                  pl.BlockSpec((1, cout), lambda i: (0, 0))],
        out_specs=pl.BlockSpec((tm, cout), lambda i: (i, 0)),
        out_shape=jax.ShapeDtypeStruct((m, cout), x.dtype),
        compiler_params=_COMPILER_PARAMS,
    )(y3, x2d, scale3, shift3)
    return out2d.reshape(n, h, w, cout)


def bottleneck_forward_nchw(x_nchw, params):
    """PyTorch-layout adapter. In a full NHWC model these transposes disappear."""
    x = jnp.transpose(x_nchw, (0, 2, 3, 1))
    return jnp.transpose(bottleneck_forward_nhwc(x, params), (0, 3, 1, 2))


# ----------------------------- pure-JAX reference -----------------------------
def _conv(x_nchw, w_oihw, stride=1, pad=0):
    return jax.lax.conv_general_dilated(
        x_nchw, w_oihw, (stride, stride), [(pad, pad), (pad, pad)],
        dimension_numbers=("NCHW", "OIHW", "NCHW"),
        precision=jax.lax.Precision.HIGHEST,
    )


def _bn_ref(x_nchw, g, b):
    mean = jnp.mean(x_nchw, axis=(0, 2, 3), keepdims=True)
    var = jnp.mean((x_nchw - mean) ** 2, axis=(0, 2, 3), keepdims=True)
    return ((x_nchw - mean) * jax.lax.rsqrt(var + EPS) * g.reshape(1, -1, 1, 1)
            + b.reshape(1, -1, 1, 1))


def bottleneck_reference(x, p):
    out = jax.nn.relu(_bn_ref(_conv(x, p["w1"]), p["g1"], p["b1"]))
    out = jax.nn.relu(_bn_ref(_conv(out, p["w2"], pad=1), p["g2"], p["b2"]))
    out = _bn_ref(_conv(out, p["w3"]), p["g3"], p["b3"])
    return jax.nn.relu(out + x)


# ----------------------------------- main -------------------------------------
if __name__ == "__main__":
    key = jax.random.PRNGKey(0)
    N, planes = 2, 128
    inplanes = planes * 4          # 512 -> downsample=None is valid, lane-dense
    H = W = 16

    kx, k1, k2, k3 = jax.random.split(key, 4)
    x_nchw = jax.random.normal(kx, (N, inplanes, H, W), jnp.float32)

    # Torch-layout (OIHW) conv weights, deterministic init.
    w1_oihw = 0.1 * jax.random.normal(k1, (planes, inplanes, 1, 1), jnp.float32)
    w2_oihw = 0.1 * jax.random.normal(k2, (planes, planes, 3, 3), jnp.float32)
    w3_oihw = 0.1 * jax.random.normal(k3, (planes * 4, planes, 1, 1), jnp.float32)

    g1 = (1.0 + 0.20 * jnp.linspace(-1.0, 1.0, planes)).astype(jnp.float32)
    b1 = (0.10 * jnp.linspace(-1.0, 1.0, planes)).astype(jnp.float32)
    g2 = (1.0 - 0.15 * jnp.linspace(-1.0, 1.0, planes)).astype(jnp.float32)
    b2 = (-0.05 * jnp.linspace(-1.0, 1.0, planes)).astype(jnp.float32)
    g3 = (1.0 + 0.10 * jnp.linspace(-1.0, 1.0, planes * 4)).astype(jnp.float32)
    b3 = (0.05 * jnp.linspace(-1.0, 1.0, planes * 4)).astype(jnp.float32)

    # Kernel (matmul-layout) parameters; weights pre-cast to bf16 for the MXU.
    params = {
        "w1": jnp.transpose(w1_oihw[:, :, 0, 0]).astype(jnp.bfloat16),       # (Cin, P)
        "w2col": jnp.stack(
            [jnp.transpose(w2_oihw[:, :, k // 3, k % 3]) for k in range(9)], axis=0
        ).astype(jnp.bfloat16),                                              # (9, P, P)
        "w3": jnp.transpose(w3_oihw[:, :, 0, 0]).astype(jnp.bfloat16),       # (P, 4P)
        "g1": g1, "b1": b1, "g2": g2, "b2": b2, "g3": g3, "b3": b3,
    }
    params_ref = {
        "w1": w1_oihw, "w2": w2_oihw, "w3": w3_oihw,
        "g1": g1, "b1": b1, "g2": g2, "b2": b2, "g3": g3, "b3": b3,
    }

    # One-time layout change outside the block (kernel path is NHWC-native).
    x_nhwc = jnp.transpose(x_nchw, (0, 2, 3, 1))

    out_nhwc = jax.jit(bottleneck_forward_nhwc)(x_nhwc, params)
    out_nhwc = jax.block_until_ready(out_nhwc)

    ref_nhwc = jnp.transpose(bottleneck_reference(x_nchw, params_ref), (0, 2, 3, 1))
    ref_nhwc = jax.block_until_ready(ref_nhwc)

    assert out_nhwc.shape == (N, H, W, inplanes), out_nhwc.shape
    max_err = float(jnp.max(jnp.abs(out_nhwc - ref_nhwc)))
    mean_err = float(jnp.mean(jnp.abs(out_nhwc - ref_nhwc)))
    # bf16 MXU operands + bf16 inter-stage activations vs f32-HIGHEST reference
    # across three stacked convs; residual stays f32.
    assert max_err < 3e-1 and mean_err < 5e-2, (max_err, mean_err)

    print("KERNEL_OK")
</pallas_src>

<mosaic_0001>
module attributes {stable_mosaic.version = 11 : i64} {
  func.func @conv1x1_stats_kernel(%arg0: i32, %arg1: memref<256x512xf32, #tpu.memory_space<vmem>>, %arg2: memref<512x128xbf16, #tpu.memory_space<vmem>>, %arg3: memref<256x128xbf16, #tpu.memory_space<vmem>>, %arg4: memref<1x2x128xf32, #tpu.memory_space<vmem>>) attributes {dimension_semantics = [#tpu.dimension_semantics<parallel>], iteration_bounds = array<i64: 2>, scalar_prefetch = 0 : i64, scratch_operands = 0 : i64, tpu.core_type = #tpu.core_type<tc>, window_params = [{transform_indices = @transform_0, window_bounds = array<i64: 256, 512>}, {pipeline_mode = #tpu.pipeline_mode<synchronous>, transform_indices = @transform_1, window_bounds = array<i64: 512, 128>}, {transform_indices = @transform_2, window_bounds = array<i64: 256, 128>}, {transform_indices = @transform_3, window_bounds = array<i64: 1, 2, 128>}]} {
    %c0 = arith.constant 0 : index
    %c0_0 = arith.constant 0 : index
    %0 = vector.load %arg1[%c0, %c0_0] : memref<256x512xf32, #tpu.memory_space<vmem>>, vector<256x512xf32>
    %1 = arith.truncf %0 : vector<256x512xf32> to vector<256x512xbf16>
    %c0_1 = arith.constant 0 : index
    %c0_2 = arith.constant 0 : index
    %2 = vector.load %arg2[%c0_1, %c0_2] : memref<512x128xbf16, #tpu.memory_space<vmem>>, vector<512x128xbf16>
    %cst = arith.constant dense<0.000000e+00> : vector<256x128xf32>
    %3 = tpu.matmul %1, %2, %cst {dimension_numbers = #tpu.dot_dimension_numbers<[1], [0], [0], [1], [0, 0, 1, 1], [], []>} : vector<256x512xbf16>, vector<512x128xbf16>, vector<256x128xf32> -> vector<256x128xf32>
    %4 = arith.truncf %3 : vector<256x128xf32> to vector<256x128xbf16>
    %c0_3 = arith.constant 0 : index
    %c0_4 = arith.constant 0 : index
    %5 = vector.load %arg3[%c0_3, %c0_4] : memref<256x128xbf16, #tpu.memory_space<vmem>>, vector<256x128xbf16>
    tpu.vector_store %arg3[%c0_3, %c0_4], %4 {strides = array<i32>} : memref<256x128xbf16, #tpu.memory_space<vmem>>, vector<256x128xbf16>,
    %cst_5 = arith.constant dense<0.000000e+00> : vector<128xf32>
    %6 = vector.multi_reduction <add>, %3, %cst_5 [0] : vector<256x128xf32> to vector<128xf32>
    %7 = vector.shape_cast %6 : vector<128xf32> to vector<1x128xf32>
    %cst_6 = arith.constant 3.906250e-03 : f32
    %8 = vector.broadcast %cst_6 : f32 to vector<1x128xf32>
    %9 = arith.mulf %7, %8 : vector<1x128xf32>
    %10 = vector.broadcast %9 : vector<1x128xf32> to vector<256x128xf32>
    %11 = arith.subf %3, %10 : vector<256x128xf32>
    %12 = arith.mulf %11, %11 : vector<256x128xf32>
    %cst_7 = arith.constant dense<0.000000e+00> : vector<128xf32>
    %13 = vector.multi_reduction <add>, %12, %cst_7 [0] : vector<256x128xf32> to vector<128xf32>
    %14 = vector.shape_cast %13 : vector<128xf32> to vector<1x128xf32>
    %15 = tpu.concatenate %7, %14 in 0 : vector<1x128xf32>, vector<1x128xf32> -> vector<2x128xf32>
    %16 = vector.shape_cast %15 : vector<2x128xf32> to vector<1x2x128xf32>
    %c0_8 = arith.constant 0 : index
    %c0_9 = arith.constant 0 : index
    %c0_10 = arith.constant 0 : index
    %17 = vector.load %arg4[%c0_8, %c0_9, %c0_10] : memref<1x2x128xf32, #tpu.memory_space<vmem>>, vector<1x2x128xf32>
    tpu.vector_store %arg4[%c0_8, %c0_9, %c0_10], %16 {strides = array<i32>} : memref<1x2x128xf32, #tpu.memory_space<vmem>>, vector<1x2x128xf32>,
    return
  }
  func.func @transform_0(%arg0: i32) -> (i32, i32) {
    %c0_i32 = arith.constant 0 : i32
    %c0_i32_0 = arith.constant 0 : i32
    return %arg0, %c0_i32 : i32, i32
  }
  func.func @transform_1(%arg0: i32) -> (i32, i32) {
    %c0_i32 = arith.constant 0 : i32
    %c0_i32_0 = arith.constant 0 : i32
    %c0_i32_1 = arith.constant 0 : i32
    return %c0_i32, %c0_i32_0 : i32, i32
  }
  func.func @transform_2(%arg0: i32) -> (i32, i32) {
    %c0_i32 = arith.constant 0 : i32
    %c0_i32_0 = arith.constant 0 : i32
    return %arg0, %c0_i32 : i32, i32
  }
  func.func @transform_3(%arg0: i32) -> (i32, i32, i32) {
    %c0_i32 = arith.constant 0 : i32
    %c0_i32_0 = arith.constant 0 : i32
    %c0_i32_1 = arith.constant 0 : i32
    return %arg0, %c0_i32, %c0_i32_0 : i32, i32, i32
  }
}

module attributes {stable_mosaic.version = 11 : i64} {
  func.func @bn_relu_conv3x3_stats_kernel(%arg0: i32, %arg1: memref<1x16x16x128xbf16, #tpu.memory_space<vmem>>, %arg2: memref<1x128xf32, #tpu.memory_space<vmem>>, %arg3: memref<1x128xf32, #tpu.memory_space<vmem>>, %arg4: memref<9x128x128xbf16, #tpu.memory_space<vmem>>, %arg5: memref<1x16x16x128xbf16, #tpu.memory_space<vmem>>, %arg6: memref<1x2x128xf32, #tpu.memory_space<vmem>>, %arg7: memref<18x18x128xbf16, #tpu.memory_space<vmem>>, %arg8: memref<256x128xf32, #tpu.memory_space<vmem>>) attributes {dimension_semantics = [#tpu.dimension_semantics<parallel>], iteration_bounds = array<i64: 2>, scalar_prefetch = 0 : i64, scratch_operands = 2 : i64, tpu.core_type = #tpu.core_type<tc>, window_params = [{transform_indices = @transform_0, window_bounds = array<i64: 1, 16, 16, 128>}, {pipeline_mode = #tpu.pipeline_mode<synchronous>, transform_indices = @transform_1, window_bounds = array<i64: 1, 128>}, {pipeline_mode = #tpu.pipeline_mode<synchronous>, transform_indices = @transform_2, window_bounds = array<i64: 1, 128>}, {pipeline_mode = #tpu.pipeline_mode<synchronous>, transform_indices = @transform_3, window_bounds = array<i64: 9, 128, 128>}, {transform_indices = @transform_4, window_bounds = array<i64: 1, 16, 16, 128>}, {transform_indices = @transform_5, window_bounds = array<i64: 1, 2, 128>}]} {
    %c0 = arith.constant 0 : index
    %c0_0 = arith.constant 0 : index
    %c0_1 = arith.constant 0 : index
    %c0_2 = arith.constant 0 : index
    %0 = vector.load %arg1[%c0, %c0_0, %c0_1, %c0_2] : memref<1x16x16x128xbf16, #tpu.memory_space<vmem>>, vector<1x16x16x128xbf16>
    %1 = vector.shape_cast %0 : vector<1x16x16x128xbf16> to vector<16x16x128xbf16>
    %2 = arith.extf %1 : vector<16x16x128xbf16> to vector<16x16x128xf32>
    %c0_3 = arith.constant 0 : index
    %c0_4 = arith.constant 0 : index
    %3 = vector.load %arg2[%c0_3, %c0_4] : memref<1x128xf32, #tpu.memory_space<vmem>>, vector<1x128xf32>
    %4 = vector.shape_cast %3 : vector<1x128xf32> to vector<1x1x128xf32>
    %5 = vector.broadcast %4 : vector<1x1x128xf32> to vector<16x16x128xf32>
    %6 = arith.mulf %2, %5 : vector<16x16x128xf32>
    %c0_5 = arith.constant 0 : index
    %c0_6 = arith.constant 0 : index
    %7 = vector.load %arg3[%c0_5, %c0_6] : memref<1x128xf32, #tpu.memory_space<vmem>>, vector<1x128xf32>
    %8 = vector.shape_cast %7 : vector<1x128xf32> to vector<1x1x128xf32>
    %9 = vector.broadcast %8 : vector<1x1x128xf32> to vector<16x16x128xf32>
    %10 = arith.addf %6, %9 : vector<16x16x128xf32>
    %cst = arith.constant 0.000000e+00 : f32
    %11 = vector.broadcast %cst : f32 to vector<16x16x128xf32>
    %12 = arith.maximumf %10, %11 : vector<16x16x128xf32>
    %cst_7 = arith.constant 0.000000e+00 : bf16
    %13 = vector.broadcast %cst_7 : bf16 to vector<18x18x128xbf16>
    %c0_8 = arith.constant 0 : index
    %c0_9 = arith.constant 0 : index
    %c0_10 = arith.constant 0 : index
    %14 = vector.load %arg7[%c0_8, %c0_9, %c0_10] : memref<18x18x128xbf16, #tpu.memory_space<vmem>>, vector<18x18x128xbf16>
    tpu.vector_store %arg7[%c0_8, %c0_9, %c0_10], %13 {strides = array<i32>} : memref<18x18x128xbf16, #tpu.memory_space<vmem>>, vector<18x18x128xbf16>,
    %15 = arith.truncf %12 : vector<16x16x128xf32> to vector<16x16x128xbf16>
    %c1 = arith.constant 1 : index
    %c1_11 = arith.constant 1 : index
    %c0_12 = arith.constant 0 : index
    %16 = vector.load %arg7[%c1, %c1_11, %c0_12] : memref<18x18x128xbf16, #tpu.memory_space<vmem>>, vector<16x16x128xbf16>
    tpu.vector_store %arg7[%c1, %c1_11, %c0_12], %15 {strides = array<i32>} : memref<18x18x128xbf16, #tpu.memory_space<vmem>>, vector<16x16x128xbf16>,
    %cst_13 = arith.constant 0.000000e+00 : f32
    %17 = vector.broadcast %cst_13 : f32 to vector<256x128xf32>
    %c0_14 = arith.constant 0 : index
    %c0_15 = arith.constant 0 : index
    %18 = vector.load %arg8[%c0_14, %c0_15] : memref<256x128xf32, #tpu.memory_space<vmem>>, vector<256x128xf32>
    tpu.vector_store %arg8[%c0_14, %c0_15], %17 {strides = array<i32>} : memref<256x128xf32, #tpu.memory_space<vmem>>, vector<256x128xf32>,
    %c0_16 = arith.constant 0 : index
    %c0_17 = arith.constant 0 : index
    %c0_18 = arith.constant 0 : index
    %19 = vector.load %arg7[%c0_16, %c0_17, %c0_18] : memref<18x18x128xbf16, #tpu.memory_space<vmem>>, vector<16x16x128xbf16>
    %20 = vector.shape_cast %19 : vector<16x16x128xbf16> to vector<256x128xbf16>
    %c0_19 = arith.constant 0 : index
    %c0_20 = arith.constant 0 : index
    %21 = vector.load %arg8[%c0_19, %c0_20] : memref<256x128xf32, #tpu.memory_space<vmem>>, vector<256x128xf32>
    %c0_21 = arith.constant 0 : index
    %c0_22 = arith.constant 0 : index
    %c0_23 = arith.constant 0 : index
    %22 = vector.load %arg4[%c0_21, %c0_22, %c0_23] : memref<9x128x128xbf16, #tpu.memory_space<vmem>>, vector<1x128x128xbf16>
    %23 = vector.shape_cast %22 : vector<1x128x128xbf16> to vector<128x128xbf16>
    %cst_24 = arith.constant dense<0.000000e+00> : vector<256x128xf32>
    %24 = tpu.matmul %20, %23, %cst_24 {dimension_numbers = #tpu.dot_dimension_numbers<[1], [0], [0], [1], [0, 0, 1, 1], [], []>} : vector<256x128xbf16>, vector<128x128xbf16>, vector<256x128xf32> -> vector<256x128xf32>
    %25 = arith.addf %21, %24 : vector<256x128xf32>
    %c0_25 = arith.constant 0 : index
    %c0_26 = arith.constant 0 : index
    %26 = vector.load %arg8[%c0_25, %c0_26] : memref<256x128xf32, #tpu.memory_space<vmem>>, vector<256x128xf32>
    tpu.vector_store %arg8[%c0_25, %c0_26], %25 {strides = array<i32>} : memref<256x128xf32, #tpu.memory_space<vmem>>, vector<256x128xf32>,
    %c0_27 = arith.constant 0 : index
    %c1_28 = arith.constant 1 : index
    %c0_29 = arith.constant 0 : index
    %27 = vector.load %arg7[%c0_27, %c1_28, %c0_29] : memref<18x18x128xbf16, #tpu.memory_space<vmem>>, vector<16x16x128xbf16>
    %28 = vector.shape_cast %27 : vector<16x16x128xbf16> to vector<256x128xbf16>
    %c0_30 = arith.constant 0 : index
    %c0_31 = arith.constant 0 : index
    %29 = vector.load %arg8[%c0_30, %c0_31] : memref<256x128xf32, #tpu.memory_space<vmem>>, vector<256x128xf32>
    %c1_32 = arith.constant 1 : index
    %c0_33 = arith.constant 0 : index
    %c0_34 = arith.constant 0 : index
    %30 = vector.load %arg4[%c1_32, %c0_33, %c0_34] : memref<9x128x128xbf16, #tpu.memory_space<vmem>>, vector<1x128x128xbf16>
    %31 = vector.shape_cast %30 : vector<1x128x128xbf16> to vector<128x128xbf16>
    %cst_35 = arith.constant dense<0.000000e+00> : vector<256x128xf32>
    %32 = tpu.matmul %28, %31, %cst_35 {dimension_numbers = #tpu.dot_dimension_numbers<[1], [0], [0], [1], [0, 0, 1, 1], [], []>} : vector<256x128xbf16>, vector<128x128xbf16>, vector<256x128xf32> -> vector<256x128xf32>
    %33 = arith.addf %29, %32 : vector<256x128xf32>
    %c0_36 = arith.constant 0 : index
    %c0_37 = arith.constant 0 : index
    %34 = vector.load %arg8[%c0_36, %c0_37] : memref<256x128xf32, #tpu.memory_space<vmem>>, vector<256x128xf32>
    tpu.vector_store %arg8[%c0_36, %c0_37], %33 {strides = array<i32>} : memref<256x128xf32, #tpu.memory_space<vmem>>, vector<256x128xf32>,
    %c0_38 = arith.constant 0 : index
    %c2 = arith.constant 2 : index
    %c0_39 = arith.constant 0 : index
    %35 = vector.load %arg7[%c0_38, %c2, %c0_39] : memref<18x18x128xbf16, #tpu.memory_space<vmem>>, vector<16x16x128xbf16>
    %36 = vector.shape_cast %35 : vector<16x16x128xbf16> to vector<256x128xbf16>
    %c0_40 = arith.constant 0 : index
    %c0_41 = arith.constant 0 : index
    %37 = vector.load %arg8[%c0_40, %c0_41] : memref<256x128xf32, #tpu.memory_space<vmem>>, vector<256x128xf32>
    %c2_42 = arith.constant 2 : index
    %c0_43 = arith.constant 0 : index
    %c0_44 = arith.constant 0 : index
    %38 = vector.load %arg4[%c2_42, %c0_43, %c0_44] : memref<9x128x128xbf16, #tpu.memory_space<vmem>>, vector<1x128x128xbf16>
    %39 = vector.shape_cast %38 : vector<1x128x128xbf16> to vector<128x128xbf16>
    %cst_45 = arith.constant dense<0.000000e+00> : vector<256x128xf32>
    %40 = tpu.matmul %36, %39, %cst_45 {dimension_numbers = #tpu.dot_dimension_numbers<[1], [0], [0], [1], [0, 0, 1, 1], [], []>} : vector<256x128xbf16>, vector<128x128xbf16>, vector<256x128xf32> -> vector<256x128xf32>
    %41 = arith.addf %37, %40 : vector<256x128xf32>
    %c0_46 = arith.constant 0 : index
    %c0_47 = arith.constant 0 : index
    %42 = vector.load %arg8[%c0_46, %c0_47] : memref<256x128xf32, #tpu.memory_space<vmem>>, vector<256x128xf32>
    tpu.vector_store %arg8[%c0_46, %c0_47], %41 {strides = array<i32>} : memref<256x128xf32, #tpu.memory_space<vmem>>, vector<256x128xf32>,
    %c1_48 = arith.constant 1 : index
    %c0_49 = arith.constant 0 : index
    %c0_50 = arith.constant 0 : index
    %43 = vector.load %arg7[%c1_48, %c0_49, %c0_50] : memref<18x18x128xbf16, #tpu.memory_space<vmem>>, vector<16x16x128xbf16>
    %44 = vector.shape_cast %43 : vector<16x16x128xbf16> to vector<256x128xbf16>
    %c0_51 = arith.constant 0 : index
    %c0_52 = arith.constant 0 : index
    %45 = vector.load %arg8[%c0_51, %c0_52] : memref<256x128xf32, #tpu.memory_space<vmem>>, vector<256x128xf32>
    %c3 = arith.constant 3 : index
    %c0_53 = arith.constant 0 : index
    %c0_54 = arith.constant 0 : index
    %46 = vector.load %arg4[%c3, %c0_53, %c0_54] : memref<9x128x128xbf16, #tpu.memory_space<vmem>>, vector<1x128x128xbf16>
    %47 = vector.shape_cast %46 : vector<1x128x128xbf16> to vector<128x128xbf16>
    %cst_55 = arith.constant dense<0.000000e+00> : vector<256x128xf32>
    %48 = tpu.matmul %44, %47, %cst_55 {dimension_numbers = #tpu.dot_dimension_numbers<[1], [0], [0], [1], [0, 0, 1, 1], [], []>} : vector<256x128xbf16>, vector<128x128xbf16>, vector<256x128xf32> -> vector<256x128xf32>
    %49 = arith.addf %45, %48 : vector<256x128xf32>
    %c0_56 = arith.constant 0 : index
    %c0_57 = arith.constant 0 : index
    %50 = vector.load %arg8[%c0_56, %c0_57] : memref<256x128xf32, #tpu.memory_space<vmem>>, vector<256x128xf32>
    tpu.vector_store %arg8[%c0_56, %c0_57], %49 {strides = array<i32>} : memref<256x128xf32, #tpu.memory_space<vmem>>, vector<256x128xf32>,
    %c1_58 = arith.constant 1 : index
    %c1_59 = arith.constant 1 : index
    %c0_60 = arith.constant 0 : index
    %51 = vector.load %arg7[%c1_58, %c1_59, %c0_60] : memref<18x18x128xbf16, #tpu.memory_space<vmem>>, vector<16x16x128xbf16>
    %52 = vector.shape_cast %51 : vector<16x16x128xbf16> to vector<256x128xbf16>
    %c0_61 = arith.constant 0 : index
    %c0_62 = arith.constant 0 : index
    %53 = vector.load %arg8[%c0_61, %c0_62] : memref<256x128xf32, #tpu.memory_space<vmem>>, vector<256x128xf32>
    %c4 = arith.constant 4 : index
    %c0_63 = arith.constant 0 : index
    %c0_64 = arith.constant 0 : index
    %54 = vector.load %arg4[%c4, %c0_63, %c0_64] : memref<9x128x128xbf16, #tpu.memory_space<vmem>>, vector<1x128x128xbf16>
    %55 = vector.shape_cast %54 : vector<1x128x128xbf16> to vector<128x128xbf16>
    %cst_65 = arith.constant dense<0.000000e+00> : vector<256x128xf32>
    %56 = tpu.matmul %52, %55, %cst_65 {dimension_numbers = #tpu.dot_dimension_numbers<[1], [0], [0], [1], [0, 0, 1, 1], [], []>} : vector<256x128xbf16>, vector<128x128xbf16>, vector<256x128xf32> -> vector<256x128xf32>
    %57 = arith.addf %53, %56 : vector<256x128xf32>
    %c0_66 = arith.constant 0 : index
    %c0_67 = arith.constant 0 : index
    %58 = vector.load %arg8[%c0_66, %c0_67] : memref<256x128xf32, #tpu.memory_space<vmem>>, vector<256x128xf32>
    tpu.vector_store %arg8[%c0_66, %c0_67], %57 {strides = array<i32>} : memref<256x128xf32, #tpu.memory_space<vmem>>, vector<256x128xf32>,
    %c1_68 = arith.constant 1 : index
    %c2_69 = arith.constant 2 : index
    %c0_70 = arith.constant 0 : index
    %59 = vector.load %arg7[%c1_68, %c2_69, %c0_70] : memref<18x18x128xbf16, #tpu.memory_space<vmem>>, vector<16x16x128xbf16>
    %60 = vector.shape_cast %59 : vector<16x16x128xbf16> to vector<256x128xbf16>
    %c0_71 = arith.constant 0 : index
    %c0_72 = arith.constant 0 : index
    %61 = vector.load %arg8[%c0_71, %c0_72] : memref<256x128xf32, #tpu.memory_space<vmem>>, vector<256x128xf32>
    %c5 = arith.constant 5 : index
    %c0_73 = arith.constant 0 : index
    %c0_74 = arith.constant 0 : index
    %62 = vector.load %arg4[%c5, %c0_73, %c0_74] : memref<9x128x128xbf16, #tpu.memory_space<vmem>>, vector<1x128x128xbf16>
    %63 = vector.shape_cast %62 : vector<1x128x128xbf16> to vector<128x128xbf16>
    %cst_75 = arith.constant dense<0.000000e+00> : vector<256x128xf32>
    %64 = tpu.matmul %60, %63, %cst_75 {dimension_numbers = #tpu.dot_dimension_numbers<[1], [0], [0], [1], [0, 0, 1, 1], [], []>} : vector<256x128xbf16>, vector<128x128xbf16>, vector<256x128xf32> -> vector<256x128xf32>
    %65 = arith.addf %61, %64 : vector<256x128xf32>
    %c0_76 = arith.constant 0 : index
    %c0_77 = arith.constant 0 : index
    %66 = vector.load %arg8[%c0_76, %c0_77] : memref<256x128xf32, #tpu.memory_space<vmem>>, vector<256x128xf32>
    tpu.vector_store %arg8[%c0_76, %c0_77], %65 {strides = array<i32>} : memref<256x128xf32, #tpu.memory_space<vmem>>, vector<256x128xf32>,
    %c2_78 = arith.constant 2 : index
    %c0_79 = arith.constant 0 : index
    %c0_80 = arith.constant 0 : index
    %67 = vector.load %arg7[%c2_78, %c0_79, %c0_80] : memref<18x18x128xbf16, #tpu.memory_space<vmem>>, vector<16x16x128xbf16>
    %68 = vector.shape_cast %67 : vector<16x16x128xbf16> to vector<256x128xbf16>
    %c0_81 = arith.constant 0 : index
    %c0_82 = arith.constant 0 : index
    %69 = vector.load %arg8[%c0_81, %c0_82] : memref<256x128xf32, #tpu.memory_space<vmem>>, vector<256x128xf32>
    %c6 = arith.constant 6 : index
    %c0_83 = arith.constant 0 : index
    %c0_84 = arith.constant 0 : index
    %70 = vector.load %arg4[%c6, %c0_83, %c0_84] : memref<9x128x128xbf16, #tpu.memory_space<vmem>>, vector<1x128x128xbf16>
    %71 = vector.shape_cast %70 : vector<1x128x128xbf16> to vector<128x128xbf16>
    %cst_85 = arith.constant dense<0.000000e+00> : vector<256x128xf32>
    %72 = tpu.matmul %68, %71, %cst_85 {dimension_numbers = #tpu.dot_dimension_numbers<[1], [0], [0], [1], [0, 0, 1, 1], [], []>} : vector<256x128xbf16>, vector<128x128xbf16>, vector<256x128xf32> -> vector<256x128xf32>
    %73 = arith.addf %69, %72 : vector<256x128xf32>
    %c0_86 = arith.constant 0 : index
    %c0_87 = arith.constant 0 : index
    %74 = vector.load %arg8[%c0_86, %c0_87] : memref<256x128xf32, #tpu.memory_space<vmem>>, vector<256x128xf32>
    tpu.vector_store %arg8[%c0_86, %c0_87], %73 {strides = array<i32>} : memref<256x128xf32, #tpu.memory_space<vmem>>, vector<256x128xf32>,
    %c2_88 = arith.constant 2 : index
    %c1_89 = arith.constant 1 : index
    %c0_90 = arith.constant 0 : index
    %75 = vector.load %arg7[%c2_88, %c1_89, %c0_90] : memref<18x18x128xbf16, #tpu.memory_space<vmem>>, vector<16x16x128xbf16>
    %76 = vector.shape_cast %75 : vector<16x16x128xbf16> to vector<256x128xbf16>
    %c0_91 = arith.constant 0 : index
    %c0_92 = arith.constant 0 : index
    %77 = vector.load %arg8[%c0_91, %c0_92] : memref<256x128xf32, #tpu.memory_space<vmem>>, vector<256x128xf32>
    %c7 = arith.constant 7 : index
    %c0_93 = arith.constant 0 : index
    %c0_94 = arith.constant 0 : index
    %78 = vector.load %arg4[%c7, %c0_93, %c0_94] : memref<9x128x128xbf16, #tpu.memory_space<vmem>>, vector<1x128x128xbf16>
    %79 = vector.shape_cast %78 : vector<1x128x128xbf16> to vector<128x128xbf16>
    %cst_95 = arith.constant dense<0.000000e+00> : vector<256x128xf32>
    %80 = tpu.matmul %76, %79, %cst_95 {dimension_numbers = #tpu.dot_dimension_numbers<[1], [0], [0], [1], [0, 0, 1, 1], [], []>} : vector<256x128xbf16>, vector<128x128xbf16>, vector<256x128xf32> -> vector<256x128xf32>
    %81 = arith.addf %77, %80 : vector<256x128xf32>
    %c0_96 = arith.constant 0 : index
    %c0_97 = arith.constant 0 : index
    %82 = vector.load %arg8[%c0_96, %c0_97] : memref<256x128xf32, #tpu.memory_space<vmem>>, vector<256x128xf32>
    tpu.vector_store %arg8[%c0_96, %c0_97], %81 {strides = array<i32>} : memref<256x128xf32, #tpu.memory_space<vmem>>, vector<256x128xf32>,
    %c2_98 = arith.constant 2 : index
    %c2_99 = arith.constant 2 : index
    %c0_100 = arith.constant 0 : index
    %83 = vector.load %arg7[%c2_98, %c2_99, %c0_100] : memref<18x18x128xbf16, #tpu.memory_space<vmem>>, vector<16x16x128xbf16>
    %84 = vector.shape_cast %83 : vector<16x16x128xbf16> to vector<256x128xbf16>
    %c0_101 = arith.constant 0 : index
    %c0_102 = arith.constant 0 : index
    %85 = vector.load %arg8[%c0_101, %c0_102] : memref<256x128xf32, #tpu.memory_space<vmem>>, vector<256x128xf32>
    %c8 = arith.constant 8 : index
    %c0_103 = arith.constant 0 : index
    %c0_104 = arith.constant 0 : index
    %86 = vector.load %arg4[%c8, %c0_103, %c0_104] : memref<9x128x128xbf16, #tpu.memory_space<vmem>>, vector<1x128x128xbf16>
    %87 = vector.shape_cast %86 : vector<1x128x128xbf16> to vector<128x128xbf16>
    %cst_105 = arith.constant dense<0.000000e+00> : vector<256x128xf32>
    %88 = tpu.matmul %84, %87, %cst_105 {dimension_numbers = #tpu.dot_dimension_numbers<[1], [0], [0], [1], [0, 0, 1, 1], [], []>} : vector<256x128xbf16>, vector<128x128xbf16>, vector<256x128xf32> -> vector<256x128xf32>
    %89 = arith.addf %85, %88 : vector<256x128xf32>
    %c0_106 = arith.constant 0 : index
    %c0_107 = arith.constant 0 : index
    %90 = vector.load %arg8[%c0_106, %c0_107] : memref<256x128xf32, #tpu.memory_space<vmem>>, vector<256x128xf32>
    tpu.vector_store %arg8[%c0_106, %c0_107], %89 {strides = array<i32>} : memref<256x128xf32, #tpu.memory_space<vmem>>, vector<256x128xf32>,
    %c0_108 = arith.constant 0 : index
    %c0_109 = arith.constant 0 : index
    %91 = vector.load %arg8[%c0_108, %c0_109] : memref<256x128xf32, #tpu.memory_space<vmem>>, vector<256x128xf32>
    %92 = vector.shape_cast %91 : vector<256x128xf32> to vector<1x16x16x128xf32>
    %93 = arith.truncf %92 : vector<1x16x16x128xf32> to vector<1x16x16x128xbf16>
    %c0_110 = arith.constant 0 : index
    %c0_111 = arith.constant 0 : index
    %c0_112 = arith.constant 0 : index
    %c0_113 = arith.constant 0 : index
    %94 = vector.load %arg5[%c0_110, %c0_111, %c0_112, %c0_113] : memref<1x16x16x128xbf16, #tpu.memory_space<vmem>>, vector<1x16x16x128xbf16>
    tpu.vector_store %arg5[%c0_110, %c0_111, %c0_112, %c0_113], %93 {strides = array<i32>} : memref<1x16x16x128xbf16, #tpu.memory_space<vmem>>, vector<1x16x16x128xbf16>,
    %cst_114 = arith.constant dense<0.000000e+00> : vector<128xf32>
    %95 = vector.multi_reduction <add>, %91, %cst_114 [0] : vector<256x128xf32> to vector<128xf32>
    %96 = vector.shape_cast %95 : vector<128xf32> to vector<1x128xf32>
    %cst_115 = arith.constant 3.906250e-03 : f32
    %97 = vector.broadcast %cst_115 : f32 to vector<1x128xf32>
    %98 = arith.mulf %96, %97 : vector<1x128xf32>
    %99 = vector.broadcast %98 : vector<1x128xf32> to vector<256x128xf32>
    %100 = arith.subf %91, %99 : vector<256x128xf32>
    %101 = arith.mulf %100, %100 : vector<256x128xf32>
    %cst_116 = arith.constant dense<0.000000e+00> : vector<128xf32>
    %102 = vector.multi_reduction <add>, %101, %cst_116 [0] : vector<256x128xf32> to vector<128xf32>
    %103 = vector.shape_cast %102 : vector<128xf32> to vector<1x128xf32>
    %104 = tpu.concatenate %96, %103 in 0 : vector<1x128xf32>, vector<1x128xf32> -> vector<2x128xf32>
    %105 = vector.shape_cast %104 : vector<2x128xf32> to vector<1x2x128xf32>
    %c0_117 = arith.constant 0 : index
    %c0_118 = arith.constant 0 : index
    %c0_119 = arith.constant 0 : index
    %106 = vector.load %arg6[%c0_117, %c0_118, %c0_119] : memref<1x2x128xf32, #tpu.memory_space<vmem>>, vector<1x2x128xf32>
    tpu.vector_store %arg6[%c0_117, %c0_118, %c0_119], %105 {strides = array<i32>} : memref<1x2x128xf32, #tpu.memory_space<vmem>>, vector<1x2x128xf32>,
    return
  }
  func.func @transform_0(%arg0: i32) -> (i32, i32, i32, i32) {
    %c0_i32 = arith.constant 0 : i32
    %c0_i32_0 = arith.constant 0 : i32
    %c0_i32_1 = arith.constant 0 : i32
    %c0_i32_2 = arith.constant 0 : i32
    return %arg0, %c0_i32, %c0_i32_0, %c0_i32_1 : i32, i32, i32, i32
  }
  func.func @transform_1(%arg0: i32) -> (i32, i32) {
    %c0_i32 = arith.constant 0 : i32
    %c0_i32_0 = arith.constant 0 : i32
    %c0_i32_1 = arith.constant 0 : i32
    return %c0_i32, %c0_i32_0 : i32, i32
  }
  func.func @transform_2(%arg0: i32) -> (i32, i32) {
    %c0_i32 = arith.constant 0 : i32
    %c0_i32_0 = arith.constant 0 : i32
    %c0_i32_1 = arith.constant 0 : i32
    return %c0_i32, %c0_i32_0 : i32, i32
  }
  func.func @transform_3(%arg0: i32) -> (i32, i32, i32) {
    %c0_i32 = arith.constant 0 : i32
    %c0_i32_0 = arith.constant 0 : i32
    %c0_i32_1 = arith.constant 0 : i32
    %c0_i32_2 = arith.constant 0 : i32
    return %c0_i32, %c0_i32_0, %c0_i32_1 : i32, i32, i32
  }
  func.func @transform_4(%arg0: i32) -> (i32, i32, i32, i32) {
    %c0_i32 = arith.constant 0 : i32
    %c0_i32_0 = arith.constant 0 : i32
    %c0_i32_1 = arith.constant 0 : i32
    %c0_i32_2 = arith.constant 0 : i32
    return %arg0, %c0_i32, %c0_i32_0, %c0_i32_1 : i32, i32, i32, i32
  }
  func.func @transform_5(%arg0: i32) -> (i32, i32, i32) {
    %c0_i32 = arith.constant 0 : i32
    %c0_i32_0 = arith.constant 0 : i32
    %c0_i32_1 = arith.constant 0 : i32
    return %arg0, %c0_i32, %c0_i32_0 : i32, i32, i32
  }
}

module attributes {stable_mosaic.version = 11 : i64} {
  func.func @bn_relu_conv1x1_stats_kernel(%arg0: i32, %arg1: memref<256x128xbf16, #tpu.memory_space<vmem>>, %arg2: memref<1x128xf32, #tpu.memory_space<vmem>>, %arg3: memref<1x128xf32, #tpu.memory_space<vmem>>, %arg4: memref<128x512xbf16, #tpu.memory_space<vmem>>, %arg5: memref<256x512xbf16, #tpu.memory_space<vmem>>, %arg6: memref<1x2x512xf32, #tpu.memory_space<vmem>>) attributes {dimension_semantics = [#tpu.dimension_semantics<parallel>], iteration_bounds = array<i64: 2>, scalar_prefetch = 0 : i64, scratch_operands = 0 : i64, tpu.core_type = #tpu.core_type<tc>, window_params = [{transform_indices = @transform_0, window_bounds = array<i64: 256, 128>}, {pipeline_mode = #tpu.pipeline_mode<synchronous>, transform_indices = @transform_1, window_bounds = array<i64: 1, 128>}, {pipeline_mode = #tpu.pipeline_mode<synchronous>, transform_indices = @transform_2, window_bounds = array<i64: 1, 128>}, {pipeline_mode = #tpu.pipeline_mode<synchronous>, transform_indices = @transform_3, window_bounds = array<i64: 128, 512>}, {transform_indices = @transform_4, window_bounds = array<i64: 256, 512>}, {transform_indices = @transform_5, window_bounds = array<i64: 1, 2, 512>}]} {
    %c0 = arith.constant 0 : index
    %c0_0 = arith.constant 0 : index
    %0 = vector.load %arg1[%c0, %c0_0] : memref<256x128xbf16, #tpu.memory_space<vmem>>, vector<256x128xbf16>
    %1 = arith.extf %0 : vector<256x128xbf16> to vector<256x128xf32>
    %c0_1 = arith.constant 0 : index
    %c0_2 = arith.constant 0 : index
    %2 = vector.load %arg2[%c0_1, %c0_2] : memref<1x128xf32, #tpu.memory_space<vmem>>, vector<1x128xf32>
    %3 = vector.broadcast %2 : vector<1x128xf32> to vector<256x128xf32>
    %4 = arith.mulf %1, %3 : vector<256x128xf32>
    %c0_3 = arith.constant 0 : index
    %c0_4 = arith.constant 0 : index
    %5 = vector.load %arg3[%c0_3, %c0_4] : memref<1x128xf32, #tpu.memory_space<vmem>>, vector<1x128xf32>
    %6 = vector.broadcast %5 : vector<1x128xf32> to vector<256x128xf32>
    %7 = arith.addf %4, %6 : vector<256x128xf32>
    %cst = arith.constant 0.000000e+00 : f32
    %8 = vector.broadcast %cst : f32 to vector<256x128xf32>
    %9 = arith.maximumf %7, %8 : vector<256x128xf32>
    %10 = arith.truncf %9 : vector<256x128xf32> to vector<256x128xbf16>
    %c0_5 = arith.constant 0 : index
    %c0_6 = arith.constant 0 : index
    %11 = vector.load %arg4[%c0_5, %c0_6] : memref<128x512xbf16, #tpu.memory_space<vmem>>, vector<128x512xbf16>
    %cst_7 = arith.constant dense<0.000000e+00> : vector<256x512xf32>
    %12 = tpu.matmul %10, %11, %cst_7 {dimension_numbers = #tpu.dot_dimension_numbers<[1], [0], [0], [1], [0, 0, 1, 1], [], []>} : vector<256x128xbf16>, vector<128x512xbf16>, vector<256x512xf32> -> vector<256x512xf32>
    %13 = arith.truncf %12 : vector<256x512xf32> to vector<256x512xbf16>
    %c0_8 = arith.constant 0 : index
    %c0_9 = arith.constant 0 : index
    %14 = vector.load %arg5[%c0_8, %c0_9] : memref<256x512xbf16, #tpu.memory_space<vmem>>, vector<256x512xbf16>
    tpu.vector_store %arg5[%c0_8, %c0_9], %13 {strides = array<i32>} : memref<256x512xbf16, #tpu.memory_space<vmem>>, vector<256x512xbf16>,
    %cst_10 = arith.constant dense<0.000000e+00> : vector<512xf32>
    %15 = vector.multi_reduction <add>, %12, %cst_10 [0] : vector<256x512xf32> to vector<512xf32>
    %16 = vector.shape_cast %15 : vector<512xf32> to vector<1x512xf32>
    %cst_11 = arith.constant 3.906250e-03 : f32
    %17 = vector.broadcast %cst_11 : f32 to vector<1x512xf32>
    %18 = arith.mulf %16, %17 : vector<1x512xf32>
    %19 = vector.broadcast %18 : vector<1x512xf32> to vector<256x512xf32>
    %20 = arith.subf %12, %19 : vector<256x512xf32>
    %21 = arith.mulf %20, %20 : vector<256x512xf32>
    %cst_12 = arith.constant dense<0.000000e+00> : vector<512xf32>
    %22 = vector.multi_reduction <add>, %21, %cst_12 [0] : vector<256x512xf32> to vector<512xf32>
    %23 = vector.shape_cast %22 : vector<512xf32> to vector<1x512xf32>
    %24 = tpu.concatenate %16, %23 in 0 : vector<1x512xf32>, vector<1x512xf32> -> vector<2x512xf32>
    %25 = vector.shape_cast %24 : vector<2x512xf32> to vector<1x2x512xf32>
    %c0_13 = arith.constant 0 : index
    %c0_14 = arith.constant 0 : index
    %c0_15 = arith.constant 0 : index
    %26 = vector.load %arg6[%c0_13, %c0_14, %c0_15] : memref<1x2x512xf32, #tpu.memory_space<vmem>>, vector<1x2x512xf32>
    tpu.vector_store %arg6[%c0_13, %c0_14, %c0_15], %25 {strides = array<i32>} : memref<1x2x512xf32, #tpu.memory_space<vmem>>, vector<1x2x512xf32>,
    return
  }
  func.func @transform_0(%arg0: i32) -> (i32, i32) {
    %c0_i32 = arith.constant 0 : i32
    %c0_i32_0 = arith.constant 0 : i32
    return %arg0, %c0_i32 : i32, i32
  }
  func.func @transform_1(%arg0: i32) -> (i32, i32) {
    %c0_i32 = arith.constant 0 : i32
    %c0_i32_0 = arith.constant 0 : i32
    %c0_i32_1 = arith.constant 0 : i32
    return %c0_i32, %c0_i32_0 : i32, i32
  }
  func.func @transform_2(%arg0: i32) -> (i32, i32) {
    %c0_i32 = arith.constant 0 : i32
    %c0_i32_0 = arith.constant 0 : i32
    %c0_i32_1 = arith.constant 0 : i32
    return %c0_i32, %c0_i32_0 : i32, i32
  }
  func.func @transform_3(%arg0: i32) -> (i32, i32) {
    %c0_i32 = arith.constant 0 : i32
    %c0_i32_0 = arith.constant 0 : i32
    %c0_i32_1 = arith.constant 0 : i32
    return %c0_i32, %c0_i32_0 : i32, i32
  }
  func.func @transform_4(%arg0: i32) -> (i32, i32) {
    %c0_i32 = arith.constant 0 : i32
    %c0_i32_0 = arith.constant 0 : i32
    return %arg0, %c0_i32 : i32, i32
  }
  func.func @transform_5(%arg0: i32) -> (i32, i32, i32) {
    %c0_i32 = arith.constant 0 : i32
    %c0_i32_0 = arith.constant 0 : i32
    %c0_i32_1 = arith.constant 0 : i32
    return %arg0, %c0_i32, %c0_i32_0 : i32, i32, i32
  }
}

module attributes {stable_mosaic.version = 11 : i64} {
  func.func @bn_add_relu_kernel(%arg0: i32, %arg1: memref<256x512xbf16, #tpu.memory_space<vmem>>, %arg2: memref<256x512xf32, #tpu.memory_space<vmem>>, %arg3: memref<1x512xf32, #tpu.memory_space<vmem>>, %arg4: memref<1x512xf32, #tpu.memory_space<vmem>>, %arg5: memref<256x512xf32, #tpu.memory_space<vmem>>) attributes {dimension_semantics = [#tpu.dimension_semantics<parallel>], iteration_bounds = array<i64: 2>, scalar_prefetch = 0 : i64, scratch_operands = 0 : i64, tpu.core_type = #tpu.core_type<tc>, window_params = [{transform_indices = @transform_0, window_bounds = array<i64: 256, 512>}, {transform_indices = @transform_1, window_bounds = array<i64: 256, 512>}, {pipeline_mode = #tpu.pipeline_mode<synchronous>, transform_indices = @transform_2, window_bounds = array<i64: 1, 512>}, {pipeline_mode = #tpu.pipeline_mode<synchronous>, transform_indices = @transform_3, window_bounds = array<i64: 1, 512>}, {transform_indices = @transform_4, window_bounds = array<i64: 256, 512>}]} {
    %c0 = arith.constant 0 : index
    %c0_0 = arith.constant 0 : index
    %0 = vector.load %arg1[%c0, %c0_0] : memref<256x512xbf16, #tpu.memory_space<vmem>>, vector<256x512xbf16>
    %1 = arith.extf %0 : vector<256x512xbf16> to vector<256x512xf32>
    %c0_1 = arith.constant 0 : index
    %c0_2 = arith.constant 0 : index
    %2 = vector.load %arg3[%c0_1, %c0_2] : memref<1x512xf32, #tpu.memory_space<vmem>>, vector<1x512xf32>
    %3 = vector.broadcast %2 : vector<1x512xf32> to vector<256x512xf32>
    %4 = arith.mulf %1, %3 : vector<256x512xf32>
    %c0_3 = arith.constant 0 : index
    %c0_4 = arith.constant 0 : index
    %5 = vector.load %arg4[%c0_3, %c0_4] : memref<1x512xf32, #tpu.memory_space<vmem>>, vector<1x512xf32>
    %6 = vector.broadcast %5 : vector<1x512xf32> to vector<256x512xf32>
    %7 = arith.addf %4, %6 : vector<256x512xf32>
    %c0_5 = arith.constant 0 : index
    %c0_6 = arith.constant 0 : index
    %8 = vector.load %arg2[%c0_5, %c0_6] : memref<256x512xf32, #tpu.memory_space<vmem>>, vector<256x512xf32>
    %9 = arith.addf %7, %8 : vector<256x512xf32>
    %cst = arith.constant 0.000000e+00 : f32
    %10 = vector.broadcast %cst : f32 to vector<256x512xf32>
    %11 = arith.maximumf %9, %10 : vector<256x512xf32>
    %c0_7 = arith.constant 0 : index
    %c0_8 = arith.constant 0 : index
    %12 = vector.load %arg5[%c0_7, %c0_8] : memref<256x512xf32, #tpu.memory_space<vmem>>, vector<256x512xf32>
    tpu.vector_store %arg5[%c0_7, %c0_8], %11 {strides = array<i32>} : memref<256x512xf32, #tpu.memory_space<vmem>>, vector<256x512xf32>,
    return
  }
  func.func @transform_0(%arg0: i32) -> (i32, i32) {
    %c0_i32 = arith.constant 0 : i32
    %c0_i32_0 = arith.constant 0 : i32
    return %arg0, %c0_i32 : i32, i32
  }
  func.func @transform_1(%arg0: i32) -> (i32, i32) {
    %c0_i32 = arith.constant 0 : i32
    %c0_i32_0 = arith.constant 0 : i32
    return %arg0, %c0_i32 : i32, i32
  }
  func.func @transform_2(%arg0: i32) -> (i32, i32) {
    %c0_i32 = arith.constant 0 : i32
    %c0_i32_0 = arith.constant 0 : i32
    %c0_i32_1 = arith.constant 0 : i32
    return %c0_i32, %c0_i32_0 : i32, i32
  }
  func.func @transform_3(%arg0: i32) -> (i32, i32) {
    %c0_i32 = arith.constant 0 : i32
    %c0_i32_0 = arith.constant 0 : i32
    %c0_i32_1 = arith.constant 0 : i32
    return %c0_i32, %c0_i32_0 : i32, i32
  }
  func.func @transform_4(%arg0: i32) -> (i32, i32) {
    %c0_i32 = arith.constant 0 : i32
    %c0_i32_0 = arith.constant 0 : i32
    return %arg0, %c0_i32 : i32, i32
  }
}

</mosaic_0001>

<llo_original>
// kernel: bottleneck_forward_nhwc.4
$region0: #{bottleneck_forward_nhwc.4}
  #allocation0 [shape = 'u32[]', space=smem, size = 0x4, offset = 0x4, fixed_abs, tag = 'smem constant byte address 0x4 - core index']
  #allocation1 [shape = 'u32[72,128]{1,0:T(1,128)}', space=vmem, size = 0x9000, scoped, tag = 'internal scratch']
  %s0 = inlined_call_operand.hbm [shape: f32[512,512], index: 0, kind: input, shape index: {}]
  %s1 = inlined_call_operand.hbm [shape: bf16[512,128], index: 1, kind: input, shape index: {}]
  %s2 = inlined_call_operand.vmem [shape: bf16[512,128], index: 2, kind: output, shape index: {0}]
  %s3 = inlined_call_operand.vmem [shape: f32[2,2,128], index: 3, kind: output, shape index: {1}]
  %4 = xla_tuple %s2, %s3
  %s5 = sld [smem:[#allocation0]]
  $region57: #{bottleneck_forward_nhwc.4} parent=0
    _
  %s7 = ssub.s32 1, %s5
  %s8 = scalar_select 0, %s7, %s5
  $region1: #{bottleneck_forward_nhwc.4} parent=0
    #allocation2 [shape = 'u8[1048576]{0}', space=vmem, size = 0x100000, scoped, tag = 'input window, operand 0']
    #allocation3 [shape = 's32[2]{0}', space=sflag, size = 0x8, scoped, tag = 'scoped memory for bottleneck_forward_nhwc.4']
    #allocation4 [shape = 'u8[131072]{0}', space=vmem, size = 0x20000, scoped, tag = 'input window, operand 1, single buffered']
    #allocation5 [shape = 's32[1]{0}', space=sflag, size = 0x4, scoped, tag = 'scoped memory for bottleneck_forward_nhwc.4']
    %9 = vsyncpa [#allocation3], 0
    %s10 = scalar_lea.sflag [#allocation3], 1
    %11 = vsyncpa %s10, 0
    %12 = vsyncpa [#allocation5], 0
    loop: start=0, step=1, limit=4
    $region2: #{bottleneck_forward_nhwc.4} parent=1 // loop_pre_header
      _
    $region3: #{bottleneck_forward_nhwc.4} parent=1 // loop_header
      %s14 = sphi 0, %s18
      %p15 = scmp.ge.s32.totalorder %s14, 4
      %s24 = sphi 0, %s26
      %s27 = sphi 0, %s24
      %s28 = sphi 0, %s27
      %s44 = sphi 0, %s28
      %s48 = sphi 0, %s48
      %s50 = sphi 0, %s48
      %s51 = sphi 0, %s50
      %s65 = sphi 0, %s51
      %s71 = sphi 0, %s73
      %s74 = sphi 0, %s71
      %s75 = sphi 0, %s74
      %s91 = sphi 0, %s75
      %s97 = sphi 0, %s99
      %s100 = sphi 0, %s97
      %s101 = sphi 0, %s100
      %s117 = sphi 0, %s101
    $region4: #{bottleneck_forward_nhwc.4} parent=1 // loop_header_branch
      %17 = sbr.rel (%p15) target = $region8
    $region5: #{bottleneck_forward_nhwc.4} parent=1 // loop_body
      %s19 = ssub.s32 %s14, 1
      %s20 = ssub.s32 %s14, 2
      %s21 = sadd.s32 %s14, 1
      %s22 = ssub.s32 %s14, %s21
      %p23 = scmp.eq.s32.totalorder %s22, 0
      %s25 = sadd.s32 %s24, 1
      %s26 = scalar_select %p23, %s24, %s25
      %p29 = pneg %p23
      %p30 = scmp.eq.s32.totalorder %s14, 1
      %p31 = por %p29, %p30
      %p32 = scmp.ne.s32.totalorder %s24, %s27
      %p33 = scmp.eq.s32.totalorder %s14, 0
      %p34 = por %p32, %p33
      %p35 = scmp.ne.s32.totalorder %s24, %s27
      %p36 = scmp.eq.s32.totalorder %s19, 1
      %p37 = por %p35, %p36
      %p38 = scmp.ne.s32.totalorder %s27, %s28
      %p39 = scmp.eq.s32.totalorder %s19, 0
      %p40 = por %p38, %p39
      %p41 = scmp.ne.s32.totalorder %s27, %s28
      %p42 = scmp.eq.s32.totalorder %s20, 1
      %p43 = por %p41, %p42
      %p45 = scmp.ne.s32.totalorder %s28, %s44
      %p46 = scmp.eq.s32.totalorder %s20, 0
      %p47 = por %p45, %p46
      %s49 = sadd.s32 %s48, 1
      %p52 = scmp.eq.s32.totalorder %s14, 1
      %p53 = scmp.ne.s32.totalorder %s48, %s50
      %p54 = scmp.eq.s32.totalorder %s14, 0
      %p55 = por %p53, %p54
      %p56 = scmp.ne.s32.totalorder %s48, %s50
      %p57 = scmp.eq.s32.totalorder %s19, 1
      %p58 = por %p56, %p57
      %p59 = scmp.ne.s32.totalorder %s50, %s51
      %p60 = scmp.eq.s32.totalorder %s19, 0
      %p61 = por %p59, %p60
      %p62 = scmp.ne.s32.totalorder %s50, %s51
      %p63 = scmp.eq.s32.totalorder %s20, 1
      %p64 = por %p62, %p63
      %p66 = scmp.ne.s32.totalorder %s51, %s65
      %p67 = scmp.eq.s32.totalorder %s20, 0
      %p68 = por %p66, %p67
      %s69 = ssub.s32 %s14, %s21
      %p70 = scmp.eq.s32.totalorder %s69, 0
      %s72 = sadd.s32 %s71, 1
      %s73 = scalar_select %p70, %s71, %s72
      %p76 = pneg %p70
      %p77 = scmp.eq.s32.totalorder %s14, 1
      %p78 = por %p76, %p77
      %p79 = scmp.ne.s32.totalorder %s71, %s74
      %p80 = scmp.eq.s32.totalorder %s14, 0
      %p81 = por %p79, %p80
      %p82 = scmp.ne.s32.totalorder %s71, %s74
      %p83 = scmp.eq.s32.totalorder %s19, 1
      %p84 = por %p82, %p83
      %p85 = scmp.ne.s32.totalorder %s74, %s75
      %p86 = scmp.eq.s32.totalorder %s19, 0
      %p87 = por %p85, %p86
      %p88 = scmp.ne.s32.totalorder %s74, %s75
      %p89 = scmp.eq.s32.totalorder %s20, 1
      %p90 = por %p88, %p89
      %p92 = scmp.ne.s32.totalorder %s75, %s91
      %p93 = scmp.eq.s32.totalorder %s20, 0
      %p94 = por %p92, %p93
      %s95 = ssub.s32 %s14, %s21
      %p96 = scmp.eq.s32.totalorder %s95, 0
      %s98 = sadd.s32 %s97, 1
      %s99 = scalar_select %p96, %s97, %s98
      %p102 = pneg %p96
      %p103 = scmp.eq.s32.totalorder %s14, 1
      %p104 = por %p102, %p103
      %p105 = scmp.ne.s32.totalorder %s97, %s100
      %p106 = scmp.eq.s32.totalorder %s14, 0
      %p107 = por %p105, %p106
      %p108 = scmp.ne.s32.totalorder %s97, %s100
      %p109 = scmp.eq.s32.totalorder %s19, 1
      %p110 = por %p108, %p109
      %p111 = scmp.ne.s32.totalorder %s100, %s101
      %p112 = scmp.eq.s32.totalorder %s19, 0
      %p113 = por %p111, %p112
      %p114 = scmp.ne.s32.totalorder %s100, %s101
      %p115 = scmp.eq.s32.totalorder %s20, 1
      %p116 = por %p114, %p115
      %p118 = scmp.ne.s32.totalorder %s101, %s117
      %p119 = scmp.eq.s32.totalorder %s20, 0
      %p120 = por %p118, %p119
      %p121 = scmp.le.s32.totalorder 1, %s14
      %p122 = scmp.lt.s32.totalorder %s14, 3
      %p123 = pnand %p121, %p122
      %p124 = pneg %p123
      // Predicated region
      $region9: #{bottleneck_forward_nhwc.4} parent=5 // pred_check
        _
      $region10: #{bottleneck_forward_nhwc.4} parent=5 // pred_check_branch
        %126 = sbr.rel (%p123) target = $region12
      $region11: #{bottleneck_forward_nhwc.4} parent=5 // pred_region
        %s127 = ssub.s32 %s14, 1
        // Predicated region
        $region13: #{bottleneck_forward_nhwc.4} parent=11 // pred_check
          %p128 = pneg %p61
        $region14: #{bottleneck_forward_nhwc.4} parent=11 // pred_check_branch
          %130 = sbr.rel (%p128) target = $region16
        $region15: #{bottleneck_forward_nhwc.4} parent=11 // pred_region
          %132 = vsyncadd [#allocation5], 0
          %s133 = sshll.u32 %s1, 4
          %s134 = int_to_ptr.hbm [resolvable:$true] %s133
          %s135 = sshll.u32 [#allocation4], 4
          %s136 = int_to_ptr.vmem [resolvable:$true] %s135
          %141 = dma.hbm_to_vmem [thread:$0]  %s134, 4096, %s136, [#allocation5], 64, 64, 4
        $region16: #{bottleneck_forward_nhwc.4} parent=11 // pred_fallthru
          _
      $region12: #{bottleneck_forward_nhwc.4} parent=5 // pred_fallthru
        _
      %p142 = scmp.lt.s32.totalorder %s14, 2
      // Predicated region
      $region17: #{bottleneck_forward_nhwc.4} parent=5 // pred_check
        %p143 = pneg %p142
      $region18: #{bottleneck_forward_nhwc.4} parent=5 // pred_check_branch
        %145 = sbr.rel (%p143) target = $region20
      $region19: #{bottleneck_forward_nhwc.4} parent=5 // pred_region
        // Predicated region
        $region21: #{bottleneck_forward_nhwc.4} parent=19 // pred_check
          %p146 = pneg %p34
        $region22: #{bottleneck_forward_nhwc.4} parent=19 // pred_check_branch
          %148 = sbr.rel (%p146) target = $region24
        $region23: #{bottleneck_forward_nhwc.4} parent=19 // pred_region
          %s149 = sand.u32 %s24, 1
          %s150 = scalar_lea.sflag [#allocation3], %s149
          %s151 = sand.u32 %s24, 1
          %s152 = smul.addr %s151, 1024
          %s153 = scalar_lea.vmem [#allocation2], %s152
          %s154 = smul.u32 32, %s14
          %156 = vsyncadd %s150, 0
          %s157 = smul.addr %s154, 4
          %s158 = smul.addr %s157, 8
          %s159 = scalar_lea.hbm %s0, %s158
          %s160 = sshll.u32 %s159, 4
          %s161 = int_to_ptr.hbm [resolvable:$true] %s160
          %s162 = sshll.u32 %s153, 4
          %s163 = int_to_ptr.vmem [resolvable:$true] %s162
          %168 = dma.hbm_to_vmem [thread:$0]  %s161, 16384, %s163, %s150, 512, 512, 32
        $region24: #{bottleneck_forward_nhwc.4} parent=19 // pred_fallthru
          _
      $region20: #{bottleneck_forward_nhwc.4} parent=5 // pred_fallthru
        _
      %p169 = scmp.le.s32.totalorder 1, %s14
      %p170 = scmp.lt.s32.totalorder %s14, 3
      %p171 = pnand %p169, %p170
      %p172 = pneg %p171
      // Predicated region
      $region25: #{bottleneck_forward_nhwc.4} parent=5 // pred_check
        _
      $region26: #{bottleneck_forward_nhwc.4} parent=5 // pred_check_branch
        %174 = sbr.rel (%p171) target = $region28
      $region27: #{bottleneck_forward_nhwc.4} parent=5 // pred_region
        %s175 = ssub.s32 %s14, 1
        %s176 = sand.u32 %s27, 1
        %s177 = scalar_lea.sflag [#allocation3], %s176
        %s178 = sand.u32 %s27, 1
        %s179 = smul.addr %s178, 1024
        %s180 = scalar_lea.vmem [#allocation2], %s179
        // Predicated region
        $region29: #{bottleneck_forward_nhwc.4} parent=27 // pred_check
          %p181 = pneg %p40
        $region30: #{bottleneck_forward_nhwc.4} parent=27 // pred_check_branch
          %183 = sbr.rel (%p181) target = $region32
        $region31: #{bottleneck_forward_nhwc.4} parent=27 // pred_region
          %185 = dma.done %s177, 16384
        $region32: #{bottleneck_forward_nhwc.4} parent=27 // pred_fallthru
          _
        // Predicated region
        $region33: #{bottleneck_forward_nhwc.4} parent=27 // pred_check
          %p186 = pneg %p61
        $region34: #{bottleneck_forward_nhwc.4} parent=27 // pred_check_branch
          %188 = sbr.rel (%p186) target = $region36
        $region35: #{bottleneck_forward_nhwc.4} parent=27 // pred_region
          %190 = dma.done [#allocation5], 4096
        $region36: #{bottleneck_forward_nhwc.4} parent=27 // pred_fallthru
          _
        %s191 = sand.u32 %s27, 1
        %s192 = scalar_lea.sflag [#allocation3], %s191
        %s193 = sand.u32 %s27, 1
        %s194 = smul.addr %s193, 1024
        %s195 = scalar_lea.vmem [#allocation2], %s194
        %p196 = pneg %p40
        %p197 = pneg %p37
        %p198 = pneg %p61
        %p199 = pneg %p58
        %p200 = pneg %p87
        %p201 = pneg %p84
        %s202 = smul.u32 32, %s19
        %p203 = scmp.lt.s32.totalorder %s202, 63
        %s204 = scalar_select %p203, %s202, 63
        %s205 = smul.addr %s204, 4
        %s206 = scalar_lea.vmem %s2, %s205
        %p207 = pneg %p113
        %p208 = pneg %p110
        %p209 = scmp.lt.s32.totalorder %s19, 1
        %s210 = scalar_select %p209, %s19, 1
        %s211 = smul.addr %s210, 2
        %s212 = scalar_lea.vmem %s3, %s211
        %s213 = smul.u32 32, %s19
        %s214 = smul.u32 32, %s19
        %p215 = scmp.lt.s32.totalorder %s214, 63
        %s216 = scalar_select %p215, %s214, 63
        %s217 = smul.addr %s216, 4
        %s218 = scalar_lea.vmem %s2, %s217
        %s219 = smul.u32 32, %s19
        %p220 = scmp.lt.s32.totalorder %s19, 1
        %s221 = scalar_select %p220, %s19, 1
        %s222 = smul.addr %s221, 2
        %s223 = scalar_lea.vmem %s3, %s222
        %v224 = vld [vmem:[%s180] sm:$0xff]
        %v225 = vld [vmem:[%s180 + $0x8] sm:$0xff]
        %v226 = vld [vmem:[%s180 + $0x10] sm:$0xff]
        %v227 = vld [vmem:[%s180 + $0x18] sm:$0xff]
        %v228 = vld [vmem:[%s180 + $0x20] sm:$0xff]
        %v229 = vld [vmem:[%s180 + $0x28] sm:$0xff]
        %v230 = vld [vmem:[%s180 + $0x30] sm:$0xff]
        %v231 = vld [vmem:[%s180 + $0x38] sm:$0xff]
        %v232 = vld [vmem:[%s180 + $0x40] sm:$0xff]
        %v233 = vld [vmem:[%s180 + $0x48] sm:$0xff]
        %v234 = vld [vmem:[%s180 + $0x50] sm:$0xff]
        %v235 = vld [vmem:[%s180 + $0x58] sm:$0xff]
        %v236 = vld [vmem:[%s180 + $0x60] sm:$0xff]
        %v237 = vld [vmem:[%s180 + $0x68] sm:$0xff]
        %v238 = vld [vmem:[%s180 + $0x70] sm:$0xff]
        %v239 = vld [vmem:[%s180 + $0x78] sm:$0xff]
        %v240 = vld [vmem:[%s180 + $0x80] sm:$0xff]
        %v241 = vld [vmem:[%s180 + $0x88] sm:$0xff]
        %v242 = vld [vmem:[%s180 + $0x90] sm:$0xff]
        %v243 = vld [vmem:[%s180 + $0x98] sm:$0xff]
        %v244 = vld [vmem:[%s180 + $0xa0] sm:$0xff]
        %v245 = vld [vmem:[%s180 + $0xa8] sm:$0xff]
        %v246 = vld [vmem:[%s180 + $0xb0] sm:$0xff]
        %v247 = vld [vmem:[%s180 + $0xb8] sm:$0xff]
        %v248 = vld [vmem:[%s180 + $0xc0] sm:$0xff]
        %v249 = vld [vmem:[%s180 + $0xc8] sm:$0xff]
        %v250 = vld [vmem:[%s180 + $0xd0] sm:$0xff]
        %v251 = vld [vmem:[%s180 + $0xd8] sm:$0xff]
        %v252 = vld [vmem:[%s180 + $0xe0] sm:$0xff]
        %v253 = vld [vmem:[%s180 + $0xe8] sm:$0xff]
        %v254 = vld [vmem:[%s180 + $0xf0] sm:$0xff]
        %v255 = vld [vmem:[%s180 + $0xf8] sm:$0xff]
        %v256 = vld [vmem:[%s180 + $0x100] sm:$0xff]
        %v257 = vld [vmem:[%s180 + $0x108] sm:$0xff]
        %v258 = vld [vmem:[%s180 + $0x110] sm:$0xff]
        %v259 = vld [vmem:[%s180 + $0x118] sm:$0xff]
        %v260 = vld [vmem:[%s180 + $0x120] sm:$0xff]
        %v261 = vld [vmem:[%s180 + $0x128] sm:$0xff]
        %v262 = vld [vmem:[%s180 + $0x130] sm:$0xff]
        %v263 = vld [vmem:[%s180 + $0x138] sm:$0xff]
        %v264 = vld [vmem:[%s180 + $0x140] sm:$0xff]
        %v265 = vld [vmem:[%s180 + $0x148] sm:$0xff]
        %v266 = vld [vmem:[%s180 + $0x150] sm:$0xff]
        %v267 = vld [vmem:[%s180 + $0x158] sm:$0xff]
        %v268 = vld [vmem:[%s180 + $0x160] sm:$0xff]
        %v269 = vld [vmem:[%s180 + $0x168] sm:$0xff]
        %v270 = vld [vmem:[%s180 + $0x170] sm:$0xff]
        %v271 = vld [vmem:[%s180 + $0x178] sm:$0xff]
        %v272 = vld [vmem:[%s180 + $0x180] sm:$0xff]
        %v273 = vld [vmem:[%s180 + $0x188] sm:$0xff]
        %v274 = vld [vmem:[%s180 + $0x190] sm:$0xff]
        %v275 = vld [vmem:[%s180 + $0x198] sm:$0xff]
        %v276 = vld [vmem:[%s180 + $0x1a0] sm:$0xff]
        %v277 = vld [vmem:[%s180 + $0x1a8] sm:$0xff]
        %v278 = vld [vmem:[%s180 + $0x1b0] sm:$0xff]
        %v279 = vld [vmem:[%s180 + $0x1b8] sm:$0xff]
        %v280 = vld [vmem:[%s180 + $0x1c0] sm:$0xff]
        %v281 = vld [vmem:[%s180 + $0x1c8] sm:$0xff]
        %v282 = vld [vmem:[%s180 + $0x1d0] sm:$0xff]
        %v283 = vld [vmem:[%s180 + $0x1d8] sm:$0xff]
        %v284 = vld [vmem:[%s180 + $0x1e0] sm:$0xff]
        %v285 = vld [vmem:[%s180 + $0x1e8] sm:$0xff]
        %v286 = vld [vmem:[%s180 + $0x1f0] sm:$0xff]
        %v287 = vld [vmem:[%s180 + $0x1f8] sm:$0xff]
        %v288 = vld [vmem:[%s180 + $0x200] sm:$0xff]
        %v289 = vld [vmem:[%s180 + $0x208] sm:$0xff]
        %v290 = vld [vmem:[%s180 + $0x210] sm:$0xff]
        %v291 = vld [vmem:[%s180 + $0x218] sm:$0xff]
        %v292 = vld [vmem:[%s180 + $0x220] sm:$0xff]
        %v293 = vld [vmem:[%s180 + $0x228] sm:$0xff]
        %v294 = vld [vmem:[%s180 + $0x230] sm:$0xff]
        %v295 = vld [vmem:[%s180 + $0x238] sm:$0xff]
        %v296 = vld [vmem:[%s180 + $0x240] sm:$0xff]
        %v297 = vld [vmem:[%s180 + $0x248] sm:$0xff]
        %v298 = vld [vmem:[%s180 + $0x250] sm:$0xff]
        %v299 = vld [vmem:[%s180 + $0x258] sm:$0xff]
        %v300 = vld [vmem:[%s180 + $0x260] sm:$0xff]
        %v301 = vld [vmem:[%s180 + $0x268] sm:$0xff]
        %v302 = vld [vmem:[%s180 + $0x270] sm:$0xff]
        %v303 = vld [vmem:[%s180 + $0x278] sm:$0xff]
        %v304 = vld [vmem:[%s180 + $0x280] sm:$0xff]
        %v305 = vld [vmem:[%s180 + $0x288] sm:$0xff]
        %v306 = vld [vmem:[%s180 + $0x290] sm:$0xff]
        %v307 = vld [vmem:[%s180 + $0x298] sm:$0xff]
        %v308 = vld [vmem:[%s180 + $0x2a0] sm:$0xff]
        %v309 = vld [vmem:[%s180 + $0x2a8] sm:$0xff]
        %v310 = vld [vmem:[%s180 + $0x2b0] sm:$0xff]
        %v311 = vld [vmem:[%s180 + $0x2b8] sm:$0xff]
        %v312 = vld [vmem:[%s180 + $0x2c0] sm:$0xff]
        %v313 = vld [vmem:[%s180 + $0x2c8] sm:$0xff]
        %v314 = vld [vmem:[%s180 + $0x2d0] sm:$0xff]
        %v315 = vld [vmem:[%s180 + $0x2d8] sm:$0xff]
        %v316 = vld [vmem:[%s180 + $0x2e0] sm:$0xff]
        %v317 = vld [vmem:[%s180 + $0x2e8] sm:$0xff]
        %v318 = vld [vmem:[%s180 + $0x2f0] sm:$0xff]
        %v319 = vld [vmem:[%s180 + $0x2f8] sm:$0xff]
        %v320 = vld [vmem:[%s180 + $0x300] sm:$0xff]
        %v321 = vld [vmem:[%s180 + $0x308] sm:$0xff]
        %v322 = vld [vmem:[%s180 + $0x310] sm:$0xff]
        %v323 = vld [vmem:[%s180 + $0x318] sm:$0xff]
        %v324 = vld [vmem:[%s180 + $0x320] sm:$0xff]
        %v325 = vld [vmem:[%s180 + $0x328] sm:$0xff]
        %v326 = vld [vmem:[%s180 + $0x330] sm:$0xff]
        %v327 = vld [vmem:[%s180 + $0x338] sm:$0xff]
        %v328 = vld [vmem:[%s180 + $0x340] sm:$0xff]
        %v329 = vld [vmem:[%s180 + $0x348] sm:$0xff]
        %v330 = vld [vmem:[%s180 + $0x350] sm:$0xff]
        %v331 = vld [vmem:[%s180 + $0x358] sm:$0xff]
        %v332 = vld [vmem:[%s180 + $0x360] sm:$0xff]
        %v333 = vld [vmem:[%s180 + $0x368] sm:$0xff]
        %v334 = vld [vmem:[%s180 + $0x370] sm:$0xff]
        %v335 = vld [vmem:[%s180 + $0x378] sm:$0xff]
        %v336 = vld [vmem:[%s180 + $0x380] sm:$0xff]
        %v337 = vld [vmem:[%s180 + $0x388] sm:$0xff]
        %v338 = vld [vmem:[%s180 + $0x390] sm:$0xff]
        %v339 = vld [vmem:[%s180 + $0x398] sm:$0xff]
        %v340 = vld [vmem:[%s180 + $0x3a0] sm:$0xff]
        %v341 = vld [vmem:[%s180 + $0x3a8] sm:$0xff]
        %v342 = vld [vmem:[%s180 + $0x3b0] sm:$0xff]
        %v343 = vld [vmem:[%s180 + $0x3b8] sm:$0xff]
        %v344 = vld [vmem:[%s180 + $0x3c0] sm:$0xff]
        %v345 = vld [vmem:[%s180 + $0x3c8] sm:$0xff]
        %v346 = vld [vmem:[%s180 + $0x3d0] sm:$0xff]
        %v347 = vld [vmem:[%s180 + $0x3d8] sm:$0xff]
        %v348 = vld [vmem:[%s180 + $0x3e0] sm:$0xff]
        %v349 = vld [vmem:[%s180 + $0x3e8] sm:$0xff]
        %v350 = vld [vmem:[%s180 + $0x3f0] sm:$0xff]
        %v351 = vld [vmem:[%s180 + $0x3f8] sm:$0xff]
        %v352 = vpack.c.bf16 %v228, %v224
        %v353 = vpack.c.bf16 %v229, %v225
        %v354 = vpack.c.bf16 %v230, %v226
        %v355 = vpack.c.bf16 %v231, %v227
        %v356 = vpack.c.bf16 %v236, %v232
        %v357 = vpack.c.bf16 %v237, %v233
        %v358 = vpack.c.bf16 %v238, %v234
        %v359 = vpack.c.bf16 %v239, %v235
        %v360 = vpack.c.bf16 %v244, %v240
        %v361 = vpack.c.bf16 %v245, %v241
        %v362 = vpack.c.bf16 %v246, %v242
        %v363 = vpack.c.bf16 %v247, %v243
        %v364 = vpack.c.bf16 %v252, %v248
        %v365 = vpack.c.bf16 %v253, %v249
        %v366 = vpack.c.bf16 %v254, %v250
        %v367 = vpack.c.bf16 %v255, %v251
        %v368 = vpack.c.bf16 %v260, %v256
        %v369 = vpack.c.bf16 %v261, %v257
        %v370 = vpack.c.bf16 %v262, %v258
        %v371 = vpack.c.bf16 %v263, %v259
        %v372 = vpack.c.bf16 %v268, %v264
        %v373 = vpack.c.bf16 %v269, %v265
        %v374 = vpack.c.bf16 %v270, %v266
        %v375 = vpack.c.bf16 %v271, %v267
        %v376 = vpack.c.bf16 %v276, %v272
        %v377 = vpack.c.bf16 %v277, %v273
        %v378 = vpack.c.bf16 %v278, %v274
        %v379 = vpack.c.bf16 %v279, %v275
        %v380 = vpack.c.bf16 %v284, %v280
        %v381 = vpack.c.bf16 %v285, %v281
        %v382 = vpack.c.bf16 %v286, %v282
        %v383 = vpack.c.bf16 %v287, %v283
        %v384 = vpack.c.bf16 %v292, %v288
        %v385 = vpack.c.bf16 %v293, %v289
        %v386 = vpack.c.bf16 %v294, %v290
        %v387 = vpack.c.bf16 %v295, %v291
        %v388 = vpack.c.bf16 %v300, %v296
        %v389 = vpack.c.bf16 %v301, %v297
        %v390 = vpack.c.bf16 %v302, %v298
        %v391 = vpack.c.bf16 %v303, %v299
        %v392 = vpack.c.bf16 %v308, %v304
        %v393 = vpack.c.bf16 %v309, %v305
        %v394 = vpack.c.bf16 %v310, %v306
        %v395 = vpack.c.bf16 %v311, %v307
        %v396 = vpack.c.bf16 %v316, %v312
        %v397 = vpack.c.bf16 %v317, %v313
        %v398 = vpack.c.bf16 %v318, %v314
        %v399 = vpack.c.bf16 %v319, %v315
        %v400 = vpack.c.bf16 %v324, %v320
        %v401 = vpack.c.bf16 %v325, %v321
        %v402 = vpack.c.bf16 %v326, %v322
        %v403 = vpack.c.bf16 %v327, %v323
        %v404 = vpack.c.bf16 %v332, %v328
        %v405 = vpack.c.bf16 %v333, %v329
        %v406 = vpack.c.bf16 %v334, %v330
        %v407 = vpack.c.bf16 %v335, %v331
        %v408 = vpack.c.bf16 %v340, %v336
        %v409 = vpack.c.bf16 %v341, %v337
        %v410 = vpack.c.bf16 %v342, %v338
        %v411 = vpack.c.bf16 %v343, %v339
        %v412 = vpack.c.bf16 %v348, %v344
        %v413 = vpack.c.bf16 %v349, %v345
        %v414 = vpack.c.bf16 %v350, %v346
        %v415 = vpack.c.bf16 %v351, %v347
        %v416 = vld [vmem:[#allocation4] sm:$0xf]
        %v417 = vld [vmem:[#allocation4 + $0x4] sm:$0xf]
        %v418 = vld [vmem:[#allocation4 + $0x8] sm:$0xf]
        %v419 = vld [vmem:[#allocation4 + $0xc] sm:$0xf]
        %v420 = vld [vmem:[#allocation4 + $0x10] sm:$0xf]
        %v421 = vld [vmem:[#allocation4 + $0x14] sm:$0xf]
        %v422 = vld [vmem:[#allocation4 + $0x18] sm:$0xf]
        %v423 = vld [vmem:[#allocation4 + $0x1c] sm:$0xf]
        %v424 = vld [vmem:[#allocation4 + $0x20] sm:$0xf]
        %v425 = vld [vmem:[#allocation4 + $0x24] sm:$0xf]
        %v426 = vld [vmem:[#allocation4 + $0x28] sm:$0xf]
        %v427 = vld [vmem:[#allocation4 + $0x2c] sm:$0xf]
        %v428 = vld [vmem:[#allocation4 + $0x30] sm:$0xf]
        %v429 = vld [vmem:[#allocation4 + $0x34] sm:$0xf]
        %v430 = vld [vmem:[#allocation4 + $0x38] sm:$0xf]
        %v431 = vld [vmem:[#allocation4 + $0x3c] sm:$0xf]
        %v432 = vld [vmem:[#allocation4 + $0x40] sm:$0xf]
        %v433 = vld [vmem:[#allocation4 + $0x44] sm:$0xf]
        %v434 = vld [vmem:[#allocation4 + $0x48] sm:$0xf]
        %v435 = vld [vmem:[#allocation4 + $0x4c] sm:$0xf]
        %v436 = vld [vmem:[#allocation4 + $0x50] sm:$0xf]
        %v437 = vld [vmem:[#allocation4 + $0x54] sm:$0xf]
        %v438 = vld [vmem:[#allocation4 + $0x58] sm:$0xf]
        %v439 = vld [vmem:[#allocation4 + $0x5c] sm:$0xf]
        %v440 = vld [vmem:[#allocation4 + $0x60] sm:$0xf]
        %v441 = vld [vmem:[#allocation4 + $0x64] sm:$0xf]
        %v442 = vld [vmem:[#allocation4 + $0x68] sm:$0xf]
        %v443 = vld [vmem:[#allocation4 + $0x6c] sm:$0xf]
        %v444 = vld [vmem:[#allocation4 + $0x70] sm:$0xf]
        %v445 = vld [vmem:[#allocation4 + $0x74] sm:$0xf]
        %v446 = vld [vmem:[#allocation4 + $0x78] sm:$0xf]
        %v447 = vld [vmem:[#allocation4 + $0x7c] sm:$0xf]
        %v448 = vld [vmem:[#allocation4 + $0x80] sm:$0xf]
        %v449 = vld [vmem:[#allocation4 + $0x84] sm:$0xf]
        %v450 = vld [vmem:[#allocation4 + $0x88] sm:$0xf]
        %v451 = vld [vmem:[#allocation4 + $0x8c] sm:$0xf]
        %v452 = vld [vmem:[#allocation4 + $0x90] sm:$0xf]
        %v453 = vld [vmem:[#allocation4 + $0x94] sm:$0xf]
        %v454 = vld [vmem:[#allocation4 + $0x98] sm:$0xf]
        %v455 = vld [vmem:[#allocation4 + $0x9c] sm:$0xf]
        %v456 = vld [vmem:[#allocation4 + $0xa0] sm:$0xf]
        %v457 = vld [vmem:[#allocation4 + $0xa4] sm:$0xf]
        %v458 = vld [vmem:[#allocation4 + $0xa8] sm:$0xf]
        %v459 = vld [vmem:[#allocation4 + $0xac] sm:$0xf]
        %v460 = vld [vmem:[#allocation4 + $0xb0] sm:$0xf]
        %v461 = vld [vmem:[#allocation4 + $0xb4] sm:$0xf]
        %v462 = vld [vmem:[#allocation4 + $0xb8] sm:$0xf]
        %v463 = vld [vmem:[#allocation4 + $0xbc] sm:$0xf]
        %v464 = vld [vmem:[#allocation4 + $0xc0] sm:$0xf]
        %v465 = vld [vmem:[#allocation4 + $0xc4] sm:$0xf]
        %v466 = vld [vmem:[#allocation4 + $0xc8] sm:$0xf]
        %v467 = vld [vmem:[#allocation4 + $0xcc] sm:$0xf]
        %v468 = vld [vmem:[#allocation4 + $0xd0] sm:$0xf]
        %v469 = vld [vmem:[#allocation4 + $0xd4] sm:$0xf]
        %v470 = vld [vmem:[#allocation4 + $0xd8] sm:$0xf]
        %v471 = vld [vmem:[#allocation4 + $0xdc] sm:$0xf]
        %v472 = vld [vmem:[#allocation4 + $0xe0] sm:$0xf]
        %v473 = vld [vmem:[#allocation4 + $0xe4] sm:$0xf]
        %v474 = vld [vmem:[#allocation4 + $0xe8] sm:$0xf]
        %v475 = vld [vmem:[#allocation4 + $0xec] sm:$0xf]
        %v476 = vld [vmem:[#allocation4 + $0xf0] sm:$0xf]
        %v477 = vld [vmem:[#allocation4 + $0xf4] sm:$0xf]
        %v478 = vld [vmem:[#allocation4 + $0xf8] sm:$0xf]
        %v479 = vld [vmem:[#allocation4 + $0xfc] sm:$0xf]
        %v544 = vunpack.c.l.b16 %v416
        %v545 = vunpack.c.l.b16 %v417
        %v546 = vunpack.c.l.b16 %v418
        %v547 = vunpack.c.l.b16 %v419
        %v548 = vunpack.c.l.b16 %v420
        %v549 = vunpack.c.l.b16 %v421
        %v550 = vunpack.c.l.b16 %v422
        %v551 = vunpack.c.l.b16 %v423
        %v552 = vunpack.c.l.b16 %v424
        %v553 = vunpack.c.l.b16 %v425
        %v554 = vunpack.c.l.b16 %v426
        %v555 = vunpack.c.l.b16 %v427
        %v556 = vunpack.c.l.b16 %v428
        %v557 = vunpack.c.l.b16 %v429
        %v558 = vunpack.c.l.b16 %v430
        %v559 = vunpack.c.l.b16 %v431
        %v560 = vunpack.c.l.b16 %v432
        %v561 = vunpack.c.l.b16 %v433
        %v562 = vunpack.c.l.b16 %v434
        %v563 = vunpack.c.l.b16 %v435
        %v564 = vunpack.c.l.b16 %v436
        %v565 = vunpack.c.l.b16 %v437
        %v566 = vunpack.c.l.b16 %v438
        %v567 = vunpack.c.l.b16 %v439
        %v568 = vunpack.c.l.b16 %v440
        %v569 = vunpack.c.l.b16 %v441
        %v570 = vunpack.c.l.b16 %v442
        %v571 = vunpack.c.l.b16 %v443
        %v572 = vunpack.c.l.b16 %v444
        %v573 = vunpack.c.l.b16 %v445
        %v574 = vunpack.c.l.b16 %v446
        %v575 = vunpack.c.l.b16 %v447
        %v576 = vunpack.c.l.b16 %v448
        %v577 = vunpack.c.l.b16 %v449
        %v578 = vunpack.c.l.b16 %v450
        %v579 = vunpack.c.l.b16 %v451
        %v580 = vunpack.c.l.b16 %v452
        %v581 = vunpack.c.l.b16 %v453
        %v582 = vunpack.c.l.b16 %v454
        %v583 = vunpack.c.l.b16 %v455
        %v584 = vunpack.c.l.b16 %v456
        %v585 = vunpack.c.l.b16 %v457
        %v586 = vunpack.c.l.b16 %v458
        %v587 = vunpack.c.l.b16 %v459
        %v588 = vunpack.c.l.b16 %v460
        %v589 = vunpack.c.l.b16 %v461
        %v590 = vunpack.c.l.b16 %v462
        %v591 = vunpack.c.l.b16 %v463
        %v592 = vunpack.c.l.b16 %v464
        %v593 = vunpack.c.l.b16 %v465
        %v594 = vunpack.c.l.b16 %v466
        %v595 = vunpack.c.l.b16 %v467
        %v596 = vunpack.c.l.b16 %v468
        %v597 = vunpack.c.l.b16 %v469
        %v598 = vunpack.c.l.b16 %v470
        %v599 = vunpack.c.l.b16 %v471
        %v600 = vunpack.c.l.b16 %v472
        %v601 = vunpack.c.l.b16 %v473
        %v602 = vunpack.c.l.b16 %v474
        %v603 = vunpack.c.l.b16 %v475
        %v604 = vunpack.c.l.b16 %v476
        %v605 = vunpack.c.l.b16 %v477
        %v606 = vunpack.c.l.b16 %v478
        %v607 = vunpack.c.l.b16 %v479
        %v608 = vpack.c.b16 %v545, %v544
        %v609 = vpack.c.b16 %v547, %v546
        %v610 = vpack.c.b16 %v549, %v548
        %v611 = vpack.c.b16 %v551, %v550
        %v612 = vpack.c.b16 %v553, %v552
        %v613 = vpack.c.b16 %v555, %v554
        %v614 = vpack.c.b16 %v557, %v556
        %v615 = vpack.c.b16 %v559, %v558
        %v616 = vpack.c.b16 %v561, %v560
        %v617 = vpack.c.b16 %v563, %v562
        %v618 = vpack.c.b16 %v565, %v564
        %v619 = vpack.c.b16 %v567, %v566
        %v620 = vpack.c.b16 %v569, %v568
        %v621 = vpack.c.b16 %v571, %v570
        %v622 = vpack.c.b16 %v573, %v572
        %v623 = vpack.c.b16 %v575, %v574
        %v624 = vpack.c.b16 %v577, %v576
        %v625 = vpack.c.b16 %v579, %v578
        %v626 = vpack.c.b16 %v581, %v580
        %v627 = vpack.c.b16 %v583, %v582
        %v628 = vpack.c.b16 %v585, %v584
        %v629 = vpack.c.b16 %v587, %v586
        %v630 = vpack.c.b16 %v589, %v588
        %v631 = vpack.c.b16 %v591, %v590
        %v632 = vpack.c.b16 %v593, %v592
        %v633 = vpack.c.b16 %v595, %v594
        %v634 = vpack.c.b16 %v597, %v596
        %v635 = vpack.c.b16 %v599, %v598
        %v636 = vpack.c.b16 %v601, %v600
        %v637 = vpack.c.b16 %v603, %v602
        %v638 = vpack.c.b16 %v605, %v604
        %v639 = vpack.c.b16 %v607, %v606
        %672 = vmatpush.bf16.msra.mxu0 %v615
        %673 = vmatpush.bf16.msra.mxu0 %v614
        %674 = vmatpush.bf16.msra.mxu0 %v613
        %675 = vmatpush.bf16.msra.mxu0 %v612
        %676 = vmatpush.bf16.msra.mxu0 %v611
        %677 = vmatpush.bf16.msra.mxu0 %v610
        %678 = vmatpush.bf16.msra.mxu0 %v609
        %679 = vmatpush.bf16.msra.mxu0 %v608
        %680 = vmatmul.bf16.gmra.mxu0 %v352
        %v681 = vpop.f32.mrf.mxu0
        %v682 = vadd.f32 0.0, %v681
        %v683 = vpop.f32.mrf.mxu0
        %v684 = vadd.f32 0.0, %v683
        %685 = vmatmul.bf16.gmra.mxu0 %v356
        %v686 = vpop.f32.mrf.mxu0
        %v687 = vadd.f32 0.0, %v686
        %v688 = vpop.f32.mrf.mxu0
        %v689 = vadd.f32 0.0, %v688
        %690 = vmatmul.bf16.gmra.mxu0 %v360
        %v691 = vpop.f32.mrf.mxu0
        %v692 = vadd.f32 0.0, %v691
        %v693 = vpop.f32.mrf.mxu0
        %v694 = vadd.f32 0.0, %v693
        %695 = vmatmul.bf16.gmra.mxu0 %v364
        %v696 = vpop.f32.mrf.mxu0
        %v697 = vadd.f32 0.0, %v696
        %v698 = vpop.f32.mrf.mxu0
        %v699 = vadd.f32 0.0, %v698
        %700 = vmatmul.bf16.gmra.mxu0 %v368
        %v701 = vpop.f32.mrf.mxu0
        %v702 = vadd.f32 0.0, %v701
        %v703 = vpop.f32.mrf.mxu0
        %v704 = vadd.f32 0.0, %v703
        %705 = vmatmul.bf16.gmra.mxu0 %v372
        %v706 = vpop.f32.mrf.mxu0
        %v707 = vadd.f32 0.0, %v706
        %v708 = vpop.f32.mrf.mxu0
        %v709 = vadd.f32 0.0, %v708
        %710 = vmatmul.bf16.gmra.mxu0 %v376
        %v711 = vpop.f32.mrf.mxu0
        %v712 = vadd.f32 0.0, %v711
        %v713 = vpop.f32.mrf.mxu0
        %v714 = vadd.f32 0.0, %v713
        %715 = vmatmul.bf16.gmra.mxu0 %v380
        %v716 = vpop.f32.mrf.mxu0
        %v717 = vadd.f32 0.0, %v716
        %v718 = vpop.f32.mrf.mxu0
        %v719 = vadd.f32 0.0, %v718
        %720 = vmatmul.bf16.gmra.mxu0 %v384
        %v721 = vpop.f32.mrf.mxu0
        %v722 = vadd.f32 0.0, %v721
        %v723 = vpop.f32.mrf.mxu0
        %v724 = vadd.f32 0.0, %v723
        %725 = vmatmul.bf16.gmra.mxu0 %v388
        %v726 = vpop.f32.mrf.mxu0
        %v727 = vadd.f32 0.0, %v726
        %v728 = vpop.f32.mrf.mxu0
        %v729 = vadd.f32 0.0, %v728
        %730 = vmatmul.bf16.gmra.mxu0 %v392
        %v731 = vpop.f32.mrf.mxu0
        %v732 = vadd.f32 0.0, %v731
        %v733 = vpop.f32.mrf.mxu0
        %v734 = vadd.f32 0.0, %v733
        %735 = vmatmul.bf16.gmra.mxu0 %v396
        %v736 = vpop.f32.mrf.mxu0
        %v737 = vadd.f32 0.0, %v736
        %v738 = vpop.f32.mrf.mxu0
        %v739 = vadd.f32 0.0, %v738
        %740 = vmatmul.bf16.gmra.mxu0 %v400
        %v741 = vpop.f32.mrf.mxu0
        %v742 = vadd.f32 0.0, %v741
        %v743 = vpop.f32.mrf.mxu0
        %v744 = vadd.f32 0.0, %v743
        %745 = vmatmul.bf16.gmra.mxu0 %v404
        %v746 = vpop.f32.mrf.mxu0
        %v747 = vadd.f32 0.0, %v746
        %v748 = vpop.f32.mrf.mxu0
        %v749 = vadd.f32 0.0, %v748
        %750 = vmatmul.bf16.gmra.mxu0 %v408
        %v751 = vpop.f32.mrf.mxu0
        %v752 = vadd.f32 0.0, %v751
        %v753 = vpop.f32.mrf.mxu0
        %v754 = vadd.f32 0.0, %v753
        %755 = vmatmul.bf16.gmra.mxu0 %v412
        %v756 = vpop.f32.mrf.mxu0
        %v757 = vadd.f32 0.0, %v756
        %v758 = vpop.f32.mrf.mxu0
        %v759 = vadd.f32 0.0, %v758
        %760 = vdwg.mxu0
        %761 = vmatpush.bf16.msra.mxu0 %v623
        %762 = vmatpush.bf16.msra.mxu0 %v622
        %763 = vmatpush.bf16.msra.mxu0 %v621
        %764 = vmatpush.bf16.msra.mxu0 %v620
        %765 = vmatpush.bf16.msra.mxu0 %v619
        %766 = vmatpush.bf16.msra.mxu0 %v618
        %767 = vmatpush.bf16.msra.mxu0 %v617
        %768 = vmatpush.bf16.msra.mxu0 %v616
        %769 = vmatmul.bf16.gmra.mxu0 %v353
        %v770 = vpop.f32.mrf.mxu0
        %v771 = vadd.f32 %v682, %v770
        %v772 = vpop.f32.mrf.mxu0
        %v773 = vadd.f32 %v684, %v772
        %774 = vmatmul.bf16.gmra.mxu0 %v357
        %v775 = vpop.f32.mrf.mxu0
        %v776 = vadd.f32 %v687, %v775
        %v777 = vpop.f32.mrf.mxu0
        %v778 = vadd.f32 %v689, %v777
        %779 = vmatmul.bf16.gmra.mxu0 %v361
        %v780 = vpop.f32.mrf.mxu0
        %v781 = vadd.f32 %v692, %v780
        %v782 = vpop.f32.mrf.mxu0
        %v783 = vadd.f32 %v694, %v782
        %784 = vmatmul.bf16.gmra.mxu0 %v365
        %v785 = vpop.f32.mrf.mxu0
        %v786 = vadd.f32 %v697, %v785
        %v787 = vpop.f32.mrf.mxu0
        %v788 = vadd.f32 %v699, %v787
        %789 = vmatmul.bf16.gmra.mxu0 %v369
        %v790 = vpop.f32.mrf.mxu0
        %v791 = vadd.f32 %v702, %v790
        %v792 = vpop.f32.mrf.mxu0
        %v793 = vadd.f32 %v704, %v792
        %794 = vmatmul.bf16.gmra.mxu0 %v373
        %v795 = vpop.f32.mrf.mxu0
        %v796 = vadd.f32 %v707, %v795
        %v797 = vpop.f32.mrf.mxu0
        %v798 = vadd.f32 %v709, %v797
        %799 = vmatmul.bf16.gmra.mxu0 %v377
        %v800 = vpop.f32.mrf.mxu0
        %v801 = vadd.f32 %v712, %v800
        %v802 = vpop.f32.mrf.mxu0
        %v803 = vadd.f32 %v714, %v802
        %804 = vmatmul.bf16.gmra.mxu0 %v381
        %v805 = vpop.f32.mrf.mxu0
        %v806 = vadd.f32 %v717, %v805
        %v807 = vpop.f32.mrf.mxu0
        %v808 = vadd.f32 %v719, %v807
        %809 = vmatmul.bf16.gmra.mxu0 %v385
        %v810 = vpop.f32.mrf.mxu0
        %v811 = vadd.f32 %v722, %v810
        %v812 = vpop.f32.mrf.mxu0
        %v813 = vadd.f32 %v724, %v812
        %814 = vmatmul.bf16.gmra.mxu0 %v389
        %v815 = vpop.f32.mrf.mxu0
        %v816 = vadd.f32 %v727, %v815
        %v817 = vpop.f32.mrf.mxu0
        %v818 = vadd.f32 %v729, %v817
        %819 = vmatmul.bf16.gmra.mxu0 %v393
        %v820 = vpop.f32.mrf.mxu0
        %v821 = vadd.f32 %v732, %v820
        %v822 = vpop.f32.mrf.mxu0
        %v823 = vadd.f32 %v734, %v822
        %824 = vmatmul.bf16.gmra.mxu0 %v397
        %v825 = vpop.f32.mrf.mxu0
        %v826 = vadd.f32 %v737, %v825
        %v827 = vpop.f32.mrf.mxu0
        %v828 = vadd.f32 %v739, %v827
        %829 = vmatmul.bf16.gmra.mxu0 %v401
        %v830 = vpop.f32.mrf.mxu0
        %v831 = vadd.f32 %v742, %v830
        %v832 = vpop.f32.mrf.mxu0
        %v833 = vadd.f32 %v744, %v832
        %834 = vmatmul.bf16.gmra.mxu0 %v405
        %v835 = vpop.f32.mrf.mxu0
        %v836 = vadd.f32 %v747, %v835
        %v837 = vpop.f32.mrf.mxu0
        %v838 = vadd.f32 %v749, %v837
        %839 = vmatmul.bf16.gmra.mxu0 %v409
        %v840 = vpop.f32.mrf.mxu0
        %v841 = vadd.f32 %v752, %v840
        %v842 = vpop.f32.mrf.mxu0
        %v843 = vadd.f32 %v754, %v842
        %844 = vmatmul.bf16.gmra.mxu0 %v413
        %v845 = vpop.f32.mrf.mxu0
        %v846 = vadd.f32 %v757, %v845
        %v847 = vpop.f32.mrf.mxu0
        %v848 = vadd.f32 %v759, %v847
        %849 = vdwg.mxu0
        %850 = vmatpush.bf16.msra.mxu0 %v631
        %851 = vmatpush.bf16.msra.mxu0 %v630
        %852 = vmatpush.bf16.msra.mxu0 %v629
        %853 = vmatpush.bf16.msra.mxu0 %v628
        %854 = vmatpush.bf16.msra.mxu0 %v627
        %855 = vmatpush.bf16.msra.mxu0 %v626
        %856 = vmatpush.bf16.msra.mxu0 %v625
        %857 = vmatpush.bf16.msra.mxu0 %v624
        %858 = vmatmul.bf16.gmra.mxu0 %v354
        %v859 = vpop.f32.mrf.mxu0
        %v860 = vadd.f32 %v771, %v859
        %v861 = vpop.f32.mrf.mxu0
        %v862 = vadd.f32 %v773, %v861
        %863 = vmatmul.bf16.gmra.mxu0 %v358
        %v864 = vpop.f32.mrf.mxu0
        %v865 = vadd.f32 %v776, %v864
        %v866 = vpop.f32.mrf.mxu0
        %v867 = vadd.f32 %v778, %v866
        %868 = vmatmul.bf16.gmra.mxu0 %v362
        %v869 = vpop.f32.mrf.mxu0
        %v870 = vadd.f32 %v781, %v869
        %v871 = vpop.f32.mrf.mxu0
        %v872 = vadd.f32 %v783, %v871
        %873 = vmatmul.bf16.gmra.mxu0 %v366
        %v874 = vpop.f32.mrf.mxu0
        %v875 = vadd.f32 %v786, %v874
        %v876 = vpop.f32.mrf.mxu0
        %v877 = vadd.f32 %v788, %v876
        %878 = vmatmul.bf16.gmra.mxu0 %v370
        %v879 = vpop.f32.mrf.mxu0
        %v880 = vadd.f32 %v791, %v879
        %v881 = vpop.f32.mrf.mxu0
        %v882 = vadd.f32 %v793, %v881
        %883 = vmatmul.bf16.gmra.mxu0 %v374
        %v884 = vpop.f32.mrf.mxu0
        %v885 = vadd.f32 %v796, %v884
        %v886 = vpop.f32.mrf.mxu0
        %v887 = vadd.f32 %v798, %v886
        %888 = vmatmul.bf16.gmra.mxu0 %v378
        %v889 = vpop.f32.mrf.mxu0
        %v890 = vadd.f32 %v801, %v889
        %v891 = vpop.f32.mrf.mxu0
        %v892 = vadd.f32 %v803, %v891
        %893 = vmatmul.bf16.gmra.mxu0 %v382
        %v894 = vpop.f32.mrf.mxu0
        %v895 = vadd.f32 %v806, %v894
        %v896 = vpop.f32.mrf.mxu0
        %v897 = vadd.f32 %v808, %v896
        %898 = vmatmul.bf16.gmra.mxu0 %v386
        %v899 = vpop.f32.mrf.mxu0
        %v900 = vadd.f32 %v811, %v899
        %v901 = vpop.f32.mrf.mxu0
        %v902 = vadd.f32 %v813, %v901
        %903 = vmatmul.bf16.gmra.mxu0 %v390
        %v904 = vpop.f32.mrf.mxu0
        %v905 = vadd.f32 %v816, %v904
        %v906 = vpop.f32.mrf.mxu0
        %v907 = vadd.f32 %v818, %v906
        %908 = vmatmul.bf16.gmra.mxu0 %v394
        %v909 = vpop.f32.mrf.mxu0
        %v910 = vadd.f32 %v821, %v909
        %v911 = vpop.f32.mrf.mxu0
        %v912 = vadd.f32 %v823, %v911
        %913 = vmatmul.bf16.gmra.mxu0 %v398
        %v914 = vpop.f32.mrf.mxu0
        %v915 = vadd.f32 %v826, %v914
        %v916 = vpop.f32.mrf.mxu0
        %v917 = vadd.f32 %v828, %v916
        %918 = vmatmul.bf16.gmra.mxu0 %v402
        %v919 = vpop.f32.mrf.mxu0
        %v920 = vadd.f32 %v831, %v919
        %v921 = vpop.f32.mrf.mxu0
        %v922 = vadd.f32 %v833, %v921
        %923 = vmatmul.bf16.gmra.mxu0 %v406
        %v924 = vpop.f32.mrf.mxu0
        %v925 = vadd.f32 %v836, %v924
        %v926 = vpop.f32.mrf.mxu0
        %v927 = vadd.f32 %v838, %v926
        %928 = vmatmul.bf16.gmra.mxu0 %v410
        %v929 = vpop.f32.mrf.mxu0
        %v930 = vadd.f32 %v841, %v929
        %v931 = vpop.f32.mrf.mxu0
        %v932 = vadd.f32 %v843, %v931
        %933 = vmatmul.bf16.gmra.mxu0 %v414
        %v934 = vpop.f32.mrf.mxu0
        %v935 = vadd.f32 %v846, %v934
        %v936 = vpop.f32.mrf.mxu0
        %v937 = vadd.f32 %v848, %v936
        %938 = vdwg.mxu0
        %939 = vmatpush.bf16.msra.mxu0 %v639
        %940 = vmatpush.bf16.msra.mxu0 %v638
        %941 = vmatpush.bf16.msra.mxu0 %v637
        %942 = vmatpush.bf16.msra.mxu0 %v636
        %943 = vmatpush.bf16.msra.mxu0 %v635
        %944 = vmatpush.bf16.msra.mxu0 %v634
        %945 = vmatpush.bf16.msra.mxu0 %v633
        %946 = vmatpush.bf16.msra.mxu0 %v632
        %947 = vmatmul.bf16.gmra.mxu0 %v355
        %v948 = vpop.f32.mrf.mxu0
        %v949 = vadd.f32 %v860, %v948
        %v950 = vpop.f32.mrf.mxu0
        %v951 = vadd.f32 %v862, %v950
        %952 = vmatmul.bf16.gmra.mxu0 %v359
        %v953 = vpop.f32.mrf.mxu0
        %v954 = vadd.f32 %v865, %v953
        %v955 = vpop.f32.mrf.mxu0
        %v956 = vadd.f32 %v867, %v955
        %957 = vmatmul.bf16.gmra.mxu0 %v363
        %v958 = vpop.f32.mrf.mxu0
        %v959 = vadd.f32 %v870, %v958
        %v960 = vpop.f32.mrf.mxu0
        %v961 = vadd.f32 %v872, %v960
        %962 = vmatmul.bf16.gmra.mxu0 %v367
        %v963 = vpop.f32.mrf.mxu0
        %v964 = vadd.f32 %v875, %v963
        %v965 = vpop.f32.mrf.mxu0
        %v966 = vadd.f32 %v877, %v965
        %967 = vmatmul.bf16.gmra.mxu0 %v371
        %v968 = vpop.f32.mrf.mxu0
        %v969 = vadd.f32 %v880, %v968
        %v970 = vpop.f32.mrf.mxu0
        %v971 = vadd.f32 %v882, %v970
        %972 = vmatmul.bf16.gmra.mxu0 %v375
        %v973 = vpop.f32.mrf.mxu0
        %v974 = vadd.f32 %v885, %v973
        %v975 = vpop.f32.mrf.mxu0
        %v976 = vadd.f32 %v887, %v975
        %977 = vmatmul.bf16.gmra.mxu0 %v379
        %v978 = vpop.f32.mrf.mxu0
        %v979 = vadd.f32 %v890, %v978
        %v980 = vpop.f32.mrf.mxu0
        %v981 = vadd.f32 %v892, %v980
        %982 = vmatmul.bf16.gmra.mxu0 %v383
        %v983 = vpop.f32.mrf.mxu0
        %v984 = vadd.f32 %v895, %v983
        %v985 = vpop.f32.mrf.mxu0
        %v986 = vadd.f32 %v897, %v985
        %987 = vmatmul.bf16.gmra.mxu0 %v387
        %v988 = vpop.f32.mrf.mxu0
        %v989 = vadd.f32 %v900, %v988
        %v990 = vpop.f32.mrf.mxu0
        %v991 = vadd.f32 %v902, %v990
        %992 = vmatmul.bf16.gmra.mxu0 %v391
        %v993 = vpop.f32.mrf.mxu0
        %v994 = vadd.f32 %v905, %v993
        %v995 = vpop.f32.mrf.mxu0
        %v996 = vadd.f32 %v907, %v995
        %997 = vmatmul.bf16.gmra.mxu0 %v395
        %v998 = vpop.f32.mrf.mxu0
        %v999 = vadd.f32 %v910, %v998
        %v1000 = vpop.f32.mrf.mxu0
        %v1001 = vadd.f32 %v912, %v1000
        %1002 = vmatmul.bf16.gmra.mxu0 %v399
        %v1003 = vpop.f32.mrf.mxu0
        %v1004 = vadd.f32 %v915, %v1003
        %v1005 = vpop.f32.mrf.mxu0
        %v1006 = vadd.f32 %v917, %v1005
        %1007 = vmatmul.bf16.gmra.mxu0 %v403
        %v1008 = vpop.f32.mrf.mxu0
        %v1009 = vadd.f32 %v920, %v1008
        %v1010 = vpop.f32.mrf.mxu0
        %v1011 = vadd.f32 %v922, %v1010
        %1012 = vmatmul.bf16.gmra.mxu0 %v407
        %v1013 = vpop.f32.mrf.mxu0
        %v1014 = vadd.f32 %v925, %v1013
        %v1015 = vpop.f32.mrf.mxu0
        %v1016 = vadd.f32 %v927, %v1015
        %1017 = vmatmul.bf16.gmra.mxu0 %v411
        %v1018 = vpop.f32.mrf.mxu0
        %v1019 = vadd.f32 %v930, %v1018
        %v1020 = vpop.f32.mrf.mxu0
        %v1021 = vadd.f32 %v932, %v1020
        %1022 = vmatmul.bf16.gmra.mxu0 %v415
        %v1023 = vpop.f32.mrf.mxu0
        %v1024 = vadd.f32 %v935, %v1023
        %v1025 = vpop.f32.mrf.mxu0
        %v1026 = vadd.f32 %v937, %v1025
        %1027 = vdwg.mxu0
        %v1028 = vpack.c.bf16 %v949, %v949
        %v1029 = vpack.c.bf16 %v951, %v951
        %v1030 = vpack.c.bf16 %v954, %v954
        %v1031 = vpack.c.bf16 %v956, %v956
        %v1032 = vpack.c.bf16 %v959, %v959
        %v1033 = vpack.c.bf16 %v961, %v961
        %v1034 = vpack.c.bf16 %v964, %v964
        %v1035 = vpack.c.bf16 %v966, %v966
        %v1036 = vpack.c.bf16 %v969, %v969
        %v1037 = vpack.c.bf16 %v971, %v971
        %v1038 = vpack.c.bf16 %v974, %v974
        %v1039 = vpack.c.bf16 %v976, %v976
        %v1040 = vpack.c.bf16 %v979, %v979
        %v1041 = vpack.c.bf16 %v981, %v981
        %v1042 = vpack.c.bf16 %v984, %v984
        %v1043 = vpack.c.bf16 %v986, %v986
        %v1044 = vpack.c.bf16 %v989, %v989
        %v1045 = vpack.c.bf16 %v991, %v991
        %v1046 = vpack.c.bf16 %v994, %v994
        %v1047 = vpack.c.bf16 %v996, %v996
        %v1048 = vpack.c.bf16 %v999, %v999
        %v1049 = vpack.c.bf16 %v1001, %v1001
        %v1050 = vpack.c.bf16 %v1004, %v1004
        %v1051 = vpack.c.bf16 %v1006, %v1006
        %v1052 = vpack.c.bf16 %v1009, %v1009
        %v1053 = vpack.c.bf16 %v1011, %v1011
        %v1054 = vpack.c.bf16 %v1014, %v1014
        %v1055 = vpack.c.bf16 %v1016, %v1016
        %v1056 = vpack.c.bf16 %v1019, %v1019
        %v1057 = vpack.c.bf16 %v1021, %v1021
        %v1058 = vpack.c.bf16 %v1024, %v1024
        %v1059 = vpack.c.bf16 %v1026, %v1026
        %1060 = vst [vmem:[%s218] sm:$0xf] %v1028
        %1061 = vst [vmem:[%s218 + $0x4] sm:$0xf] %v1029
        %1062 = vst [vmem:[%s218 + $0x8] sm:$0xf] %v1030
        %1063 = vst [vmem:[%s218 + $0xc] sm:$0xf] %v1031
        %1064 = vst [vmem:[%s218 + $0x10] sm:$0xf] %v1032
        %1065 = vst [vmem:[%s218 + $0x14] sm:$0xf] %v1033
        %1066 = vst [vmem:[%s218 + $0x18] sm:$0xf] %v1034
        %1067 = vst [vmem:[%s218 + $0x1c] sm:$0xf] %v1035
        %1068 = vst [vmem:[%s218 + $0x20] sm:$0xf] %v1036
        %1069 = vst [vmem:[%s218 + $0x24] sm:$0xf] %v1037
        %1070 = vst [vmem:[%s218 + $0x28] sm:$0xf] %v1038
        %1071 = vst [vmem:[%s218 + $0x2c] sm:$0xf] %v1039
        %1072 = vst [vmem:[%s218 + $0x30] sm:$0xf] %v1040
        %1073 = vst [vmem:[%s218 + $0x34] sm:$0xf] %v1041
        %1074 = vst [vmem:[%s218 + $0x38] sm:$0xf] %v1042
        %1075 = vst [vmem:[%s218 + $0x3c] sm:$0xf] %v1043
        %1076 = vst [vmem:[%s218 + $0x40] sm:$0xf] %v1044
        %1077 = vst [vmem:[%s218 + $0x44] sm:$0xf] %v1045
        %1078 = vst [vmem:[%s218 + $0x48] sm:$0xf] %v1046
        %1079 = vst [vmem:[%s218 + $0x4c] sm:$0xf] %v1047
        %1080 = vst [vmem:[%s218 + $0x50] sm:$0xf] %v1048
        %1081 = vst [vmem:[%s218 + $0x54] sm:$0xf] %v1049
        %1082 = vst [vmem:[%s218 + $0x58] sm:$0xf] %v1050
        %1083 = vst [vmem:[%s218 + $0x5c] sm:$0xf] %v1051
        %1084 = vst [vmem:[%s218 + $0x60] sm:$0xf] %v1052
        %1085 = vst [vmem:[%s218 + $0x64] sm:$0xf] %v1053
        %1086 = vst [vmem:[%s218 + $0x68] sm:$0xf] %v1054
        %1087 = vst [vmem:[%s218 + $0x6c] sm:$0xf] %v1055
        %1088 = vst [vmem:[%s218 + $0x70] sm:$0xf] %v1056
        %1089 = vst [vmem:[%s218 + $0x74] sm:$0xf] %v1057
        %1090 = vst [vmem:[%s218 + $0x78] sm:$0xf] %v1058
        %1091 = vst [vmem:[%s218 + $0x7c] sm:$0xf] %v1059
        %v1092 = vadd.f32 %v949, %v951
        %v1093 = vadd.f32 %v1092, %v954
        %v1094 = vadd.f32 %v1093, %v956
        %v1095 = vadd.f32 %v1094, %v959
        %v1096 = vadd.f32 %v1095, %v961
        %v1097 = vadd.f32 %v1096, %v964
        %v1098 = vadd.f32 %v1097, %v966
        %v1099 = vadd.f32 %v1098, %v969
        %v1100 = vadd.f32 %v1099, %v971
        %v1101 = vadd.f32 %v1100, %v974
        %v1102 = vadd.f32 %v1101, %v976
        %v1103 = vadd.f32 %v1102, %v979
        %v1104 = vadd.f32 %v1103, %v981
        %v1105 = vadd.f32 %v1104, %v984
        %v1106 = vadd.f32 %v1105, %v986
        %v1107 = vadd.f32 %v1106, %v989
        %v1108 = vadd.f32 %v1107, %v991
        %v1109 = vadd.f32 %v1108, %v994
        %v1110 = vadd.f32 %v1109, %v996
        %v1111 = vadd.f32 %v1110, %v999
        %v1112 = vadd.f32 %v1111, %v1001
        %v1113 = vadd.f32 %v1112, %v1004
        %v1114 = vadd.f32 %v1113, %v1006
        %v1115 = vadd.f32 %v1114, %v1009
        %v1116 = vadd.f32 %v1115, %v1011
        %v1117 = vadd.f32 %v1116, %v1014
        %v1118 = vadd.f32 %v1117, %v1016
        %v1119 = vadd.f32 %v1118, %v1019
        %v1120 = vadd.f32 %v1119, %v1021
        %v1121 = vadd.f32 %v1120, %v1024
        %v1122 = vadd.f32 %v1121, %v1026
        %v1123 = vrot.slane %v1122, 4
        %v1124 = vadd.f32 %v1122, %v1123
        %v1125 = vrot.slane %v1124, 2
        %v1126 = vadd.f32 %v1124, %v1125
        %v1127 = vrot.slane %v1126, 1
        %v1128 = vadd.f32 %v1126, %v1127
        %v1129 = vmul.f32 %v1128, 0.00390625
        %v1130 = vsub.f32 %v949, %v1129
        %v1131 = vsub.f32 %v951, %v1129
        %v1132 = vsub.f32 %v954, %v1129
        %v1133 = vsub.f32 %v956, %v1129
        %v1134 = vsub.f32 %v959, %v1129
        %v1135 = vsub.f32 %v961, %v1129
        %v1136 = vsub.f32 %v964, %v1129
        %v1137 = vsub.f32 %v966, %v1129
        %v1138 = vsub.f32 %v969, %v1129
        %v1139 = vsub.f32 %v971, %v1129
        %v1140 = vsub.f32 %v974, %v1129
        %v1141 = vsub.f32 %v976, %v1129
        %v1142 = vsub.f32 %v979, %v1129
        %v1143 = vsub.f32 %v981, %v1129
        %v1144 = vsub.f32 %v984, %v1129
        %v1145 = vsub.f32 %v986, %v1129
        %v1146 = vsub.f32 %v989, %v1129
        %v1147 = vsub.f32 %v991, %v1129
        %v1148 = vsub.f32 %v994, %v1129
        %v1149 = vsub.f32 %v996, %v1129
        %v1150 = vsub.f32 %v999, %v1129
        %v1151 = vsub.f32 %v1001, %v1129
        %v1152 = vsub.f32 %v1004, %v1129
        %v1153 = vsub.f32 %v1006, %v1129
        %v1154 = vsub.f32 %v1009, %v1129
        %v1155 = vsub.f32 %v1011, %v1129
        %v1156 = vsub.f32 %v1014, %v1129
        %v1157 = vsub.f32 %v1016, %v1129
        %v1158 = vsub.f32 %v1019, %v1129
        %v1159 = vsub.f32 %v1021, %v1129
        %v1160 = vsub.f32 %v1024, %v1129
        %v1161 = vsub.f32 %v1026, %v1129
        %v1162 = vmul.f32 %v1130, %v1130
        %v1163 = vmul.f32 %v1131, %v1131
        %v1164 = vmul.f32 %v1132, %v1132
        %v1165 = vmul.f32 %v1133, %v1133
        %v1166 = vmul.f32 %v1134, %v1134
        %v1167 = vmul.f32 %v1135, %v1135
        %v1168 = vmul.f32 %v1136, %v1136
        %v1169 = vmul.f32 %v1137, %v1137
        %v1170 = vmul.f32 %v1138, %v1138
        %v1171 = vmul.f32 %v1139, %v1139
        %v1172 = vmul.f32 %v1140, %v1140
        %v1173 = vmul.f32 %v1141, %v1141
        %v1174 = vmul.f32 %v1142, %v1142
        %v1175 = vmul.f32 %v1143, %v1143
        %v1176 = vmul.f32 %v1144, %v1144
        %v1177 = vmul.f32 %v1145, %v1145
        %v1178 = vmul.f32 %v1146, %v1146
        %v1179 = vmul.f32 %v1147, %v1147
        %v1180 = vmul.f32 %v1148, %v1148
        %v1181 = vmul.f32 %v1149, %v1149
        %v1182 = vmul.f32 %v1150, %v1150
        %v1183 = vmul.f32 %v1151, %v1151
        %v1184 = vmul.f32 %v1152, %v1152
        %v1185 = vmul.f32 %v1153, %v1153
        %v1186 = vmul.f32 %v1154, %v1154
        %v1187 = vmul.f32 %v1155, %v1155
        %v1188 = vmul.f32 %v1156, %v1156
        %v1189 = vmul.f32 %v1157, %v1157
        %v1190 = vmul.f32 %v1158, %v1158
        %v1191 = vmul.f32 %v1159, %v1159
        %v1192 = vmul.f32 %v1160, %v1160
        %v1193 = vmul.f32 %v1161, %v1161
        %v1194 = vadd.f32 %v1162, %v1163
        %v1195 = vadd.f32 %v1194, %v1164
        %v1196 = vadd.f32 %v1195, %v1165
        %v1197 = vadd.f32 %v1196, %v1166
        %v1198 = vadd.f32 %v1197, %v1167
        %v1199 = vadd.f32 %v1198, %v1168
        %v1200 = vadd.f32 %v1199, %v1169
        %v1201 = vadd.f32 %v1200, %v1170
        %v1202 = vadd.f32 %v1201, %v1171
        %v1203 = vadd.f32 %v1202, %v1172
        %v1204 = vadd.f32 %v1203, %v1173
        %v1205 = vadd.f32 %v1204, %v1174
        %v1206 = vadd.f32 %v1205, %v1175
        %v1207 = vadd.f32 %v1206, %v1176
        %v1208 = vadd.f32 %v1207, %v1177
        %v1209 = vadd.f32 %v1208, %v1178
        %v1210 = vadd.f32 %v1209, %v1179
        %v1211 = vadd.f32 %v1210, %v1180
        %v1212 = vadd.f32 %v1211, %v1181
        %v1213 = vadd.f32 %v1212, %v1182
        %v1214 = vadd.f32 %v1213, %v1183
        %v1215 = vadd.f32 %v1214, %v1184
        %v1216 = vadd.f32 %v1215, %v1185
        %v1217 = vadd.f32 %v1216, %v1186
        %v1218 = vadd.f32 %v1217, %v1187
        %v1219 = vadd.f32 %v1218, %v1188
        %v1220 = vadd.f32 %v1219, %v1189
        %v1221 = vadd.f32 %v1220, %v1190
        %v1222 = vadd.f32 %v1221, %v1191
        %v1223 = vadd.f32 %v1222, %v1192
        %v1224 = vadd.f32 %v1223, %v1193
        %v1225 = vrot.slane %v1224, 4
        %v1226 = vadd.f32 %v1224, %v1225
        %v1227 = vrot.slane %v1226, 2
        %v1228 = vadd.f32 %v1226, %v1227
        %v1229 = vrot.slane %v1228, 1
        %v1230 = vadd.f32 %v1228, %v1229
        %vm1231 = vcmask 1040384
        %v1232 = vsel %vm1231, %v1128, %v1230
        %1233 = vst [vmem:[%s223] sm:$0x3] %v1232
        %s1234 = smul.u32 32, %s19
        %p1235 = scmp.lt.s32.totalorder %s1234, 63
        %s1236 = scalar_select %p1235, %s1234, 63
        %s1237 = smul.addr %s1236, 4
        %s1238 = scalar_lea.vmem %s2, %s1237
        %p1239 = scmp.lt.s32.totalorder %s19, 1
        %s1240 = scalar_select %p1239, %s19, 1
        %s1241 = smul.addr %s1240, 2
        %s1242 = scalar_lea.vmem %s3, %s1241
        // Predicated region
        $region37: #{bottleneck_forward_nhwc.4} parent=27 // pred_check
          %p1243 = pneg %p84
        $region38: #{bottleneck_forward_nhwc.4} parent=27 // pred_check_branch
          %1245 = sbr.rel (%p1243) target = $region40
        $region39: #{bottleneck_forward_nhwc.4} parent=27 // pred_region
          %s1246 = smul.u32 32, %s19
        $region40: #{bottleneck_forward_nhwc.4} parent=27 // pred_fallthru
          _
        // Predicated region
        $region41: #{bottleneck_forward_nhwc.4} parent=27 // pred_check
          %p1247 = pneg %p110
        $region42: #{bottleneck_forward_nhwc.4} parent=27 // pred_check_branch
          %1249 = sbr.rel (%p1247) target = $region44
        $region43: #{bottleneck_forward_nhwc.4} parent=27 // pred_region
          _
        $region44: #{bottleneck_forward_nhwc.4} parent=27 // pred_fallthru
          _
      $region28: #{bottleneck_forward_nhwc.4} parent=5 // pred_fallthru
        _
      %p1250 = scmp.le.s32.totalorder 2, %s14
      // Predicated region
      $region45: #{bottleneck_forward_nhwc.4} parent=5 // pred_check
        %p1251 = pneg %p1250
      $region46: #{bottleneck_forward_nhwc.4} parent=5 // pred_check_branch
        %1253 = sbr.rel (%p1251) target = $region48
      $region47: #{bottleneck_forward_nhwc.4} parent=5 // pred_region
        %s1254 = ssub.s32 %s14, 2
        // Predicated region
        $region49: #{bottleneck_forward_nhwc.4} parent=47 // pred_check
          %p1255 = pneg %p90
        $region50: #{bottleneck_forward_nhwc.4} parent=47 // pred_check_branch
          %1257 = sbr.rel (%p1255) target = $region52
        $region51: #{bottleneck_forward_nhwc.4} parent=47 // pred_region
          %s1258 = smul.u32 32, %s20
          %p1259 = scmp.lt.s32.totalorder %s1258, 63
          %s1260 = scalar_select %p1259, %s1258, 63
          %s1261 = smul.addr %s1260, 4
          %s1262 = scalar_lea.vmem %s2, %s1261
        $region52: #{bottleneck_forward_nhwc.4} parent=47 // pred_fallthru
          _
        // Predicated region
        $region53: #{bottleneck_forward_nhwc.4} parent=47 // pred_check
          %p1263 = pneg %p116
        $region54: #{bottleneck_forward_nhwc.4} parent=47 // pred_check_branch
          %1265 = sbr.rel (%p1263) target = $region56
        $region55: #{bottleneck_forward_nhwc.4} parent=47 // pred_region
          %p1266 = scmp.lt.s32.totalorder %s20, 1
          %s1267 = scalar_select %p1266, %s20, 1
          %s1268 = smul.addr %s1267, 2
          %s1269 = scalar_lea.vmem %s3, %s1268
        $region56: #{bottleneck_forward_nhwc.4} parent=47 // pred_fallthru
          _
      $region48: #{bottleneck_forward_nhwc.4} parent=5 // pred_fallthru
        _
    $region6: #{bottleneck_forward_nhwc.4} parent=1 // loop_footer
      %s18 = sadd.s32 1, %s14
    $region7: #{bottleneck_forward_nhwc.4} parent=1 // loop_footer_branch
      %13 = sbr.rel target = $region3
    $region8: #{bottleneck_forward_nhwc.4} parent=1 // loop_exit
      _
    %1270 = vsyncpa [#allocation3], 1
    %s1271 = scalar_lea.sflag [#allocation3], 1
    %1272 = vsyncpa %s1271, 1
    %1273 = vsyncpa [#allocation5], 1

// kernel: bottleneck_forward_nhwc.6
$region0: #{bottleneck_forward_nhwc.6}
  #allocation0 [shape = 'u32[]', space=smem, size = 0x4, offset = 0x4, fixed_abs, tag = 'smem constant byte address 0x4 - core index']
  #allocation1 [shape = 'u32[72,128]{1,0:T(1,128)}', space=vmem, size = 0x9000, scoped, tag = 'internal scratch']
  %s0 = inlined_call_operand.vmem [shape: bf16[512,128], index: 0, kind: input, shape index: {}]
  %s1 = inlined_call_operand.vmem [shape: f32[1,128], index: 1, kind: input, shape index: {}]
  %s2 = inlined_call_operand.vmem [shape: f32[1,128], index: 2, kind: input, shape index: {}]
  %s3 = inlined_call_operand.hbm [shape: bf16[128,512], index: 3, kind: input, shape index: {}]
  %s4 = inlined_call_operand.vmem [shape: bf16[512,512], index: 4, kind: output, shape index: {0}]
  %s5 = inlined_call_operand.vmem [shape: f32[2,2,512], index: 5, kind: output, shape index: {1}]
  %6 = xla_tuple %s4, %s5
  %s7 = sld [smem:[#allocation0]]
  $region61: #{bottleneck_forward_nhwc.6} parent=0
    _
  %s9 = ssub.s32 1, %s7
  %s10 = scalar_select 0, %s9, %s7
  $region1: #{bottleneck_forward_nhwc.6} parent=0
    #allocation2 [shape = 'u8[131072]{0}', space=vmem, size = 0x20000, scoped, tag = 'input window, operand 3, single buffered']
    #allocation3 [shape = 's32[2]{0}', space=sflag, size = 0x8, scoped, tag = 'scoped memory for bottleneck_forward_nhwc.6']
    %11 = vsyncpa [#allocation3], 0
    loop: start=0, step=1, limit=4
    $region2: #{bottleneck_forward_nhwc.6} parent=1 // loop_pre_header
      _
    $region3: #{bottleneck_forward_nhwc.6} parent=1 // loop_header
      %s13 = sphi 0, %s17
      %p14 = scmp.ge.s32.totalorder %s13, 4
      %s23 = sphi 0, %s25
      %s26 = sphi 0, %s23
      %s27 = sphi 0, %s26
      %s43 = sphi 0, %s27
      %s47 = sphi 0, %s47
      %s49 = sphi 0, %s47
      %s50 = sphi 0, %s49
      %s64 = sphi 0, %s50
      %s68 = sphi 0, %s68
      %s70 = sphi 0, %s68
      %s71 = sphi 0, %s70
      %s85 = sphi 0, %s71
      %s89 = sphi 0, %s89
      %s91 = sphi 0, %s89
      %s92 = sphi 0, %s91
      %s106 = sphi 0, %s92
      %s112 = sphi 0, %s114
      %s115 = sphi 0, %s112
      %s116 = sphi 0, %s115
      %s132 = sphi 0, %s116
      %s138 = sphi 0, %s140
      %s141 = sphi 0, %s138
      %s142 = sphi 0, %s141
      %s158 = sphi 0, %s142
    $region4: #{bottleneck_forward_nhwc.6} parent=1 // loop_header_branch
      %16 = sbr.rel (%p14) target = $region8
    $region5: #{bottleneck_forward_nhwc.6} parent=1 // loop_body
      %s18 = ssub.s32 %s13, 1
      %s19 = ssub.s32 %s13, 2
      %s20 = sadd.s32 %s13, 1
      %s21 = ssub.s32 %s13, %s20
      %p22 = scmp.eq.s32.totalorder %s21, 0
      %s24 = sadd.s32 %s23, 1
      %s25 = scalar_select %p22, %s23, %s24
      %p28 = pneg %p22
      %p29 = scmp.eq.s32.totalorder %s13, 1
      %p30 = por %p28, %p29
      %p31 = scmp.ne.s32.totalorder %s23, %s26
      %p32 = scmp.eq.s32.totalorder %s13, 0
      %p33 = por %p31, %p32
      %p34 = scmp.ne.s32.totalorder %s23, %s26
      %p35 = scmp.eq.s32.totalorder %s18, 1
      %p36 = por %p34, %p35
      %p37 = scmp.ne.s32.totalorder %s26, %s27
      %p38 = scmp.eq.s32.totalorder %s18, 0
      %p39 = por %p37, %p38
      %p40 = scmp.ne.s32.totalorder %s26, %s27
      %p41 = scmp.eq.s32.totalorder %s19, 1
      %p42 = por %p40, %p41
      %p44 = scmp.ne.s32.totalorder %s27, %s43
      %p45 = scmp.eq.s32.totalorder %s19, 0
      %p46 = por %p44, %p45
      %s48 = sadd.s32 %s47, 1
      %p51 = scmp.eq.s32.totalorder %s13, 1
      %p52 = scmp.ne.s32.totalorder %s47, %s49
      %p53 = scmp.eq.s32.totalorder %s13, 0
      %p54 = por %p52, %p53
      %p55 = scmp.ne.s32.totalorder %s47, %s49
      %p56 = scmp.eq.s32.totalorder %s18, 1
      %p57 = por %p55, %p56
      %p58 = scmp.ne.s32.totalorder %s49, %s50
      %p59 = scmp.eq.s32.totalorder %s18, 0
      %p60 = por %p58, %p59
      %p61 = scmp.ne.s32.totalorder %s49, %s50
      %p62 = scmp.eq.s32.totalorder %s19, 1
      %p63 = por %p61, %p62
      %p65 = scmp.ne.s32.totalorder %s50, %s64
      %p66 = scmp.eq.s32.totalorder %s19, 0
      %p67 = por %p65, %p66
      %s69 = sadd.s32 %s68, 1
      %p72 = scmp.eq.s32.totalorder %s13, 1
      %p73 = scmp.ne.s32.totalorder %s68, %s70
      %p74 = scmp.eq.s32.totalorder %s13, 0
      %p75 = por %p73, %p74
      %p76 = scmp.ne.s32.totalorder %s68, %s70
      %p77 = scmp.eq.s32.totalorder %s18, 1
      %p78 = por %p76, %p77
      %p79 = scmp.ne.s32.totalorder %s70, %s71
      %p80 = scmp.eq.s32.totalorder %s18, 0
      %p81 = por %p79, %p80
      %p82 = scmp.ne.s32.totalorder %s70, %s71
      %p83 = scmp.eq.s32.totalorder %s19, 1
      %p84 = por %p82, %p83
      %p86 = scmp.ne.s32.totalorder %s71, %s85
      %p87 = scmp.eq.s32.totalorder %s19, 0
      %p88 = por %p86, %p87
      %s90 = sadd.s32 %s89, 1
      %p93 = scmp.eq.s32.totalorder %s13, 1
      %p94 = scmp.ne.s32.totalorder %s89, %s91
      %p95 = scmp.eq.s32.totalorder %s13, 0
      %p96 = por %p94, %p95
      %p97 = scmp.ne.s32.totalorder %s89, %s91
      %p98 = scmp.eq.s32.totalorder %s18, 1
      %p99 = por %p97, %p98
      %p100 = scmp.ne.s32.totalorder %s91, %s92
      %p101 = scmp.eq.s32.totalorder %s18, 0
      %p102 = por %p100, %p101
      %p103 = scmp.ne.s32.totalorder %s91, %s92
      %p104 = scmp.eq.s32.totalorder %s19, 1
      %p105 = por %p103, %p104
      %p107 = scmp.ne.s32.totalorder %s92, %s106
      %p108 = scmp.eq.s32.totalorder %s19, 0
      %p109 = por %p107, %p108
      %s110 = ssub.s32 %s13, %s20
      %p111 = scmp.eq.s32.totalorder %s110, 0
      %s113 = sadd.s32 %s112, 1
      %s114 = scalar_select %p111, %s112, %s113
      %p117 = pneg %p111
      %p118 = scmp.eq.s32.totalorder %s13, 1
      %p119 = por %p117, %p118
      %p120 = scmp.ne.s32.totalorder %s112, %s115
      %p121 = scmp.eq.s32.totalorder %s13, 0
      %p122 = por %p120, %p121
      %p123 = scmp.ne.s32.totalorder %s112, %s115
      %p124 = scmp.eq.s32.totalorder %s18, 1
      %p125 = por %p123, %p124
      %p126 = scmp.ne.s32.totalorder %s115, %s116
      %p127 = scmp.eq.s32.totalorder %s18, 0
      %p128 = por %p126, %p127
      %p129 = scmp.ne.s32.totalorder %s115, %s116
      %p130 = scmp.eq.s32.totalorder %s19, 1
      %p131 = por %p129, %p130
      %p133 = scmp.ne.s32.totalorder %s116, %s132
      %p134 = scmp.eq.s32.totalorder %s19, 0
      %p135 = por %p133, %p134
      %s136 = ssub.s32 %s13, %s20
      %p137 = scmp.eq.s32.totalorder %s136, 0
      %s139 = sadd.s32 %s138, 1
      %s140 = scalar_select %p137, %s138, %s139
      %p143 = pneg %p137
      %p144 = scmp.eq.s32.totalorder %s13, 1
      %p145 = por %p143, %p144
      %p146 = scmp.ne.s32.totalorder %s138, %s141
      %p147 = scmp.eq.s32.totalorder %s13, 0
      %p148 = por %p146, %p147
      %p149 = scmp.ne.s32.totalorder %s138, %s141
      %p150 = scmp.eq.s32.totalorder %s18, 1
      %p151 = por %p149, %p150
      %p152 = scmp.ne.s32.totalorder %s141, %s142
      %p153 = scmp.eq.s32.totalorder %s18, 0
      %p154 = por %p152, %p153
      %p155 = scmp.ne.s32.totalorder %s141, %s142
      %p156 = scmp.eq.s32.totalorder %s19, 1
      %p157 = por %p155, %p156
      %p159 = scmp.ne.s32.totalorder %s142, %s158
      %p160 = scmp.eq.s32.totalorder %s19, 0
      %p161 = por %p159, %p160
      %p162 = scmp.le.s32.totalorder 1, %s13
      %p163 = scmp.lt.s32.totalorder %s13, 3
      %p164 = pnand %p162, %p163
      %p165 = pneg %p164
      // Predicated region
      $region9: #{bottleneck_forward_nhwc.6} parent=5 // pred_check
        _
      $region10: #{bottleneck_forward_nhwc.6} parent=5 // pred_check_branch
        %167 = sbr.rel (%p164) target = $region12
      $region11: #{bottleneck_forward_nhwc.6} parent=5 // pred_region
        %s168 = ssub.s32 %s13, 1
        // Predicated region
        $region13: #{bottleneck_forward_nhwc.6} parent=11 // pred_check
          %p169 = pneg %p60
        $region14: #{bottleneck_forward_nhwc.6} parent=11 // pred_check_branch
          %171 = sbr.rel (%p169) target = $region16
        $region15: #{bottleneck_forward_nhwc.6} parent=11 // pred_region
          _
        $region16: #{bottleneck_forward_nhwc.6} parent=11 // pred_fallthru
          _
        // Predicated region
        $region17: #{bottleneck_forward_nhwc.6} parent=11 // pred_check
          %p172 = pneg %p81
        $region18: #{bottleneck_forward_nhwc.6} parent=11 // pred_check_branch
          %174 = sbr.rel (%p172) target = $region20
        $region19: #{bottleneck_forward_nhwc.6} parent=11 // pred_region
          _
        $region20: #{bottleneck_forward_nhwc.6} parent=11 // pred_fallthru
          _
        // Predicated region
        $region21: #{bottleneck_forward_nhwc.6} parent=11 // pred_check
          %p175 = pneg %p102
        $region22: #{bottleneck_forward_nhwc.6} parent=11 // pred_check_branch
          %177 = sbr.rel (%p175) target = $region24
        $region23: #{bottleneck_forward_nhwc.6} parent=11 // pred_region
          %179 = vsyncadd [#allocation3], 0
          %s180 = sshll.u32 %s3, 4
          %s181 = int_to_ptr.hbm [resolvable:$true] %s180
          %s182 = sshll.u32 [#allocation2], 4
          %s183 = int_to_ptr.vmem [resolvable:$true] %s182
          %188 = dma.hbm_to_vmem [thread:$0]  %s181, 4096, %s183, [#allocation3], 256, 256, 16
        $region24: #{bottleneck_forward_nhwc.6} parent=11 // pred_fallthru
          _
      $region12: #{bottleneck_forward_nhwc.6} parent=5 // pred_fallthru
        _
      %p189 = scmp.lt.s32.totalorder %s13, 2
      // Predicated region
      $region25: #{bottleneck_forward_nhwc.6} parent=5 // pred_check
        %p190 = pneg %p189
      $region26: #{bottleneck_forward_nhwc.6} parent=5 // pred_check_branch
        %192 = sbr.rel (%p190) target = $region28
      $region27: #{bottleneck_forward_nhwc.6} parent=5 // pred_region
        // Predicated region
        $region29: #{bottleneck_forward_nhwc.6} parent=27 // pred_check
          %p193 = pneg %p33
        $region30: #{bottleneck_forward_nhwc.6} parent=27 // pred_check_branch
          %195 = sbr.rel (%p193) target = $region32
        $region31: #{bottleneck_forward_nhwc.6} parent=27 // pred_region
          %s196 = smul.u32 32, %s13
          %p197 = scmp.lt.s32.totalorder %s196, 63
          %s198 = scalar_select %p197, %s196, 63
          %s199 = smul.addr %s198, 4
          %s200 = scalar_lea.vmem %s0, %s199
          %s201 = smul.u32 32, %s13
        $region32: #{bottleneck_forward_nhwc.6} parent=27 // pred_fallthru
          _
      $region28: #{bottleneck_forward_nhwc.6} parent=5 // pred_fallthru
        _
      %p202 = scmp.le.s32.totalorder 1, %s13
      %p203 = scmp.lt.s32.totalorder %s13, 3
      %p204 = pnand %p202, %p203
      %p205 = pneg %p204
      // Predicated region
      $region33: #{bottleneck_forward_nhwc.6} parent=5 // pred_check
        _
      $region34: #{bottleneck_forward_nhwc.6} parent=5 // pred_check_branch
        %207 = sbr.rel (%p204) target = $region36
      $region35: #{bottleneck_forward_nhwc.6} parent=5 // pred_region
        %s208 = ssub.s32 %s13, 1
        // Predicated region
        $region37: #{bottleneck_forward_nhwc.6} parent=35 // pred_check
          %p209 = pneg %p102
        $region38: #{bottleneck_forward_nhwc.6} parent=35 // pred_check_branch
          %211 = sbr.rel (%p209) target = $region40
        $region39: #{bottleneck_forward_nhwc.6} parent=35 // pred_region
          %213 = dma.done [#allocation3], 4096
        $region40: #{bottleneck_forward_nhwc.6} parent=35 // pred_fallthru
          _
        %s214 = smul.u32 32, %s18
        %p215 = scmp.lt.s32.totalorder %s214, 63
        %s216 = scalar_select %p215, %s214, 63
        %s217 = smul.addr %s216, 4
        %s218 = scalar_lea.vmem %s0, %s217
        %p219 = pneg %p39
        %p220 = pneg %p36
        %p221 = pneg %p60
        %p222 = pneg %p57
        %p223 = pneg %p81
        %p224 = pneg %p78
        %p225 = pneg %p102
        %p226 = pneg %p99
        %p227 = pneg %p128
        %p228 = pneg %p125
        %s229 = smul.u32 32, %s18
        %p230 = scmp.lt.s32.totalorder %s229, 63
        %s231 = scalar_select %p230, %s229, 63
        %s232 = smul.addr %s231, 4
        %s233 = smul.addr %s232, 4
        %s234 = scalar_lea.vmem %s4, %s233
        %p235 = pneg %p154
        %p236 = pneg %p151
        %p237 = scmp.lt.s32.totalorder %s18, 1
        %s238 = scalar_select %p237, %s18, 1
        %s239 = smul.addr %s238, 4
        %s240 = smul.addr %s239, 2
        %s241 = scalar_lea.vmem %s5, %s240
        %s242 = smul.u32 32, %s18
        %p243 = scmp.lt.s32.totalorder %s242, 63
        %s244 = scalar_select %p243, %s242, 63
        %s245 = smul.addr %s244, 4
        %s246 = scalar_lea.vmem %s0, %s245
        %s247 = smul.u32 32, %s18
        %s248 = smul.u32 32, %s18
        %p249 = scmp.lt.s32.totalorder %s248, 63
        %s250 = scalar_select %p249, %s248, 63
        %s251 = smul.addr %s250, 4
        %s252 = smul.addr %s251, 4
        %s253 = scalar_lea.vmem %s4, %s252
        %s254 = smul.u32 32, %s18
        %p255 = scmp.lt.s32.totalorder %s18, 1
        %s256 = scalar_select %p255, %s18, 1
        %s257 = smul.addr %s256, 4
        %s258 = smul.addr %s257, 2
        %s259 = scalar_lea.vmem %s5, %s258
        %v260 = vld [vmem:[%s246] sm:$0xf]
        %v261 = vld [vmem:[%s246 + $0x4] sm:$0xf]
        %v262 = vld [vmem:[%s246 + $0x8] sm:$0xf]
        %v263 = vld [vmem:[%s246 + $0xc] sm:$0xf]
        %v264 = vld [vmem:[%s246 + $0x10] sm:$0xf]
        %v265 = vld [vmem:[%s246 + $0x14] sm:$0xf]
        %v266 = vld [vmem:[%s246 + $0x18] sm:$0xf]
        %v267 = vld [vmem:[%s246 + $0x1c] sm:$0xf]
        %v268 = vld [vmem:[%s246 + $0x20] sm:$0xf]
        %v269 = vld [vmem:[%s246 + $0x24] sm:$0xf]
        %v270 = vld [vmem:[%s246 + $0x28] sm:$0xf]
        %v271 = vld [vmem:[%s246 + $0x2c] sm:$0xf]
        %v272 = vld [vmem:[%s246 + $0x30] sm:$0xf]
        %v273 = vld [vmem:[%s246 + $0x34] sm:$0xf]
        %v274 = vld [vmem:[%s246 + $0x38] sm:$0xf]
        %v275 = vld [vmem:[%s246 + $0x3c] sm:$0xf]
        %v276 = vld [vmem:[%s246 + $0x40] sm:$0xf]
        %v277 = vld [vmem:[%s246 + $0x44] sm:$0xf]
        %v278 = vld [vmem:[%s246 + $0x48] sm:$0xf]
        %v279 = vld [vmem:[%s246 + $0x4c] sm:$0xf]
        %v280 = vld [vmem:[%s246 + $0x50] sm:$0xf]
        %v281 = vld [vmem:[%s246 + $0x54] sm:$0xf]
        %v282 = vld [vmem:[%s246 + $0x58] sm:$0xf]
        %v283 = vld [vmem:[%s246 + $0x5c] sm:$0xf]
        %v284 = vld [vmem:[%s246 + $0x60] sm:$0xf]
        %v285 = vld [vmem:[%s246 + $0x64] sm:$0xf]
        %v286 = vld [vmem:[%s246 + $0x68] sm:$0xf]
        %v287 = vld [vmem:[%s246 + $0x6c] sm:$0xf]
        %v288 = vld [vmem:[%s246 + $0x70] sm:$0xf]
        %v289 = vld [vmem:[%s246 + $0x74] sm:$0xf]
        %v290 = vld [vmem:[%s246 + $0x78] sm:$0xf]
        %v291 = vld [vmem:[%s246 + $0x7c] sm:$0xf]
        %v292 = vunpack.c.l.bf16 %v260
        %v293 = vunpack.c.l.bf16 %v261
        %v294 = vunpack.c.l.bf16 %v262
        %v295 = vunpack.c.l.bf16 %v263
        %v296 = vunpack.c.l.bf16 %v264
        %v297 = vunpack.c.l.bf16 %v265
        %v298 = vunpack.c.l.bf16 %v266
        %v299 = vunpack.c.l.bf16 %v267
        %v300 = vunpack.c.l.bf16 %v268
        %v301 = vunpack.c.l.bf16 %v269
        %v302 = vunpack.c.l.bf16 %v270
        %v303 = vunpack.c.l.bf16 %v271
        %v304 = vunpack.c.l.bf16 %v272
        %v305 = vunpack.c.l.bf16 %v273
        %v306 = vunpack.c.l.bf16 %v274
        %v307 = vunpack.c.l.bf16 %v275
        %v308 = vunpack.c.l.bf16 %v276
        %v309 = vunpack.c.l.bf16 %v277
        %v310 = vunpack.c.l.bf16 %v278
        %v311 = vunpack.c.l.bf16 %v279
        %v312 = vunpack.c.l.bf16 %v280
        %v313 = vunpack.c.l.bf16 %v281
        %v314 = vunpack.c.l.bf16 %v282
        %v315 = vunpack.c.l.bf16 %v283
        %v316 = vunpack.c.l.bf16 %v284
        %v317 = vunpack.c.l.bf16 %v285
        %v318 = vunpack.c.l.bf16 %v286
        %v319 = vunpack.c.l.bf16 %v287
        %v320 = vunpack.c.l.bf16 %v288
        %v321 = vunpack.c.l.bf16 %v289
        %v322 = vunpack.c.l.bf16 %v290
        %v323 = vunpack.c.l.bf16 %v291
        %v324 = vld [vmem:[%s1] sm:$0x1]
        %v326 = vperm.slane %v324, 0
        %v328 = vmul.f32 %v292, %v326
        %v329 = vmul.f32 %v293, %v326
        %v330 = vmul.f32 %v294, %v326
        %v331 = vmul.f32 %v295, %v326
        %v332 = vmul.f32 %v296, %v326
        %v333 = vmul.f32 %v297, %v326
        %v334 = vmul.f32 %v298, %v326
        %v335 = vmul.f32 %v299, %v326
        %v336 = vmul.f32 %v300, %v326
        %v337 = vmul.f32 %v301, %v326
        %v338 = vmul.f32 %v302, %v326
        %v339 = vmul.f32 %v303, %v326
        %v340 = vmul.f32 %v304, %v326
        %v341 = vmul.f32 %v305, %v326
        %v342 = vmul.f32 %v306, %v326
        %v343 = vmul.f32 %v307, %v326
        %v344 = vmul.f32 %v308, %v326
        %v345 = vmul.f32 %v309, %v326
        %v346 = vmul.f32 %v310, %v326
        %v347 = vmul.f32 %v311, %v326
        %v348 = vmul.f32 %v312, %v326
        %v349 = vmul.f32 %v313, %v326
        %v350 = vmul.f32 %v314, %v326
        %v351 = vmul.f32 %v315, %v326
        %v352 = vmul.f32 %v316, %v326
        %v353 = vmul.f32 %v317, %v326
        %v354 = vmul.f32 %v318, %v326
        %v355 = vmul.f32 %v319, %v326
        %v356 = vmul.f32 %v320, %v326
        %v357 = vmul.f32 %v321, %v326
        %v358 = vmul.f32 %v322, %v326
        %v359 = vmul.f32 %v323, %v326
        %v360 = vld [vmem:[%s2] sm:$0x1]
        %v362 = vperm.slane %v360, 0
        %v364 = vadd.f32 %v328, %v362
        %v365 = vadd.f32 %v329, %v362
        %v366 = vadd.f32 %v330, %v362
        %v367 = vadd.f32 %v331, %v362
        %v368 = vadd.f32 %v332, %v362
        %v369 = vadd.f32 %v333, %v362
        %v370 = vadd.f32 %v334, %v362
        %v371 = vadd.f32 %v335, %v362
        %v372 = vadd.f32 %v336, %v362
        %v373 = vadd.f32 %v337, %v362
        %v374 = vadd.f32 %v338, %v362
        %v375 = vadd.f32 %v339, %v362
        %v376 = vadd.f32 %v340, %v362
        %v377 = vadd.f32 %v341, %v362
        %v378 = vadd.f32 %v342, %v362
        %v379 = vadd.f32 %v343, %v362
        %v380 = vadd.f32 %v344, %v362
        %v381 = vadd.f32 %v345, %v362
        %v382 = vadd.f32 %v346, %v362
        %v383 = vadd.f32 %v347, %v362
        %v384 = vadd.f32 %v348, %v362
        %v385 = vadd.f32 %v349, %v362
        %v386 = vadd.f32 %v350, %v362
        %v387 = vadd.f32 %v351, %v362
        %v388 = vadd.f32 %v352, %v362
        %v389 = vadd.f32 %v353, %v362
        %v390 = vadd.f32 %v354, %v362
        %v391 = vadd.f32 %v355, %v362
        %v392 = vadd.f32 %v356, %v362
        %v393 = vadd.f32 %v357, %v362
        %v394 = vadd.f32 %v358, %v362
        %v395 = vadd.f32 %v359, %v362
        %v396 = vmax.f32 %v364, 0.0
        %v397 = vmax.f32 %v365, 0.0
        %v398 = vmax.f32 %v366, 0.0
        %v399 = vmax.f32 %v367, 0.0
        %v400 = vmax.f32 %v368, 0.0
        %v401 = vmax.f32 %v369, 0.0
        %v402 = vmax.f32 %v370, 0.0
        %v403 = vmax.f32 %v371, 0.0
        %v404 = vmax.f32 %v372, 0.0
        %v405 = vmax.f32 %v373, 0.0
        %v406 = vmax.f32 %v374, 0.0
        %v407 = vmax.f32 %v375, 0.0
        %v408 = vmax.f32 %v376, 0.0
        %v409 = vmax.f32 %v377, 0.0
        %v410 = vmax.f32 %v378, 0.0
        %v411 = vmax.f32 %v379, 0.0
        %v412 = vmax.f32 %v380, 0.0
        %v413 = vmax.f32 %v381, 0.0
        %v414 = vmax.f32 %v382, 0.0
        %v415 = vmax.f32 %v383, 0.0
        %v416 = vmax.f32 %v384, 0.0
        %v417 = vmax.f32 %v385, 0.0
        %v418 = vmax.f32 %v386, 0.0
        %v419 = vmax.f32 %v387, 0.0
        %v420 = vmax.f32 %v388, 0.0
        %v421 = vmax.f32 %v389, 0.0
        %v422 = vmax.f32 %v390, 0.0
        %v423 = vmax.f32 %v391, 0.0
        %v424 = vmax.f32 %v392, 0.0
        %v425 = vmax.f32 %v393, 0.0
        %v426 = vmax.f32 %v394, 0.0
        %v427 = vmax.f32 %v395, 0.0
        %v428 = vpack.c.bf16 %v397, %v396
        %v429 = vpack.c.bf16 %v399, %v398
        %v430 = vpack.c.bf16 %v401, %v400
        %v431 = vpack.c.bf16 %v403, %v402
        %v432 = vpack.c.bf16 %v405, %v404
        %v433 = vpack.c.bf16 %v407, %v406
        %v434 = vpack.c.bf16 %v409, %v408
        %v435 = vpack.c.bf16 %v411, %v410
        %v436 = vpack.c.bf16 %v413, %v412
        %v437 = vpack.c.bf16 %v415, %v414
        %v438 = vpack.c.bf16 %v417, %v416
        %v439 = vpack.c.bf16 %v419, %v418
        %v440 = vpack.c.bf16 %v421, %v420
        %v441 = vpack.c.bf16 %v423, %v422
        %v442 = vpack.c.bf16 %v425, %v424
        %v443 = vpack.c.bf16 %v427, %v426
        %v444 = vld [vmem:[#allocation2] sm:$0xff]
        %v445 = vld [vmem:[#allocation2 + $0x8] sm:$0xff]
        %v446 = vld [vmem:[#allocation2 + $0x10] sm:$0xff]
        %v447 = vld [vmem:[#allocation2 + $0x18] sm:$0xff]
        %v448 = vld [vmem:[#allocation2 + $0x20] sm:$0xff]
        %v449 = vld [vmem:[#allocation2 + $0x28] sm:$0xff]
        %v450 = vld [vmem:[#allocation2 + $0x30] sm:$0xff]
        %v451 = vld [vmem:[#allocation2 + $0x38] sm:$0xff]
        %v452 = vld [vmem:[#allocation2 + $0x40] sm:$0xff]
        %v453 = vld [vmem:[#allocation2 + $0x48] sm:$0xff]
        %v454 = vld [vmem:[#allocation2 + $0x50] sm:$0xff]
        %v455 = vld [vmem:[#allocation2 + $0x58] sm:$0xff]
        %v456 = vld [vmem:[#allocation2 + $0x60] sm:$0xff]
        %v457 = vld [vmem:[#allocation2 + $0x68] sm:$0xff]
        %v458 = vld [vmem:[#allocation2 + $0x70] sm:$0xff]
        %v459 = vld [vmem:[#allocation2 + $0x78] sm:$0xff]
        %v460 = vld [vmem:[#allocation2 + $0x80] sm:$0xff]
        %v461 = vld [vmem:[#allocation2 + $0x88] sm:$0xff]
        %v462 = vld [vmem:[#allocation2 + $0x90] sm:$0xff]
        %v463 = vld [vmem:[#allocation2 + $0x98] sm:$0xff]
        %v464 = vld [vmem:[#allocation2 + $0xa0] sm:$0xff]
        %v465 = vld [vmem:[#allocation2 + $0xa8] sm:$0xff]
        %v466 = vld [vmem:[#allocation2 + $0xb0] sm:$0xff]
        %v467 = vld [vmem:[#allocation2 + $0xb8] sm:$0xff]
        %v468 = vld [vmem:[#allocation2 + $0xc0] sm:$0xff]
        %v469 = vld [vmem:[#allocation2 + $0xc8] sm:$0xff]
        %v470 = vld [vmem:[#allocation2 + $0xd0] sm:$0xff]
        %v471 = vld [vmem:[#allocation2 + $0xd8] sm:$0xff]
        %v472 = vld [vmem:[#allocation2 + $0xe0] sm:$0xff]
        %v473 = vld [vmem:[#allocation2 + $0xe8] sm:$0xff]
        %v474 = vld [vmem:[#allocation2 + $0xf0] sm:$0xff]
        %v475 = vld [vmem:[#allocation2 + $0xf8] sm:$0xff]
        %v508 = vunpack.c.l.b16 %v444
        %v509 = vunpack.c.h.b16 %v444
        %v510 = vunpack.c.l.b16 %v445
        %v511 = vunpack.c.h.b16 %v445
        %v512 = vunpack.c.l.b16 %v446
        %v513 = vunpack.c.h.b16 %v446
        %v514 = vunpack.c.l.b16 %v447
        %v515 = vunpack.c.h.b16 %v447
        %v516 = vunpack.c.l.b16 %v448
        %v517 = vunpack.c.h.b16 %v448
        %v518 = vunpack.c.l.b16 %v449
        %v519 = vunpack.c.h.b16 %v449
        %v520 = vunpack.c.l.b16 %v450
        %v521 = vunpack.c.h.b16 %v450
        %v522 = vunpack.c.l.b16 %v451
        %v523 = vunpack.c.h.b16 %v451
        %v524 = vunpack.c.l.b16 %v452
        %v525 = vunpack.c.h.b16 %v452
        %v526 = vunpack.c.l.b16 %v453
        %v527 = vunpack.c.h.b16 %v453
        %v528 = vunpack.c.l.b16 %v454
        %v529 = vunpack.c.h.b16 %v454
        %v530 = vunpack.c.l.b16 %v455
        %v531 = vunpack.c.h.b16 %v455
        %v532 = vunpack.c.l.b16 %v456
        %v533 = vunpack.c.h.b16 %v456
        %v534 = vunpack.c.l.b16 %v457
        %v535 = vunpack.c.h.b16 %v457
        %v536 = vunpack.c.l.b16 %v458
        %v537 = vunpack.c.h.b16 %v458
        %v538 = vunpack.c.l.b16 %v459
        %v539 = vunpack.c.h.b16 %v459
        %v540 = vunpack.c.l.b16 %v460
        %v541 = vunpack.c.h.b16 %v460
        %v542 = vunpack.c.l.b16 %v461
        %v543 = vunpack.c.h.b16 %v461
        %v544 = vunpack.c.l.b16 %v462
        %v545 = vunpack.c.h.b16 %v462
        %v546 = vunpack.c.l.b16 %v463
        %v547 = vunpack.c.h.b16 %v463
        %v548 = vunpack.c.l.b16 %v464
        %v549 = vunpack.c.h.b16 %v464
        %v550 = vunpack.c.l.b16 %v465
        %v551 = vunpack.c.h.b16 %v465
        %v552 = vunpack.c.l.b16 %v466
        %v553 = vunpack.c.h.b16 %v466
        %v554 = vunpack.c.l.b16 %v467
        %v555 = vunpack.c.h.b16 %v467
        %v556 = vunpack.c.l.b16 %v468
        %v557 = vunpack.c.h.b16 %v468
        %v558 = vunpack.c.l.b16 %v469
        %v559 = vunpack.c.h.b16 %v469
        %v560 = vunpack.c.l.b16 %v470
        %v561 = vunpack.c.h.b16 %v470
        %v562 = vunpack.c.l.b16 %v471
        %v563 = vunpack.c.h.b16 %v471
        %v564 = vunpack.c.l.b16 %v472
        %v565 = vunpack.c.h.b16 %v472
        %v566 = vunpack.c.l.b16 %v473
        %v567 = vunpack.c.h.b16 %v473
        %v568 = vunpack.c.l.b16 %v474
        %v569 = vunpack.c.h.b16 %v474
        %v570 = vunpack.c.l.b16 %v475
        %v571 = vunpack.c.h.b16 %v475
        %v572 = vpack.c.b16 %v512, %v508
        %v573 = vpack.c.b16 %v513, %v509
        %v574 = vpack.c.b16 %v514, %v510
        %v575 = vpack.c.b16 %v515, %v511
        %v576 = vpack.c.b16 %v520, %v516
        %v577 = vpack.c.b16 %v521, %v517
        %v578 = vpack.c.b16 %v522, %v518
        %v579 = vpack.c.b16 %v523, %v519
        %v580 = vpack.c.b16 %v528, %v524
        %v581 = vpack.c.b16 %v529, %v525
        %v582 = vpack.c.b16 %v530, %v526
        %v583 = vpack.c.b16 %v531, %v527
        %v584 = vpack.c.b16 %v536, %v532
        %v585 = vpack.c.b16 %v537, %v533
        %v586 = vpack.c.b16 %v538, %v534
        %v587 = vpack.c.b16 %v539, %v535
        %v588 = vpack.c.b16 %v544, %v540
        %v589 = vpack.c.b16 %v545, %v541
        %v590 = vpack.c.b16 %v546, %v542
        %v591 = vpack.c.b16 %v547, %v543
        %v592 = vpack.c.b16 %v552, %v548
        %v593 = vpack.c.b16 %v553, %v549
        %v594 = vpack.c.b16 %v554, %v550
        %v595 = vpack.c.b16 %v555, %v551
        %v596 = vpack.c.b16 %v560, %v556
        %v597 = vpack.c.b16 %v561, %v557
        %v598 = vpack.c.b16 %v562, %v558
        %v599 = vpack.c.b16 %v563, %v559
        %v600 = vpack.c.b16 %v568, %v564
        %v601 = vpack.c.b16 %v569, %v565
        %v602 = vpack.c.b16 %v570, %v566
        %v603 = vpack.c.b16 %v571, %v567
        %636 = vmatpush.bf16.msra.mxu0 %v600
        %637 = vmatpush.bf16.msra.mxu0 %v596
        %638 = vmatpush.bf16.msra.mxu0 %v592
        %639 = vmatpush.bf16.msra.mxu0 %v588
        %640 = vmatpush.bf16.msra.mxu0 %v584
        %641 = vmatpush.bf16.msra.mxu0 %v580
        %642 = vmatpush.bf16.msra.mxu0 %v576
        %643 = vmatpush.bf16.msra.mxu0 %v572
        %644 = vmatmul.bf16.gmra.mxu0 %v428
        %v645 = vpop.f32.mrf.mxu0
        %v646 = vadd.f32 0.0, %v645
        %v647 = vpop.f32.mrf.mxu0
        %v648 = vadd.f32 0.0, %v647
        %649 = vmatmul.bf16.gmra.mxu0 %v429
        %v650 = vpop.f32.mrf.mxu0
        %v651 = vadd.f32 0.0, %v650
        %v652 = vpop.f32.mrf.mxu0
        %v653 = vadd.f32 0.0, %v652
        %654 = vmatmul.bf16.gmra.mxu0 %v430
        %v655 = vpop.f32.mrf.mxu0
        %v656 = vadd.f32 0.0, %v655
        %v657 = vpop.f32.mrf.mxu0
        %v658 = vadd.f32 0.0, %v657
        %659 = vmatmul.bf16.gmra.mxu0 %v431
        %v660 = vpop.f32.mrf.mxu0
        %v661 = vadd.f32 0.0, %v660
        %v662 = vpop.f32.mrf.mxu0
        %v663 = vadd.f32 0.0, %v662
        %664 = vmatmul.bf16.gmra.mxu0 %v432
        %v665 = vpop.f32.mrf.mxu0
        %v666 = vadd.f32 0.0, %v665
        %v667 = vpop.f32.mrf.mxu0
        %v668 = vadd.f32 0.0, %v667
        %669 = vmatmul.bf16.gmra.mxu0 %v433
        %v670 = vpop.f32.mrf.mxu0
        %v671 = vadd.f32 0.0, %v670
        %v672 = vpop.f32.mrf.mxu0
        %v673 = vadd.f32 0.0, %v672
        %674 = vmatmul.bf16.gmra.mxu0 %v434
        %v675 = vpop.f32.mrf.mxu0
        %v676 = vadd.f32 0.0, %v675
        %v677 = vpop.f32.mrf.mxu0
        %v678 = vadd.f32 0.0, %v677
        %679 = vmatmul.bf16.gmra.mxu0 %v435
        %v680 = vpop.f32.mrf.mxu0
        %v681 = vadd.f32 0.0, %v680
        %v682 = vpop.f32.mrf.mxu0
        %v683 = vadd.f32 0.0, %v682
        %684 = vmatmul.bf16.gmra.mxu0 %v436
        %v685 = vpop.f32.mrf.mxu0
        %v686 = vadd.f32 0.0, %v685
        %v687 = vpop.f32.mrf.mxu0
        %v688 = vadd.f32 0.0, %v687
        %689 = vmatmul.bf16.gmra.mxu0 %v437
        %v690 = vpop.f32.mrf.mxu0
        %v691 = vadd.f32 0.0, %v690
        %v692 = vpop.f32.mrf.mxu0
        %v693 = vadd.f32 0.0, %v692
        %694 = vmatmul.bf16.gmra.mxu0 %v438
        %v695 = vpop.f32.mrf.mxu0
        %v696 = vadd.f32 0.0, %v695
        %v697 = vpop.f32.mrf.mxu0
        %v698 = vadd.f32 0.0, %v697
        %699 = vmatmul.bf16.gmra.mxu0 %v439
        %v700 = vpop.f32.mrf.mxu0
        %v701 = vadd.f32 0.0, %v700
        %v702 = vpop.f32.mrf.mxu0
        %v703 = vadd.f32 0.0, %v702
        %704 = vmatmul.bf16.gmra.mxu0 %v440
        %v705 = vpop.f32.mrf.mxu0
        %v706 = vadd.f32 0.0, %v705
        %v707 = vpop.f32.mrf.mxu0
        %v708 = vadd.f32 0.0, %v707
        %709 = vmatmul.bf16.gmra.mxu0 %v441
        %v710 = vpop.f32.mrf.mxu0
        %v711 = vadd.f32 0.0, %v710
        %v712 = vpop.f32.mrf.mxu0
        %v713 = vadd.f32 0.0, %v712
        %714 = vmatmul.bf16.gmra.mxu0 %v442
        %v715 = vpop.f32.mrf.mxu0
        %v716 = vadd.f32 0.0, %v715
        %v717 = vpop.f32.mrf.mxu0
        %v718 = vadd.f32 0.0, %v717
        %719 = vmatmul.bf16.gmra.mxu0 %v443
        %v720 = vpop.f32.mrf.mxu0
        %v721 = vadd.f32 0.0, %v720
        %v722 = vpop.f32.mrf.mxu0
        %v723 = vadd.f32 0.0, %v722
        %724 = vdwg.mxu0
        %725 = vmatpush.bf16.msra.mxu0 %v601
        %726 = vmatpush.bf16.msra.mxu0 %v597
        %727 = vmatpush.bf16.msra.mxu0 %v593
        %728 = vmatpush.bf16.msra.mxu0 %v589
        %729 = vmatpush.bf16.msra.mxu0 %v585
        %730 = vmatpush.bf16.msra.mxu0 %v581
        %731 = vmatpush.bf16.msra.mxu0 %v577
        %732 = vmatpush.bf16.msra.mxu0 %v573
        %733 = vmatmul.bf16.gmra.mxu0 %v428
        %v734 = vpop.f32.mrf.mxu0
        %v735 = vadd.f32 0.0, %v734
        %v736 = vpop.f32.mrf.mxu0
        %v737 = vadd.f32 0.0, %v736
        %738 = vmatmul.bf16.gmra.mxu0 %v429
        %v739 = vpop.f32.mrf.mxu0
        %v740 = vadd.f32 0.0, %v739
        %v741 = vpop.f32.mrf.mxu0
        %v742 = vadd.f32 0.0, %v741
        %743 = vmatmul.bf16.gmra.mxu0 %v430
        %v744 = vpop.f32.mrf.mxu0
        %v745 = vadd.f32 0.0, %v744
        %v746 = vpop.f32.mrf.mxu0
        %v747 = vadd.f32 0.0, %v746
        %748 = vmatmul.bf16.gmra.mxu0 %v431
        %v749 = vpop.f32.mrf.mxu0
        %v750 = vadd.f32 0.0, %v749
        %v751 = vpop.f32.mrf.mxu0
        %v752 = vadd.f32 0.0, %v751
        %753 = vmatmul.bf16.gmra.mxu0 %v432
        %v754 = vpop.f32.mrf.mxu0
        %v755 = vadd.f32 0.0, %v754
        %v756 = vpop.f32.mrf.mxu0
        %v757 = vadd.f32 0.0, %v756
        %758 = vmatmul.bf16.gmra.mxu0 %v433
        %v759 = vpop.f32.mrf.mxu0
        %v760 = vadd.f32 0.0, %v759
        %v761 = vpop.f32.mrf.mxu0
        %v762 = vadd.f32 0.0, %v761
        %763 = vmatmul.bf16.gmra.mxu0 %v434
        %v764 = vpop.f32.mrf.mxu0
        %v765 = vadd.f32 0.0, %v764
        %v766 = vpop.f32.mrf.mxu0
        %v767 = vadd.f32 0.0, %v766
        %768 = vmatmul.bf16.gmra.mxu0 %v435
        %v769 = vpop.f32.mrf.mxu0
        %v770 = vadd.f32 0.0, %v769
        %v771 = vpop.f32.mrf.mxu0
        %v772 = vadd.f32 0.0, %v771
        %773 = vmatmul.bf16.gmra.mxu0 %v436
        %v774 = vpop.f32.mrf.mxu0
        %v775 = vadd.f32 0.0, %v774
        %v776 = vpop.f32.mrf.mxu0
        %v777 = vadd.f32 0.0, %v776
        %778 = vmatmul.bf16.gmra.mxu0 %v437
        %v779 = vpop.f32.mrf.mxu0
        %v780 = vadd.f32 0.0, %v779
        %v781 = vpop.f32.mrf.mxu0
        %v782 = vadd.f32 0.0, %v781
        %783 = vmatmul.bf16.gmra.mxu0 %v438
        %v784 = vpop.f32.mrf.mxu0
        %v785 = vadd.f32 0.0, %v784
        %v786 = vpop.f32.mrf.mxu0
        %v787 = vadd.f32 0.0, %v786
        %788 = vmatmul.bf16.gmra.mxu0 %v439
        %v789 = vpop.f32.mrf.mxu0
        %v790 = vadd.f32 0.0, %v789
        %v791 = vpop.f32.mrf.mxu0
        %v792 = vadd.f32 0.0, %v791
        %793 = vmatmul.bf16.gmra.mxu0 %v440
        %v794 = vpop.f32.mrf.mxu0
        %v795 = vadd.f32 0.0, %v794
        %v796 = vpop.f32.mrf.mxu0
        %v797 = vadd.f32 0.0, %v796
        %798 = vmatmul.bf16.gmra.mxu0 %v441
        %v799 = vpop.f32.mrf.mxu0
        %v800 = vadd.f32 0.0, %v799
        %v801 = vpop.f32.mrf.mxu0
        %v802 = vadd.f32 0.0, %v801
        %803 = vmatmul.bf16.gmra.mxu0 %v442
        %v804 = vpop.f32.mrf.mxu0
        %v805 = vadd.f32 0.0, %v804
        %v806 = vpop.f32.mrf.mxu0
        %v807 = vadd.f32 0.0, %v806
        %808 = vmatmul.bf16.gmra.mxu0 %v443
        %v809 = vpop.f32.mrf.mxu0
        %v810 = vadd.f32 0.0, %v809
        %v811 = vpop.f32.mrf.mxu0
        %v812 = vadd.f32 0.0, %v811
        %813 = vdwg.mxu0
        %814 = vmatpush.bf16.msra.mxu0 %v602
        %815 = vmatpush.bf16.msra.mxu0 %v598
        %816 = vmatpush.bf16.msra.mxu0 %v594
        %817 = vmatpush.bf16.msra.mxu0 %v590
        %818 = vmatpush.bf16.msra.mxu0 %v586
        %819 = vmatpush.bf16.msra.mxu0 %v582
        %820 = vmatpush.bf16.msra.mxu0 %v578
        %821 = vmatpush.bf16.msra.mxu0 %v574
        %822 = vmatmul.bf16.gmra.mxu0 %v428
        %v823 = vpop.f32.mrf.mxu0
        %v824 = vadd.f32 0.0, %v823
        %v825 = vpop.f32.mrf.mxu0
        %v826 = vadd.f32 0.0, %v825
        %827 = vmatmul.bf16.gmra.mxu0 %v429
        %v828 = vpop.f32.mrf.mxu0
        %v829 = vadd.f32 0.0, %v828
        %v830 = vpop.f32.mrf.mxu0
        %v831 = vadd.f32 0.0, %v830
        %832 = vmatmul.bf16.gmra.mxu0 %v430
        %v833 = vpop.f32.mrf.mxu0
        %v834 = vadd.f32 0.0, %v833
        %v835 = vpop.f32.mrf.mxu0
        %v836 = vadd.f32 0.0, %v835
        %837 = vmatmul.bf16.gmra.mxu0 %v431
        %v838 = vpop.f32.mrf.mxu0
        %v839 = vadd.f32 0.0, %v838
        %v840 = vpop.f32.mrf.mxu0
        %v841 = vadd.f32 0.0, %v840
        %842 = vmatmul.bf16.gmra.mxu0 %v432
        %v843 = vpop.f32.mrf.mxu0
        %v844 = vadd.f32 0.0, %v843
        %v845 = vpop.f32.mrf.mxu0
        %v846 = vadd.f32 0.0, %v845
        %847 = vmatmul.bf16.gmra.mxu0 %v433
        %v848 = vpop.f32.mrf.mxu0
        %v849 = vadd.f32 0.0, %v848
        %v850 = vpop.f32.mrf.mxu0
        %v851 = vadd.f32 0.0, %v850
        %852 = vmatmul.bf16.gmra.mxu0 %v434
        %v853 = vpop.f32.mrf.mxu0
        %v854 = vadd.f32 0.0, %v853
        %v855 = vpop.f32.mrf.mxu0
        %v856 = vadd.f32 0.0, %v855
        %857 = vmatmul.bf16.gmra.mxu0 %v435
        %v858 = vpop.f32.mrf.mxu0
        %v859 = vadd.f32 0.0, %v858
        %v860 = vpop.f32.mrf.mxu0
        %v861 = vadd.f32 0.0, %v860
        %862 = vmatmul.bf16.gmra.mxu0 %v436
        %v863 = vpop.f32.mrf.mxu0
        %v864 = vadd.f32 0.0, %v863
        %v865 = vpop.f32.mrf.mxu0
        %v866 = vadd.f32 0.0, %v865
        %867 = vmatmul.bf16.gmra.mxu0 %v437
        %v868 = vpop.f32.mrf.mxu0
        %v869 = vadd.f32 0.0, %v868
        %v870 = vpop.f32.mrf.mxu0
        %v871 = vadd.f32 0.0, %v870
        %872 = vmatmul.bf16.gmra.mxu0 %v438
        %v873 = vpop.f32.mrf.mxu0
        %v874 = vadd.f32 0.0, %v873
        %v875 = vpop.f32.mrf.mxu0
        %v876 = vadd.f32 0.0, %v875
        %877 = vmatmul.bf16.gmra.mxu0 %v439
        %v878 = vpop.f32.mrf.mxu0
        %v879 = vadd.f32 0.0, %v878
        %v880 = vpop.f32.mrf.mxu0
        %v881 = vadd.f32 0.0, %v880
        %882 = vmatmul.bf16.gmra.mxu0 %v440
        %v883 = vpop.f32.mrf.mxu0
        %v884 = vadd.f32 0.0, %v883
        %v885 = vpop.f32.mrf.mxu0
        %v886 = vadd.f32 0.0, %v885
        %887 = vmatmul.bf16.gmra.mxu0 %v441
        %v888 = vpop.f32.mrf.mxu0
        %v889 = vadd.f32 0.0, %v888
        %v890 = vpop.f32.mrf.mxu0
        %v891 = vadd.f32 0.0, %v890
        %892 = vmatmul.bf16.gmra.mxu0 %v442
        %v893 = vpop.f32.mrf.mxu0
        %v894 = vadd.f32 0.0, %v893
        %v895 = vpop.f32.mrf.mxu0
        %v896 = vadd.f32 0.0, %v895
        %897 = vmatmul.bf16.gmra.mxu0 %v443
        %v898 = vpop.f32.mrf.mxu0
        %v899 = vadd.f32 0.0, %v898
        %v900 = vpop.f32.mrf.mxu0
        %v901 = vadd.f32 0.0, %v900
        %902 = vdwg.mxu0
        %903 = vmatpush.bf16.msra.mxu0 %v603
        %904 = vmatpush.bf16.msra.mxu0 %v599
        %905 = vmatpush.bf16.msra.mxu0 %v595
        %906 = vmatpush.bf16.msra.mxu0 %v591
        %907 = vmatpush.bf16.msra.mxu0 %v587
        %908 = vmatpush.bf16.msra.mxu0 %v583
        %909 = vmatpush.bf16.msra.mxu0 %v579
        %910 = vmatpush.bf16.msra.mxu0 %v575
        %911 = vmatmul.bf16.gmra.mxu0 %v428
        %v912 = vpop.f32.mrf.mxu0
        %v913 = vadd.f32 0.0, %v912
        %v914 = vpop.f32.mrf.mxu0
        %v915 = vadd.f32 0.0, %v914
        %916 = vmatmul.bf16.gmra.mxu0 %v429
        %v917 = vpop.f32.mrf.mxu0
        %v918 = vadd.f32 0.0, %v917
        %v919 = vpop.f32.mrf.mxu0
        %v920 = vadd.f32 0.0, %v919
        %921 = vmatmul.bf16.gmra.mxu0 %v430
        %v922 = vpop.f32.mrf.mxu0
        %v923 = vadd.f32 0.0, %v922
        %v924 = vpop.f32.mrf.mxu0
        %v925 = vadd.f32 0.0, %v924
        %926 = vmatmul.bf16.gmra.mxu0 %v431
        %v927 = vpop.f32.mrf.mxu0
        %v928 = vadd.f32 0.0, %v927
        %v929 = vpop.f32.mrf.mxu0
        %v930 = vadd.f32 0.0, %v929
        %931 = vmatmul.bf16.gmra.mxu0 %v432
        %v932 = vpop.f32.mrf.mxu0
        %v933 = vadd.f32 0.0, %v932
        %v934 = vpop.f32.mrf.mxu0
        %v935 = vadd.f32 0.0, %v934
        %936 = vmatmul.bf16.gmra.mxu0 %v433
        %v937 = vpop.f32.mrf.mxu0
        %v938 = vadd.f32 0.0, %v937
        %v939 = vpop.f32.mrf.mxu0
        %v940 = vadd.f32 0.0, %v939
        %941 = vmatmul.bf16.gmra.mxu0 %v434
        %v942 = vpop.f32.mrf.mxu0
        %v943 = vadd.f32 0.0, %v942
        %v944 = vpop.f32.mrf.mxu0
        %v945 = vadd.f32 0.0, %v944
        %946 = vmatmul.bf16.gmra.mxu0 %v435
        %v947 = vpop.f32.mrf.mxu0
        %v948 = vadd.f32 0.0, %v947
        %v949 = vpop.f32.mrf.mxu0
        %v950 = vadd.f32 0.0, %v949
        %951 = vmatmul.bf16.gmra.mxu0 %v436
        %v952 = vpop.f32.mrf.mxu0
        %v953 = vadd.f32 0.0, %v952
        %v954 = vpop.f32.mrf.mxu0
        %v955 = vadd.f32 0.0, %v954
        %956 = vmatmul.bf16.gmra.mxu0 %v437
        %v957 = vpop.f32.mrf.mxu0
        %v958 = vadd.f32 0.0, %v957
        %v959 = vpop.f32.mrf.mxu0
        %v960 = vadd.f32 0.0, %v959
        %961 = vmatmul.bf16.gmra.mxu0 %v438
        %v962 = vpop.f32.mrf.mxu0
        %v963 = vadd.f32 0.0, %v962
        %v964 = vpop.f32.mrf.mxu0
        %v965 = vadd.f32 0.0, %v964
        %966 = vmatmul.bf16.gmra.mxu0 %v439
        %v967 = vpop.f32.mrf.mxu0
        %v968 = vadd.f32 0.0, %v967
        %v969 = vpop.f32.mrf.mxu0
        %v970 = vadd.f32 0.0, %v969
        %971 = vmatmul.bf16.gmra.mxu0 %v440
        %v972 = vpop.f32.mrf.mxu0
        %v973 = vadd.f32 0.0, %v972
        %v974 = vpop.f32.mrf.mxu0
        %v975 = vadd.f32 0.0, %v974
        %976 = vmatmul.bf16.gmra.mxu0 %v441
        %v977 = vpop.f32.mrf.mxu0
        %v978 = vadd.f32 0.0, %v977
        %v979 = vpop.f32.mrf.mxu0
        %v980 = vadd.f32 0.0, %v979
        %981 = vmatmul.bf16.gmra.mxu0 %v442
        %v982 = vpop.f32.mrf.mxu0
        %v983 = vadd.f32 0.0, %v982
        %v984 = vpop.f32.mrf.mxu0
        %v985 = vadd.f32 0.0, %v984
        %986 = vmatmul.bf16.gmra.mxu0 %v443
        %v987 = vpop.f32.mrf.mxu0
        %v988 = vadd.f32 0.0, %v987
        %v989 = vpop.f32.mrf.mxu0
        %v990 = vadd.f32 0.0, %v989
        %991 = vdwg.mxu0
        %v992 = vpack.c.bf16 %v735, %v646
        %v993 = vpack.c.bf16 %v913, %v824
        %v994 = vpack.c.bf16 %v737, %v648
        %v995 = vpack.c.bf16 %v915, %v826
        %v996 = vpack.c.bf16 %v740, %v651
        %v997 = vpack.c.bf16 %v918, %v829
        %v998 = vpack.c.bf16 %v742, %v653
        %v999 = vpack.c.bf16 %v920, %v831
        %v1000 = vpack.c.bf16 %v745, %v656
        %v1001 = vpack.c.bf16 %v923, %v834
        %v1002 = vpack.c.bf16 %v747, %v658
        %v1003 = vpack.c.bf16 %v925, %v836
        %v1004 = vpack.c.bf16 %v750, %v661
        %v1005 = vpack.c.bf16 %v928, %v839
        %v1006 = vpack.c.bf16 %v752, %v663
        %v1007 = vpack.c.bf16 %v930, %v841
        %v1008 = vpack.c.bf16 %v755, %v666
        %v1009 = vpack.c.bf16 %v933, %v844
        %v1010 = vpack.c.bf16 %v757, %v668
        %v1011 = vpack.c.bf16 %v935, %v846
        %v1012 = vpack.c.bf16 %v760, %v671
        %v1013 = vpack.c.bf16 %v938, %v849
        %v1014 = vpack.c.bf16 %v762, %v673
        %v1015 = vpack.c.bf16 %v940, %v851
        %v1016 = vpack.c.bf16 %v765, %v676
        %v1017 = vpack.c.bf16 %v943, %v854
        %v1018 = vpack.c.bf16 %v767, %v678
        %v1019 = vpack.c.bf16 %v945, %v856
        %v1020 = vpack.c.bf16 %v770, %v681
        %v1021 = vpack.c.bf16 %v948, %v859
        %v1022 = vpack.c.bf16 %v772, %v683
        %v1023 = vpack.c.bf16 %v950, %v861
        %v1024 = vpack.c.bf16 %v775, %v686
        %v1025 = vpack.c.bf16 %v953, %v864
        %v1026 = vpack.c.bf16 %v777, %v688
        %v1027 = vpack.c.bf16 %v955, %v866
        %v1028 = vpack.c.bf16 %v780, %v691
        %v1029 = vpack.c.bf16 %v958, %v869
        %v1030 = vpack.c.bf16 %v782, %v693
        %v1031 = vpack.c.bf16 %v960, %v871
        %v1032 = vpack.c.bf16 %v785, %v696
        %v1033 = vpack.c.bf16 %v963, %v874
        %v1034 = vpack.c.bf16 %v787, %v698
        %v1035 = vpack.c.bf16 %v965, %v876
        %v1036 = vpack.c.bf16 %v790, %v701
        %v1037 = vpack.c.bf16 %v968, %v879
        %v1038 = vpack.c.bf16 %v792, %v703
        %v1039 = vpack.c.bf16 %v970, %v881
        %v1040 = vpack.c.bf16 %v795, %v706
        %v1041 = vpack.c.bf16 %v973, %v884
        %v1042 = vpack.c.bf16 %v797, %v708
        %v1043 = vpack.c.bf16 %v975, %v886
        %v1044 = vpack.c.bf16 %v800, %v711
        %v1045 = vpack.c.bf16 %v978, %v889
        %v1046 = vpack.c.bf16 %v802, %v713
        %v1047 = vpack.c.bf16 %v980, %v891
        %v1048 = vpack.c.bf16 %v805, %v716
        %v1049 = vpack.c.bf16 %v983, %v894
        %v1050 = vpack.c.bf16 %v807, %v718
        %v1051 = vpack.c.bf16 %v985, %v896
        %v1052 = vpack.c.bf16 %v810, %v721
        %v1053 = vpack.c.bf16 %v988, %v899
        %v1054 = vpack.c.bf16 %v812, %v723
        %v1055 = vpack.c.bf16 %v990, %v901
        %1056 = vst [vmem:[%s253] sm:$0xff] %v992
        %1057 = vst [vmem:[%s253 + $0x8] sm:$0xff] %v993
        %1058 = vst [vmem:[%s253 + $0x10] sm:$0xff] %v994
        %1059 = vst [vmem:[%s253 + $0x18] sm:$0xff] %v995
        %1060 = vst [vmem:[%s253 + $0x20] sm:$0xff] %v996
        %1061 = vst [vmem:[%s253 + $0x28] sm:$0xff] %v997
        %1062 = vst [vmem:[%s253 + $0x30] sm:$0xff] %v998
        %1063 = vst [vmem:[%s253 + $0x38] sm:$0xff] %v999
        %1064 = vst [vmem:[%s253 + $0x40] sm:$0xff] %v1000
        %1065 = vst [vmem:[%s253 + $0x48] sm:$0xff] %v1001
        %1066 = vst [vmem:[%s253 + $0x50] sm:$0xff] %v1002
        %1067 = vst [vmem:[%s253 + $0x58] sm:$0xff] %v1003
        %1068 = vst [vmem:[%s253 + $0x60] sm:$0xff] %v1004
        %1069 = vst [vmem:[%s253 + $0x68] sm:$0xff] %v1005
        %1070 = vst [vmem:[%s253 + $0x70] sm:$0xff] %v1006
        %1071 = vst [vmem:[%s253 + $0x78] sm:$0xff] %v1007
        %1072 = vst [vmem:[%s253 + $0x80] sm:$0xff] %v1008
        %1073 = vst [vmem:[%s253 + $0x88] sm:$0xff] %v1009
        %1074 = vst [vmem:[%s253 + $0x90] sm:$0xff] %v1010
        %1075 = vst [vmem:[%s253 + $0x98] sm:$0xff] %v1011
        %1076 = vst [vmem:[%s253 + $0xa0] sm:$0xff] %v1012
        %1077 = vst [vmem:[%s253 + $0xa8] sm:$0xff] %v1013
        %1078 = vst [vmem:[%s253 + $0xb0] sm:$0xff] %v1014
        %1079 = vst [vmem:[%s253 + $0xb8] sm:$0xff] %v1015
        %1080 = vst [vmem:[%s253 + $0xc0] sm:$0xff] %v1016
        %1081 = vst [vmem:[%s253 + $0xc8] sm:$0xff] %v1017
        %1082 = vst [vmem:[%s253 + $0xd0] sm:$0xff] %v1018
        %1083 = vst [vmem:[%s253 + $0xd8] sm:$0xff] %v1019
        %1084 = vst [vmem:[%s253 + $0xe0] sm:$0xff] %v1020
        %1085 = vst [vmem:[%s253 + $0xe8] sm:$0xff] %v1021
        %1086 = vst [vmem:[%s253 + $0xf0] sm:$0xff] %v1022
        %1087 = vst [vmem:[%s253 + $0xf8] sm:$0xff] %v1023
        %1088 = vst [vmem:[%s253 + $0x100] sm:$0xff] %v1024
        %1089 = vst [vmem:[%s253 + $0x108] sm:$0xff] %v1025
        %1090 = vst [vmem:[%s253 + $0x110] sm:$0xff] %v1026
        %1091 = vst [vmem:[%s253 + $0x118] sm:$0xff] %v1027
        %1092 = vst [vmem:[%s253 + $0x120] sm:$0xff] %v1028
        %1093 = vst [vmem:[%s253 + $0x128] sm:$0xff] %v1029
        %1094 = vst [vmem:[%s253 + $0x130] sm:$0xff] %v1030
        %1095 = vst [vmem:[%s253 + $0x138] sm:$0xff] %v1031
        %1096 = vst [vmem:[%s253 + $0x140] sm:$0xff] %v1032
        %1097 = vst [vmem:[%s253 + $0x148] sm:$0xff] %v1033
        %1098 = vst [vmem:[%s253 + $0x150] sm:$0xff] %v1034
        %1099 = vst [vmem:[%s253 + $0x158] sm:$0xff] %v1035
        %1100 = vst [vmem:[%s253 + $0x160] sm:$0xff] %v1036
        %1101 = vst [vmem:[%s253 + $0x168] sm:$0xff] %v1037
        %1102 = vst [vmem:[%s253 + $0x170] sm:$0xff] %v1038
        %1103 = vst [vmem:[%s253 + $0x178] sm:$0xff] %v1039
        %1104 = vst [vmem:[%s253 + $0x180] sm:$0xff] %v1040
        %1105 = vst [vmem:[%s253 + $0x188] sm:$0xff] %v1041
        %1106 = vst [vmem:[%s253 + $0x190] sm:$0xff] %v1042
        %1107 = vst [vmem:[%s253 + $0x198] sm:$0xff] %v1043
        %1108 = vst [vmem:[%s253 + $0x1a0] sm:$0xff] %v1044
        %1109 = vst [vmem:[%s253 + $0x1a8] sm:$0xff] %v1045
        %1110 = vst [vmem:[%s253 + $0x1b0] sm:$0xff] %v1046
        %1111 = vst [vmem:[%s253 + $0x1b8] sm:$0xff] %v1047
        %1112 = vst [vmem:[%s253 + $0x1c0] sm:$0xff] %v1048
        %1113 = vst [vmem:[%s253 + $0x1c8] sm:$0xff] %v1049
        %1114 = vst [vmem:[%s253 + $0x1d0] sm:$0xff] %v1050
        %1115 = vst [vmem:[%s253 + $0x1d8] sm:$0xff] %v1051
        %1116 = vst [vmem:[%s253 + $0x1e0] sm:$0xff] %v1052
        %1117 = vst [vmem:[%s253 + $0x1e8] sm:$0xff] %v1053
        %1118 = vst [vmem:[%s253 + $0x1f0] sm:$0xff] %v1054
        %1119 = vst [vmem:[%s253 + $0x1f8] sm:$0xff] %v1055
        %v1120 = vadd.f32 %v646, %v648
        %v1121 = vadd.f32 %v1120, %v651
        %v1122 = vadd.f32 %v1121, %v653
        %v1123 = vadd.f32 %v1122, %v656
        %v1124 = vadd.f32 %v1123, %v658
        %v1125 = vadd.f32 %v1124, %v661
        %v1126 = vadd.f32 %v1125, %v663
        %v1127 = vadd.f32 %v1126, %v666
        %v1128 = vadd.f32 %v1127, %v668
        %v1129 = vadd.f32 %v1128, %v671
        %v1130 = vadd.f32 %v1129, %v673
        %v1131 = vadd.f32 %v1130, %v676
        %v1132 = vadd.f32 %v1131, %v678
        %v1133 = vadd.f32 %v1132, %v681
        %v1134 = vadd.f32 %v1133, %v683
        %v1135 = vadd.f32 %v1134, %v686
        %v1136 = vadd.f32 %v1135, %v688
        %v1137 = vadd.f32 %v1136, %v691
        %v1138 = vadd.f32 %v1137, %v693
        %v1139 = vadd.f32 %v1138, %v696
        %v1140 = vadd.f32 %v1139, %v698
        %v1141 = vadd.f32 %v1140, %v701
        %v1142 = vadd.f32 %v1141, %v703
        %v1143 = vadd.f32 %v1142, %v706
        %v1144 = vadd.f32 %v1143, %v708
        %v1145 = vadd.f32 %v1144, %v711
        %v1146 = vadd.f32 %v1145, %v713
        %v1147 = vadd.f32 %v1146, %v716
        %v1148 = vadd.f32 %v1147, %v718
        %v1149 = vadd.f32 %v1148, %v721
        %v1150 = vadd.f32 %v1149, %v723
        %v1151 = vrot.slane %v1150, 4
        %v1152 = vadd.f32 %v1150, %v1151
        %v1153 = vrot.slane %v1152, 2
        %v1154 = vadd.f32 %v1152, %v1153
        %v1155 = vrot.slane %v1154, 1
        %v1156 = vadd.f32 %v1154, %v1155
        %v1157 = vadd.f32 %v735, %v737
        %v1158 = vadd.f32 %v1157, %v740
        %v1159 = vadd.f32 %v1158, %v742
        %v1160 = vadd.f32 %v1159, %v745
        %v1161 = vadd.f32 %v1160, %v747
        %v1162 = vadd.f32 %v1161, %v750
        %v1163 = vadd.f32 %v1162, %v752
        %v1164 = vadd.f32 %v1163, %v755
        %v1165 = vadd.f32 %v1164, %v757
        %v1166 = vadd.f32 %v1165, %v760
        %v1167 = vadd.f32 %v1166, %v762
        %v1168 = vadd.f32 %v1167, %v765
        %v1169 = vadd.f32 %v1168, %v767
        %v1170 = vadd.f32 %v1169, %v770
        %v1171 = vadd.f32 %v1170, %v772
        %v1172 = vadd.f32 %v1171, %v775
        %v1173 = vadd.f32 %v1172, %v777
        %v1174 = vadd.f32 %v1173, %v780
        %v1175 = vadd.f32 %v1174, %v782
        %v1176 = vadd.f32 %v1175, %v785
        %v1177 = vadd.f32 %v1176, %v787
        %v1178 = vadd.f32 %v1177, %v790
        %v1179 = vadd.f32 %v1178, %v792
        %v1180 = vadd.f32 %v1179, %v795
        %v1181 = vadd.f32 %v1180, %v797
        %v1182 = vadd.f32 %v1181, %v800
        %v1183 = vadd.f32 %v1182, %v802
        %v1184 = vadd.f32 %v1183, %v805
        %v1185 = vadd.f32 %v1184, %v807
        %v1186 = vadd.f32 %v1185, %v810
        %v1187 = vadd.f32 %v1186, %v812
        %v1188 = vrot.slane %v1187, 4
        %v1189 = vadd.f32 %v1187, %v1188
        %v1190 = vrot.slane %v1189, 2
        %v1191 = vadd.f32 %v1189, %v1190
        %v1192 = vrot.slane %v1191, 1
        %v1193 = vadd.f32 %v1191, %v1192
        %v1194 = vadd.f32 %v824, %v826
        %v1195 = vadd.f32 %v1194, %v829
        %v1196 = vadd.f32 %v1195, %v831
        %v1197 = vadd.f32 %v1196, %v834
        %v1198 = vadd.f32 %v1197, %v836
        %v1199 = vadd.f32 %v1198, %v839
        %v1200 = vadd.f32 %v1199, %v841
        %v1201 = vadd.f32 %v1200, %v844
        %v1202 = vadd.f32 %v1201, %v846
        %v1203 = vadd.f32 %v1202, %v849
        %v1204 = vadd.f32 %v1203, %v851
        %v1205 = vadd.f32 %v1204, %v854
        %v1206 = vadd.f32 %v1205, %v856
        %v1207 = vadd.f32 %v1206, %v859
        %v1208 = vadd.f32 %v1207, %v861
        %v1209 = vadd.f32 %v1208, %v864
        %v1210 = vadd.f32 %v1209, %v866
        %v1211 = vadd.f32 %v1210, %v869
        %v1212 = vadd.f32 %v1211, %v871
        %v1213 = vadd.f32 %v1212, %v874
        %v1214 = vadd.f32 %v1213, %v876
        %v1215 = vadd.f32 %v1214, %v879
        %v1216 = vadd.f32 %v1215, %v881
        %v1217 = vadd.f32 %v1216, %v884
        %v1218 = vadd.f32 %v1217, %v886
        %v1219 = vadd.f32 %v1218, %v889
        %v1220 = vadd.f32 %v1219, %v891
        %v1221 = vadd.f32 %v1220, %v894
        %v1222 = vadd.f32 %v1221, %v896
        %v1223 = vadd.f32 %v1222, %v899
        %v1224 = vadd.f32 %v1223, %v901
        %v1225 = vrot.slane %v1224, 4
        %v1226 = vadd.f32 %v1224, %v1225
        %v1227 = vrot.slane %v1226, 2
        %v1228 = vadd.f32 %v1226, %v1227
        %v1229 = vrot.slane %v1228, 1
        %v1230 = vadd.f32 %v1228, %v1229
        %v1231 = vadd.f32 %v913, %v915
        %v1232 = vadd.f32 %v1231, %v918
        %v1233 = vadd.f32 %v1232, %v920
        %v1234 = vadd.f32 %v1233, %v923
        %v1235 = vadd.f32 %v1234, %v925
        %v1236 = vadd.f32 %v1235, %v928
        %v1237 = vadd.f32 %v1236, %v930
        %v1238 = vadd.f32 %v1237, %v933
        %v1239 = vadd.f32 %v1238, %v935
        %v1240 = vadd.f32 %v1239, %v938
        %v1241 = vadd.f32 %v1240, %v940
        %v1242 = vadd.f32 %v1241, %v943
        %v1243 = vadd.f32 %v1242, %v945
        %v1244 = vadd.f32 %v1243, %v948
        %v1245 = vadd.f32 %v1244, %v950
        %v1246 = vadd.f32 %v1245, %v953
        %v1247 = vadd.f32 %v1246, %v955
        %v1248 = vadd.f32 %v1247, %v958
        %v1249 = vadd.f32 %v1248, %v960
        %v1250 = vadd.f32 %v1249, %v963
        %v1251 = vadd.f32 %v1250, %v965
        %v1252 = vadd.f32 %v1251, %v968
        %v1253 = vadd.f32 %v1252, %v970
        %v1254 = vadd.f32 %v1253, %v973
        %v1255 = vadd.f32 %v1254, %v975
        %v1256 = vadd.f32 %v1255, %v978
        %v1257 = vadd.f32 %v1256, %v980
        %v1258 = vadd.f32 %v1257, %v983
        %v1259 = vadd.f32 %v1258, %v985
        %v1260 = vadd.f32 %v1259, %v988
        %v1261 = vadd.f32 %v1260, %v990
        %v1262 = vrot.slane %v1261, 4
        %v1263 = vadd.f32 %v1261, %v1262
        %v1264 = vrot.slane %v1263, 2
        %v1265 = vadd.f32 %v1263, %v1264
        %v1266 = vrot.slane %v1265, 1
        %v1267 = vadd.f32 %v1265, %v1266
        %v1268 = vmul.f32 %v1156, 0.00390625
        %v1269 = vmul.f32 %v1193, 0.00390625
        %v1270 = vmul.f32 %v1230, 0.00390625
        %v1271 = vmul.f32 %v1267, 0.00390625
        %v1272 = vsub.f32 %v646, %v1268
        %v1273 = vsub.f32 %v735, %v1269
        %v1274 = vsub.f32 %v824, %v1270
        %v1275 = vsub.f32 %v913, %v1271
        %v1276 = vsub.f32 %v648, %v1268
        %v1277 = vsub.f32 %v737, %v1269
        %v1278 = vsub.f32 %v826, %v1270
        %v1279 = vsub.f32 %v915, %v1271
        %v1280 = vsub.f32 %v651, %v1268
        %v1281 = vsub.f32 %v740, %v1269
        %v1282 = vsub.f32 %v829, %v1270
        %v1283 = vsub.f32 %v918, %v1271
        %v1284 = vsub.f32 %v653, %v1268
        %v1285 = vsub.f32 %v742, %v1269
        %v1286 = vsub.f32 %v831, %v1270
        %v1287 = vsub.f32 %v920, %v1271
        %v1288 = vsub.f32 %v656, %v1268
        %v1289 = vsub.f32 %v745, %v1269
        %v1290 = vsub.f32 %v834, %v1270
        %v1291 = vsub.f32 %v923, %v1271
        %v1292 = vsub.f32 %v658, %v1268
        %v1293 = vsub.f32 %v747, %v1269
        %v1294 = vsub.f32 %v836, %v1270
        %v1295 = vsub.f32 %v925, %v1271
        %v1296 = vsub.f32 %v661, %v1268
        %v1297 = vsub.f32 %v750, %v1269
        %v1298 = vsub.f32 %v839, %v1270
        %v1299 = vsub.f32 %v928, %v1271
        %v1300 = vsub.f32 %v663, %v1268
        %v1301 = vsub.f32 %v752, %v1269
        %v1302 = vsub.f32 %v841, %v1270
        %v1303 = vsub.f32 %v930, %v1271
        %v1304 = vsub.f32 %v666, %v1268
        %v1305 = vsub.f32 %v755, %v1269
        %v1306 = vsub.f32 %v844, %v1270
        %v1307 = vsub.f32 %v933, %v1271
        %v1308 = vsub.f32 %v668, %v1268
        %v1309 = vsub.f32 %v757, %v1269
        %v1310 = vsub.f32 %v846, %v1270
        %v1311 = vsub.f32 %v935, %v1271
        %v1312 = vsub.f32 %v671, %v1268
        %v1313 = vsub.f32 %v760, %v1269
        %v1314 = vsub.f32 %v849, %v1270
        %v1315 = vsub.f32 %v938, %v1271
        %v1316 = vsub.f32 %v673, %v1268
        %v1317 = vsub.f32 %v762, %v1269
        %v1318 = vsub.f32 %v851, %v1270
        %v1319 = vsub.f32 %v940, %v1271
        %v1320 = vsub.f32 %v676, %v1268
        %v1321 = vsub.f32 %v765, %v1269
        %v1322 = vsub.f32 %v854, %v1270
        %v1323 = vsub.f32 %v943, %v1271
        %v1324 = vsub.f32 %v678, %v1268
        %v1325 = vsub.f32 %v767, %v1269
        %v1326 = vsub.f32 %v856, %v1270
        %v1327 = vsub.f32 %v945, %v1271
        %v1328 = vsub.f32 %v681, %v1268
        %v1329 = vsub.f32 %v770, %v1269
        %v1330 = vsub.f32 %v859, %v1270
        %v1331 = vsub.f32 %v948, %v1271
        %v1332 = vsub.f32 %v683, %v1268
        %v1333 = vsub.f32 %v772, %v1269
        %v1334 = vsub.f32 %v861, %v1270
        %v1335 = vsub.f32 %v950, %v1271
        %v1336 = vsub.f32 %v686, %v1268
        %v1337 = vsub.f32 %v775, %v1269
        %v1338 = vsub.f32 %v864, %v1270
        %v1339 = vsub.f32 %v953, %v1271
        %v1340 = vsub.f32 %v688, %v1268
        %v1341 = vsub.f32 %v777, %v1269
        %v1342 = vsub.f32 %v866, %v1270
        %v1343 = vsub.f32 %v955, %v1271
        %v1344 = vsub.f32 %v691, %v1268
        %v1345 = vsub.f32 %v780, %v1269
        %v1346 = vsub.f32 %v869, %v1270
        %v1347 = vsub.f32 %v958, %v1271
        %v1348 = vsub.f32 %v693, %v1268
        %v1349 = vsub.f32 %v782, %v1269
        %v1350 = vsub.f32 %v871, %v1270
        %v1351 = vsub.f32 %v960, %v1271
        %v1352 = vsub.f32 %v696, %v1268
        %v1353 = vsub.f32 %v785, %v1269
        %v1354 = vsub.f32 %v874, %v1270
        %v1355 = vsub.f32 %v963, %v1271
        %v1356 = vsub.f32 %v698, %v1268
        %v1357 = vsub.f32 %v787, %v1269
        %v1358 = vsub.f32 %v876, %v1270
        %v1359 = vsub.f32 %v965, %v1271
        %v1360 = vsub.f32 %v701, %v1268
        %v1361 = vsub.f32 %v790, %v1269
        %v1362 = vsub.f32 %v879, %v1270
        %v1363 = vsub.f32 %v968, %v1271
        %v1364 = vsub.f32 %v703, %v1268
        %v1365 = vsub.f32 %v792, %v1269
        %v1366 = vsub.f32 %v881, %v1270
        %v1367 = vsub.f32 %v970, %v1271
        %v1368 = vsub.f32 %v706, %v1268
        %v1369 = vsub.f32 %v795, %v1269
        %v1370 = vsub.f32 %v884, %v1270
        %v1371 = vsub.f32 %v973, %v1271
        %v1372 = vsub.f32 %v708, %v1268
        %v1373 = vsub.f32 %v797, %v1269
        %v1374 = vsub.f32 %v886, %v1270
        %v1375 = vsub.f32 %v975, %v1271
        %v1376 = vsub.f32 %v711, %v1268
        %v1377 = vsub.f32 %v800, %v1269
        %v1378 = vsub.f32 %v889, %v1270
        %v1379 = vsub.f32 %v978, %v1271
        %v1380 = vsub.f32 %v713, %v1268
        %v1381 = vsub.f32 %v802, %v1269
        %v1382 = vsub.f32 %v891, %v1270
        %v1383 = vsub.f32 %v980, %v1271
        %v1384 = vsub.f32 %v716, %v1268
        %v1385 = vsub.f32 %v805, %v1269
        %v1386 = vsub.f32 %v894, %v1270
        %v1387 = vsub.f32 %v983, %v1271
        %v1388 = vsub.f32 %v718, %v1268
        %v1389 = vsub.f32 %v807, %v1269
        %v1390 = vsub.f32 %v896, %v1270
        %v1391 = vsub.f32 %v985, %v1271
        %v1392 = vsub.f32 %v721, %v1268
        %v1393 = vsub.f32 %v810, %v1269
        %v1394 = vsub.f32 %v899, %v1270
        %v1395 = vsub.f32 %v988, %v1271
        %v1396 = vsub.f32 %v723, %v1268
        %v1397 = vsub.f32 %v812, %v1269
        %v1398 = vsub.f32 %v901, %v1270
        %v1399 = vsub.f32 %v990, %v1271
        %v1400 = vmul.f32 %v1272, %v1272
        %v1401 = vmul.f32 %v1273, %v1273
        %v1402 = vmul.f32 %v1274, %v1274
        %v1403 = vmul.f32 %v1275, %v1275
        %v1404 = vmul.f32 %v1276, %v1276
        %v1405 = vmul.f32 %v1277, %v1277
        %v1406 = vmul.f32 %v1278, %v1278
        %v1407 = vmul.f32 %v1279, %v1279
        %v1408 = vmul.f32 %v1280, %v1280
        %v1409 = vmul.f32 %v1281, %v1281
        %v1410 = vmul.f32 %v1282, %v1282
        %v1411 = vmul.f32 %v1283, %v1283
        %v1412 = vmul.f32 %v1284, %v1284
        %v1413 = vmul.f32 %v1285, %v1285
        %v1414 = vmul.f32 %v1286, %v1286
        %v1415 = vmul.f32 %v1287, %v1287
        %v1416 = vmul.f32 %v1288, %v1288
        %v1417 = vmul.f32 %v1289, %v1289
        %v1418 = vmul.f32 %v1290, %v1290
        %v1419 = vmul.f32 %v1291, %v1291
        %v1420 = vmul.f32 %v1292, %v1292
        %v1421 = vmul.f32 %v1293, %v1293
        %v1422 = vmul.f32 %v1294, %v1294
        %v1423 = vmul.f32 %v1295, %v1295
        %v1424 = vmul.f32 %v1296, %v1296
        %v1425 = vmul.f32 %v1297, %v1297
        %v1426 = vmul.f32 %v1298, %v1298
        %v1427 = vmul.f32 %v1299, %v1299
        %v1428 = vmul.f32 %v1300, %v1300
        %v1429 = vmul.f32 %v1301, %v1301
        %v1430 = vmul.f32 %v1302, %v1302
        %v1431 = vmul.f32 %v1303, %v1303
        %v1432 = vmul.f32 %v1304, %v1304
        %v1433 = vmul.f32 %v1305, %v1305
        %v1434 = vmul.f32 %v1306, %v1306
        %v1435 = vmul.f32 %v1307, %v1307
        %v1436 = vmul.f32 %v1308, %v1308
        %v1437 = vmul.f32 %v1309, %v1309
        %v1438 = vmul.f32 %v1310, %v1310
        %v1439 = vmul.f32 %v1311, %v1311
        %v1440 = vmul.f32 %v1312, %v1312
        %v1441 = vmul.f32 %v1313, %v1313
        %v1442 = vmul.f32 %v1314, %v1314
        %v1443 = vmul.f32 %v1315, %v1315
        %v1444 = vmul.f32 %v1316, %v1316
        %v1445 = vmul.f32 %v1317, %v1317
        %v1446 = vmul.f32 %v1318, %v1318
        %v1447 = vmul.f32 %v1319, %v1319
        %v1448 = vmul.f32 %v1320, %v1320
        %v1449 = vmul.f32 %v1321, %v1321
        %v1450 = vmul.f32 %v1322, %v1322
        %v1451 = vmul.f32 %v1323, %v1323
        %v1452 = vmul.f32 %v1324, %v1324
        %v1453 = vmul.f32 %v1325, %v1325
        %v1454 = vmul.f32 %v1326, %v1326
        %v1455 = vmul.f32 %v1327, %v1327
        %v1456 = vmul.f32 %v1328, %v1328
        %v1457 = vmul.f32 %v1329, %v1329
        %v1458 = vmul.f32 %v1330, %v1330
        %v1459 = vmul.f32 %v1331, %v1331
        %v1460 = vmul.f32 %v1332, %v1332
        %v1461 = vmul.f32 %v1333, %v1333
        %v1462 = vmul.f32 %v1334, %v1334
        %v1463 = vmul.f32 %v1335, %v1335
        %v1464 = vmul.f32 %v1336, %v1336
        %v1465 = vmul.f32 %v1337, %v1337
        %v1466 = vmul.f32 %v1338, %v1338
        %v1467 = vmul.f32 %v1339, %v1339
        %v1468 = vmul.f32 %v1340, %v1340
        %v1469 = vmul.f32 %v1341, %v1341
        %v1470 = vmul.f32 %v1342, %v1342
        %v1471 = vmul.f32 %v1343, %v1343
        %v1472 = vmul.f32 %v1344, %v1344
        %v1473 = vmul.f32 %v1345, %v1345
        %v1474 = vmul.f32 %v1346, %v1346
        %v1475 = vmul.f32 %v1347, %v1347
        %v1476 = vmul.f32 %v1348, %v1348
        %v1477 = vmul.f32 %v1349, %v1349
        %v1478 = vmul.f32 %v1350, %v1350
        %v1479 = vmul.f32 %v1351, %v1351
        %v1480 = vmul.f32 %v1352, %v1352
        %v1481 = vmul.f32 %v1353, %v1353
        %v1482 = vmul.f32 %v1354, %v1354
        %v1483 = vmul.f32 %v1355, %v1355
        %v1484 = vmul.f32 %v1356, %v1356
        %v1485 = vmul.f32 %v1357, %v1357
        %v1486 = vmul.f32 %v1358, %v1358
        %v1487 = vmul.f32 %v1359, %v1359
        %v1488 = vmul.f32 %v1360, %v1360
        %v1489 = vmul.f32 %v1361, %v1361
        %v1490 = vmul.f32 %v1362, %v1362
        %v1491 = vmul.f32 %v1363, %v1363
        %v1492 = vmul.f32 %v1364, %v1364
        %v1493 = vmul.f32 %v1365, %v1365
        %v1494 = vmul.f32 %v1366, %v1366
        %v1495 = vmul.f32 %v1367, %v1367
        %v1496 = vmul.f32 %v1368, %v1368
        %v1497 = vmul.f32 %v1369, %v1369
        %v1498 = vmul.f32 %v1370, %v1370
        %v1499 = vmul.f32 %v1371, %v1371
        %v1500 = vmul.f32 %v1372, %v1372
        %v1501 = vmul.f32 %v1373, %v1373
        %v1502 = vmul.f32 %v1374, %v1374
        %v1503 = vmul.f32 %v1375, %v1375
        %v1504 = vmul.f32 %v1376, %v1376
        %v1505 = vmul.f32 %v1377, %v1377
        %v1506 = vmul.f32 %v1378, %v1378
        %v1507 = vmul.f32 %v1379, %v1379
        %v1508 = vmul.f32 %v1380, %v1380
        %v1509 = vmul.f32 %v1381, %v1381
        %v1510 = vmul.f32 %v1382, %v1382
        %v1511 = vmul.f32 %v1383, %v1383
        %v1512 = vmul.f32 %v1384, %v1384
        %v1513 = vmul.f32 %v1385, %v1385
        %v1514 = vmul.f32 %v1386, %v1386
        %v1515 = vmul.f32 %v1387, %v1387
        %v1516 = vmul.f32 %v1388, %v1388
        %v1517 = vmul.f32 %v1389, %v1389
        %v1518 = vmul.f32 %v1390, %v1390
        %v1519 = vmul.f32 %v1391, %v1391
        %v1520 = vmul.f32 %v1392, %v1392
        %v1521 = vmul.f32 %v1393, %v1393
        %v1522 = vmul.f32 %v1394, %v1394
        %v1523 = vmul.f32 %v1395, %v1395
        %v1524 = vmul.f32 %v1396, %v1396
        %v1525 = vmul.f32 %v1397, %v1397
        %v1526 = vmul.f32 %v1398, %v1398
        %v1527 = vmul.f32 %v1399, %v1399
        %v1528 = vadd.f32 %v1400, %v1404
        %v1529 = vadd.f32 %v1528, %v1408
        %v1530 = vadd.f32 %v1529, %v1412
        %v1531 = vadd.f32 %v1530, %v1416
        %v1532 = vadd.f32 %v1531, %v1420
        %v1533 = vadd.f32 %v1532, %v1424
        %v1534 = vadd.f32 %v1533, %v1428
        %v1535 = vadd.f32 %v1534, %v1432
        %v1536 = vadd.f32 %v1535, %v1436
        %v1537 = vadd.f32 %v1536, %v1440
        %v1538 = vadd.f32 %v1537, %v1444
        %v1539 = vadd.f32 %v1538, %v1448
        %v1540 = vadd.f32 %v1539, %v1452
        %v1541 = vadd.f32 %v1540, %v1456
        %v1542 = vadd.f32 %v1541, %v1460
        %v1543 = vadd.f32 %v1542, %v1464
        %v1544 = vadd.f32 %v1543, %v1468
        %v1545 = vadd.f32 %v1544, %v1472
        %v1546 = vadd.f32 %v1545, %v1476
        %v1547 = vadd.f32 %v1546, %v1480
        %v1548 = vadd.f32 %v1547, %v1484
        %v1549 = vadd.f32 %v1548, %v1488
        %v1550 = vadd.f32 %v1549, %v1492
        %v1551 = vadd.f32 %v1550, %v1496
        %v1552 = vadd.f32 %v1551, %v1500
        %v1553 = vadd.f32 %v1552, %v1504
        %v1554 = vadd.f32 %v1553, %v1508
        %v1555 = vadd.f32 %v1554, %v1512
        %v1556 = vadd.f32 %v1555, %v1516
        %v1557 = vadd.f32 %v1556, %v1520
        %v1558 = vadd.f32 %v1557, %v1524
        %v1559 = vrot.slane %v1558, 4
        %v1560 = vadd.f32 %v1558, %v1559
        %v1561 = vrot.slane %v1560, 2
        %v1562 = vadd.f32 %v1560, %v1561
        %v1563 = vrot.slane %v1562, 1
        %v1564 = vadd.f32 %v1562, %v1563
        %v1565 = vadd.f32 %v1401, %v1405
        %v1566 = vadd.f32 %v1565, %v1409
        %v1567 = vadd.f32 %v1566, %v1413
        %v1568 = vadd.f32 %v1567, %v1417
        %v1569 = vadd.f32 %v1568, %v1421
        %v1570 = vadd.f32 %v1569, %v1425
        %v1571 = vadd.f32 %v1570, %v1429
        %v1572 = vadd.f32 %v1571, %v1433
        %v1573 = vadd.f32 %v1572, %v1437
        %v1574 = vadd.f32 %v1573, %v1441
        %v1575 = vadd.f32 %v1574, %v1445
        %v1576 = vadd.f32 %v1575, %v1449
        %v1577 = vadd.f32 %v1576, %v1453
        %v1578 = vadd.f32 %v1577, %v1457
        %v1579 = vadd.f32 %v1578, %v1461
        %v1580 = vadd.f32 %v1579, %v1465
        %v1581 = vadd.f32 %v1580, %v1469
        %v1582 = vadd.f32 %v1581, %v1473
        %v1583 = vadd.f32 %v1582, %v1477
        %v1584 = vadd.f32 %v1583, %v1481
        %v1585 = vadd.f32 %v1584, %v1485
        %v1586 = vadd.f32 %v1585, %v1489
        %v1587 = vadd.f32 %v1586, %v1493
        %v1588 = vadd.f32 %v1587, %v1497
        %v1589 = vadd.f32 %v1588, %v1501
        %v1590 = vadd.f32 %v1589, %v1505
        %v1591 = vadd.f32 %v1590, %v1509
        %v1592 = vadd.f32 %v1591, %v1513
        %v1593 = vadd.f32 %v1592, %v1517
        %v1594 = vadd.f32 %v1593, %v1521
        %v1595 = vadd.f32 %v1594, %v1525
        %v1596 = vrot.slane %v1595, 4
        %v1597 = vadd.f32 %v1595, %v1596
        %v1598 = vrot.slane %v1597, 2
        %v1599 = vadd.f32 %v1597, %v1598
        %v1600 = vrot.slane %v1599, 1
        %v1601 = vadd.f32 %v1599, %v1600
        %v1602 = vadd.f32 %v1402, %v1406
        %v1603 = vadd.f32 %v1602, %v1410
        %v1604 = vadd.f32 %v1603, %v1414
        %v1605 = vadd.f32 %v1604, %v1418
        %v1606 = vadd.f32 %v1605, %v1422
        %v1607 = vadd.f32 %v1606, %v1426
        %v1608 = vadd.f32 %v1607, %v1430
        %v1609 = vadd.f32 %v1608, %v1434
        %v1610 = vadd.f32 %v1609, %v1438
        %v1611 = vadd.f32 %v1610, %v1442
        %v1612 = vadd.f32 %v1611, %v1446
        %v1613 = vadd.f32 %v1612, %v1450
        %v1614 = vadd.f32 %v1613, %v1454
        %v1615 = vadd.f32 %v1614, %v1458
        %v1616 = vadd.f32 %v1615, %v1462
        %v1617 = vadd.f32 %v1616, %v1466
        %v1618 = vadd.f32 %v1617, %v1470
        %v1619 = vadd.f32 %v1618, %v1474
        %v1620 = vadd.f32 %v1619, %v1478
        %v1621 = vadd.f32 %v1620, %v1482
        %v1622 = vadd.f32 %v1621, %v1486
        %v1623 = vadd.f32 %v1622, %v1490
        %v1624 = vadd.f32 %v1623, %v1494
        %v1625 = vadd.f32 %v1624, %v1498
        %v1626 = vadd.f32 %v1625, %v1502
        %v1627 = vadd.f32 %v1626, %v1506
        %v1628 = vadd.f32 %v1627, %v1510
        %v1629 = vadd.f32 %v1628, %v1514
        %v1630 = vadd.f32 %v1629, %v1518
        %v1631 = vadd.f32 %v1630, %v1522
        %v1632 = vadd.f32 %v1631, %v1526
        %v1633 = vrot.slane %v1632, 4
        %v1634 = vadd.f32 %v1632, %v1633
        %v1635 = vrot.slane %v1634, 2
        %v1636 = vadd.f32 %v1634, %v1635
        %v1637 = vrot.slane %v1636, 1
        %v1638 = vadd.f32 %v1636, %v1637
        %v1639 = vadd.f32 %v1403, %v1407
        %v1640 = vadd.f32 %v1639, %v1411
        %v1641 = vadd.f32 %v1640, %v1415
        %v1642 = vadd.f32 %v1641, %v1419
        %v1643 = vadd.f32 %v1642, %v1423
        %v1644 = vadd.f32 %v1643, %v1427
        %v1645 = vadd.f32 %v1644, %v1431
        %v1646 = vadd.f32 %v1645, %v1435
        %v1647 = vadd.f32 %v1646, %v1439
        %v1648 = vadd.f32 %v1647, %v1443
        %v1649 = vadd.f32 %v1648, %v1447
        %v1650 = vadd.f32 %v1649, %v1451
        %v1651 = vadd.f32 %v1650, %v1455
        %v1652 = vadd.f32 %v1651, %v1459
        %v1653 = vadd.f32 %v1652, %v1463
        %v1654 = vadd.f32 %v1653, %v1467
        %v1655 = vadd.f32 %v1654, %v1471
        %v1656 = vadd.f32 %v1655, %v1475
        %v1657 = vadd.f32 %v1656, %v1479
        %v1658 = vadd.f32 %v1657, %v1483
        %v1659 = vadd.f32 %v1658, %v1487
        %v1660 = vadd.f32 %v1659, %v1491
        %v1661 = vadd.f32 %v1660, %v1495
        %v1662 = vadd.f32 %v1661, %v1499
        %v1663 = vadd.f32 %v1662, %v1503
        %v1664 = vadd.f32 %v1663, %v1507
        %v1665 = vadd.f32 %v1664, %v1511
        %v1666 = vadd.f32 %v1665, %v1515
        %v1667 = vadd.f32 %v1666, %v1519
        %v1668 = vadd.f32 %v1667, %v1523
        %v1669 = vadd.f32 %v1668, %v1527
        %v1670 = vrot.slane %v1669, 4
        %v1671 = vadd.f32 %v1669, %v1670
        %v1672 = vrot.slane %v1671, 2
        %v1673 = vadd.f32 %v1671, %v1672
        %v1674 = vrot.slane %v1673, 1
        %v1675 = vadd.f32 %v1673, %v1674
        %vm1676 = vcmask 1040384
        %v1677 = vsel %vm1676, %v1156, %v1564
        %v1678 = vsel %vm1676, %v1193, %v1601
        %v1679 = vsel %vm1676, %v1230, %v1638
        %v1680 = vsel %vm1676, %v1267, %v1675
        %v1685 = vrot.slane %v1678, 6
        %v1686 = vrot.slane %v1679, 4
        %v1687 = vrot.slane %v1680, 2
        %vm1688 = vcmask 1041408
        %v1689 = vsel %vm1688, %v1677, %v1685
        %vm1690 = vcmask 1045508
        %v1691 = vsel %vm1690, %v1686, %v1687
        %vm1692 = vcmask 1043456
        %v1693 = vsel %vm1692, %v1689, %v1691
        %1695 = vst [vmem:[%s259] sm:$0xff] %v1693
        %s1696 = smul.u32 32, %s18
        %p1697 = scmp.lt.s32.totalorder %s1696, 63
        %s1698 = scalar_select %p1697, %s1696, 63
        %s1699 = smul.addr %s1698, 4
        %s1700 = smul.addr %s1699, 4
        %s1701 = scalar_lea.vmem %s4, %s1700
        %p1702 = scmp.lt.s32.totalorder %s18, 1
        %s1703 = scalar_select %p1702, %s18, 1
        %s1704 = smul.addr %s1703, 4
        %s1705 = smul.addr %s1704, 2
        %s1706 = scalar_lea.vmem %s5, %s1705
        // Predicated region
        $region41: #{bottleneck_forward_nhwc.6} parent=35 // pred_check
          %p1707 = pneg %p125
        $region42: #{bottleneck_forward_nhwc.6} parent=35 // pred_check_branch
          %1709 = sbr.rel (%p1707) target = $region44
        $region43: #{bottleneck_forward_nhwc.6} parent=35 // pred_region
          %s1710 = smul.u32 32, %s18
        $region44: #{bottleneck_forward_nhwc.6} parent=35 // pred_fallthru
          _
        // Predicated region
        $region45: #{bottleneck_forward_nhwc.6} parent=35 // pred_check
          %p1711 = pneg %p151
        $region46: #{bottleneck_forward_nhwc.6} parent=35 // pred_check_branch
          %1713 = sbr.rel (%p1711) target = $region48
        $region47: #{bottleneck_forward_nhwc.6} parent=35 // pred_region
          _
        $region48: #{bottleneck_forward_nhwc.6} parent=35 // pred_fallthru
          _
      $region36: #{bottleneck_forward_nhwc.6} parent=5 // pred_fallthru
        _
      %p1714 = scmp.le.s32.totalorder 2, %s13
      // Predicated region
      $region49: #{bottleneck_forward_nhwc.6} parent=5 // pred_check
        %p1715 = pneg %p1714
      $region50: #{bottleneck_forward_nhwc.6} parent=5 // pred_check_branch
        %1717 = sbr.rel (%p1715) target = $region52
      $region51: #{bottleneck_forward_nhwc.6} parent=5 // pred_region
        %s1718 = ssub.s32 %s13, 2
        // Predicated region
        $region53: #{bottleneck_forward_nhwc.6} parent=51 // pred_check
          %p1719 = pneg %p131
        $region54: #{bottleneck_forward_nhwc.6} parent=51 // pred_check_branch
          %1721 = sbr.rel (%p1719) target = $region56
        $region55: #{bottleneck_forward_nhwc.6} parent=51 // pred_region
          %s1722 = smul.u32 32, %s19
          %p1723 = scmp.lt.s32.totalorder %s1722, 63
          %s1724 = scalar_select %p1723, %s1722, 63
          %s1725 = smul.addr %s1724, 4
          %s1726 = smul.addr %s1725, 4
          %s1727 = scalar_lea.vmem %s4, %s1726
        $region56: #{bottleneck_forward_nhwc.6} parent=51 // pred_fallthru
          _
        // Predicated region
        $region57: #{bottleneck_forward_nhwc.6} parent=51 // pred_check
          %p1728 = pneg %p157
        $region58: #{bottleneck_forward_nhwc.6} parent=51 // pred_check_branch
          %1730 = sbr.rel (%p1728) target = $region60
        $region59: #{bottleneck_forward_nhwc.6} parent=51 // pred_region
          %p1731 = scmp.lt.s32.totalorder %s19, 1
          %s1732 = scalar_select %p1731, %s19, 1
          %s1733 = smul.addr %s1732, 4
          %s1734 = smul.addr %s1733, 2
          %s1735 = scalar_lea.vmem %s5, %s1734
        $region60: #{bottleneck_forward_nhwc.6} parent=51 // pred_fallthru
          _
      $region52: #{bottleneck_forward_nhwc.6} parent=5 // pred_fallthru
        _
    $region6: #{bottleneck_forward_nhwc.6} parent=1 // loop_footer
      %s17 = sadd.s32 1, %s13
    $region7: #{bottleneck_forward_nhwc.6} parent=1 // loop_footer_branch
      %12 = sbr.rel target = $region3
    $region8: #{bottleneck_forward_nhwc.6} parent=1 // loop_exit
      _
    %1736 = vsyncpa [#allocation3], 1
    %s1737 = scalar_lea.sflag [#allocation3], 1
    %1738 = vsyncpa %s1737, 1

// kernel: bottleneck_forward_nhwc.7
$region0: #{bottleneck_forward_nhwc.7}
  #allocation0 [shape = 'u32[]', space=smem, size = 0x4, offset = 0x4, fixed_abs, tag = 'smem constant byte address 0x4 - core index']
  #allocation1 [shape = 'u32[72,128]{1,0:T(1,128)}', space=vmem, size = 0x9000, scoped, tag = 'internal scratch']
  %s0 = inlined_call_operand.vmem [shape: bf16[512,512], index: 0, kind: input, shape index: {}]
  %s1 = inlined_call_operand.hbm [shape: f32[512,512], index: 1, kind: input, shape index: {}]
  %s2 = inlined_call_operand.vmem [shape: f32[1,512], index: 2, kind: input, shape index: {}]
  %s3 = inlined_call_operand.vmem [shape: f32[1,512], index: 3, kind: input, shape index: {}]
  %s4 = inlined_call_operand.hbm [shape: f32[512,512], index: 4, kind: output, shape index: {}]
  %s5 = sld [smem:[#allocation0]]
  $region53: #{bottleneck_forward_nhwc.7} parent=0
    _
  %s7 = ssub.s32 1, %s5
  %s8 = scalar_select 0, %s7, %s5
  $region1: #{bottleneck_forward_nhwc.7} parent=0
    #allocation2 [shape = 'u8[1048576]{0}', space=vmem, size = 0x100000, scoped, tag = 'input window, operand 1']
    #allocation3 [shape = 's32[2]{0}', space=sflag, size = 0x8, scoped, tag = 'scoped memory for bottleneck_forward_nhwc.7']
    #allocation4 [shape = 's32[2]{0}', space=sflag, size = 0x8, scoped, tag = 'scoped memory for bottleneck_forward_nhwc.7']
    #allocation5 [shape = 'u8[1048576]{0}', space=vmem, size = 0x100000, scoped, tag = 'output window, operand 0']
    %9 = vsyncpa [#allocation3], 0
    %s10 = scalar_lea.sflag [#allocation3], 1
    %11 = vsyncpa %s10, 0
    %12 = vsyncpa [#allocation4], 0
    %s13 = scalar_lea.sflag [#allocation4], 1
    %14 = vsyncpa %s13, 0
    loop: start=0, step=1, limit=4
    $region2: #{bottleneck_forward_nhwc.7} parent=1 // loop_pre_header
      _
    $region3: #{bottleneck_forward_nhwc.7} parent=1 // loop_header
      %s16 = sphi 0, %s20
      %p17 = scmp.ge.s32.totalorder %s16, 4
      %s26 = sphi 0, %s28
      %s29 = sphi 0, %s26
      %s30 = sphi 0, %s29
      %s46 = sphi 0, %s30
      %s52 = sphi 0, %s54
      %s55 = sphi 0, %s52
      %s56 = sphi 0, %s55
      %s72 = sphi 0, %s56
      %s76 = sphi 0, %s76
      %s78 = sphi 0, %s76
      %s79 = sphi 0, %s78
      %s93 = sphi 0, %s79
      %s97 = sphi 0, %s97
      %s99 = sphi 0, %s97
      %s100 = sphi 0, %s99
      %s114 = sphi 0, %s100
      %s120 = sphi 0, %s122
      %s123 = sphi 0, %s120
      %s124 = sphi 0, %s123
      %s140 = sphi 0, %s124
    $region4: #{bottleneck_forward_nhwc.7} parent=1 // loop_header_branch
      %19 = sbr.rel (%p17) target = $region8
    $region5: #{bottleneck_forward_nhwc.7} parent=1 // loop_body
      %s21 = ssub.s32 %s16, 1
      %s22 = ssub.s32 %s16, 2
      %s23 = sadd.s32 %s16, 1
      %s24 = ssub.s32 %s16, %s23
      %p25 = scmp.eq.s32.totalorder %s24, 0
      %s27 = sadd.s32 %s26, 1
      %s28 = scalar_select %p25, %s26, %s27
      %p31 = pneg %p25
      %p32 = scmp.eq.s32.totalorder %s16, 1
      %p33 = por %p31, %p32
      %p34 = scmp.ne.s32.totalorder %s26, %s29
      %p35 = scmp.eq.s32.totalorder %s16, 0
      %p36 = por %p34, %p35
      %p37 = scmp.ne.s32.totalorder %s26, %s29
      %p38 = scmp.eq.s32.totalorder %s21, 1
      %p39 = por %p37, %p38
      %p40 = scmp.ne.s32.totalorder %s29, %s30
      %p41 = scmp.eq.s32.totalorder %s21, 0
      %p42 = por %p40, %p41
      %p43 = scmp.ne.s32.totalorder %s29, %s30
      %p44 = scmp.eq.s32.totalorder %s22, 1
      %p45 = por %p43, %p44
      %p47 = scmp.ne.s32.totalorder %s30, %s46
      %p48 = scmp.eq.s32.totalorder %s22, 0
      %p49 = por %p47, %p48
      %s50 = ssub.s32 %s16, %s23
      %p51 = scmp.eq.s32.totalorder %s50, 0
      %s53 = sadd.s32 %s52, 1
      %s54 = scalar_select %p51, %s52, %s53
      %p57 = pneg %p51
      %p58 = scmp.eq.s32.totalorder %s16, 1
      %p59 = por %p57, %p58
      %p60 = scmp.ne.s32.totalorder %s52, %s55
      %p61 = scmp.eq.s32.totalorder %s16, 0
      %p62 = por %p60, %p61
      %p63 = scmp.ne.s32.totalorder %s52, %s55
      %p64 = scmp.eq.s32.totalorder %s21, 1
      %p65 = por %p63, %p64
      %p66 = scmp.ne.s32.totalorder %s55, %s56
      %p67 = scmp.eq.s32.totalorder %s21, 0
      %p68 = por %p66, %p67
      %p69 = scmp.ne.s32.totalorder %s55, %s56
      %p70 = scmp.eq.s32.totalorder %s22, 1
      %p71 = por %p69, %p70
      %p73 = scmp.ne.s32.totalorder %s56, %s72
      %p74 = scmp.eq.s32.totalorder %s22, 0
      %p75 = por %p73, %p74
      %s77 = sadd.s32 %s76, 1
      %p80 = scmp.eq.s32.totalorder %s16, 1
      %p81 = scmp.ne.s32.totalorder %s76, %s78
      %p82 = scmp.eq.s32.totalorder %s16, 0
      %p83 = por %p81, %p82
      %p84 = scmp.ne.s32.totalorder %s76, %s78
      %p85 = scmp.eq.s32.totalorder %s21, 1
      %p86 = por %p84, %p85
      %p87 = scmp.ne.s32.totalorder %s78, %s79
      %p88 = scmp.eq.s32.totalorder %s21, 0
      %p89 = por %p87, %p88
      %p90 = scmp.ne.s32.totalorder %s78, %s79
      %p91 = scmp.eq.s32.totalorder %s22, 1
      %p92 = por %p90, %p91
      %p94 = scmp.ne.s32.totalorder %s79, %s93
      %p95 = scmp.eq.s32.totalorder %s22, 0
      %p96 = por %p94, %p95
      %s98 = sadd.s32 %s97, 1
      %p101 = scmp.eq.s32.totalorder %s16, 1
      %p102 = scmp.ne.s32.totalorder %s97, %s99
      %p103 = scmp.eq.s32.totalorder %s16, 0
      %p104 = por %p102, %p103
      %p105 = scmp.ne.s32.totalorder %s97, %s99
      %p106 = scmp.eq.s32.totalorder %s21, 1
      %p107 = por %p105, %p106
      %p108 = scmp.ne.s32.totalorder %s99, %s100
      %p109 = scmp.eq.s32.totalorder %s21, 0
      %p110 = por %p108, %p109
      %p111 = scmp.ne.s32.totalorder %s99, %s100
      %p112 = scmp.eq.s32.totalorder %s22, 1
      %p113 = por %p111, %p112
      %p115 = scmp.ne.s32.totalorder %s100, %s114
      %p116 = scmp.eq.s32.totalorder %s22, 0
      %p117 = por %p115, %p116
      %s118 = ssub.s32 %s16, %s23
      %p119 = scmp.eq.s32.totalorder %s118, 0
      %s121 = sadd.s32 %s120, 1
      %s122 = scalar_select %p119, %s120, %s121
      %p125 = pneg %p119
      %p126 = scmp.eq.s32.totalorder %s16, 1
      %p127 = por %p125, %p126
      %p128 = scmp.ne.s32.totalorder %s120, %s123
      %p129 = scmp.eq.s32.totalorder %s16, 0
      %p130 = por %p128, %p129
      %p131 = scmp.ne.s32.totalorder %s120, %s123
      %p132 = scmp.eq.s32.totalorder %s21, 1
      %p133 = por %p131, %p132
      %p134 = scmp.ne.s32.totalorder %s123, %s124
      %p135 = scmp.eq.s32.totalorder %s21, 0
      %p136 = por %p134, %p135
      %p137 = scmp.ne.s32.totalorder %s123, %s124
      %p138 = scmp.eq.s32.totalorder %s22, 1
      %p139 = por %p137, %p138
      %p141 = scmp.ne.s32.totalorder %s124, %s140
      %p142 = scmp.eq.s32.totalorder %s22, 0
      %p143 = por %p141, %p142
      %p144 = scmp.le.s32.totalorder 1, %s16
      %p145 = scmp.lt.s32.totalorder %s16, 3
      %p146 = pnand %p144, %p145
      %p147 = pneg %p146
      // Predicated region
      $region9: #{bottleneck_forward_nhwc.7} parent=5 // pred_check
        _
      $region10: #{bottleneck_forward_nhwc.7} parent=5 // pred_check_branch
        %149 = sbr.rel (%p146) target = $region12
      $region11: #{bottleneck_forward_nhwc.7} parent=5 // pred_region
        %s150 = ssub.s32 %s16, 1
        // Predicated region
        $region13: #{bottleneck_forward_nhwc.7} parent=11 // pred_check
          %p151 = pneg %p89
        $region14: #{bottleneck_forward_nhwc.7} parent=11 // pred_check_branch
          %153 = sbr.rel (%p151) target = $region16
        $region15: #{bottleneck_forward_nhwc.7} parent=11 // pred_region
          _
        $region16: #{bottleneck_forward_nhwc.7} parent=11 // pred_fallthru
          _
        // Predicated region
        $region17: #{bottleneck_forward_nhwc.7} parent=11 // pred_check
          %p154 = pneg %p110
        $region18: #{bottleneck_forward_nhwc.7} parent=11 // pred_check_branch
          %156 = sbr.rel (%p154) target = $region20
        $region19: #{bottleneck_forward_nhwc.7} parent=11 // pred_region
          _
        $region20: #{bottleneck_forward_nhwc.7} parent=11 // pred_fallthru
          _
      $region12: #{bottleneck_forward_nhwc.7} parent=5 // pred_fallthru
        _
      %p157 = scmp.lt.s32.totalorder %s16, 2
      // Predicated region
      $region21: #{bottleneck_forward_nhwc.7} parent=5 // pred_check
        %p158 = pneg %p157
      $region22: #{bottleneck_forward_nhwc.7} parent=5 // pred_check_branch
        %160 = sbr.rel (%p158) target = $region24
      $region23: #{bottleneck_forward_nhwc.7} parent=5 // pred_region
        // Predicated region
        $region25: #{bottleneck_forward_nhwc.7} parent=23 // pred_check
          %p161 = pneg %p36
        $region26: #{bottleneck_forward_nhwc.7} parent=23 // pred_check_branch
          %163 = sbr.rel (%p161) target = $region28
        $region27: #{bottleneck_forward_nhwc.7} parent=23 // pred_region
          %s164 = smul.u32 32, %s16
          %p165 = scmp.lt.s32.totalorder %s164, 63
          %s166 = scalar_select %p165, %s164, 63
          %s167 = smul.addr %s166, 4
          %s168 = smul.addr %s167, 4
          %s169 = scalar_lea.vmem %s0, %s168
          %s170 = smul.u32 32, %s16
        $region28: #{bottleneck_forward_nhwc.7} parent=23 // pred_fallthru
          _
        // Predicated region
        $region29: #{bottleneck_forward_nhwc.7} parent=23 // pred_check
          %p171 = pneg %p62
        $region30: #{bottleneck_forward_nhwc.7} parent=23 // pred_check_branch
          %173 = sbr.rel (%p171) target = $region32
        $region31: #{bottleneck_forward_nhwc.7} parent=23 // pred_region
          %s174 = sand.u32 %s52, 1
          %s175 = scalar_lea.sflag [#allocation3], %s174
          %s176 = sand.u32 %s52, 1
          %s177 = smul.addr %s176, 1024
          %s178 = scalar_lea.vmem [#allocation2], %s177
          %s179 = smul.u32 32, %s16
          %181 = vsyncadd %s175, 0
          %s182 = smul.addr %s179, 4
          %s183 = smul.addr %s182, 8
          %s184 = scalar_lea.hbm %s1, %s183
          %s185 = sshll.u32 %s184, 4
          %s186 = int_to_ptr.hbm [resolvable:$true] %s185
          %s187 = sshll.u32 %s178, 4
          %s188 = int_to_ptr.vmem [resolvable:$true] %s187
          %193 = dma.hbm_to_vmem [thread:$0]  %s186, 16384, %s188, %s175, 512, 512, 32
        $region32: #{bottleneck_forward_nhwc.7} parent=23 // pred_fallthru
          _
      $region24: #{bottleneck_forward_nhwc.7} parent=5 // pred_fallthru
        _
      %p194 = scmp.le.s32.totalorder 1, %s16
      %p195 = scmp.lt.s32.totalorder %s16, 3
      %p196 = pnand %p194, %p195
      %p197 = pneg %p196
      // Predicated region
      $region33: #{bottleneck_forward_nhwc.7} parent=5 // pred_check
        _
      $region34: #{bottleneck_forward_nhwc.7} parent=5 // pred_check_branch
        %199 = sbr.rel (%p196) target = $region36
      $region35: #{bottleneck_forward_nhwc.7} parent=5 // pred_region
        %s200 = ssub.s32 %s16, 1
        %s201 = sand.u32 %s55, 1
        %s202 = scalar_lea.sflag [#allocation3], %s201
        %s203 = sand.u32 %s55, 1
        %s204 = smul.addr %s203, 1024
        %s205 = scalar_lea.vmem [#allocation2], %s204
        // Predicated region
        $region37: #{bottleneck_forward_nhwc.7} parent=35 // pred_check
          %p206 = pneg %p68
        $region38: #{bottleneck_forward_nhwc.7} parent=35 // pred_check_branch
          %208 = sbr.rel (%p206) target = $region40
        $region39: #{bottleneck_forward_nhwc.7} parent=35 // pred_region
          %210 = dma.done %s202, 16384
        $region40: #{bottleneck_forward_nhwc.7} parent=35 // pred_fallthru
          _
        %s211 = smul.u32 32, %s21
        %p212 = scmp.lt.s32.totalorder %s211, 63
        %s213 = scalar_select %p212, %s211, 63
        %s214 = smul.addr %s213, 4
        %s215 = smul.addr %s214, 4
        %s216 = scalar_lea.vmem %s0, %s215
        %p217 = pneg %p42
        %p218 = pneg %p39
        %s219 = sand.u32 %s55, 1
        %s220 = scalar_lea.sflag [#allocation3], %s219
        %s221 = sand.u32 %s55, 1
        %s222 = smul.addr %s221, 1024
        %s223 = scalar_lea.vmem [#allocation2], %s222
        %p224 = pneg %p68
        %p225 = pneg %p65
        %p226 = pneg %p89
        %p227 = pneg %p86
        %p228 = pneg %p110
        %p229 = pneg %p107
        %p230 = pneg %p136
        %p231 = pneg %p133
        %s232 = sand.u32 %s123, 1
        %s233 = scalar_lea.sflag [#allocation4], %s232
        %s234 = sand.u32 %s123, 1
        %s235 = smul.addr %s234, 1024
        %s236 = scalar_lea.vmem [#allocation5], %s235
        %s237 = smul.u32 32, %s21
        %p238 = scmp.lt.s32.totalorder %s237, 63
        %s239 = scalar_select %p238, %s237, 63
        %s240 = smul.addr %s239, 4
        %s241 = smul.addr %s240, 4
        %s242 = scalar_lea.vmem %s0, %s241
        %s243 = smul.u32 32, %s21
        %s244 = smul.u32 32, %s21
        %s245 = smul.u32 32, %s21
        %v246 = vld [vmem:[%s242] sm:$0xff]
        %v247 = vld [vmem:[%s242 + $0x8] sm:$0xff]
        %v248 = vld [vmem:[%s242 + $0x10] sm:$0xff]
        %v249 = vld [vmem:[%s242 + $0x18] sm:$0xff]
        %v250 = vld [vmem:[%s242 + $0x20] sm:$0xff]
        %v251 = vld [vmem:[%s242 + $0x28] sm:$0xff]
        %v252 = vld [vmem:[%s242 + $0x30] sm:$0xff]
        %v253 = vld [vmem:[%s242 + $0x38] sm:$0xff]
        %v254 = vld [vmem:[%s242 + $0x40] sm:$0xff]
        %v255 = vld [vmem:[%s242 + $0x48] sm:$0xff]
        %v256 = vld [vmem:[%s242 + $0x50] sm:$0xff]
        %v257 = vld [vmem:[%s242 + $0x58] sm:$0xff]
        %v258 = vld [vmem:[%s242 + $0x60] sm:$0xff]
        %v259 = vld [vmem:[%s242 + $0x68] sm:$0xff]
        %v260 = vld [vmem:[%s242 + $0x70] sm:$0xff]
        %v261 = vld [vmem:[%s242 + $0x78] sm:$0xff]
        %v262 = vld [vmem:[%s242 + $0x80] sm:$0xff]
        %v263 = vld [vmem:[%s242 + $0x88] sm:$0xff]
        %v264 = vld [vmem:[%s242 + $0x90] sm:$0xff]
        %v265 = vld [vmem:[%s242 + $0x98] sm:$0xff]
        %v266 = vld [vmem:[%s242 + $0xa0] sm:$0xff]
        %v267 = vld [vmem:[%s242 + $0xa8] sm:$0xff]
        %v268 = vld [vmem:[%s242 + $0xb0] sm:$0xff]
        %v269 = vld [vmem:[%s242 + $0xb8] sm:$0xff]
        %v270 = vld [vmem:[%s242 + $0xc0] sm:$0xff]
        %v271 = vld [vmem:[%s242 + $0xc8] sm:$0xff]
        %v272 = vld [vmem:[%s242 + $0xd0] sm:$0xff]
        %v273 = vld [vmem:[%s242 + $0xd8] sm:$0xff]
        %v274 = vld [vmem:[%s242 + $0xe0] sm:$0xff]
        %v275 = vld [vmem:[%s242 + $0xe8] sm:$0xff]
        %v276 = vld [vmem:[%s242 + $0xf0] sm:$0xff]
        %v277 = vld [vmem:[%s242 + $0xf8] sm:$0xff]
        %v278 = vld [vmem:[%s242 + $0x100] sm:$0xff]
        %v279 = vld [vmem:[%s242 + $0x108] sm:$0xff]
        %v280 = vld [vmem:[%s242 + $0x110] sm:$0xff]
        %v281 = vld [vmem:[%s242 + $0x118] sm:$0xff]
        %v282 = vld [vmem:[%s242 + $0x120] sm:$0xff]
        %v283 = vld [vmem:[%s242 + $0x128] sm:$0xff]
        %v284 = vld [vmem:[%s242 + $0x130] sm:$0xff]
        %v285 = vld [vmem:[%s242 + $0x138] sm:$0xff]
        %v286 = vld [vmem:[%s242 + $0x140] sm:$0xff]
        %v287 = vld [vmem:[%s242 + $0x148] sm:$0xff]
        %v288 = vld [vmem:[%s242 + $0x150] sm:$0xff]
        %v289 = vld [vmem:[%s242 + $0x158] sm:$0xff]
        %v290 = vld [vmem:[%s242 + $0x160] sm:$0xff]
        %v291 = vld [vmem:[%s242 + $0x168] sm:$0xff]
        %v292 = vld [vmem:[%s242 + $0x170] sm:$0xff]
        %v293 = vld [vmem:[%s242 + $0x178] sm:$0xff]
        %v294 = vld [vmem:[%s242 + $0x180] sm:$0xff]
        %v295 = vld [vmem:[%s242 + $0x188] sm:$0xff]
        %v296 = vld [vmem:[%s242 + $0x190] sm:$0xff]
        %v297 = vld [vmem:[%s242 + $0x198] sm:$0xff]
        %v298 = vld [vmem:[%s242 + $0x1a0] sm:$0xff]
        %v299 = vld [vmem:[%s242 + $0x1a8] sm:$0xff]
        %v300 = vld [vmem:[%s242 + $0x1b0] sm:$0xff]
        %v301 = vld [vmem:[%s242 + $0x1b8] sm:$0xff]
        %v302 = vld [vmem:[%s242 + $0x1c0] sm:$0xff]
        %v303 = vld [vmem:[%s242 + $0x1c8] sm:$0xff]
        %v304 = vld [vmem:[%s242 + $0x1d0] sm:$0xff]
        %v305 = vld [vmem:[%s242 + $0x1d8] sm:$0xff]
        %v306 = vld [vmem:[%s242 + $0x1e0] sm:$0xff]
        %v307 = vld [vmem:[%s242 + $0x1e8] sm:$0xff]
        %v308 = vld [vmem:[%s242 + $0x1f0] sm:$0xff]
        %v309 = vld [vmem:[%s242 + $0x1f8] sm:$0xff]
        %v310 = vunpack.c.l.bf16 %v246
        %v311 = vunpack.c.h.bf16 %v246
        %v312 = vunpack.c.l.bf16 %v247
        %v313 = vunpack.c.h.bf16 %v247
        %v314 = vunpack.c.l.bf16 %v248
        %v315 = vunpack.c.h.bf16 %v248
        %v316 = vunpack.c.l.bf16 %v249
        %v317 = vunpack.c.h.bf16 %v249
        %v318 = vunpack.c.l.bf16 %v250
        %v319 = vunpack.c.h.bf16 %v250
        %v320 = vunpack.c.l.bf16 %v251
        %v321 = vunpack.c.h.bf16 %v251
        %v322 = vunpack.c.l.bf16 %v252
        %v323 = vunpack.c.h.bf16 %v252
        %v324 = vunpack.c.l.bf16 %v253
        %v325 = vunpack.c.h.bf16 %v253
        %v326 = vunpack.c.l.bf16 %v254
        %v327 = vunpack.c.h.bf16 %v254
        %v328 = vunpack.c.l.bf16 %v255
        %v329 = vunpack.c.h.bf16 %v255
        %v330 = vunpack.c.l.bf16 %v256
        %v331 = vunpack.c.h.bf16 %v256
        %v332 = vunpack.c.l.bf16 %v257
        %v333 = vunpack.c.h.bf16 %v257
        %v334 = vunpack.c.l.bf16 %v258
        %v335 = vunpack.c.h.bf16 %v258
        %v336 = vunpack.c.l.bf16 %v259
        %v337 = vunpack.c.h.bf16 %v259
        %v338 = vunpack.c.l.bf16 %v260
        %v339 = vunpack.c.h.bf16 %v260
        %v340 = vunpack.c.l.bf16 %v261
        %v341 = vunpack.c.h.bf16 %v261
        %v342 = vunpack.c.l.bf16 %v262
        %v343 = vunpack.c.h.bf16 %v262
        %v344 = vunpack.c.l.bf16 %v263
        %v345 = vunpack.c.h.bf16 %v263
        %v346 = vunpack.c.l.bf16 %v264
        %v347 = vunpack.c.h.bf16 %v264
        %v348 = vunpack.c.l.bf16 %v265
        %v349 = vunpack.c.h.bf16 %v265
        %v350 = vunpack.c.l.bf16 %v266
        %v351 = vunpack.c.h.bf16 %v266
        %v352 = vunpack.c.l.bf16 %v267
        %v353 = vunpack.c.h.bf16 %v267
        %v354 = vunpack.c.l.bf16 %v268
        %v355 = vunpack.c.h.bf16 %v268
        %v356 = vunpack.c.l.bf16 %v269
        %v357 = vunpack.c.h.bf16 %v269
        %v358 = vunpack.c.l.bf16 %v270
        %v359 = vunpack.c.h.bf16 %v270
        %v360 = vunpack.c.l.bf16 %v271
        %v361 = vunpack.c.h.bf16 %v271
        %v362 = vunpack.c.l.bf16 %v272
        %v363 = vunpack.c.h.bf16 %v272
        %v364 = vunpack.c.l.bf16 %v273
        %v365 = vunpack.c.h.bf16 %v273
        %v366 = vunpack.c.l.bf16 %v274
        %v367 = vunpack.c.h.bf16 %v274
        %v368 = vunpack.c.l.bf16 %v275
        %v369 = vunpack.c.h.bf16 %v275
        %v370 = vunpack.c.l.bf16 %v276
        %v371 = vunpack.c.h.bf16 %v276
        %v372 = vunpack.c.l.bf16 %v277
        %v373 = vunpack.c.h.bf16 %v277
        %v374 = vunpack.c.l.bf16 %v278
        %v375 = vunpack.c.h.bf16 %v278
        %v376 = vunpack.c.l.bf16 %v279
        %v377 = vunpack.c.h.bf16 %v279
        %v378 = vunpack.c.l.bf16 %v280
        %v379 = vunpack.c.h.bf16 %v280
        %v380 = vunpack.c.l.bf16 %v281
        %v381 = vunpack.c.h.bf16 %v281
        %v382 = vunpack.c.l.bf16 %v282
        %v383 = vunpack.c.h.bf16 %v282
        %v384 = vunpack.c.l.bf16 %v283
        %v385 = vunpack.c.h.bf16 %v283
        %v386 = vunpack.c.l.bf16 %v284
        %v387 = vunpack.c.h.bf16 %v284
        %v388 = vunpack.c.l.bf16 %v285
        %v389 = vunpack.c.h.bf16 %v285
        %v390 = vunpack.c.l.bf16 %v286
        %v391 = vunpack.c.h.bf16 %v286
        %v392 = vunpack.c.l.bf16 %v287
        %v393 = vunpack.c.h.bf16 %v287
        %v394 = vunpack.c.l.bf16 %v288
        %v395 = vunpack.c.h.bf16 %v288
        %v396 = vunpack.c.l.bf16 %v289
        %v397 = vunpack.c.h.bf16 %v289
        %v398 = vunpack.c.l.bf16 %v290
        %v399 = vunpack.c.h.bf16 %v290
        %v400 = vunpack.c.l.bf16 %v291
        %v401 = vunpack.c.h.bf16 %v291
        %v402 = vunpack.c.l.bf16 %v292
        %v403 = vunpack.c.h.bf16 %v292
        %v404 = vunpack.c.l.bf16 %v293
        %v405 = vunpack.c.h.bf16 %v293
        %v406 = vunpack.c.l.bf16 %v294
        %v407 = vunpack.c.h.bf16 %v294
        %v408 = vunpack.c.l.bf16 %v295
        %v409 = vunpack.c.h.bf16 %v295
        %v410 = vunpack.c.l.bf16 %v296
        %v411 = vunpack.c.h.bf16 %v296
        %v412 = vunpack.c.l.bf16 %v297
        %v413 = vunpack.c.h.bf16 %v297
        %v414 = vunpack.c.l.bf16 %v298
        %v415 = vunpack.c.h.bf16 %v298
        %v416 = vunpack.c.l.bf16 %v299
        %v417 = vunpack.c.h.bf16 %v299
        %v418 = vunpack.c.l.bf16 %v300
        %v419 = vunpack.c.h.bf16 %v300
        %v420 = vunpack.c.l.bf16 %v301
        %v421 = vunpack.c.h.bf16 %v301
        %v422 = vunpack.c.l.bf16 %v302
        %v423 = vunpack.c.h.bf16 %v302
        %v424 = vunpack.c.l.bf16 %v303
        %v425 = vunpack.c.h.bf16 %v303
        %v426 = vunpack.c.l.bf16 %v304
        %v427 = vunpack.c.h.bf16 %v304
        %v428 = vunpack.c.l.bf16 %v305
        %v429 = vunpack.c.h.bf16 %v305
        %v430 = vunpack.c.l.bf16 %v306
        %v431 = vunpack.c.h.bf16 %v306
        %v432 = vunpack.c.l.bf16 %v307
        %v433 = vunpack.c.h.bf16 %v307
        %v434 = vunpack.c.l.bf16 %v308
        %v435 = vunpack.c.h.bf16 %v308
        %v436 = vunpack.c.l.bf16 %v309
        %v437 = vunpack.c.h.bf16 %v309
        %v438 = vld [vmem:[%s2] sm:$0xf]
        %v440 = vperm.slane %v438, 0
        %v441 = vperm.slane %v438, 1
        %v442 = vperm.slane %v438, 2
        %v443 = vperm.slane %v438, 3
        %v448 = vmul.f32 %v310, %v440
        %v449 = vmul.f32 %v311, %v441
        %v450 = vmul.f32 %v312, %v442
        %v451 = vmul.f32 %v313, %v443
        %v452 = vmul.f32 %v314, %v440
        %v453 = vmul.f32 %v315, %v441
        %v454 = vmul.f32 %v316, %v442
        %v455 = vmul.f32 %v317, %v443
        %v456 = vmul.f32 %v318, %v440
        %v457 = vmul.f32 %v319, %v441
        %v458 = vmul.f32 %v320, %v442
        %v459 = vmul.f32 %v321, %v443
        %v460 = vmul.f32 %v322, %v440
        %v461 = vmul.f32 %v323, %v441
        %v462 = vmul.f32 %v324, %v442
        %v463 = vmul.f32 %v325, %v443
        %v464 = vmul.f32 %v326, %v440
        %v465 = vmul.f32 %v327, %v441
        %v466 = vmul.f32 %v328, %v442
        %v467 = vmul.f32 %v329, %v443
        %v468 = vmul.f32 %v330, %v440
        %v469 = vmul.f32 %v331, %v441
        %v470 = vmul.f32 %v332, %v442
        %v471 = vmul.f32 %v333, %v443
        %v472 = vmul.f32 %v334, %v440
        %v473 = vmul.f32 %v335, %v441
        %v474 = vmul.f32 %v336, %v442
        %v475 = vmul.f32 %v337, %v443
        %v476 = vmul.f32 %v338, %v440
        %v477 = vmul.f32 %v339, %v441
        %v478 = vmul.f32 %v340, %v442
        %v479 = vmul.f32 %v341, %v443
        %v480 = vmul.f32 %v342, %v440
        %v481 = vmul.f32 %v343, %v441
        %v482 = vmul.f32 %v344, %v442
        %v483 = vmul.f32 %v345, %v443
        %v484 = vmul.f32 %v346, %v440
        %v485 = vmul.f32 %v347, %v441
        %v486 = vmul.f32 %v348, %v442
        %v487 = vmul.f32 %v349, %v443
        %v488 = vmul.f32 %v350, %v440
        %v489 = vmul.f32 %v351, %v441
        %v490 = vmul.f32 %v352, %v442
        %v491 = vmul.f32 %v353, %v443
        %v492 = vmul.f32 %v354, %v440
        %v493 = vmul.f32 %v355, %v441
        %v494 = vmul.f32 %v356, %v442
        %v495 = vmul.f32 %v357, %v443
        %v496 = vmul.f32 %v358, %v440
        %v497 = vmul.f32 %v359, %v441
        %v498 = vmul.f32 %v360, %v442
        %v499 = vmul.f32 %v361, %v443
        %v500 = vmul.f32 %v362, %v440
        %v501 = vmul.f32 %v363, %v441
        %v502 = vmul.f32 %v364, %v442
        %v503 = vmul.f32 %v365, %v443
        %v504 = vmul.f32 %v366, %v440
        %v505 = vmul.f32 %v367, %v441
        %v506 = vmul.f32 %v368, %v442
        %v507 = vmul.f32 %v369, %v443
        %v508 = vmul.f32 %v370, %v440
        %v509 = vmul.f32 %v371, %v441
        %v510 = vmul.f32 %v372, %v442
        %v511 = vmul.f32 %v373, %v443
        %v512 = vmul.f32 %v374, %v440
        %v513 = vmul.f32 %v375, %v441
        %v514 = vmul.f32 %v376, %v442
        %v515 = vmul.f32 %v377, %v443
        %v516 = vmul.f32 %v378, %v440
        %v517 = vmul.f32 %v379, %v441
        %v518 = vmul.f32 %v380, %v442
        %v519 = vmul.f32 %v381, %v443
        %v520 = vmul.f32 %v382, %v440
        %v521 = vmul.f32 %v383, %v441
        %v522 = vmul.f32 %v384, %v442
        %v523 = vmul.f32 %v385, %v443
        %v524 = vmul.f32 %v386, %v440
        %v525 = vmul.f32 %v387, %v441
        %v526 = vmul.f32 %v388, %v442
        %v527 = vmul.f32 %v389, %v443
        %v528 = vmul.f32 %v390, %v440
        %v529 = vmul.f32 %v391, %v441
        %v530 = vmul.f32 %v392, %v442
        %v531 = vmul.f32 %v393, %v443
        %v532 = vmul.f32 %v394, %v440
        %v533 = vmul.f32 %v395, %v441
        %v534 = vmul.f32 %v396, %v442
        %v535 = vmul.f32 %v397, %v443
        %v536 = vmul.f32 %v398, %v440
        %v537 = vmul.f32 %v399, %v441
        %v538 = vmul.f32 %v400, %v442
        %v539 = vmul.f32 %v401, %v443
        %v540 = vmul.f32 %v402, %v440
        %v541 = vmul.f32 %v403, %v441
        %v542 = vmul.f32 %v404, %v442
        %v543 = vmul.f32 %v405, %v443
        %v544 = vmul.f32 %v406, %v440
        %v545 = vmul.f32 %v407, %v441
        %v546 = vmul.f32 %v408, %v442
        %v547 = vmul.f32 %v409, %v443
        %v548 = vmul.f32 %v410, %v440
        %v549 = vmul.f32 %v411, %v441
        %v550 = vmul.f32 %v412, %v442
        %v551 = vmul.f32 %v413, %v443
        %v552 = vmul.f32 %v414, %v440
        %v553 = vmul.f32 %v415, %v441
        %v554 = vmul.f32 %v416, %v442
        %v555 = vmul.f32 %v417, %v443
        %v556 = vmul.f32 %v418, %v440
        %v557 = vmul.f32 %v419, %v441
        %v558 = vmul.f32 %v420, %v442
        %v559 = vmul.f32 %v421, %v443
        %v560 = vmul.f32 %v422, %v440
        %v561 = vmul.f32 %v423, %v441
        %v562 = vmul.f32 %v424, %v442
        %v563 = vmul.f32 %v425, %v443
        %v564 = vmul.f32 %v426, %v440
        %v565 = vmul.f32 %v427, %v441
        %v566 = vmul.f32 %v428, %v442
        %v567 = vmul.f32 %v429, %v443
        %v568 = vmul.f32 %v430, %v440
        %v569 = vmul.f32 %v431, %v441
        %v570 = vmul.f32 %v432, %v442
        %v571 = vmul.f32 %v433, %v443
        %v572 = vmul.f32 %v434, %v440
        %v573 = vmul.f32 %v435, %v441
        %v574 = vmul.f32 %v436, %v442
        %v575 = vmul.f32 %v437, %v443
        %v576 = vld [vmem:[%s3] sm:$0xf]
        %v578 = vperm.slane %v576, 0
        %v579 = vperm.slane %v576, 1
        %v580 = vperm.slane %v576, 2
        %v581 = vperm.slane %v576, 3
        %v586 = vadd.f32 %v448, %v578
        %v587 = vadd.f32 %v449, %v579
        %v588 = vadd.f32 %v450, %v580
        %v589 = vadd.f32 %v451, %v581
        %v590 = vadd.f32 %v452, %v578
        %v591 = vadd.f32 %v453, %v579
        %v592 = vadd.f32 %v454, %v580
        %v593 = vadd.f32 %v455, %v581
        %v594 = vadd.f32 %v456, %v578
        %v595 = vadd.f32 %v457, %v579
        %v596 = vadd.f32 %v458, %v580
        %v597 = vadd.f32 %v459, %v581
        %v598 = vadd.f32 %v460, %v578
        %v599 = vadd.f32 %v461, %v579
        %v600 = vadd.f32 %v462, %v580
        %v601 = vadd.f32 %v463, %v581
        %v602 = vadd.f32 %v464, %v578
        %v603 = vadd.f32 %v465, %v579
        %v604 = vadd.f32 %v466, %v580
        %v605 = vadd.f32 %v467, %v581
        %v606 = vadd.f32 %v468, %v578
        %v607 = vadd.f32 %v469, %v579
        %v608 = vadd.f32 %v470, %v580
        %v609 = vadd.f32 %v471, %v581
        %v610 = vadd.f32 %v472, %v578
        %v611 = vadd.f32 %v473, %v579
        %v612 = vadd.f32 %v474, %v580
        %v613 = vadd.f32 %v475, %v581
        %v614 = vadd.f32 %v476, %v578
        %v615 = vadd.f32 %v477, %v579
        %v616 = vadd.f32 %v478, %v580
        %v617 = vadd.f32 %v479, %v581
        %v618 = vadd.f32 %v480, %v578
        %v619 = vadd.f32 %v481, %v579
        %v620 = vadd.f32 %v482, %v580
        %v621 = vadd.f32 %v483, %v581
        %v622 = vadd.f32 %v484, %v578
        %v623 = vadd.f32 %v485, %v579
        %v624 = vadd.f32 %v486, %v580
        %v625 = vadd.f32 %v487, %v581
        %v626 = vadd.f32 %v488, %v578
        %v627 = vadd.f32 %v489, %v579
        %v628 = vadd.f32 %v490, %v580
        %v629 = vadd.f32 %v491, %v581
        %v630 = vadd.f32 %v492, %v578
        %v631 = vadd.f32 %v493, %v579
        %v632 = vadd.f32 %v494, %v580
        %v633 = vadd.f32 %v495, %v581
        %v634 = vadd.f32 %v496, %v578
        %v635 = vadd.f32 %v497, %v579
        %v636 = vadd.f32 %v498, %v580
        %v637 = vadd.f32 %v499, %v581
        %v638 = vadd.f32 %v500, %v578
        %v639 = vadd.f32 %v501, %v579
        %v640 = vadd.f32 %v502, %v580
        %v641 = vadd.f32 %v503, %v581
        %v642 = vadd.f32 %v504, %v578
        %v643 = vadd.f32 %v505, %v579
        %v644 = vadd.f32 %v506, %v580
        %v645 = vadd.f32 %v507, %v581
        %v646 = vadd.f32 %v508, %v578
        %v647 = vadd.f32 %v509, %v579
        %v648 = vadd.f32 %v510, %v580
        %v649 = vadd.f32 %v511, %v581
        %v650 = vadd.f32 %v512, %v578
        %v651 = vadd.f32 %v513, %v579
        %v652 = vadd.f32 %v514, %v580
        %v653 = vadd.f32 %v515, %v581
        %v654 = vadd.f32 %v516, %v578
        %v655 = vadd.f32 %v517, %v579
        %v656 = vadd.f32 %v518, %v580
        %v657 = vadd.f32 %v519, %v581
        %v658 = vadd.f32 %v520, %v578
        %v659 = vadd.f32 %v521, %v579
        %v660 = vadd.f32 %v522, %v580
        %v661 = vadd.f32 %v523, %v581
        %v662 = vadd.f32 %v524, %v578
        %v663 = vadd.f32 %v525, %v579
        %v664 = vadd.f32 %v526, %v580
        %v665 = vadd.f32 %v527, %v581
        %v666 = vadd.f32 %v528, %v578
        %v667 = vadd.f32 %v529, %v579
        %v668 = vadd.f32 %v530, %v580
        %v669 = vadd.f32 %v531, %v581
        %v670 = vadd.f32 %v532, %v578
        %v671 = vadd.f32 %v533, %v579
        %v672 = vadd.f32 %v534, %v580
        %v673 = vadd.f32 %v535, %v581
        %v674 = vadd.f32 %v536, %v578
        %v675 = vadd.f32 %v537, %v579
        %v676 = vadd.f32 %v538, %v580
        %v677 = vadd.f32 %v539, %v581
        %v678 = vadd.f32 %v540, %v578
        %v679 = vadd.f32 %v541, %v579
        %v680 = vadd.f32 %v542, %v580
        %v681 = vadd.f32 %v543, %v581
        %v682 = vadd.f32 %v544, %v578
        %v683 = vadd.f32 %v545, %v579
        %v684 = vadd.f32 %v546, %v580
        %v685 = vadd.f32 %v547, %v581
        %v686 = vadd.f32 %v548, %v578
        %v687 = vadd.f32 %v549, %v579
        %v688 = vadd.f32 %v550, %v580
        %v689 = vadd.f32 %v551, %v581
        %v690 = vadd.f32 %v552, %v578
        %v691 = vadd.f32 %v553, %v579
        %v692 = vadd.f32 %v554, %v580
        %v693 = vadd.f32 %v555, %v581
        %v694 = vadd.f32 %v556, %v578
        %v695 = vadd.f32 %v557, %v579
        %v696 = vadd.f32 %v558, %v580
        %v697 = vadd.f32 %v559, %v581
        %v698 = vadd.f32 %v560, %v578
        %v699 = vadd.f32 %v561, %v579
        %v700 = vadd.f32 %v562, %v580
        %v701 = vadd.f32 %v563, %v581
        %v702 = vadd.f32 %v564, %v578
        %v703 = vadd.f32 %v565, %v579
        %v704 = vadd.f32 %v566, %v580
        %v705 = vadd.f32 %v567, %v581
        %v706 = vadd.f32 %v568, %v578
        %v707 = vadd.f32 %v569, %v579
        %v708 = vadd.f32 %v570, %v580
        %v709 = vadd.f32 %v571, %v581
        %v710 = vadd.f32 %v572, %v578
        %v711 = vadd.f32 %v573, %v579
        %v712 = vadd.f32 %v574, %v580
        %v713 = vadd.f32 %v575, %v581
        %v714 = vld [vmem:[%s205] sm:$0xff]
        %v715 = vld [vmem:[%s205 + $0x8] sm:$0xff]
        %v716 = vld [vmem:[%s205 + $0x10] sm:$0xff]
        %v717 = vld [vmem:[%s205 + $0x18] sm:$0xff]
        %v718 = vld [vmem:[%s205 + $0x20] sm:$0xff]
        %v719 = vld [vmem:[%s205 + $0x28] sm:$0xff]
        %v720 = vld [vmem:[%s205 + $0x30] sm:$0xff]
        %v721 = vld [vmem:[%s205 + $0x38] sm:$0xff]
        %v722 = vld [vmem:[%s205 + $0x40] sm:$0xff]
        %v723 = vld [vmem:[%s205 + $0x48] sm:$0xff]
        %v724 = vld [vmem:[%s205 + $0x50] sm:$0xff]
        %v725 = vld [vmem:[%s205 + $0x58] sm:$0xff]
        %v726 = vld [vmem:[%s205 + $0x60] sm:$0xff]
        %v727 = vld [vmem:[%s205 + $0x68] sm:$0xff]
        %v728 = vld [vmem:[%s205 + $0x70] sm:$0xff]
        %v729 = vld [vmem:[%s205 + $0x78] sm:$0xff]
        %v730 = vld [vmem:[%s205 + $0x80] sm:$0xff]
        %v731 = vld [vmem:[%s205 + $0x88] sm:$0xff]
        %v732 = vld [vmem:[%s205 + $0x90] sm:$0xff]
        %v733 = vld [vmem:[%s205 + $0x98] sm:$0xff]
        %v734 = vld [vmem:[%s205 + $0xa0] sm:$0xff]
        %v735 = vld [vmem:[%s205 + $0xa8] sm:$0xff]
        %v736 = vld [vmem:[%s205 + $0xb0] sm:$0xff]
        %v737 = vld [vmem:[%s205 + $0xb8] sm:$0xff]
        %v738 = vld [vmem:[%s205 + $0xc0] sm:$0xff]
        %v739 = vld [vmem:[%s205 + $0xc8] sm:$0xff]
        %v740 = vld [vmem:[%s205 + $0xd0] sm:$0xff]
        %v741 = vld [vmem:[%s205 + $0xd8] sm:$0xff]
        %v742 = vld [vmem:[%s205 + $0xe0] sm:$0xff]
        %v743 = vld [vmem:[%s205 + $0xe8] sm:$0xff]
        %v744 = vld [vmem:[%s205 + $0xf0] sm:$0xff]
        %v745 = vld [vmem:[%s205 + $0xf8] sm:$0xff]
        %v746 = vld [vmem:[%s205 + $0x100] sm:$0xff]
        %v747 = vld [vmem:[%s205 + $0x108] sm:$0xff]
        %v748 = vld [vmem:[%s205 + $0x110] sm:$0xff]
        %v749 = vld [vmem:[%s205 + $0x118] sm:$0xff]
        %v750 = vld [vmem:[%s205 + $0x120] sm:$0xff]
        %v751 = vld [vmem:[%s205 + $0x128] sm:$0xff]
        %v752 = vld [vmem:[%s205 + $0x130] sm:$0xff]
        %v753 = vld [vmem:[%s205 + $0x138] sm:$0xff]
        %v754 = vld [vmem:[%s205 + $0x140] sm:$0xff]
        %v755 = vld [vmem:[%s205 + $0x148] sm:$0xff]
        %v756 = vld [vmem:[%s205 + $0x150] sm:$0xff]
        %v757 = vld [vmem:[%s205 + $0x158] sm:$0xff]
        %v758 = vld [vmem:[%s205 + $0x160] sm:$0xff]
        %v759 = vld [vmem:[%s205 + $0x168] sm:$0xff]
        %v760 = vld [vmem:[%s205 + $0x170] sm:$0xff]
        %v761 = vld [vmem:[%s205 + $0x178] sm:$0xff]
        %v762 = vld [vmem:[%s205 + $0x180] sm:$0xff]
        %v763 = vld [vmem:[%s205 + $0x188] sm:$0xff]
        %v764 = vld [vmem:[%s205 + $0x190] sm:$0xff]
        %v765 = vld [vmem:[%s205 + $0x198] sm:$0xff]
        %v766 = vld [vmem:[%s205 + $0x1a0] sm:$0xff]
        %v767 = vld [vmem:[%s205 + $0x1a8] sm:$0xff]
        %v768 = vld [vmem:[%s205 + $0x1b0] sm:$0xff]
        %v769 = vld [vmem:[%s205 + $0x1b8] sm:$0xff]
        %v770 = vld [vmem:[%s205 + $0x1c0] sm:$0xff]
        %v771 = vld [vmem:[%s205 + $0x1c8] sm:$0xff]
        %v772 = vld [vmem:[%s205 + $0x1d0] sm:$0xff]
        %v773 = vld [vmem:[%s205 + $0x1d8] sm:$0xff]
        %v774 = vld [vmem:[%s205 + $0x1e0] sm:$0xff]
        %v775 = vld [vmem:[%s205 + $0x1e8] sm:$0xff]
        %v776 = vld [vmem:[%s205 + $0x1f0] sm:$0xff]
        %v777 = vld [vmem:[%s205 + $0x1f8] sm:$0xff]
        %v778 = vld [vmem:[%s205 + $0x200] sm:$0xff]
        %v779 = vld [vmem:[%s205 + $0x208] sm:$0xff]
        %v780 = vld [vmem:[%s205 + $0x210] sm:$0xff]
        %v781 = vld [vmem:[%s205 + $0x218] sm:$0xff]
        %v782 = vld [vmem:[%s205 + $0x220] sm:$0xff]
        %v783 = vld [vmem:[%s205 + $0x228] sm:$0xff]
        %v784 = vld [vmem:[%s205 + $0x230] sm:$0xff]
        %v785 = vld [vmem:[%s205 + $0x238] sm:$0xff]
        %v786 = vld [vmem:[%s205 + $0x240] sm:$0xff]
        %v787 = vld [vmem:[%s205 + $0x248] sm:$0xff]
        %v788 = vld [vmem:[%s205 + $0x250] sm:$0xff]
        %v789 = vld [vmem:[%s205 + $0x258] sm:$0xff]
        %v790 = vld [vmem:[%s205 + $0x260] sm:$0xff]
        %v791 = vld [vmem:[%s205 + $0x268] sm:$0xff]
        %v792 = vld [vmem:[%s205 + $0x270] sm:$0xff]
        %v793 = vld [vmem:[%s205 + $0x278] sm:$0xff]
        %v794 = vld [vmem:[%s205 + $0x280] sm:$0xff]
        %v795 = vld [vmem:[%s205 + $0x288] sm:$0xff]
        %v796 = vld [vmem:[%s205 + $0x290] sm:$0xff]
        %v797 = vld [vmem:[%s205 + $0x298] sm:$0xff]
        %v798 = vld [vmem:[%s205 + $0x2a0] sm:$0xff]
        %v799 = vld [vmem:[%s205 + $0x2a8] sm:$0xff]
        %v800 = vld [vmem:[%s205 + $0x2b0] sm:$0xff]
        %v801 = vld [vmem:[%s205 + $0x2b8] sm:$0xff]
        %v802 = vld [vmem:[%s205 + $0x2c0] sm:$0xff]
        %v803 = vld [vmem:[%s205 + $0x2c8] sm:$0xff]
        %v804 = vld [vmem:[%s205 + $0x2d0] sm:$0xff]
        %v805 = vld [vmem:[%s205 + $0x2d8] sm:$0xff]
        %v806 = vld [vmem:[%s205 + $0x2e0] sm:$0xff]
        %v807 = vld [vmem:[%s205 + $0x2e8] sm:$0xff]
        %v808 = vld [vmem:[%s205 + $0x2f0] sm:$0xff]
        %v809 = vld [vmem:[%s205 + $0x2f8] sm:$0xff]
        %v810 = vld [vmem:[%s205 + $0x300] sm:$0xff]
        %v811 = vld [vmem:[%s205 + $0x308] sm:$0xff]
        %v812 = vld [vmem:[%s205 + $0x310] sm:$0xff]
        %v813 = vld [vmem:[%s205 + $0x318] sm:$0xff]
        %v814 = vld [vmem:[%s205 + $0x320] sm:$0xff]
        %v815 = vld [vmem:[%s205 + $0x328] sm:$0xff]
        %v816 = vld [vmem:[%s205 + $0x330] sm:$0xff]
        %v817 = vld [vmem:[%s205 + $0x338] sm:$0xff]
        %v818 = vld [vmem:[%s205 + $0x340] sm:$0xff]
        %v819 = vld [vmem:[%s205 + $0x348] sm:$0xff]
        %v820 = vld [vmem:[%s205 + $0x350] sm:$0xff]
        %v821 = vld [vmem:[%s205 + $0x358] sm:$0xff]
        %v822 = vld [vmem:[%s205 + $0x360] sm:$0xff]
        %v823 = vld [vmem:[%s205 + $0x368] sm:$0xff]
        %v824 = vld [vmem:[%s205 + $0x370] sm:$0xff]
        %v825 = vld [vmem:[%s205 + $0x378] sm:$0xff]
        %v826 = vld [vmem:[%s205 + $0x380] sm:$0xff]
        %v827 = vld [vmem:[%s205 + $0x388] sm:$0xff]
        %v828 = vld [vmem:[%s205 + $0x390] sm:$0xff]
        %v829 = vld [vmem:[%s205 + $0x398] sm:$0xff]
        %v830 = vld [vmem:[%s205 + $0x3a0] sm:$0xff]
        %v831 = vld [vmem:[%s205 + $0x3a8] sm:$0xff]
        %v832 = vld [vmem:[%s205 + $0x3b0] sm:$0xff]
        %v833 = vld [vmem:[%s205 + $0x3b8] sm:$0xff]
        %v834 = vld [vmem:[%s205 + $0x3c0] sm:$0xff]
        %v835 = vld [vmem:[%s205 + $0x3c8] sm:$0xff]
        %v836 = vld [vmem:[%s205 + $0x3d0] sm:$0xff]
        %v837 = vld [vmem:[%s205 + $0x3d8] sm:$0xff]
        %v838 = vld [vmem:[%s205 + $0x3e0] sm:$0xff]
        %v839 = vld [vmem:[%s205 + $0x3e8] sm:$0xff]
        %v840 = vld [vmem:[%s205 + $0x3f0] sm:$0xff]
        %v841 = vld [vmem:[%s205 + $0x3f8] sm:$0xff]
        %v842 = vadd.f32 %v586, %v714
        %v843 = vadd.f32 %v587, %v715
        %v844 = vadd.f32 %v588, %v716
        %v845 = vadd.f32 %v589, %v717
        %v846 = vadd.f32 %v590, %v718
        %v847 = vadd.f32 %v591, %v719
        %v848 = vadd.f32 %v592, %v720
        %v849 = vadd.f32 %v593, %v721
        %v850 = vadd.f32 %v594, %v722
        %v851 = vadd.f32 %v595, %v723
        %v852 = vadd.f32 %v596, %v724
        %v853 = vadd.f32 %v597, %v725
        %v854 = vadd.f32 %v598, %v726
        %v855 = vadd.f32 %v599, %v727
        %v856 = vadd.f32 %v600, %v728
        %v857 = vadd.f32 %v601, %v729
        %v858 = vadd.f32 %v602, %v730
        %v859 = vadd.f32 %v603, %v731
        %v860 = vadd.f32 %v604, %v732
        %v861 = vadd.f32 %v605, %v733
        %v862 = vadd.f32 %v606, %v734
        %v863 = vadd.f32 %v607, %v735
        %v864 = vadd.f32 %v608, %v736
        %v865 = vadd.f32 %v609, %v737
        %v866 = vadd.f32 %v610, %v738
        %v867 = vadd.f32 %v611, %v739
        %v868 = vadd.f32 %v612, %v740
        %v869 = vadd.f32 %v613, %v741
        %v870 = vadd.f32 %v614, %v742
        %v871 = vadd.f32 %v615, %v743
        %v872 = vadd.f32 %v616, %v744
        %v873 = vadd.f32 %v617, %v745
        %v874 = vadd.f32 %v618, %v746
        %v875 = vadd.f32 %v619, %v747
        %v876 = vadd.f32 %v620, %v748
        %v877 = vadd.f32 %v621, %v749
        %v878 = vadd.f32 %v622, %v750
        %v879 = vadd.f32 %v623, %v751
        %v880 = vadd.f32 %v624, %v752
        %v881 = vadd.f32 %v625, %v753
        %v882 = vadd.f32 %v626, %v754
        %v883 = vadd.f32 %v627, %v755
        %v884 = vadd.f32 %v628, %v756
        %v885 = vadd.f32 %v629, %v757
        %v886 = vadd.f32 %v630, %v758
        %v887 = vadd.f32 %v631, %v759
        %v888 = vadd.f32 %v632, %v760
        %v889 = vadd.f32 %v633, %v761
        %v890 = vadd.f32 %v634, %v762
        %v891 = vadd.f32 %v635, %v763
        %v892 = vadd.f32 %v636, %v764
        %v893 = vadd.f32 %v637, %v765
        %v894 = vadd.f32 %v638, %v766
        %v895 = vadd.f32 %v639, %v767
        %v896 = vadd.f32 %v640, %v768
        %v897 = vadd.f32 %v641, %v769
        %v898 = vadd.f32 %v642, %v770
        %v899 = vadd.f32 %v643, %v771
        %v900 = vadd.f32 %v644, %v772
        %v901 = vadd.f32 %v645, %v773
        %v902 = vadd.f32 %v646, %v774
        %v903 = vadd.f32 %v647, %v775
        %v904 = vadd.f32 %v648, %v776
        %v905 = vadd.f32 %v649, %v777
        %v906 = vadd.f32 %v650, %v778
        %v907 = vadd.f32 %v651, %v779
        %v908 = vadd.f32 %v652, %v780
        %v909 = vadd.f32 %v653, %v781
        %v910 = vadd.f32 %v654, %v782
        %v911 = vadd.f32 %v655, %v783
        %v912 = vadd.f32 %v656, %v784
        %v913 = vadd.f32 %v657, %v785
        %v914 = vadd.f32 %v658, %v786
        %v915 = vadd.f32 %v659, %v787
        %v916 = vadd.f32 %v660, %v788
        %v917 = vadd.f32 %v661, %v789
        %v918 = vadd.f32 %v662, %v790
        %v919 = vadd.f32 %v663, %v791
        %v920 = vadd.f32 %v664, %v792
        %v921 = vadd.f32 %v665, %v793
        %v922 = vadd.f32 %v666, %v794
        %v923 = vadd.f32 %v667, %v795
        %v924 = vadd.f32 %v668, %v796
        %v925 = vadd.f32 %v669, %v797
        %v926 = vadd.f32 %v670, %v798
        %v927 = vadd.f32 %v671, %v799
        %v928 = vadd.f32 %v672, %v800
        %v929 = vadd.f32 %v673, %v801
        %v930 = vadd.f32 %v674, %v802
        %v931 = vadd.f32 %v675, %v803
        %v932 = vadd.f32 %v676, %v804
        %v933 = vadd.f32 %v677, %v805
        %v934 = vadd.f32 %v678, %v806
        %v935 = vadd.f32 %v679, %v807
        %v936 = vadd.f32 %v680, %v808
        %v937 = vadd.f32 %v681, %v809
        %v938 = vadd.f32 %v682, %v810
        %v939 = vadd.f32 %v683, %v811
        %v940 = vadd.f32 %v684, %v812
        %v941 = vadd.f32 %v685, %v813
        %v942 = vadd.f32 %v686, %v814
        %v943 = vadd.f32 %v687, %v815
        %v944 = vadd.f32 %v688, %v816
        %v945 = vadd.f32 %v689, %v817
        %v946 = vadd.f32 %v690, %v818
        %v947 = vadd.f32 %v691, %v819
        %v948 = vadd.f32 %v692, %v820
        %v949 = vadd.f32 %v693, %v821
        %v950 = vadd.f32 %v694, %v822
        %v951 = vadd.f32 %v695, %v823
        %v952 = vadd.f32 %v696, %v824
        %v953 = vadd.f32 %v697, %v825
        %v954 = vadd.f32 %v698, %v826
        %v955 = vadd.f32 %v699, %v827
        %v956 = vadd.f32 %v700, %v828
        %v957 = vadd.f32 %v701, %v829
        %v958 = vadd.f32 %v702, %v830
        %v959 = vadd.f32 %v703, %v831
        %v960 = vadd.f32 %v704, %v832
        %v961 = vadd.f32 %v705, %v833
        %v962 = vadd.f32 %v706, %v834
        %v963 = vadd.f32 %v707, %v835
        %v964 = vadd.f32 %v708, %v836
        %v965 = vadd.f32 %v709, %v837
        %v966 = vadd.f32 %v710, %v838
        %v967 = vadd.f32 %v711, %v839
        %v968 = vadd.f32 %v712, %v840
        %v969 = vadd.f32 %v713, %v841
        %v970 = vmax.f32 %v842, 0.0
        %v971 = vmax.f32 %v843, 0.0
        %v972 = vmax.f32 %v844, 0.0
        %v973 = vmax.f32 %v845, 0.0
        %v974 = vmax.f32 %v846, 0.0
        %v975 = vmax.f32 %v847, 0.0
        %v976 = vmax.f32 %v848, 0.0
        %v977 = vmax.f32 %v849, 0.0
        %v978 = vmax.f32 %v850, 0.0
        %v979 = vmax.f32 %v851, 0.0
        %v980 = vmax.f32 %v852, 0.0
        %v981 = vmax.f32 %v853, 0.0
        %v982 = vmax.f32 %v854, 0.0
        %v983 = vmax.f32 %v855, 0.0
        %v984 = vmax.f32 %v856, 0.0
        %v985 = vmax.f32 %v857, 0.0
        %v986 = vmax.f32 %v858, 0.0
        %v987 = vmax.f32 %v859, 0.0
        %v988 = vmax.f32 %v860, 0.0
        %v989 = vmax.f32 %v861, 0.0
        %v990 = vmax.f32 %v862, 0.0
        %v991 = vmax.f32 %v863, 0.0
        %v992 = vmax.f32 %v864, 0.0
        %v993 = vmax.f32 %v865, 0.0
        %v994 = vmax.f32 %v866, 0.0
        %v995 = vmax.f32 %v867, 0.0
        %v996 = vmax.f32 %v868, 0.0
        %v997 = vmax.f32 %v869, 0.0
        %v998 = vmax.f32 %v870, 0.0
        %v999 = vmax.f32 %v871, 0.0
        %v1000 = vmax.f32 %v872, 0.0
        %v1001 = vmax.f32 %v873, 0.0
        %v1002 = vmax.f32 %v874, 0.0
        %v1003 = vmax.f32 %v875, 0.0
        %v1004 = vmax.f32 %v876, 0.0
        %v1005 = vmax.f32 %v877, 0.0
        %v1006 = vmax.f32 %v878, 0.0
        %v1007 = vmax.f32 %v879, 0.0
        %v1008 = vmax.f32 %v880, 0.0
        %v1009 = vmax.f32 %v881, 0.0
        %v1010 = vmax.f32 %v882, 0.0
        %v1011 = vmax.f32 %v883, 0.0
        %v1012 = vmax.f32 %v884, 0.0
        %v1013 = vmax.f32 %v885, 0.0
        %v1014 = vmax.f32 %v886, 0.0
        %v1015 = vmax.f32 %v887, 0.0
        %v1016 = vmax.f32 %v888, 0.0
        %v1017 = vmax.f32 %v889, 0.0
        %v1018 = vmax.f32 %v890, 0.0
        %v1019 = vmax.f32 %v891, 0.0
        %v1020 = vmax.f32 %v892, 0.0
        %v1021 = vmax.f32 %v893, 0.0
        %v1022 = vmax.f32 %v894, 0.0
        %v1023 = vmax.f32 %v895, 0.0
        %v1024 = vmax.f32 %v896, 0.0
        %v1025 = vmax.f32 %v897, 0.0
        %v1026 = vmax.f32 %v898, 0.0
        %v1027 = vmax.f32 %v899, 0.0
        %v1028 = vmax.f32 %v900, 0.0
        %v1029 = vmax.f32 %v901, 0.0
        %v1030 = vmax.f32 %v902, 0.0
        %v1031 = vmax.f32 %v903, 0.0
        %v1032 = vmax.f32 %v904, 0.0
        %v1033 = vmax.f32 %v905, 0.0
        %v1034 = vmax.f32 %v906, 0.0
        %v1035 = vmax.f32 %v907, 0.0
        %v1036 = vmax.f32 %v908, 0.0
        %v1037 = vmax.f32 %v909, 0.0
        %v1038 = vmax.f32 %v910, 0.0
        %v1039 = vmax.f32 %v911, 0.0
        %v1040 = vmax.f32 %v912, 0.0
        %v1041 = vmax.f32 %v913, 0.0
        %v1042 = vmax.f32 %v914, 0.0
        %v1043 = vmax.f32 %v915, 0.0
        %v1044 = vmax.f32 %v916, 0.0
        %v1045 = vmax.f32 %v917, 0.0
        %v1046 = vmax.f32 %v918, 0.0
        %v1047 = vmax.f32 %v919, 0.0
        %v1048 = vmax.f32 %v920, 0.0
        %v1049 = vmax.f32 %v921, 0.0
        %v1050 = vmax.f32 %v922, 0.0
        %v1051 = vmax.f32 %v923, 0.0
        %v1052 = vmax.f32 %v924, 0.0
        %v1053 = vmax.f32 %v925, 0.0
        %v1054 = vmax.f32 %v926, 0.0
        %v1055 = vmax.f32 %v927, 0.0
        %v1056 = vmax.f32 %v928, 0.0
        %v1057 = vmax.f32 %v929, 0.0
        %v1058 = vmax.f32 %v930, 0.0
        %v1059 = vmax.f32 %v931, 0.0
        %v1060 = vmax.f32 %v932, 0.0
        %v1061 = vmax.f32 %v933, 0.0
        %v1062 = vmax.f32 %v934, 0.0
        %v1063 = vmax.f32 %v935, 0.0
        %v1064 = vmax.f32 %v936, 0.0
        %v1065 = vmax.f32 %v937, 0.0
        %v1066 = vmax.f32 %v938, 0.0
        %v1067 = vmax.f32 %v939, 0.0
        %v1068 = vmax.f32 %v940, 0.0
        %v1069 = vmax.f32 %v941, 0.0
        %v1070 = vmax.f32 %v942, 0.0
        %v1071 = vmax.f32 %v943, 0.0
        %v1072 = vmax.f32 %v944, 0.0
        %v1073 = vmax.f32 %v945, 0.0
        %v1074 = vmax.f32 %v946, 0.0
        %v1075 = vmax.f32 %v947, 0.0
        %v1076 = vmax.f32 %v948, 0.0
        %v1077 = vmax.f32 %v949, 0.0
        %v1078 = vmax.f32 %v950, 0.0
        %v1079 = vmax.f32 %v951, 0.0
        %v1080 = vmax.f32 %v952, 0.0
        %v1081 = vmax.f32 %v953, 0.0
        %v1082 = vmax.f32 %v954, 0.0
        %v1083 = vmax.f32 %v955, 0.0
        %v1084 = vmax.f32 %v956, 0.0
        %v1085 = vmax.f32 %v957, 0.0
        %v1086 = vmax.f32 %v958, 0.0
        %v1087 = vmax.f32 %v959, 0.0
        %v1088 = vmax.f32 %v960, 0.0
        %v1089 = vmax.f32 %v961, 0.0
        %v1090 = vmax.f32 %v962, 0.0
        %v1091 = vmax.f32 %v963, 0.0
        %v1092 = vmax.f32 %v964, 0.0
        %v1093 = vmax.f32 %v965, 0.0
        %v1094 = vmax.f32 %v966, 0.0
        %v1095 = vmax.f32 %v967, 0.0
        %v1096 = vmax.f32 %v968, 0.0
        %v1097 = vmax.f32 %v969, 0.0
        %1098 = vst [vmem:[%s236] sm:$0xff] %v970
        %1099 = vst [vmem:[%s236 + $0x8] sm:$0xff] %v971
        %1100 = vst [vmem:[%s236 + $0x10] sm:$0xff] %v972
        %1101 = vst [vmem:[%s236 + $0x18] sm:$0xff] %v973
        %1102 = vst [vmem:[%s236 + $0x20] sm:$0xff] %v974
        %1103 = vst [vmem:[%s236 + $0x28] sm:$0xff] %v975
        %1104 = vst [vmem:[%s236 + $0x30] sm:$0xff] %v976
        %1105 = vst [vmem:[%s236 + $0x38] sm:$0xff] %v977
        %1106 = vst [vmem:[%s236 + $0x40] sm:$0xff] %v978
        %1107 = vst [vmem:[%s236 + $0x48] sm:$0xff] %v979
        %1108 = vst [vmem:[%s236 + $0x50] sm:$0xff] %v980
        %1109 = vst [vmem:[%s236 + $0x58] sm:$0xff] %v981
        %1110 = vst [vmem:[%s236 + $0x60] sm:$0xff] %v982
        %1111 = vst [vmem:[%s236 + $0x68] sm:$0xff] %v983
        %1112 = vst [vmem:[%s236 + $0x70] sm:$0xff] %v984
        %1113 = vst [vmem:[%s236 + $0x78] sm:$0xff] %v985
        %1114 = vst [vmem:[%s236 + $0x80] sm:$0xff] %v986
        %1115 = vst [vmem:[%s236 + $0x88] sm:$0xff] %v987
        %1116 = vst [vmem:[%s236 + $0x90] sm:$0xff] %v988
        %1117 = vst [vmem:[%s236 + $0x98] sm:$0xff] %v989
        %1118 = vst [vmem:[%s236 + $0xa0] sm:$0xff] %v990
        %1119 = vst [vmem:[%s236 + $0xa8] sm:$0xff] %v991
        %1120 = vst [vmem:[%s236 + $0xb0] sm:$0xff] %v992
        %1121 = vst [vmem:[%s236 + $0xb8] sm:$0xff] %v993
        %1122 = vst [vmem:[%s236 + $0xc0] sm:$0xff] %v994
        %1123 = vst [vmem:[%s236 + $0xc8] sm:$0xff] %v995
        %1124 = vst [vmem:[%s236 + $0xd0] sm:$0xff] %v996
        %1125 = vst [vmem:[%s236 + $0xd8] sm:$0xff] %v997
        %1126 = vst [vmem:[%s236 + $0xe0] sm:$0xff] %v998
        %1127 = vst [vmem:[%s236 + $0xe8] sm:$0xff] %v999
        %1128 = vst [vmem:[%s236 + $0xf0] sm:$0xff] %v1000
        %1129 = vst [vmem:[%s236 + $0xf8] sm:$0xff] %v1001
        %1130 = vst [vmem:[%s236 + $0x100] sm:$0xff] %v1002
        %1131 = vst [vmem:[%s236 + $0x108] sm:$0xff] %v1003
        %1132 = vst [vmem:[%s236 + $0x110] sm:$0xff] %v1004
        %1133 = vst [vmem:[%s236 + $0x118] sm:$0xff] %v1005
        %1134 = vst [vmem:[%s236 + $0x120] sm:$0xff] %v1006
        %1135 = vst [vmem:[%s236 + $0x128] sm:$0xff] %v1007
        %1136 = vst [vmem:[%s236 + $0x130] sm:$0xff] %v1008
        %1137 = vst [vmem:[%s236 + $0x138] sm:$0xff] %v1009
        %1138 = vst [vmem:[%s236 + $0x140] sm:$0xff] %v1010
        %1139 = vst [vmem:[%s236 + $0x148] sm:$0xff] %v1011
        %1140 = vst [vmem:[%s236 + $0x150] sm:$0xff] %v1012
        %1141 = vst [vmem:[%s236 + $0x158] sm:$0xff] %v1013
        %1142 = vst [vmem:[%s236 + $0x160] sm:$0xff] %v1014
        %1143 = vst [vmem:[%s236 + $0x168] sm:$0xff] %v1015
        %1144 = vst [vmem:[%s236 + $0x170] sm:$0xff] %v1016
        %1145 = vst [vmem:[%s236 + $0x178] sm:$0xff] %v1017
        %1146 = vst [vmem:[%s236 + $0x180] sm:$0xff] %v1018
        %1147 = vst [vmem:[%s236 + $0x188] sm:$0xff] %v1019
        %1148 = vst [vmem:[%s236 + $0x190] sm:$0xff] %v1020
        %1149 = vst [vmem:[%s236 + $0x198] sm:$0xff] %v1021
        %1150 = vst [vmem:[%s236 + $0x1a0] sm:$0xff] %v1022
        %1151 = vst [vmem:[%s236 + $0x1a8] sm:$0xff] %v1023
        %1152 = vst [vmem:[%s236 + $0x1b0] sm:$0xff] %v1024
        %1153 = vst [vmem:[%s236 + $0x1b8] sm:$0xff] %v1025
        %1154 = vst [vmem:[%s236 + $0x1c0] sm:$0xff] %v1026
        %1155 = vst [vmem:[%s236 + $0x1c8] sm:$0xff] %v1027
        %1156 = vst [vmem:[%s236 + $0x1d0] sm:$0xff] %v1028
        %1157 = vst [vmem:[%s236 + $0x1d8] sm:$0xff] %v1029
        %1158 = vst [vmem:[%s236 + $0x1e0] sm:$0xff] %v1030
        %1159 = vst [vmem:[%s236 + $0x1e8] sm:$0xff] %v1031
        %1160 = vst [vmem:[%s236 + $0x1f0] sm:$0xff] %v1032
        %1161 = vst [vmem:[%s236 + $0x1f8] sm:$0xff] %v1033
        %1162 = vst [vmem:[%s236 + $0x200] sm:$0xff] %v1034
        %1163 = vst [vmem:[%s236 + $0x208] sm:$0xff] %v1035
        %1164 = vst [vmem:[%s236 + $0x210] sm:$0xff] %v1036
        %1165 = vst [vmem:[%s236 + $0x218] sm:$0xff] %v1037
        %1166 = vst [vmem:[%s236 + $0x220] sm:$0xff] %v1038
        %1167 = vst [vmem:[%s236 + $0x228] sm:$0xff] %v1039
        %1168 = vst [vmem:[%s236 + $0x230] sm:$0xff] %v1040
        %1169 = vst [vmem:[%s236 + $0x238] sm:$0xff] %v1041
        %1170 = vst [vmem:[%s236 + $0x240] sm:$0xff] %v1042
        %1171 = vst [vmem:[%s236 + $0x248] sm:$0xff] %v1043
        %1172 = vst [vmem:[%s236 + $0x250] sm:$0xff] %v1044
        %1173 = vst [vmem:[%s236 + $0x258] sm:$0xff] %v1045
        %1174 = vst [vmem:[%s236 + $0x260] sm:$0xff] %v1046
        %1175 = vst [vmem:[%s236 + $0x268] sm:$0xff] %v1047
        %1176 = vst [vmem:[%s236 + $0x270] sm:$0xff] %v1048
        %1177 = vst [vmem:[%s236 + $0x278] sm:$0xff] %v1049
        %1178 = vst [vmem:[%s236 + $0x280] sm:$0xff] %v1050
        %1179 = vst [vmem:[%s236 + $0x288] sm:$0xff] %v1051
        %1180 = vst [vmem:[%s236 + $0x290] sm:$0xff] %v1052
        %1181 = vst [vmem:[%s236 + $0x298] sm:$0xff] %v1053
        %1182 = vst [vmem:[%s236 + $0x2a0] sm:$0xff] %v1054
        %1183 = vst [vmem:[%s236 + $0x2a8] sm:$0xff] %v1055
        %1184 = vst [vmem:[%s236 + $0x2b0] sm:$0xff] %v1056
        %1185 = vst [vmem:[%s236 + $0x2b8] sm:$0xff] %v1057
        %1186 = vst [vmem:[%s236 + $0x2c0] sm:$0xff] %v1058
        %1187 = vst [vmem:[%s236 + $0x2c8] sm:$0xff] %v1059
        %1188 = vst [vmem:[%s236 + $0x2d0] sm:$0xff] %v1060
        %1189 = vst [vmem:[%s236 + $0x2d8] sm:$0xff] %v1061
        %1190 = vst [vmem:[%s236 + $0x2e0] sm:$0xff] %v1062
        %1191 = vst [vmem:[%s236 + $0x2e8] sm:$0xff] %v1063
        %1192 = vst [vmem:[%s236 + $0x2f0] sm:$0xff] %v1064
        %1193 = vst [vmem:[%s236 + $0x2f8] sm:$0xff] %v1065
        %1194 = vst [vmem:[%s236 + $0x300] sm:$0xff] %v1066
        %1195 = vst [vmem:[%s236 + $0x308] sm:$0xff] %v1067
        %1196 = vst [vmem:[%s236 + $0x310] sm:$0xff] %v1068
        %1197 = vst [vmem:[%s236 + $0x318] sm:$0xff] %v1069
        %1198 = vst [vmem:[%s236 + $0x320] sm:$0xff] %v1070
        %1199 = vst [vmem:[%s236 + $0x328] sm:$0xff] %v1071
        %1200 = vst [vmem:[%s236 + $0x330] sm:$0xff] %v1072
        %1201 = vst [vmem:[%s236 + $0x338] sm:$0xff] %v1073
        %1202 = vst [vmem:[%s236 + $0x340] sm:$0xff] %v1074
        %1203 = vst [vmem:[%s236 + $0x348] sm:$0xff] %v1075
        %1204 = vst [vmem:[%s236 + $0x350] sm:$0xff] %v1076
        %1205 = vst [vmem:[%s236 + $0x358] sm:$0xff] %v1077
        %1206 = vst [vmem:[%s236 + $0x360] sm:$0xff] %v1078
        %1207 = vst [vmem:[%s236 + $0x368] sm:$0xff] %v1079
        %1208 = vst [vmem:[%s236 + $0x370] sm:$0xff] %v1080
        %1209 = vst [vmem:[%s236 + $0x378] sm:$0xff] %v1081
        %1210 = vst [vmem:[%s236 + $0x380] sm:$0xff] %v1082
        %1211 = vst [vmem:[%s236 + $0x388] sm:$0xff] %v1083
        %1212 = vst [vmem:[%s236 + $0x390] sm:$0xff] %v1084
        %1213 = vst [vmem:[%s236 + $0x398] sm:$0xff] %v1085
        %1214 = vst [vmem:[%s236 + $0x3a0] sm:$0xff] %v1086
        %1215 = vst [vmem:[%s236 + $0x3a8] sm:$0xff] %v1087
        %1216 = vst [vmem:[%s236 + $0x3b0] sm:$0xff] %v1088
        %1217 = vst [vmem:[%s236 + $0x3b8] sm:$0xff] %v1089
        %1218 = vst [vmem:[%s236 + $0x3c0] sm:$0xff] %v1090
        %1219 = vst [vmem:[%s236 + $0x3c8] sm:$0xff] %v1091
        %1220 = vst [vmem:[%s236 + $0x3d0] sm:$0xff] %v1092
        %1221 = vst [vmem:[%s236 + $0x3d8] sm:$0xff] %v1093
        %1222 = vst [vmem:[%s236 + $0x3e0] sm:$0xff] %v1094
        %1223 = vst [vmem:[%s236 + $0x3e8] sm:$0xff] %v1095
        %1224 = vst [vmem:[%s236 + $0x3f0] sm:$0xff] %v1096
        %1225 = vst [vmem:[%s236 + $0x3f8] sm:$0xff] %v1097
        %s1226 = sand.u32 %s123, 1
        %s1227 = scalar_lea.sflag [#allocation4], %s1226
        %s1228 = sand.u32 %s123, 1
        %s1229 = smul.addr %s1228, 1024
        %s1230 = scalar_lea.vmem [#allocation5], %s1229
        // Predicated region
        $region41: #{bottleneck_forward_nhwc.7} parent=35 // pred_check
          %p1231 = pneg %p133
        $region42: #{bottleneck_forward_nhwc.7} parent=35 // pred_check_branch
          %1233 = sbr.rel (%p1231) target = $region44
        $region43: #{bottleneck_forward_nhwc.7} parent=35 // pred_region
          %s1234 = smul.u32 32, %s21
          %1236 = vsyncadd %s1227, 0
          %s1237 = smul.addr %s1234, 4
          %s1238 = smul.addr %s1237, 8
          %s1239 = scalar_lea.hbm %s4, %s1238
          %s1240 = sshll.u32 %s1230, 4
          %s1241 = int_to_ptr.vmem [resolvable:$true] %s1240
          %s1242 = sshll.u32 %s1239, 4
          %s1243 = int_to_ptr.hbm [resolvable:$true] %s1242
          %1248 = dma.vmem_to_hbm [thread:$0]  %s1241, 16384, %s1243, %s1227, 512, 512, 32
        $region44: #{bottleneck_forward_nhwc.7} parent=35 // pred_fallthru
          _
      $region36: #{bottleneck_forward_nhwc.7} parent=5 // pred_fallthru
        _
      %p1249 = scmp.le.s32.totalorder 2, %s16
      // Predicated region
      $region45: #{bottleneck_forward_nhwc.7} parent=5 // pred_check
        %p1250 = pneg %p1249
      $region46: #{bottleneck_forward_nhwc.7} parent=5 // pred_check_branch
        %1252 = sbr.rel (%p1250) target = $region48
      $region47: #{bottleneck_forward_nhwc.7} parent=5 // pred_region
        %s1253 = ssub.s32 %s16, 2
        // Predicated region
        $region49: #{bottleneck_forward_nhwc.7} parent=47 // pred_check
          %p1254 = pneg %p139
        $region50: #{bottleneck_forward_nhwc.7} parent=47 // pred_check_branch
          %1256 = sbr.rel (%p1254) target = $region52
        $region51: #{bottleneck_forward_nhwc.7} parent=47 // pred_region
          %s1257 = sand.u32 %s124, 1
          %s1258 = scalar_lea.sflag [#allocation4], %s1257
          %s1259 = sand.u32 %s124, 1
          %s1260 = smul.addr %s1259, 1024
          %s1261 = scalar_lea.vmem [#allocation5], %s1260
          %1263 = dma.done %s1258, 16384
        $region52: #{bottleneck_forward_nhwc.7} parent=47 // pred_fallthru
          _
      $region48: #{bottleneck_forward_nhwc.7} parent=5 // pred_fallthru
        _
    $region6: #{bottleneck_forward_nhwc.7} parent=1 // loop_footer
      %s20 = sadd.s32 1, %s16
    $region7: #{bottleneck_forward_nhwc.7} parent=1 // loop_footer_branch
      %15 = sbr.rel target = $region3
    $region8: #{bottleneck_forward_nhwc.7} parent=1 // loop_exit
      _
    %1264 = vsyncpa [#allocation3], 1
    %s1265 = scalar_lea.sflag [#allocation3], 1
    %1266 = vsyncpa %s1265, 1
    %1267 = vsyncpa [#allocation4], 1
    %s1268 = scalar_lea.sflag [#allocation4], 1
    %1269 = vsyncpa %s1268, 1

// kernel: bottleneck_forward_nhwc.5
$region0: #{bottleneck_forward_nhwc.5}
  #allocation0 [shape = 'u32[]', space=smem, size = 0x4, offset = 0x4, fixed_abs, tag = 'smem constant byte address 0x4 - core index']
  #allocation1 [shape = 'u32[72,128]{1,0:T(1,128)}', space=vmem, size = 0x9000, scoped, tag = 'internal scratch']
  #allocation2 [shape = 'bf16[18,18,128]{2,1,0:T(8,128)(2,1)}', space=vmem, size = 0x1b000, scoped, tag = 'scratch operand']
  #allocation3 [shape = 'f32[256,128]{1,0:T(8,128)}', space=vmem, size = 0x20000, scoped, tag = 'scratch operand']
  %s0 = inlined_call_operand.vmem [shape: bf16[2,16,16,128], index: 0, kind: input, shape index: {}]
  %s1 = inlined_call_operand.vmem [shape: f32[1,128], index: 1, kind: input, shape index: {}]
  %s2 = inlined_call_operand.vmem [shape: f32[1,128], index: 2, kind: input, shape index: {}]
  %s3 = inlined_call_operand.hbm [shape: bf16[9,128,128], index: 3, kind: input, shape index: {}]
  %s4 = inlined_call_operand.vmem [shape: bf16[2,16,16,128], index: 4, kind: output, shape index: {0}]
  %s5 = inlined_call_operand.vmem [shape: f32[2,2,128], index: 5, kind: output, shape index: {1}]
  %6 = xla_tuple %s4, %s5
  %s7 = sld [smem:[#allocation0]]
  $region61: #{bottleneck_forward_nhwc.5} parent=0
    _
  %s9 = ssub.s32 1, %s7
  %s10 = scalar_select 0, %s9, %s7
  $region1: #{bottleneck_forward_nhwc.5} parent=0
    #allocation4 [shape = 'u8[294912]{0}', space=vmem, size = 0x48000, scoped, tag = 'input window, operand 3, single buffered']
    #allocation5 [shape = 's32[2]{0}', space=sflag, size = 0x8, scoped, tag = 'scoped memory for bottleneck_forward_nhwc.5']
    %11 = vsyncpa [#allocation5], 0
    loop: start=0, step=1, limit=4
    $region2: #{bottleneck_forward_nhwc.5} parent=1 // loop_pre_header
      _
    $region3: #{bottleneck_forward_nhwc.5} parent=1 // loop_header
      %s13 = sphi 0, %s17
      %p14 = scmp.ge.s32.totalorder %s13, 4
      %s23 = sphi 0, %s25
      %s26 = sphi 0, %s23
      %s27 = sphi 0, %s26
      %s43 = sphi 0, %s27
      %s47 = sphi 0, %s47
      %s49 = sphi 0, %s47
      %s50 = sphi 0, %s49
      %s64 = sphi 0, %s50
      %s68 = sphi 0, %s68
      %s70 = sphi 0, %s68
      %s71 = sphi 0, %s70
      %s85 = sphi 0, %s71
      %s89 = sphi 0, %s89
      %s91 = sphi 0, %s89
      %s92 = sphi 0, %s91
      %s106 = sphi 0, %s92
      %s112 = sphi 0, %s114
      %s115 = sphi 0, %s112
      %s116 = sphi 0, %s115
      %s132 = sphi 0, %s116
      %s138 = sphi 0, %s140
      %s141 = sphi 0, %s138
      %s142 = sphi 0, %s141
      %s158 = sphi 0, %s142
    $region4: #{bottleneck_forward_nhwc.5} parent=1 // loop_header_branch
      %16 = sbr.rel (%p14) target = $region8
    $region5: #{bottleneck_forward_nhwc.5} parent=1 // loop_body
      %s18 = ssub.s32 %s13, 1
      %s19 = ssub.s32 %s13, 2
      %s20 = sadd.s32 %s13, 1
      %s21 = ssub.s32 %s13, %s20
      %p22 = scmp.eq.s32.totalorder %s21, 0
      %s24 = sadd.s32 %s23, 1
      %s25 = scalar_select %p22, %s23, %s24
      %p28 = pneg %p22
      %p29 = scmp.eq.s32.totalorder %s13, 1
      %p30 = por %p28, %p29
      %p31 = scmp.ne.s32.totalorder %s23, %s26
      %p32 = scmp.eq.s32.totalorder %s13, 0
      %p33 = por %p31, %p32
      %p34 = scmp.ne.s32.totalorder %s23, %s26
      %p35 = scmp.eq.s32.totalorder %s18, 1
      %p36 = por %p34, %p35
      %p37 = scmp.ne.s32.totalorder %s26, %s27
      %p38 = scmp.eq.s32.totalorder %s18, 0
      %p39 = por %p37, %p38
      %p40 = scmp.ne.s32.totalorder %s26, %s27
      %p41 = scmp.eq.s32.totalorder %s19, 1
      %p42 = por %p40, %p41
      %p44 = scmp.ne.s32.totalorder %s27, %s43
      %p45 = scmp.eq.s32.totalorder %s19, 0
      %p46 = por %p44, %p45
      %s48 = sadd.s32 %s47, 1
      %p51 = scmp.eq.s32.totalorder %s13, 1
      %p52 = scmp.ne.s32.totalorder %s47, %s49
      %p53 = scmp.eq.s32.totalorder %s13, 0
      %p54 = por %p52, %p53
      %p55 = scmp.ne.s32.totalorder %s47, %s49
      %p56 = scmp.eq.s32.totalorder %s18, 1
      %p57 = por %p55, %p56
      %p58 = scmp.ne.s32.totalorder %s49, %s50
      %p59 = scmp.eq.s32.totalorder %s18, 0
      %p60 = por %p58, %p59
      %p61 = scmp.ne.s32.totalorder %s49, %s50
      %p62 = scmp.eq.s32.totalorder %s19, 1
      %p63 = por %p61, %p62
      %p65 = scmp.ne.s32.totalorder %s50, %s64
      %p66 = scmp.eq.s32.totalorder %s19, 0
      %p67 = por %p65, %p66
      %s69 = sadd.s32 %s68, 1
      %p72 = scmp.eq.s32.totalorder %s13, 1
      %p73 = scmp.ne.s32.totalorder %s68, %s70
      %p74 = scmp.eq.s32.totalorder %s13, 0
      %p75 = por %p73, %p74
      %p76 = scmp.ne.s32.totalorder %s68, %s70
      %p77 = scmp.eq.s32.totalorder %s18, 1
      %p78 = por %p76, %p77
      %p79 = scmp.ne.s32.totalorder %s70, %s71
      %p80 = scmp.eq.s32.totalorder %s18, 0
      %p81 = por %p79, %p80
      %p82 = scmp.ne.s32.totalorder %s70, %s71
      %p83 = scmp.eq.s32.totalorder %s19, 1
      %p84 = por %p82, %p83
      %p86 = scmp.ne.s32.totalorder %s71, %s85
      %p87 = scmp.eq.s32.totalorder %s19, 0
      %p88 = por %p86, %p87
      %s90 = sadd.s32 %s89, 1
      %p93 = scmp.eq.s32.totalorder %s13, 1
      %p94 = scmp.ne.s32.totalorder %s89, %s91
      %p95 = scmp.eq.s32.totalorder %s13, 0
      %p96 = por %p94, %p95
      %p97 = scmp.ne.s32.totalorder %s89, %s91
      %p98 = scmp.eq.s32.totalorder %s18, 1
      %p99 = por %p97, %p98
      %p100 = scmp.ne.s32.totalorder %s91, %s92
      %p101 = scmp.eq.s32.totalorder %s18, 0
      %p102 = por %p100, %p101
      %p103 = scmp.ne.s32.totalorder %s91, %s92
      %p104 = scmp.eq.s32.totalorder %s19, 1
      %p105 = por %p103, %p104
      %p107 = scmp.ne.s32.totalorder %s92, %s106
      %p108 = scmp.eq.s32.totalorder %s19, 0
      %p109 = por %p107, %p108
      %s110 = ssub.s32 %s13, %s20
      %p111 = scmp.eq.s32.totalorder %s110, 0
      %s113 = sadd.s32 %s112, 1
      %s114 = scalar_select %p111, %s112, %s113
      %p117 = pneg %p111
      %p118 = scmp.eq.s32.totalorder %s13, 1
      %p119 = por %p117, %p118
      %p120 = scmp.ne.s32.totalorder %s112, %s115
      %p121 = scmp.eq.s32.totalorder %s13, 0
      %p122 = por %p120, %p121
      %p123 = scmp.ne.s32.totalorder %s112, %s115
      %p124 = scmp.eq.s32.totalorder %s18, 1
      %p125 = por %p123, %p124
      %p126 = scmp.ne.s32.totalorder %s115, %s116
      %p127 = scmp.eq.s32.totalorder %s18, 0
      %p128 = por %p126, %p127
      %p129 = scmp.ne.s32.totalorder %s115, %s116
      %p130 = scmp.eq.s32.totalorder %s19, 1
      %p131 = por %p129, %p130
      %p133 = scmp.ne.s32.totalorder %s116, %s132
      %p134 = scmp.eq.s32.totalorder %s19, 0
      %p135 = por %p133, %p134
      %s136 = ssub.s32 %s13, %s20
      %p137 = scmp.eq.s32.totalorder %s136, 0
      %s139 = sadd.s32 %s138, 1
      %s140 = scalar_select %p137, %s138, %s139
      %p143 = pneg %p137
      %p144 = scmp.eq.s32.totalorder %s13, 1
      %p145 = por %p143, %p144
      %p146 = scmp.ne.s32.totalorder %s138, %s141
      %p147 = scmp.eq.s32.totalorder %s13, 0
      %p148 = por %p146, %p147
      %p149 = scmp.ne.s32.totalorder %s138, %s141
      %p150 = scmp.eq.s32.totalorder %s18, 1
      %p151 = por %p149, %p150
      %p152 = scmp.ne.s32.totalorder %s141, %s142
      %p153 = scmp.eq.s32.totalorder %s18, 0
      %p154 = por %p152, %p153
      %p155 = scmp.ne.s32.totalorder %s141, %s142
      %p156 = scmp.eq.s32.totalorder %s19, 1
      %p157 = por %p155, %p156
      %p159 = scmp.ne.s32.totalorder %s142, %s158
      %p160 = scmp.eq.s32.totalorder %s19, 0
      %p161 = por %p159, %p160
      %p162 = scmp.le.s32.totalorder 1, %s13
      %p163 = scmp.lt.s32.totalorder %s13, 3
      %p164 = pnand %p162, %p163
      %p165 = pneg %p164
      // Predicated region
      $region9: #{bottleneck_forward_nhwc.5} parent=5 // pred_check
        _
      $region10: #{bottleneck_forward_nhwc.5} parent=5 // pred_check_branch
        %167 = sbr.rel (%p164) target = $region12
      $region11: #{bottleneck_forward_nhwc.5} parent=5 // pred_region
        %s168 = ssub.s32 %s13, 1
        // Predicated region
        $region13: #{bottleneck_forward_nhwc.5} parent=11 // pred_check
          %p169 = pneg %p60
        $region14: #{bottleneck_forward_nhwc.5} parent=11 // pred_check_branch
          %171 = sbr.rel (%p169) target = $region16
        $region15: #{bottleneck_forward_nhwc.5} parent=11 // pred_region
          _
        $region16: #{bottleneck_forward_nhwc.5} parent=11 // pred_fallthru
          _
        // Predicated region
        $region17: #{bottleneck_forward_nhwc.5} parent=11 // pred_check
          %p172 = pneg %p81
        $region18: #{bottleneck_forward_nhwc.5} parent=11 // pred_check_branch
          %174 = sbr.rel (%p172) target = $region20
        $region19: #{bottleneck_forward_nhwc.5} parent=11 // pred_region
          _
        $region20: #{bottleneck_forward_nhwc.5} parent=11 // pred_fallthru
          _
        // Predicated region
        $region21: #{bottleneck_forward_nhwc.5} parent=11 // pred_check
          %p175 = pneg %p102
        $region22: #{bottleneck_forward_nhwc.5} parent=11 // pred_check_branch
          %177 = sbr.rel (%p175) target = $region24
        $region23: #{bottleneck_forward_nhwc.5} parent=11 // pred_region
          %179 = vsyncadd [#allocation5], 0
          %s180 = sshll.u32 %s3, 4
          %s181 = int_to_ptr.hbm [resolvable:$true] %s180
          %s182 = sshll.u32 [#allocation4], 4
          %s183 = int_to_ptr.vmem [resolvable:$true] %s182
          %188 = dma.hbm_to_vmem [thread:$0]  %s181, 9216, %s183, [#allocation5], 64, 64, 4
        $region24: #{bottleneck_forward_nhwc.5} parent=11 // pred_fallthru
          _
      $region12: #{bottleneck_forward_nhwc.5} parent=5 // pred_fallthru
        _
      %p189 = scmp.lt.s32.totalorder %s13, 2
      // Predicated region
      $region25: #{bottleneck_forward_nhwc.5} parent=5 // pred_check
        %p190 = pneg %p189
      $region26: #{bottleneck_forward_nhwc.5} parent=5 // pred_check_branch
        %192 = sbr.rel (%p190) target = $region28
      $region27: #{bottleneck_forward_nhwc.5} parent=5 // pred_region
        // Predicated region
        $region29: #{bottleneck_forward_nhwc.5} parent=27 // pred_check
          %p193 = pneg %p33
        $region30: #{bottleneck_forward_nhwc.5} parent=27 // pred_check_branch
          %195 = sbr.rel (%p193) target = $region32
        $region31: #{bottleneck_forward_nhwc.5} parent=27 // pred_region
          %p196 = scmp.lt.s32.totalorder %s13, 1
          %s197 = scalar_select %p196, %s13, 1
          %s198 = smul.addr %s197, 32
          %s199 = smul.addr %s198, 4
          %s200 = scalar_lea.vmem %s0, %s199
        $region32: #{bottleneck_forward_nhwc.5} parent=27 // pred_fallthru
          _
      $region28: #{bottleneck_forward_nhwc.5} parent=5 // pred_fallthru
        _
      %p201 = scmp.le.s32.totalorder 1, %s13
      %p202 = scmp.lt.s32.totalorder %s13, 3
      %p203 = pnand %p201, %p202
      %p204 = pneg %p203
      // Predicated region
      $region33: #{bottleneck_forward_nhwc.5} parent=5 // pred_check
        _
      $region34: #{bottleneck_forward_nhwc.5} parent=5 // pred_check_branch
        %206 = sbr.rel (%p203) target = $region36
      $region35: #{bottleneck_forward_nhwc.5} parent=5 // pred_region
        %s207 = ssub.s32 %s13, 1
        // Predicated region
        $region37: #{bottleneck_forward_nhwc.5} parent=35 // pred_check
          %p208 = pneg %p102
        $region38: #{bottleneck_forward_nhwc.5} parent=35 // pred_check_branch
          %210 = sbr.rel (%p208) target = $region40
        $region39: #{bottleneck_forward_nhwc.5} parent=35 // pred_region
          %212 = dma.done [#allocation5], 9216
        $region40: #{bottleneck_forward_nhwc.5} parent=35 // pred_fallthru
          _
        %p213 = scmp.lt.s32.totalorder %s18, 1
        %s214 = scalar_select %p213, %s18, 1
        %s215 = smul.addr %s214, 32
        %s216 = smul.addr %s215, 4
        %s217 = scalar_lea.vmem %s0, %s216
        %p218 = pneg %p39
        %p219 = pneg %p36
        %p220 = pneg %p60
        %p221 = pneg %p57
        %p222 = pneg %p81
        %p223 = pneg %p78
        %p224 = pneg %p102
        %p225 = pneg %p99
        %p226 = pneg %p128
        %p227 = pneg %p125
        %p228 = scmp.lt.s32.totalorder %s18, 1
        %s229 = scalar_select %p228, %s18, 1
        %s230 = smul.addr %s229, 32
        %s231 = smul.addr %s230, 4
        %s232 = scalar_lea.vmem %s4, %s231
        %p233 = pneg %p154
        %p234 = pneg %p151
        %p235 = scmp.lt.s32.totalorder %s18, 1
        %s236 = scalar_select %p235, %s18, 1
        %s237 = smul.addr %s236, 2
        %s238 = scalar_lea.vmem %s5, %s237
        %p239 = scmp.lt.s32.totalorder %s18, 1
        %s240 = scalar_select %p239, %s18, 1
        %s241 = smul.addr %s240, 32
        %s242 = smul.addr %s241, 4
        %s243 = scalar_lea.vmem %s0, %s242
        %p244 = scmp.lt.s32.totalorder %s18, 1
        %s245 = scalar_select %p244, %s18, 1
        %s246 = smul.addr %s245, 32
        %s247 = smul.addr %s246, 4
        %s248 = scalar_lea.vmem %s4, %s247
        %p249 = scmp.lt.s32.totalorder %s18, 1
        %s250 = scalar_select %p249, %s18, 1
        %s251 = smul.addr %s250, 2
        %s252 = scalar_lea.vmem %s5, %s251
        %v254 = vld [vmem:[%s243] sm:$0xf]
        %v255 = vld [vmem:[%s243 + $0x4] sm:$0xf]
        %v256 = vld [vmem:[%s243 + $0x8] sm:$0xf]
        %v257 = vld [vmem:[%s243 + $0xc] sm:$0xf]
        %v258 = vld [vmem:[%s243 + $0x10] sm:$0xf]
        %v259 = vld [vmem:[%s243 + $0x14] sm:$0xf]
        %v260 = vld [vmem:[%s243 + $0x18] sm:$0xf]
        %v261 = vld [vmem:[%s243 + $0x1c] sm:$0xf]
        %v262 = vld [vmem:[%s243 + $0x20] sm:$0xf]
        %v263 = vld [vmem:[%s243 + $0x24] sm:$0xf]
        %v264 = vld [vmem:[%s243 + $0x28] sm:$0xf]
        %v265 = vld [vmem:[%s243 + $0x2c] sm:$0xf]
        %v266 = vld [vmem:[%s243 + $0x30] sm:$0xf]
        %v267 = vld [vmem:[%s243 + $0x34] sm:$0xf]
        %v268 = vld [vmem:[%s243 + $0x38] sm:$0xf]
        %v269 = vld [vmem:[%s243 + $0x3c] sm:$0xf]
        %v270 = vld [vmem:[%s243 + $0x40] sm:$0xf]
        %v271 = vld [vmem:[%s243 + $0x44] sm:$0xf]
        %v272 = vld [vmem:[%s243 + $0x48] sm:$0xf]
        %v273 = vld [vmem:[%s243 + $0x4c] sm:$0xf]
        %v274 = vld [vmem:[%s243 + $0x50] sm:$0xf]
        %v275 = vld [vmem:[%s243 + $0x54] sm:$0xf]
        %v276 = vld [vmem:[%s243 + $0x58] sm:$0xf]
        %v277 = vld [vmem:[%s243 + $0x5c] sm:$0xf]
        %v278 = vld [vmem:[%s243 + $0x60] sm:$0xf]
        %v279 = vld [vmem:[%s243 + $0x64] sm:$0xf]
        %v280 = vld [vmem:[%s243 + $0x68] sm:$0xf]
        %v281 = vld [vmem:[%s243 + $0x6c] sm:$0xf]
        %v282 = vld [vmem:[%s243 + $0x70] sm:$0xf]
        %v283 = vld [vmem:[%s243 + $0x74] sm:$0xf]
        %v284 = vld [vmem:[%s243 + $0x78] sm:$0xf]
        %v285 = vld [vmem:[%s243 + $0x7c] sm:$0xf]
        %v286 = vunpack.c.l.bf16 %v254
        %v287 = vunpack.c.l.bf16 %v255
        %v288 = vunpack.c.l.bf16 %v256
        %v289 = vunpack.c.l.bf16 %v257
        %v290 = vunpack.c.l.bf16 %v258
        %v291 = vunpack.c.l.bf16 %v259
        %v292 = vunpack.c.l.bf16 %v260
        %v293 = vunpack.c.l.bf16 %v261
        %v294 = vunpack.c.l.bf16 %v262
        %v295 = vunpack.c.l.bf16 %v263
        %v296 = vunpack.c.l.bf16 %v264
        %v297 = vunpack.c.l.bf16 %v265
        %v298 = vunpack.c.l.bf16 %v266
        %v299 = vunpack.c.l.bf16 %v267
        %v300 = vunpack.c.l.bf16 %v268
        %v301 = vunpack.c.l.bf16 %v269
        %v302 = vunpack.c.l.bf16 %v270
        %v303 = vunpack.c.l.bf16 %v271
        %v304 = vunpack.c.l.bf16 %v272
        %v305 = vunpack.c.l.bf16 %v273
        %v306 = vunpack.c.l.bf16 %v274
        %v307 = vunpack.c.l.bf16 %v275
        %v308 = vunpack.c.l.bf16 %v276
        %v309 = vunpack.c.l.bf16 %v277
        %v310 = vunpack.c.l.bf16 %v278
        %v311 = vunpack.c.l.bf16 %v279
        %v312 = vunpack.c.l.bf16 %v280
        %v313 = vunpack.c.l.bf16 %v281
        %v314 = vunpack.c.l.bf16 %v282
        %v315 = vunpack.c.l.bf16 %v283
        %v316 = vunpack.c.l.bf16 %v284
        %v317 = vunpack.c.l.bf16 %v285
        %v318 = vld [vmem:[%s1] sm:$0x1]
        %v320 = vperm.slane %v318, 0
        %v322 = vmul.f32 %v286, %v320
        %v323 = vmul.f32 %v287, %v320
        %v324 = vmul.f32 %v288, %v320
        %v325 = vmul.f32 %v289, %v320
        %v326 = vmul.f32 %v290, %v320
        %v327 = vmul.f32 %v291, %v320
        %v328 = vmul.f32 %v292, %v320
        %v329 = vmul.f32 %v293, %v320
        %v330 = vmul.f32 %v294, %v320
        %v331 = vmul.f32 %v295, %v320
        %v332 = vmul.f32 %v296, %v320
        %v333 = vmul.f32 %v297, %v320
        %v334 = vmul.f32 %v298, %v320
        %v335 = vmul.f32 %v299, %v320
        %v336 = vmul.f32 %v300, %v320
        %v337 = vmul.f32 %v301, %v320
        %v338 = vmul.f32 %v302, %v320
        %v339 = vmul.f32 %v303, %v320
        %v340 = vmul.f32 %v304, %v320
        %v341 = vmul.f32 %v305, %v320
        %v342 = vmul.f32 %v306, %v320
        %v343 = vmul.f32 %v307, %v320
        %v344 = vmul.f32 %v308, %v320
        %v345 = vmul.f32 %v309, %v320
        %v346 = vmul.f32 %v310, %v320
        %v347 = vmul.f32 %v311, %v320
        %v348 = vmul.f32 %v312, %v320
        %v349 = vmul.f32 %v313, %v320
        %v350 = vmul.f32 %v314, %v320
        %v351 = vmul.f32 %v315, %v320
        %v352 = vmul.f32 %v316, %v320
        %v353 = vmul.f32 %v317, %v320
        %v354 = vld [vmem:[%s2] sm:$0x1]
        %v356 = vperm.slane %v354, 0
        %v358 = vadd.f32 %v322, %v356
        %v359 = vadd.f32 %v323, %v356
        %v360 = vadd.f32 %v324, %v356
        %v361 = vadd.f32 %v325, %v356
        %v362 = vadd.f32 %v326, %v356
        %v363 = vadd.f32 %v327, %v356
        %v364 = vadd.f32 %v328, %v356
        %v365 = vadd.f32 %v329, %v356
        %v366 = vadd.f32 %v330, %v356
        %v367 = vadd.f32 %v331, %v356
        %v368 = vadd.f32 %v332, %v356
        %v369 = vadd.f32 %v333, %v356
        %v370 = vadd.f32 %v334, %v356
        %v371 = vadd.f32 %v335, %v356
        %v372 = vadd.f32 %v336, %v356
        %v373 = vadd.f32 %v337, %v356
        %v374 = vadd.f32 %v338, %v356
        %v375 = vadd.f32 %v339, %v356
        %v376 = vadd.f32 %v340, %v356
        %v377 = vadd.f32 %v341, %v356
        %v378 = vadd.f32 %v342, %v356
        %v379 = vadd.f32 %v343, %v356
        %v380 = vadd.f32 %v344, %v356
        %v381 = vadd.f32 %v345, %v356
        %v382 = vadd.f32 %v346, %v356
        %v383 = vadd.f32 %v347, %v356
        %v384 = vadd.f32 %v348, %v356
        %v385 = vadd.f32 %v349, %v356
        %v386 = vadd.f32 %v350, %v356
        %v387 = vadd.f32 %v351, %v356
        %v388 = vadd.f32 %v352, %v356
        %v389 = vadd.f32 %v353, %v356
        %v390 = vmax.f32 %v358, 0.0
        %v391 = vmax.f32 %v359, 0.0
        %v392 = vmax.f32 %v360, 0.0
        %v393 = vmax.f32 %v361, 0.0
        %v394 = vmax.f32 %v362, 0.0
        %v395 = vmax.f32 %v363, 0.0
        %v396 = vmax.f32 %v364, 0.0
        %v397 = vmax.f32 %v365, 0.0
        %v398 = vmax.f32 %v366, 0.0
        %v399 = vmax.f32 %v367, 0.0
        %v400 = vmax.f32 %v368, 0.0
        %v401 = vmax.f32 %v369, 0.0
        %v402 = vmax.f32 %v370, 0.0
        %v403 = vmax.f32 %v371, 0.0
        %v404 = vmax.f32 %v372, 0.0
        %v405 = vmax.f32 %v373, 0.0
        %v406 = vmax.f32 %v374, 0.0
        %v407 = vmax.f32 %v375, 0.0
        %v408 = vmax.f32 %v376, 0.0
        %v409 = vmax.f32 %v377, 0.0
        %v410 = vmax.f32 %v378, 0.0
        %v411 = vmax.f32 %v379, 0.0
        %v412 = vmax.f32 %v380, 0.0
        %v413 = vmax.f32 %v381, 0.0
        %v414 = vmax.f32 %v382, 0.0
        %v415 = vmax.f32 %v383, 0.0
        %v416 = vmax.f32 %v384, 0.0
        %v417 = vmax.f32 %v385, 0.0
        %v418 = vmax.f32 %v386, 0.0
        %v419 = vmax.f32 %v387, 0.0
        %v420 = vmax.f32 %v388, 0.0
        %v421 = vmax.f32 %v389, 0.0
        %422 = vst [vmem:[#allocation2] sm:$0xf] 0
        %423 = vst [vmem:[#allocation2 + $0x4] sm:$0xf] 0
        %424 = vst [vmem:[#allocation2 + $0x8] sm:$0x1] 0
        %425 = vst [vmem:[#allocation2 + $0xc] sm:$0xf] 0
        %426 = vst [vmem:[#allocation2 + $0x10] sm:$0xf] 0
        %427 = vst [vmem:[#allocation2 + $0x14] sm:$0x1] 0
        %428 = vst [vmem:[#allocation2 + $0x18] sm:$0xf] 0
        %429 = vst [vmem:[#allocation2 + $0x1c] sm:$0xf] 0
        %430 = vst [vmem:[#allocation2 + $0x20] sm:$0x1] 0
        %431 = vst [vmem:[#allocation2 + $0x24] sm:$0xf] 0
        %432 = vst [vmem:[#allocation2 + $0x28] sm:$0xf] 0
        %433 = vst [vmem:[#allocation2 + $0x2c] sm:$0x1] 0
        %434 = vst [vmem:[#allocation2 + $0x30] sm:$0xf] 0
        %435 = vst [vmem:[#allocation2 + $0x34] sm:$0xf] 0
        %436 = vst [vmem:[#allocation2 + $0x38] sm:$0x1] 0
        %437 = vst [vmem:[#allocation2 + $0x3c] sm:$0xf] 0
        %438 = vst [vmem:[#allocation2 + $0x40] sm:$0xf] 0
        %439 = vst [vmem:[#allocation2 + $0x44] sm:$0x1] 0
        %440 = vst [vmem:[#allocation2 + $0x48] sm:$0xf] 0
        %441 = vst [vmem:[#allocation2 + $0x4c] sm:$0xf] 0
        %442 = vst [vmem:[#allocation2 + $0x50] sm:$0x1] 0
        %443 = vst [vmem:[#allocation2 + $0x54] sm:$0xf] 0
        %444 = vst [vmem:[#allocation2 + $0x58] sm:$0xf] 0
        %445 = vst [vmem:[#allocation2 + $0x5c] sm:$0x1] 0
        %446 = vst [vmem:[#allocation2 + $0x60] sm:$0xf] 0
        %447 = vst [vmem:[#allocation2 + $0x64] sm:$0xf] 0
        %448 = vst [vmem:[#allocation2 + $0x68] sm:$0x1] 0
        %449 = vst [vmem:[#allocation2 + $0x6c] sm:$0xf] 0
        %450 = vst [vmem:[#allocation2 + $0x70] sm:$0xf] 0
        %451 = vst [vmem:[#allocation2 + $0x74] sm:$0x1] 0
        %452 = vst [vmem:[#allocation2 + $0x78] sm:$0xf] 0
        %453 = vst [vmem:[#allocation2 + $0x7c] sm:$0xf] 0
        %454 = vst [vmem:[#allocation2 + $0x80] sm:$0x1] 0
        %455 = vst [vmem:[#allocation2 + $0x84] sm:$0xf] 0
        %456 = vst [vmem:[#allocation2 + $0x88] sm:$0xf] 0
        %457 = vst [vmem:[#allocation2 + $0x8c] sm:$0x1] 0
        %458 = vst [vmem:[#allocation2 + $0x90] sm:$0xf] 0
        %459 = vst [vmem:[#allocation2 + $0x94] sm:$0xf] 0
        %460 = vst [vmem:[#allocation2 + $0x98] sm:$0x1] 0
        %461 = vst [vmem:[#allocation2 + $0x9c] sm:$0xf] 0
        %462 = vst [vmem:[#allocation2 + $0xa0] sm:$0xf] 0
        %463 = vst [vmem:[#allocation2 + $0xa4] sm:$0x1] 0
        %464 = vst [vmem:[#allocation2 + $0xa8] sm:$0xf] 0
        %465 = vst [vmem:[#allocation2 + $0xac] sm:$0xf] 0
        %466 = vst [vmem:[#allocation2 + $0xb0] sm:$0x1] 0
        %467 = vst [vmem:[#allocation2 + $0xb4] sm:$0xf] 0
        %468 = vst [vmem:[#allocation2 + $0xb8] sm:$0xf] 0
        %469 = vst [vmem:[#allocation2 + $0xbc] sm:$0x1] 0
        %470 = vst [vmem:[#allocation2 + $0xc0] sm:$0xf] 0
        %471 = vst [vmem:[#allocation2 + $0xc4] sm:$0xf] 0
        %472 = vst [vmem:[#allocation2 + $0xc8] sm:$0x1] 0
        %473 = vst [vmem:[#allocation2 + $0xcc] sm:$0xf] 0
        %474 = vst [vmem:[#allocation2 + $0xd0] sm:$0xf] 0
        %475 = vst [vmem:[#allocation2 + $0xd4] sm:$0x1] 0
        %v476 = vpack.c.bf16 %v390, %v390
        %v477 = vpack.c.bf16 %v391, %v391
        %v478 = vpack.c.bf16 %v392, %v392
        %v479 = vpack.c.bf16 %v393, %v393
        %v480 = vpack.c.bf16 %v394, %v394
        %v481 = vpack.c.bf16 %v395, %v395
        %v482 = vpack.c.bf16 %v396, %v396
        %v483 = vpack.c.bf16 %v397, %v397
        %v484 = vpack.c.bf16 %v398, %v398
        %v485 = vpack.c.bf16 %v399, %v399
        %v486 = vpack.c.bf16 %v400, %v400
        %v487 = vpack.c.bf16 %v401, %v401
        %v488 = vpack.c.bf16 %v402, %v402
        %v489 = vpack.c.bf16 %v403, %v403
        %v490 = vpack.c.bf16 %v404, %v404
        %v491 = vpack.c.bf16 %v405, %v405
        %v492 = vpack.c.bf16 %v406, %v406
        %v493 = vpack.c.bf16 %v407, %v407
        %v494 = vpack.c.bf16 %v408, %v408
        %v495 = vpack.c.bf16 %v409, %v409
        %v496 = vpack.c.bf16 %v410, %v410
        %v497 = vpack.c.bf16 %v411, %v411
        %v498 = vpack.c.bf16 %v412, %v412
        %v499 = vpack.c.bf16 %v413, %v413
        %v500 = vpack.c.bf16 %v414, %v414
        %v501 = vpack.c.bf16 %v415, %v415
        %v502 = vpack.c.bf16 %v416, %v416
        %v503 = vpack.c.bf16 %v417, %v417
        %v504 = vpack.c.bf16 %v418, %v418
        %v505 = vpack.c.bf16 %v419, %v419
        %v506 = vpack.c.bf16 %v420, %v420
        %v507 = vpack.c.bf16 %v421, %v421
        %vm508 = vsmask.f32 256
        %vm509 = vsmask.f32 4368
        %vm510 = vmor %vm508, %vm509
        %v512 = vshrl.u32 %v476, 16
        %v514 = vrot.slane %v512, 7
        %v515 = vshll.u32 %v476, 16
        %v517 = vor.u32 %v514, %v515
        %v518 = vrot.slane %v514, 4
        %v520 = vshrl.u32 %v477, 16
        %v522 = vrot.slane %v520, 7
        %v523 = vshll.u32 %v477, 16
        %v525 = vor.u32 %v522, %v523
        %v526 = vsel %vm510, %v518, %v525
        %v527 = vrot.slane %v522, 4
        %v529 = vshrl.u32 %v478, 16
        %v531 = vrot.slane %v529, 7
        %v532 = vshll.u32 %v478, 16
        %v534 = vor.u32 %v531, %v532
        %v535 = vrot.slane %v531, 4
        %v537 = vshrl.u32 %v479, 16
        %v539 = vrot.slane %v537, 7
        %v540 = vshll.u32 %v479, 16
        %v542 = vor.u32 %v539, %v540
        %v543 = vsel %vm510, %v535, %v542
        %v544 = vrot.slane %v539, 4
        %v546 = vshrl.u32 %v480, 16
        %v548 = vrot.slane %v546, 7
        %v549 = vshll.u32 %v480, 16
        %v551 = vor.u32 %v548, %v549
        %v552 = vrot.slane %v548, 4
        %v554 = vshrl.u32 %v481, 16
        %v556 = vrot.slane %v554, 7
        %v557 = vshll.u32 %v481, 16
        %v559 = vor.u32 %v556, %v557
        %v560 = vsel %vm510, %v552, %v559
        %v561 = vrot.slane %v556, 4
        %v563 = vshrl.u32 %v482, 16
        %v565 = vrot.slane %v563, 7
        %v566 = vshll.u32 %v482, 16
        %v568 = vor.u32 %v565, %v566
        %v569 = vrot.slane %v565, 4
        %v571 = vshrl.u32 %v483, 16
        %v573 = vrot.slane %v571, 7
        %v574 = vshll.u32 %v483, 16
        %v576 = vor.u32 %v573, %v574
        %v577 = vsel %vm510, %v569, %v576
        %v578 = vrot.slane %v573, 4
        %v580 = vshrl.u32 %v484, 16
        %v582 = vrot.slane %v580, 7
        %v583 = vshll.u32 %v484, 16
        %v585 = vor.u32 %v582, %v583
        %v586 = vrot.slane %v582, 4
        %v588 = vshrl.u32 %v485, 16
        %v590 = vrot.slane %v588, 7
        %v591 = vshll.u32 %v485, 16
        %v593 = vor.u32 %v590, %v591
        %v594 = vsel %vm510, %v586, %v593
        %v595 = vrot.slane %v590, 4
        %v597 = vshrl.u32 %v486, 16
        %v599 = vrot.slane %v597, 7
        %v600 = vshll.u32 %v486, 16
        %v602 = vor.u32 %v599, %v600
        %v603 = vrot.slane %v599, 4
        %v605 = vshrl.u32 %v487, 16
        %v607 = vrot.slane %v605, 7
        %v608 = vshll.u32 %v487, 16
        %v610 = vor.u32 %v607, %v608
        %v611 = vsel %vm510, %v603, %v610
        %v612 = vrot.slane %v607, 4
        %v614 = vshrl.u32 %v488, 16
        %v616 = vrot.slane %v614, 7
        %v617 = vshll.u32 %v488, 16
        %v619 = vor.u32 %v616, %v617
        %v620 = vrot.slane %v616, 4
        %v622 = vshrl.u32 %v489, 16
        %v624 = vrot.slane %v622, 7
        %v625 = vshll.u32 %v489, 16
        %v627 = vor.u32 %v624, %v625
        %v628 = vsel %vm510, %v620, %v627
        %v629 = vrot.slane %v624, 4
        %v631 = vshrl.u32 %v490, 16
        %v633 = vrot.slane %v631, 7
        %v634 = vshll.u32 %v490, 16
        %v636 = vor.u32 %v633, %v634
        %v637 = vrot.slane %v633, 4
        %v639 = vshrl.u32 %v491, 16
        %v641 = vrot.slane %v639, 7
        %v642 = vshll.u32 %v491, 16
        %v644 = vor.u32 %v641, %v642
        %v645 = vsel %vm510, %v637, %v644
        %v646 = vrot.slane %v641, 4
        %v648 = vshrl.u32 %v492, 16
        %v650 = vrot.slane %v648, 7
        %v651 = vshll.u32 %v492, 16
        %v653 = vor.u32 %v650, %v651
        %v654 = vrot.slane %v650, 4
        %v656 = vshrl.u32 %v493, 16
        %v658 = vrot.slane %v656, 7
        %v659 = vshll.u32 %v493, 16
        %v661 = vor.u32 %v658, %v659
        %v662 = vsel %vm510, %v654, %v661
        %v663 = vrot.slane %v658, 4
        %v665 = vshrl.u32 %v494, 16
        %v667 = vrot.slane %v665, 7
        %v668 = vshll.u32 %v494, 16
        %v670 = vor.u32 %v667, %v668
        %v671 = vrot.slane %v667, 4
        %v673 = vshrl.u32 %v495, 16
        %v675 = vrot.slane %v673, 7
        %v676 = vshll.u32 %v495, 16
        %v678 = vor.u32 %v675, %v676
        %v679 = vsel %vm510, %v671, %v678
        %v680 = vrot.slane %v675, 4
        %v682 = vshrl.u32 %v496, 16
        %v684 = vrot.slane %v682, 7
        %v685 = vshll.u32 %v496, 16
        %v687 = vor.u32 %v684, %v685
        %v688 = vrot.slane %v684, 4
        %v690 = vshrl.u32 %v497, 16
        %v692 = vrot.slane %v690, 7
        %v693 = vshll.u32 %v497, 16
        %v695 = vor.u32 %v692, %v693
        %v696 = vsel %vm510, %v688, %v695
        %v697 = vrot.slane %v692, 4
        %v699 = vshrl.u32 %v498, 16
        %v701 = vrot.slane %v699, 7
        %v702 = vshll.u32 %v498, 16
        %v704 = vor.u32 %v701, %v702
        %v705 = vrot.slane %v701, 4
        %v707 = vshrl.u32 %v499, 16
        %v709 = vrot.slane %v707, 7
        %v710 = vshll.u32 %v499, 16
        %v712 = vor.u32 %v709, %v710
        %v713 = vsel %vm510, %v705, %v712
        %v714 = vrot.slane %v709, 4
        %v716 = vshrl.u32 %v500, 16
        %v718 = vrot.slane %v716, 7
        %v719 = vshll.u32 %v500, 16
        %v721 = vor.u32 %v718, %v719
        %v722 = vrot.slane %v718, 4
        %v724 = vshrl.u32 %v501, 16
        %v726 = vrot.slane %v724, 7
        %v727 = vshll.u32 %v501, 16
        %v729 = vor.u32 %v726, %v727
        %v730 = vsel %vm510, %v722, %v729
        %v731 = vrot.slane %v726, 4
        %v733 = vshrl.u32 %v502, 16
        %v735 = vrot.slane %v733, 7
        %v736 = vshll.u32 %v502, 16
        %v738 = vor.u32 %v735, %v736
        %v739 = vrot.slane %v735, 4
        %v741 = vshrl.u32 %v503, 16
        %v743 = vrot.slane %v741, 7
        %v744 = vshll.u32 %v503, 16
        %v746 = vor.u32 %v743, %v744
        %v747 = vsel %vm510, %v739, %v746
        %v748 = vrot.slane %v743, 4
        %v750 = vshrl.u32 %v504, 16
        %v752 = vrot.slane %v750, 7
        %v753 = vshll.u32 %v504, 16
        %v755 = vor.u32 %v752, %v753
        %v756 = vrot.slane %v752, 4
        %v758 = vshrl.u32 %v505, 16
        %v760 = vrot.slane %v758, 7
        %v761 = vshll.u32 %v505, 16
        %v763 = vor.u32 %v760, %v761
        %v764 = vsel %vm510, %v756, %v763
        %v765 = vrot.slane %v760, 4
        %v767 = vshrl.u32 %v506, 16
        %v769 = vrot.slane %v767, 7
        %v770 = vshll.u32 %v506, 16
        %v772 = vor.u32 %v769, %v770
        %v773 = vrot.slane %v769, 4
        %v775 = vshrl.u32 %v507, 16
        %v777 = vrot.slane %v775, 7
        %v778 = vshll.u32 %v507, 16
        %v780 = vor.u32 %v777, %v778
        %v781 = vsel %vm510, %v773, %v780
        %v782 = vrot.slane %v777, 4
        %s831 = scalar_lea.vmem [#allocation2], 12
        %vm832 = vcmask 1043456
        %vm833 = vsmask.f32 7938
        %vm834 = vmand %vm832, %vm833
        %v835 = vld [vmem:[%s831] sm:$0xf]
        %v836 = vsel %vm834, %v517, %v835
        %837 = vst [vmem:[%s831] sm:$0xf] %v836
        %838 = vst [vmem:[%s831 + $0x4] sm:$0xf] %v526
        %vm839 = vcmask 1040384
        %vm840 = vmand %vm839, %vm508
        %v841 = vld [vmem:[%s831 + $0x8] sm:$0x1]
        %v842 = vsel %vm840, %v527, %v841
        %843 = vst [vmem:[%s831 + $0x8] sm:$0x1] %v842
        %v844 = vld [vmem:[%s831 + $0xc] sm:$0xf]
        %v845 = vsel %vm834, %v534, %v844
        %846 = vst [vmem:[%s831 + $0xc] sm:$0xf] %v845
        %847 = vst [vmem:[%s831 + $0x10] sm:$0xf] %v543
        %v848 = vld [vmem:[%s831 + $0x14] sm:$0x1]
        %v849 = vsel %vm840, %v544, %v848
        %850 = vst [vmem:[%s831 + $0x14] sm:$0x1] %v849
        %v851 = vld [vmem:[%s831 + $0x18] sm:$0xf]
        %v852 = vsel %vm834, %v551, %v851
        %853 = vst [vmem:[%s831 + $0x18] sm:$0xf] %v852
        %854 = vst [vmem:[%s831 + $0x1c] sm:$0xf] %v560
        %v855 = vld [vmem:[%s831 + $0x20] sm:$0x1]
        %v856 = vsel %vm840, %v561, %v855
        %857 = vst [vmem:[%s831 + $0x20] sm:$0x1] %v856
        %v858 = vld [vmem:[%s831 + $0x24] sm:$0xf]
        %v859 = vsel %vm834, %v568, %v858
        %860 = vst [vmem:[%s831 + $0x24] sm:$0xf] %v859
        %861 = vst [vmem:[%s831 + $0x28] sm:$0xf] %v577
        %v862 = vld [vmem:[%s831 + $0x2c] sm:$0x1]
        %v863 = vsel %vm840, %v578, %v862
        %864 = vst [vmem:[%s831 + $0x2c] sm:$0x1] %v863
        %v865 = vld [vmem:[%s831 + $0x30] sm:$0xf]
        %v866 = vsel %vm834, %v585, %v865
        %867 = vst [vmem:[%s831 + $0x30] sm:$0xf] %v866
        %868 = vst [vmem:[%s831 + $0x34] sm:$0xf] %v594
        %v869 = vld [vmem:[%s831 + $0x38] sm:$0x1]
        %v870 = vsel %vm840, %v595, %v869
        %871 = vst [vmem:[%s831 + $0x38] sm:$0x1] %v870
        %v872 = vld [vmem:[%s831 + $0x3c] sm:$0xf]
        %v873 = vsel %vm834, %v602, %v872
        %874 = vst [vmem:[%s831 + $0x3c] sm:$0xf] %v873
        %875 = vst [vmem:[%s831 + $0x40] sm:$0xf] %v611
        %v876 = vld [vmem:[%s831 + $0x44] sm:$0x1]
        %v877 = vsel %vm840, %v612, %v876
        %878 = vst [vmem:[%s831 + $0x44] sm:$0x1] %v877
        %v879 = vld [vmem:[%s831 + $0x48] sm:$0xf]
        %v880 = vsel %vm834, %v619, %v879
        %881 = vst [vmem:[%s831 + $0x48] sm:$0xf] %v880
        %882 = vst [vmem:[%s831 + $0x4c] sm:$0xf] %v628
        %v883 = vld [vmem:[%s831 + $0x50] sm:$0x1]
        %v884 = vsel %vm840, %v629, %v883
        %885 = vst [vmem:[%s831 + $0x50] sm:$0x1] %v884
        %v886 = vld [vmem:[%s831 + $0x54] sm:$0xf]
        %v887 = vsel %vm834, %v636, %v886
        %888 = vst [vmem:[%s831 + $0x54] sm:$0xf] %v887
        %889 = vst [vmem:[%s831 + $0x58] sm:$0xf] %v645
        %v890 = vld [vmem:[%s831 + $0x5c] sm:$0x1]
        %v891 = vsel %vm840, %v646, %v890
        %892 = vst [vmem:[%s831 + $0x5c] sm:$0x1] %v891
        %v893 = vld [vmem:[%s831 + $0x60] sm:$0xf]
        %v894 = vsel %vm834, %v653, %v893
        %895 = vst [vmem:[%s831 + $0x60] sm:$0xf] %v894
        %896 = vst [vmem:[%s831 + $0x64] sm:$0xf] %v662
        %v897 = vld [vmem:[%s831 + $0x68] sm:$0x1]
        %v898 = vsel %vm840, %v663, %v897
        %899 = vst [vmem:[%s831 + $0x68] sm:$0x1] %v898
        %v900 = vld [vmem:[%s831 + $0x6c] sm:$0xf]
        %v901 = vsel %vm834, %v670, %v900
        %902 = vst [vmem:[%s831 + $0x6c] sm:$0xf] %v901
        %903 = vst [vmem:[%s831 + $0x70] sm:$0xf] %v679
        %v904 = vld [vmem:[%s831 + $0x74] sm:$0x1]
        %v905 = vsel %vm840, %v680, %v904
        %906 = vst [vmem:[%s831 + $0x74] sm:$0x1] %v905
        %v907 = vld [vmem:[%s831 + $0x78] sm:$0xf]
        %v908 = vsel %vm834, %v687, %v907
        %909 = vst [vmem:[%s831 + $0x78] sm:$0xf] %v908
        %910 = vst [vmem:[%s831 + $0x7c] sm:$0xf] %v696
        %v911 = vld [vmem:[%s831 + $0x80] sm:$0x1]
        %v912 = vsel %vm840, %v697, %v911
        %913 = vst [vmem:[%s831 + $0x80] sm:$0x1] %v912
        %v914 = vld [vmem:[%s831 + $0x84] sm:$0xf]
        %v915 = vsel %vm834, %v704, %v914
        %916 = vst [vmem:[%s831 + $0x84] sm:$0xf] %v915
        %917 = vst [vmem:[%s831 + $0x88] sm:$0xf] %v713
        %v918 = vld [vmem:[%s831 + $0x8c] sm:$0x1]
        %v919 = vsel %vm840, %v714, %v918
        %920 = vst [vmem:[%s831 + $0x8c] sm:$0x1] %v919
        %v921 = vld [vmem:[%s831 + $0x90] sm:$0xf]
        %v922 = vsel %vm834, %v721, %v921
        %923 = vst [vmem:[%s831 + $0x90] sm:$0xf] %v922
        %924 = vst [vmem:[%s831 + $0x94] sm:$0xf] %v730
        %v925 = vld [vmem:[%s831 + $0x98] sm:$0x1]
        %v926 = vsel %vm840, %v731, %v925
        %927 = vst [vmem:[%s831 + $0x98] sm:$0x1] %v926
        %v928 = vld [vmem:[%s831 + $0x9c] sm:$0xf]
        %v929 = vsel %vm834, %v738, %v928
        %930 = vst [vmem:[%s831 + $0x9c] sm:$0xf] %v929
        %931 = vst [vmem:[%s831 + $0xa0] sm:$0xf] %v747
        %v932 = vld [vmem:[%s831 + $0xa4] sm:$0x1]
        %v933 = vsel %vm840, %v748, %v932
        %934 = vst [vmem:[%s831 + $0xa4] sm:$0x1] %v933
        %v935 = vld [vmem:[%s831 + $0xa8] sm:$0xf]
        %v936 = vsel %vm834, %v755, %v935
        %937 = vst [vmem:[%s831 + $0xa8] sm:$0xf] %v936
        %938 = vst [vmem:[%s831 + $0xac] sm:$0xf] %v764
        %v939 = vld [vmem:[%s831 + $0xb0] sm:$0x1]
        %v940 = vsel %vm840, %v765, %v939
        %941 = vst [vmem:[%s831 + $0xb0] sm:$0x1] %v940
        %v942 = vld [vmem:[%s831 + $0xb4] sm:$0xf]
        %v943 = vsel %vm834, %v772, %v942
        %944 = vst [vmem:[%s831 + $0xb4] sm:$0xf] %v943
        %945 = vst [vmem:[%s831 + $0xb8] sm:$0xf] %v781
        %v946 = vld [vmem:[%s831 + $0xbc] sm:$0x1]
        %v947 = vsel %vm840, %v782, %v946
        %948 = vst [vmem:[%s831 + $0xbc] sm:$0x1] %v947
        %949 = vst [vmem:[#allocation3] sm:$0xff] 0.0
        %950 = vst [vmem:[#allocation3 + $0x8] sm:$0xff] 0.0
        %951 = vst [vmem:[#allocation3 + $0x10] sm:$0xff] 0.0
        %952 = vst [vmem:[#allocation3 + $0x18] sm:$0xff] 0.0
        %953 = vst [vmem:[#allocation3 + $0x20] sm:$0xff] 0.0
        %954 = vst [vmem:[#allocation3 + $0x28] sm:$0xff] 0.0
        %955 = vst [vmem:[#allocation3 + $0x30] sm:$0xff] 0.0
        %956 = vst [vmem:[#allocation3 + $0x38] sm:$0xff] 0.0
        %957 = vst [vmem:[#allocation3 + $0x40] sm:$0xff] 0.0
        %958 = vst [vmem:[#allocation3 + $0x48] sm:$0xff] 0.0
        %959 = vst [vmem:[#allocation3 + $0x50] sm:$0xff] 0.0
        %960 = vst [vmem:[#allocation3 + $0x58] sm:$0xff] 0.0
        %961 = vst [vmem:[#allocation3 + $0x60] sm:$0xff] 0.0
        %962 = vst [vmem:[#allocation3 + $0x68] sm:$0xff] 0.0
        %963 = vst [vmem:[#allocation3 + $0x70] sm:$0xff] 0.0
        %964 = vst [vmem:[#allocation3 + $0x78] sm:$0xff] 0.0
        %965 = vst [vmem:[#allocation3 + $0x80] sm:$0xff] 0.0
        %966 = vst [vmem:[#allocation3 + $0x88] sm:$0xff] 0.0
        %967 = vst [vmem:[#allocation3 + $0x90] sm:$0xff] 0.0
        %968 = vst [vmem:[#allocation3 + $0x98] sm:$0xff] 0.0
        %969 = vst [vmem:[#allocation3 + $0xa0] sm:$0xff] 0.0
        %970 = vst [vmem:[#allocation3 + $0xa8] sm:$0xff] 0.0
        %971 = vst [vmem:[#allocation3 + $0xb0] sm:$0xff] 0.0
        %972 = vst [vmem:[#allocation3 + $0xb8] sm:$0xff] 0.0
        %973 = vst [vmem:[#allocation3 + $0xc0] sm:$0xff] 0.0
        %974 = vst [vmem:[#allocation3 + $0xc8] sm:$0xff] 0.0
        %975 = vst [vmem:[#allocation3 + $0xd0] sm:$0xff] 0.0
        %976 = vst [vmem:[#allocation3 + $0xd8] sm:$0xff] 0.0
        %977 = vst [vmem:[#allocation3 + $0xe0] sm:$0xff] 0.0
        %978 = vst [vmem:[#allocation3 + $0xe8] sm:$0xff] 0.0
        %979 = vst [vmem:[#allocation3 + $0xf0] sm:$0xff] 0.0
        %980 = vst [vmem:[#allocation3 + $0xf8] sm:$0xff] 0.0
        %v981 = vld [vmem:[#allocation2] sm:$0xf]
        %v982 = vld [vmem:[#allocation2 + $0x4] sm:$0xf]
        %v983 = vld [vmem:[#allocation2 + $0xc] sm:$0xf]
        %v984 = vld [vmem:[#allocation2 + $0x10] sm:$0xf]
        %v985 = vld [vmem:[#allocation2 + $0x18] sm:$0xf]
        %v986 = vld [vmem:[#allocation2 + $0x1c] sm:$0xf]
        %v987 = vld [vmem:[#allocation2 + $0x24] sm:$0xf]
        %v988 = vld [vmem:[#allocation2 + $0x28] sm:$0xf]
        %v989 = vld [vmem:[#allocation2 + $0x30] sm:$0xf]
        %v990 = vld [vmem:[#allocation2 + $0x34] sm:$0xf]
        %v991 = vld [vmem:[#allocation2 + $0x3c] sm:$0xf]
        %v992 = vld [vmem:[#allocation2 + $0x40] sm:$0xf]
        %v993 = vld [vmem:[#allocation2 + $0x48] sm:$0xf]
        %v994 = vld [vmem:[#allocation2 + $0x4c] sm:$0xf]
        %v995 = vld [vmem:[#allocation2 + $0x54] sm:$0xf]
        %v996 = vld [vmem:[#allocation2 + $0x58] sm:$0xf]
        %v997 = vld [vmem:[#allocation2 + $0x60] sm:$0xf]
        %v998 = vld [vmem:[#allocation2 + $0x64] sm:$0xf]
        %v999 = vld [vmem:[#allocation2 + $0x6c] sm:$0xf]
        %v1000 = vld [vmem:[#allocation2 + $0x70] sm:$0xf]
        %v1001 = vld [vmem:[#allocation2 + $0x78] sm:$0xf]
        %v1002 = vld [vmem:[#allocation2 + $0x7c] sm:$0xf]
        %v1003 = vld [vmem:[#allocation2 + $0x84] sm:$0xf]
        %v1004 = vld [vmem:[#allocation2 + $0x88] sm:$0xf]
        %v1005 = vld [vmem:[#allocation2 + $0x90] sm:$0xf]
        %v1006 = vld [vmem:[#allocation2 + $0x94] sm:$0xf]
        %v1007 = vld [vmem:[#allocation2 + $0x9c] sm:$0xf]
        %v1008 = vld [vmem:[#allocation2 + $0xa0] sm:$0xf]
        %v1009 = vld [vmem:[#allocation2 + $0xa8] sm:$0xf]
        %v1010 = vld [vmem:[#allocation2 + $0xac] sm:$0xf]
        %v1011 = vld [vmem:[#allocation2 + $0xb4] sm:$0xf]
        %v1012 = vld [vmem:[#allocation2 + $0xb8] sm:$0xf]
        %v1013 = vld [vmem:[#allocation3] sm:$0xff]
        %v1014 = vld [vmem:[#allocation3 + $0x8] sm:$0xff]
        %v1015 = vld [vmem:[#allocation3 + $0x10] sm:$0xff]
        %v1016 = vld [vmem:[#allocation3 + $0x18] sm:$0xff]
        %v1017 = vld [vmem:[#allocation3 + $0x20] sm:$0xff]
        %v1018 = vld [vmem:[#allocation3 + $0x28] sm:$0xff]
        %v1019 = vld [vmem:[#allocation3 + $0x30] sm:$0xff]
        %v1020 = vld [vmem:[#allocation3 + $0x38] sm:$0xff]
        %v1021 = vld [vmem:[#allocation3 + $0x40] sm:$0xff]
        %v1022 = vld [vmem:[#allocation3 + $0x48] sm:$0xff]
        %v1023 = vld [vmem:[#allocation3 + $0x50] sm:$0xff]
        %v1024 = vld [vmem:[#allocation3 + $0x58] sm:$0xff]
        %v1025 = vld [vmem:[#allocation3 + $0x60] sm:$0xff]
        %v1026 = vld [vmem:[#allocation3 + $0x68] sm:$0xff]
        %v1027 = vld [vmem:[#allocation3 + $0x70] sm:$0xff]
        %v1028 = vld [vmem:[#allocation3 + $0x78] sm:$0xff]
        %v1029 = vld [vmem:[#allocation3 + $0x80] sm:$0xff]
        %v1030 = vld [vmem:[#allocation3 + $0x88] sm:$0xff]
        %v1031 = vld [vmem:[#allocation3 + $0x90] sm:$0xff]
        %v1032 = vld [vmem:[#allocation3 + $0x98] sm:$0xff]
        %v1033 = vld [vmem:[#allocation3 + $0xa0] sm:$0xff]
        %v1034 = vld [vmem:[#allocation3 + $0xa8] sm:$0xff]
        %v1035 = vld [vmem:[#allocation3 + $0xb0] sm:$0xff]
        %v1036 = vld [vmem:[#allocation3 + $0xb8] sm:$0xff]
        %v1037 = vld [vmem:[#allocation3 + $0xc0] sm:$0xff]
        %v1038 = vld [vmem:[#allocation3 + $0xc8] sm:$0xff]
        %v1039 = vld [vmem:[#allocation3 + $0xd0] sm:$0xff]
        %v1040 = vld [vmem:[#allocation3 + $0xd8] sm:$0xff]
        %v1041 = vld [vmem:[#allocation3 + $0xe0] sm:$0xff]
        %v1042 = vld [vmem:[#allocation3 + $0xe8] sm:$0xff]
        %v1043 = vld [vmem:[#allocation3 + $0xf0] sm:$0xff]
        %v1044 = vld [vmem:[#allocation3 + $0xf8] sm:$0xff]
        %v1045 = vld [vmem:[#allocation4] sm:$0xf]
        %v1046 = vld [vmem:[#allocation4 + $0x4] sm:$0xf]
        %v1047 = vld [vmem:[#allocation4 + $0x8] sm:$0xf]
        %v1048 = vld [vmem:[#allocation4 + $0xc] sm:$0xf]
        %v1049 = vld [vmem:[#allocation4 + $0x10] sm:$0xf]
        %v1050 = vld [vmem:[#allocation4 + $0x14] sm:$0xf]
        %v1051 = vld [vmem:[#allocation4 + $0x18] sm:$0xf]
        %v1052 = vld [vmem:[#allocation4 + $0x1c] sm:$0xf]
        %v1053 = vld [vmem:[#allocation4 + $0x20] sm:$0xf]
        %v1054 = vld [vmem:[#allocation4 + $0x24] sm:$0xf]
        %v1055 = vld [vmem:[#allocation4 + $0x28] sm:$0xf]
        %v1056 = vld [vmem:[#allocation4 + $0x2c] sm:$0xf]
        %v1057 = vld [vmem:[#allocation4 + $0x30] sm:$0xf]
        %v1058 = vld [vmem:[#allocation4 + $0x34] sm:$0xf]
        %v1059 = vld [vmem:[#allocation4 + $0x38] sm:$0xf]
        %v1060 = vld [vmem:[#allocation4 + $0x3c] sm:$0xf]
        %v1093 = vunpack.c.l.b16 %v981
        %v1094 = vunpack.c.l.b16 %v982
        %v1095 = vunpack.c.l.b16 %v983
        %v1096 = vunpack.c.l.b16 %v984
        %v1097 = vunpack.c.l.b16 %v985
        %v1098 = vunpack.c.l.b16 %v986
        %v1099 = vunpack.c.l.b16 %v987
        %v1100 = vunpack.c.l.b16 %v988
        %v1101 = vunpack.c.l.b16 %v989
        %v1102 = vunpack.c.l.b16 %v990
        %v1103 = vunpack.c.l.b16 %v991
        %v1104 = vunpack.c.l.b16 %v992
        %v1105 = vunpack.c.l.b16 %v993
        %v1106 = vunpack.c.l.b16 %v994
        %v1107 = vunpack.c.l.b16 %v995
        %v1108 = vunpack.c.l.b16 %v996
        %v1109 = vunpack.c.l.b16 %v997
        %v1110 = vunpack.c.l.b16 %v998
        %v1111 = vunpack.c.l.b16 %v999
        %v1112 = vunpack.c.l.b16 %v1000
        %v1113 = vunpack.c.l.b16 %v1001
        %v1114 = vunpack.c.l.b16 %v1002
        %v1115 = vunpack.c.l.b16 %v1003
        %v1116 = vunpack.c.l.b16 %v1004
        %v1117 = vunpack.c.l.b16 %v1005
        %v1118 = vunpack.c.l.b16 %v1006
        %v1119 = vunpack.c.l.b16 %v1007
        %v1120 = vunpack.c.l.b16 %v1008
        %v1121 = vunpack.c.l.b16 %v1009
        %v1122 = vunpack.c.l.b16 %v1010
        %v1123 = vunpack.c.l.b16 %v1011
        %v1124 = vunpack.c.l.b16 %v1012
        %v1125 = vpack.c.b16 %v1094, %v1093
        %v1126 = vpack.c.b16 %v1096, %v1095
        %v1127 = vpack.c.b16 %v1098, %v1097
        %v1128 = vpack.c.b16 %v1100, %v1099
        %v1129 = vpack.c.b16 %v1102, %v1101
        %v1130 = vpack.c.b16 %v1104, %v1103
        %v1131 = vpack.c.b16 %v1106, %v1105
        %v1132 = vpack.c.b16 %v1108, %v1107
        %v1133 = vpack.c.b16 %v1110, %v1109
        %v1134 = vpack.c.b16 %v1112, %v1111
        %v1135 = vpack.c.b16 %v1114, %v1113
        %v1136 = vpack.c.b16 %v1116, %v1115
        %v1137 = vpack.c.b16 %v1118, %v1117
        %v1138 = vpack.c.b16 %v1120, %v1119
        %v1139 = vpack.c.b16 %v1122, %v1121
        %v1140 = vpack.c.b16 %v1124, %v1123
        %v1173 = vunpack.c.l.b16 %v1045
        %v1174 = vunpack.c.l.b16 %v1046
        %v1175 = vunpack.c.l.b16 %v1047
        %v1176 = vunpack.c.l.b16 %v1048
        %v1177 = vunpack.c.l.b16 %v1049
        %v1178 = vunpack.c.l.b16 %v1050
        %v1179 = vunpack.c.l.b16 %v1051
        %v1180 = vunpack.c.l.b16 %v1052
        %v1181 = vunpack.c.l.b16 %v1053
        %v1182 = vunpack.c.l.b16 %v1054
        %v1183 = vunpack.c.l.b16 %v1055
        %v1184 = vunpack.c.l.b16 %v1056
        %v1185 = vunpack.c.l.b16 %v1057
        %v1186 = vunpack.c.l.b16 %v1058
        %v1187 = vunpack.c.l.b16 %v1059
        %v1188 = vunpack.c.l.b16 %v1060
        %v1189 = vpack.c.b16 %v1174, %v1173
        %v1190 = vpack.c.b16 %v1176, %v1175
        %v1191 = vpack.c.b16 %v1178, %v1177
        %v1192 = vpack.c.b16 %v1180, %v1179
        %v1193 = vpack.c.b16 %v1182, %v1181
        %v1194 = vpack.c.b16 %v1184, %v1183
        %v1195 = vpack.c.b16 %v1186, %v1185
        %v1196 = vpack.c.b16 %v1188, %v1187
        %1205 = vmatpush.bf16.msra.mxu0 %v1196
        %1206 = vmatpush.bf16.msra.mxu0 %v1195
        %1207 = vmatpush.bf16.msra.mxu0 %v1194
        %1208 = vmatpush.bf16.msra.mxu0 %v1193
        %1209 = vmatpush.bf16.msra.mxu0 %v1192
        %1210 = vmatpush.bf16.msra.mxu0 %v1191
        %1211 = vmatpush.bf16.msra.mxu0 %v1190
        %1212 = vmatpush.bf16.msra.mxu0 %v1189
        %1213 = vmatmul.bf16.gmra.mxu0 %v1125
        %v1214 = vpop.f32.mrf.mxu0
        %v1215 = vadd.f32 0.0, %v1214
        %v1216 = vpop.f32.mrf.mxu0
        %v1217 = vadd.f32 0.0, %v1216
        %1218 = vmatmul.bf16.gmra.mxu0 %v1126
        %v1219 = vpop.f32.mrf.mxu0
        %v1220 = vadd.f32 0.0, %v1219
        %v1221 = vpop.f32.mrf.mxu0
        %v1222 = vadd.f32 0.0, %v1221
        %1223 = vmatmul.bf16.gmra.mxu0 %v1127
        %v1224 = vpop.f32.mrf.mxu0
        %v1225 = vadd.f32 0.0, %v1224
        %v1226 = vpop.f32.mrf.mxu0
        %v1227 = vadd.f32 0.0, %v1226
        %1228 = vmatmul.bf16.gmra.mxu0 %v1128
        %v1229 = vpop.f32.mrf.mxu0
        %v1230 = vadd.f32 0.0, %v1229
        %v1231 = vpop.f32.mrf.mxu0
        %v1232 = vadd.f32 0.0, %v1231
        %1233 = vmatmul.bf16.gmra.mxu0 %v1129
        %v1234 = vpop.f32.mrf.mxu0
        %v1235 = vadd.f32 0.0, %v1234
        %v1236 = vpop.f32.mrf.mxu0
        %v1237 = vadd.f32 0.0, %v1236
        %1238 = vmatmul.bf16.gmra.mxu0 %v1130
        %v1239 = vpop.f32.mrf.mxu0
        %v1240 = vadd.f32 0.0, %v1239
        %v1241 = vpop.f32.mrf.mxu0
        %v1242 = vadd.f32 0.0, %v1241
        %1243 = vmatmul.bf16.gmra.mxu0 %v1131
        %v1244 = vpop.f32.mrf.mxu0
        %v1245 = vadd.f32 0.0, %v1244
        %v1246 = vpop.f32.mrf.mxu0
        %v1247 = vadd.f32 0.0, %v1246
        %1248 = vmatmul.bf16.gmra.mxu0 %v1132
        %v1249 = vpop.f32.mrf.mxu0
        %v1250 = vadd.f32 0.0, %v1249
        %v1251 = vpop.f32.mrf.mxu0
        %v1252 = vadd.f32 0.0, %v1251
        %1253 = vmatmul.bf16.gmra.mxu0 %v1133
        %v1254 = vpop.f32.mrf.mxu0
        %v1255 = vadd.f32 0.0, %v1254
        %v1256 = vpop.f32.mrf.mxu0
        %v1257 = vadd.f32 0.0, %v1256
        %1258 = vmatmul.bf16.gmra.mxu0 %v1134
        %v1259 = vpop.f32.mrf.mxu0
        %v1260 = vadd.f32 0.0, %v1259
        %v1261 = vpop.f32.mrf.mxu0
        %v1262 = vadd.f32 0.0, %v1261
        %1263 = vmatmul.bf16.gmra.mxu0 %v1135
        %v1264 = vpop.f32.mrf.mxu0
        %v1265 = vadd.f32 0.0, %v1264
        %v1266 = vpop.f32.mrf.mxu0
        %v1267 = vadd.f32 0.0, %v1266
        %1268 = vmatmul.bf16.gmra.mxu0 %v1136
        %v1269 = vpop.f32.mrf.mxu0
        %v1270 = vadd.f32 0.0, %v1269
        %v1271 = vpop.f32.mrf.mxu0
        %v1272 = vadd.f32 0.0, %v1271
        %1273 = vmatmul.bf16.gmra.mxu0 %v1137
        %v1274 = vpop.f32.mrf.mxu0
        %v1275 = vadd.f32 0.0, %v1274
        %v1276 = vpop.f32.mrf.mxu0
        %v1277 = vadd.f32 0.0, %v1276
        %1278 = vmatmul.bf16.gmra.mxu0 %v1138
        %v1279 = vpop.f32.mrf.mxu0
        %v1280 = vadd.f32 0.0, %v1279
        %v1281 = vpop.f32.mrf.mxu0
        %v1282 = vadd.f32 0.0, %v1281
        %1283 = vmatmul.bf16.gmra.mxu0 %v1139
        %v1284 = vpop.f32.mrf.mxu0
        %v1285 = vadd.f32 0.0, %v1284
        %v1286 = vpop.f32.mrf.mxu0
        %v1287 = vadd.f32 0.0, %v1286
        %1288 = vmatmul.bf16.gmra.mxu0 %v1140
        %v1289 = vpop.f32.mrf.mxu0
        %v1290 = vadd.f32 0.0, %v1289
        %v1291 = vpop.f32.mrf.mxu0
        %v1292 = vadd.f32 0.0, %v1291
        %1293 = vdwg.mxu0
        %v1294 = vadd.f32 %v1013, %v1215
        %v1295 = vadd.f32 %v1014, %v1217
        %v1296 = vadd.f32 %v1015, %v1220
        %v1297 = vadd.f32 %v1016, %v1222
        %v1298 = vadd.f32 %v1017, %v1225
        %v1299 = vadd.f32 %v1018, %v1227
        %v1300 = vadd.f32 %v1019, %v1230
        %v1301 = vadd.f32 %v1020, %v1232
        %v1302 = vadd.f32 %v1021, %v1235
        %v1303 = vadd.f32 %v1022, %v1237
        %v1304 = vadd.f32 %v1023, %v1240
        %v1305 = vadd.f32 %v1024, %v1242
        %v1306 = vadd.f32 %v1025, %v1245
        %v1307 = vadd.f32 %v1026, %v1247
        %v1308 = vadd.f32 %v1027, %v1250
        %v1309 = vadd.f32 %v1028, %v1252
        %v1310 = vadd.f32 %v1029, %v1255
        %v1311 = vadd.f32 %v1030, %v1257
        %v1312 = vadd.f32 %v1031, %v1260
        %v1313 = vadd.f32 %v1032, %v1262
        %v1314 = vadd.f32 %v1033, %v1265
        %v1315 = vadd.f32 %v1034, %v1267
        %v1316 = vadd.f32 %v1035, %v1270
        %v1317 = vadd.f32 %v1036, %v1272
        %v1318 = vadd.f32 %v1037, %v1275
        %v1319 = vadd.f32 %v1038, %v1277
        %v1320 = vadd.f32 %v1039, %v1280
        %v1321 = vadd.f32 %v1040, %v1282
        %v1322 = vadd.f32 %v1041, %v1285
        %v1323 = vadd.f32 %v1042, %v1287
        %v1324 = vadd.f32 %v1043, %v1290
        %v1325 = vadd.f32 %v1044, %v1292
        %1326 = vst [vmem:[#allocation3] sm:$0xff] %v1294
        %1327 = vst [vmem:[#allocation3 + $0x8] sm:$0xff] %v1295
        %1328 = vst [vmem:[#allocation3 + $0x10] sm:$0xff] %v1296
        %1329 = vst [vmem:[#allocation3 + $0x18] sm:$0xff] %v1297
        %1330 = vst [vmem:[#allocation3 + $0x20] sm:$0xff] %v1298
        %1331 = vst [vmem:[#allocation3 + $0x28] sm:$0xff] %v1299
        %1332 = vst [vmem:[#allocation3 + $0x30] sm:$0xff] %v1300
        %1333 = vst [vmem:[#allocation3 + $0x38] sm:$0xff] %v1301
        %1334 = vst [vmem:[#allocation3 + $0x40] sm:$0xff] %v1302
        %1335 = vst [vmem:[#allocation3 + $0x48] sm:$0xff] %v1303
        %1336 = vst [vmem:[#allocation3 + $0x50] sm:$0xff] %v1304
        %1337 = vst [vmem:[#allocation3 + $0x58] sm:$0xff] %v1305
        %1338 = vst [vmem:[#allocation3 + $0x60] sm:$0xff] %v1306
        %1339 = vst [vmem:[#allocation3 + $0x68] sm:$0xff] %v1307
        %1340 = vst [vmem:[#allocation3 + $0x70] sm:$0xff] %v1308
        %1341 = vst [vmem:[#allocation3 + $0x78] sm:$0xff] %v1309
        %1342 = vst [vmem:[#allocation3 + $0x80] sm:$0xff] %v1310
        %1343 = vst [vmem:[#allocation3 + $0x88] sm:$0xff] %v1311
        %1344 = vst [vmem:[#allocation3 + $0x90] sm:$0xff] %v1312
        %1345 = vst [vmem:[#allocation3 + $0x98] sm:$0xff] %v1313
        %1346 = vst [vmem:[#allocation3 + $0xa0] sm:$0xff] %v1314
        %1347 = vst [vmem:[#allocation3 + $0xa8] sm:$0xff] %v1315
        %1348 = vst [vmem:[#allocation3 + $0xb0] sm:$0xff] %v1316
        %1349 = vst [vmem:[#allocation3 + $0xb8] sm:$0xff] %v1317
        %1350 = vst [vmem:[#allocation3 + $0xc0] sm:$0xff] %v1318
        %1351 = vst [vmem:[#allocation3 + $0xc8] sm:$0xff] %v1319
        %1352 = vst [vmem:[#allocation3 + $0xd0] sm:$0xff] %v1320
        %1353 = vst [vmem:[#allocation3 + $0xd8] sm:$0xff] %v1321
        %1354 = vst [vmem:[#allocation3 + $0xe0] sm:$0xff] %v1322
        %1355 = vst [vmem:[#allocation3 + $0xe8] sm:$0xff] %v1323
        %1356 = vst [vmem:[#allocation3 + $0xf0] sm:$0xff] %v1324
        %1357 = vst [vmem:[#allocation3 + $0xf8] sm:$0xff] %v1325
        %v1358 = vld [vmem:[#allocation2] sm:$0xf]
        %v1359 = vld [vmem:[#allocation2 + $0x4] sm:$0xf]
        %v1360 = vld [vmem:[#allocation2 + $0x8] sm:$0x1]
        %v1361 = vld [vmem:[#allocation2 + $0xc] sm:$0xf]
        %v1362 = vld [vmem:[#allocation2 + $0x10] sm:$0xf]
        %v1363 = vld [vmem:[#allocation2 + $0x14] sm:$0x1]
        %v1364 = vld [vmem:[#allocation2 + $0x18] sm:$0xf]
        %v1365 = vld [vmem:[#allocation2 + $0x1c] sm:$0xf]
        %v1366 = vld [vmem:[#allocation2 + $0x20] sm:$0x1]
        %v1367 = vld [vmem:[#allocation2 + $0x24] sm:$0xf]
        %v1368 = vld [vmem:[#allocation2 + $0x28] sm:$0xf]
        %v1369 = vld [vmem:[#allocation2 + $0x2c] sm:$0x1]
        %v1370 = vld [vmem:[#allocation2 + $0x30] sm:$0xf]
        %v1371 = vld [vmem:[#allocation2 + $0x34] sm:$0xf]
        %v1372 = vld [vmem:[#allocation2 + $0x38] sm:$0x1]
        %v1373 = vld [vmem:[#allocation2 + $0x3c] sm:$0xf]
        %v1374 = vld [vmem:[#allocation2 + $0x40] sm:$0xf]
        %v1375 = vld [vmem:[#allocation2 + $0x44] sm:$0x1]
        %v1376 = vld [vmem:[#allocation2 + $0x48] sm:$0xf]
        %v1377 = vld [vmem:[#allocation2 + $0x4c] sm:$0xf]
        %v1378 = vld [vmem:[#allocation2 + $0x50] sm:$0x1]
        %v1379 = vld [vmem:[#allocation2 + $0x54] sm:$0xf]
        %v1380 = vld [vmem:[#allocation2 + $0x58] sm:$0xf]
        %v1381 = vld [vmem:[#allocation2 + $0x5c] sm:$0x1]
        %v1382 = vld [vmem:[#allocation2 + $0x60] sm:$0xf]
        %v1383 = vld [vmem:[#allocation2 + $0x64] sm:$0xf]
        %v1384 = vld [vmem:[#allocation2 + $0x68] sm:$0x1]
        %v1385 = vld [vmem:[#allocation2 + $0x6c] sm:$0xf]
        %v1386 = vld [vmem:[#allocation2 + $0x70] sm:$0xf]
        %v1387 = vld [vmem:[#allocation2 + $0x74] sm:$0x1]
        %v1388 = vld [vmem:[#allocation2 + $0x78] sm:$0xf]
        %v1389 = vld [vmem:[#allocation2 + $0x7c] sm:$0xf]
        %v1390 = vld [vmem:[#allocation2 + $0x80] sm:$0x1]
        %v1391 = vld [vmem:[#allocation2 + $0x84] sm:$0xf]
        %v1392 = vld [vmem:[#allocation2 + $0x88] sm:$0xf]
        %v1393 = vld [vmem:[#allocation2 + $0x8c] sm:$0x1]
        %v1394 = vld [vmem:[#allocation2 + $0x90] sm:$0xf]
        %v1395 = vld [vmem:[#allocation2 + $0x94] sm:$0xf]
        %v1396 = vld [vmem:[#allocation2 + $0x98] sm:$0x1]
        %v1397 = vld [vmem:[#allocation2 + $0x9c] sm:$0xf]
        %v1398 = vld [vmem:[#allocation2 + $0xa0] sm:$0xf]
        %v1399 = vld [vmem:[#allocation2 + $0xa4] sm:$0x1]
        %v1400 = vld [vmem:[#allocation2 + $0xa8] sm:$0xf]
        %v1401 = vld [vmem:[#allocation2 + $0xac] sm:$0xf]
        %v1402 = vld [vmem:[#allocation2 + $0xb0] sm:$0x1]
        %v1403 = vld [vmem:[#allocation2 + $0xb4] sm:$0xf]
        %v1404 = vld [vmem:[#allocation2 + $0xb8] sm:$0xf]
        %v1405 = vld [vmem:[#allocation2 + $0xbc] sm:$0x1]
        %vm1406 = vsmask.f32 3328
        %vm1407 = vsmask.f32 7440
        %vm1408 = vmor %vm1406, %vm1407
        %v1410 = vshrl.u32 %v1358, 16
        %v1412 = vrot.slane %v1410, 4
        %v1413 = vshll.u32 %v1358, 16
        %v1415 = vrot.slane %v1413, 5
        %v1416 = vor.u32 %v1412, %v1415
        %v1417 = vrot.slane %v1416, 4
        %v1419 = vshll.u32 %v1359, 16
        %v1421 = vrot.slane %v1419, 5
        %v1422 = vsel %vm1408, %v1417, %v1421
        %v1423 = vshrl.u32 %v1359, 16
        %v1425 = vrot.slane %v1423, 4
        %v1426 = vor.u32 %v1425, %v1421
        %v1427 = vrot.slane %v1426, 4
        %v1429 = vshll.u32 %v1360, 16
        %v1431 = vrot.slane %v1429, 5
        %v1432 = vsel %vm1408, %v1427, %v1431
        %v1434 = vshrl.u32 %v1361, 16
        %v1436 = vrot.slane %v1434, 4
        %v1437 = vshll.u32 %v1361, 16
        %v1439 = vrot.slane %v1437, 5
        %v1440 = vor.u32 %v1436, %v1439
        %v1441 = vrot.slane %v1440, 4
        %v1443 = vshll.u32 %v1362, 16
        %v1445 = vrot.slane %v1443, 5
        %v1446 = vsel %vm1408, %v1441, %v1445
        %v1447 = vshrl.u32 %v1362, 16
        %v1449 = vrot.slane %v1447, 4
        %v1450 = vor.u32 %v1449, %v1445
        %v1451 = vrot.slane %v1450, 4
        %v1453 = vshll.u32 %v1363, 16
        %v1455 = vrot.slane %v1453, 5
        %v1456 = vsel %vm1408, %v1451, %v1455
        %v1458 = vshrl.u32 %v1364, 16
        %v1460 = vrot.slane %v1458, 4
        %v1461 = vshll.u32 %v1364, 16
        %v1463 = vrot.slane %v1461, 5
        %v1464 = vor.u32 %v1460, %v1463
        %v1465 = vrot.slane %v1464, 4
        %v1467 = vshll.u32 %v1365, 16
        %v1469 = vrot.slane %v1467, 5
        %v1470 = vsel %vm1408, %v1465, %v1469
        %v1471 = vshrl.u32 %v1365, 16
        %v1473 = vrot.slane %v1471, 4
        %v1474 = vor.u32 %v1473, %v1469
        %v1475 = vrot.slane %v1474, 4
        %v1477 = vshll.u32 %v1366, 16
        %v1479 = vrot.slane %v1477, 5
        %v1480 = vsel %vm1408, %v1475, %v1479
        %v1482 = vshrl.u32 %v1367, 16
        %v1484 = vrot.slane %v1482, 4
        %v1485 = vshll.u32 %v1367, 16
        %v1487 = vrot.slane %v1485, 5
        %v1488 = vor.u32 %v1484, %v1487
        %v1489 = vrot.slane %v1488, 4
        %v1491 = vshll.u32 %v1368, 16
        %v1493 = vrot.slane %v1491, 5
        %v1494 = vsel %vm1408, %v1489, %v1493
        %v1495 = vshrl.u32 %v1368, 16
        %v1497 = vrot.slane %v1495, 4
        %v1498 = vor.u32 %v1497, %v1493
        %v1499 = vrot.slane %v1498, 4
        %v1501 = vshll.u32 %v1369, 16
        %v1503 = vrot.slane %v1501, 5
        %v1504 = vsel %vm1408, %v1499, %v1503
        %v1506 = vshrl.u32 %v1370, 16
        %v1508 = vrot.slane %v1506, 4
        %v1509 = vshll.u32 %v1370, 16
        %v1511 = vrot.slane %v1509, 5
        %v1512 = vor.u32 %v1508, %v1511
        %v1513 = vrot.slane %v1512, 4
        %v1515 = vshll.u32 %v1371, 16
        %v1517 = vrot.slane %v1515, 5
        %v1518 = vsel %vm1408, %v1513, %v1517
        %v1519 = vshrl.u32 %v1371, 16
        %v1521 = vrot.slane %v1519, 4
        %v1522 = vor.u32 %v1521, %v1517
        %v1523 = vrot.slane %v1522, 4
        %v1525 = vshll.u32 %v1372, 16
        %v1527 = vrot.slane %v1525, 5
        %v1528 = vsel %vm1408, %v1523, %v1527
        %v1530 = vshrl.u32 %v1373, 16
        %v1532 = vrot.slane %v1530, 4
        %v1533 = vshll.u32 %v1373, 16
        %v1535 = vrot.slane %v1533, 5
        %v1536 = vor.u32 %v1532, %v1535
        %v1537 = vrot.slane %v1536, 4
        %v1539 = vshll.u32 %v1374, 16
        %v1541 = vrot.slane %v1539, 5
        %v1542 = vsel %vm1408, %v1537, %v1541
        %v1543 = vshrl.u32 %v1374, 16
        %v1545 = vrot.slane %v1543, 4
        %v1546 = vor.u32 %v1545, %v1541
        %v1547 = vrot.slane %v1546, 4
        %v1549 = vshll.u32 %v1375, 16
        %v1551 = vrot.slane %v1549, 5
        %v1552 = vsel %vm1408, %v1547, %v1551
        %v1554 = vshrl.u32 %v1376, 16
        %v1556 = vrot.slane %v1554, 4
        %v1557 = vshll.u32 %v1376, 16
        %v1559 = vrot.slane %v1557, 5
        %v1560 = vor.u32 %v1556, %v1559
        %v1561 = vrot.slane %v1560, 4
        %v1563 = vshll.u32 %v1377, 16
        %v1565 = vrot.slane %v1563, 5
        %v1566 = vsel %vm1408, %v1561, %v1565
        %v1567 = vshrl.u32 %v1377, 16
        %v1569 = vrot.slane %v1567, 4
        %v1570 = vor.u32 %v1569, %v1565
        %v1571 = vrot.slane %v1570, 4
        %v1573 = vshll.u32 %v1378, 16
        %v1575 = vrot.slane %v1573, 5
        %v1576 = vsel %vm1408, %v1571, %v1575
        %v1578 = vshrl.u32 %v1379, 16
        %v1580 = vrot.slane %v1578, 4
        %v1581 = vshll.u32 %v1379, 16
        %v1583 = vrot.slane %v1581, 5
        %v1584 = vor.u32 %v1580, %v1583
        %v1585 = vrot.slane %v1584, 4
        %v1587 = vshll.u32 %v1380, 16
        %v1589 = vrot.slane %v1587, 5
        %v1590 = vsel %vm1408, %v1585, %v1589
        %v1591 = vshrl.u32 %v1380, 16
        %v1593 = vrot.slane %v1591, 4
        %v1594 = vor.u32 %v1593, %v1589
        %v1595 = vrot.slane %v1594, 4
        %v1597 = vshll.u32 %v1381, 16
        %v1599 = vrot.slane %v1597, 5
        %v1600 = vsel %vm1408, %v1595, %v1599
        %v1602 = vshrl.u32 %v1382, 16
        %v1604 = vrot.slane %v1602, 4
        %v1605 = vshll.u32 %v1382, 16
        %v1607 = vrot.slane %v1605, 5
        %v1608 = vor.u32 %v1604, %v1607
        %v1609 = vrot.slane %v1608, 4
        %v1611 = vshll.u32 %v1383, 16
        %v1613 = vrot.slane %v1611, 5
        %v1614 = vsel %vm1408, %v1609, %v1613
        %v1615 = vshrl.u32 %v1383, 16
        %v1617 = vrot.slane %v1615, 4
        %v1618 = vor.u32 %v1617, %v1613
        %v1619 = vrot.slane %v1618, 4
        %v1621 = vshll.u32 %v1384, 16
        %v1623 = vrot.slane %v1621, 5
        %v1624 = vsel %vm1408, %v1619, %v1623
        %v1626 = vshrl.u32 %v1385, 16
        %v1628 = vrot.slane %v1626, 4
        %v1629 = vshll.u32 %v1385, 16
        %v1631 = vrot.slane %v1629, 5
        %v1632 = vor.u32 %v1628, %v1631
        %v1633 = vrot.slane %v1632, 4
        %v1635 = vshll.u32 %v1386, 16
        %v1637 = vrot.slane %v1635, 5
        %v1638 = vsel %vm1408, %v1633, %v1637
        %v1639 = vshrl.u32 %v1386, 16
        %v1641 = vrot.slane %v1639, 4
        %v1642 = vor.u32 %v1641, %v1637
        %v1643 = vrot.slane %v1642, 4
        %v1645 = vshll.u32 %v1387, 16
        %v1647 = vrot.slane %v1645, 5
        %v1648 = vsel %vm1408, %v1643, %v1647
        %v1650 = vshrl.u32 %v1388, 16
        %v1652 = vrot.slane %v1650, 4
        %v1653 = vshll.u32 %v1388, 16
        %v1655 = vrot.slane %v1653, 5
        %v1656 = vor.u32 %v1652, %v1655
        %v1657 = vrot.slane %v1656, 4
        %v1659 = vshll.u32 %v1389, 16
        %v1661 = vrot.slane %v1659, 5
        %v1662 = vsel %vm1408, %v1657, %v1661
        %v1663 = vshrl.u32 %v1389, 16
        %v1665 = vrot.slane %v1663, 4
        %v1666 = vor.u32 %v1665, %v1661
        %v1667 = vrot.slane %v1666, 4
        %v1669 = vshll.u32 %v1390, 16
        %v1671 = vrot.slane %v1669, 5
        %v1672 = vsel %vm1408, %v1667, %v1671
        %v1674 = vshrl.u32 %v1391, 16
        %v1676 = vrot.slane %v1674, 4
        %v1677 = vshll.u32 %v1391, 16
        %v1679 = vrot.slane %v1677, 5
        %v1680 = vor.u32 %v1676, %v1679
        %v1681 = vrot.slane %v1680, 4
        %v1683 = vshll.u32 %v1392, 16
        %v1685 = vrot.slane %v1683, 5
        %v1686 = vsel %vm1408, %v1681, %v1685
        %v1687 = vshrl.u32 %v1392, 16
        %v1689 = vrot.slane %v1687, 4
        %v1690 = vor.u32 %v1689, %v1685
        %v1691 = vrot.slane %v1690, 4
        %v1693 = vshll.u32 %v1393, 16
        %v1695 = vrot.slane %v1693, 5
        %v1696 = vsel %vm1408, %v1691, %v1695
        %v1698 = vshrl.u32 %v1394, 16
        %v1700 = vrot.slane %v1698, 4
        %v1701 = vshll.u32 %v1394, 16
        %v1703 = vrot.slane %v1701, 5
        %v1704 = vor.u32 %v1700, %v1703
        %v1705 = vrot.slane %v1704, 4
        %v1707 = vshll.u32 %v1395, 16
        %v1709 = vrot.slane %v1707, 5
        %v1710 = vsel %vm1408, %v1705, %v1709
        %v1711 = vshrl.u32 %v1395, 16
        %v1713 = vrot.slane %v1711, 4
        %v1714 = vor.u32 %v1713, %v1709
        %v1715 = vrot.slane %v1714, 4
        %v1717 = vshll.u32 %v1396, 16
        %v1719 = vrot.slane %v1717, 5
        %v1720 = vsel %vm1408, %v1715, %v1719
        %v1722 = vshrl.u32 %v1397, 16
        %v1724 = vrot.slane %v1722, 4
        %v1725 = vshll.u32 %v1397, 16
        %v1727 = vrot.slane %v1725, 5
        %v1728 = vor.u32 %v1724, %v1727
        %v1729 = vrot.slane %v1728, 4
        %v1731 = vshll.u32 %v1398, 16
        %v1733 = vrot.slane %v1731, 5
        %v1734 = vsel %vm1408, %v1729, %v1733
        %v1735 = vshrl.u32 %v1398, 16
        %v1737 = vrot.slane %v1735, 4
        %v1738 = vor.u32 %v1737, %v1733
        %v1739 = vrot.slane %v1738, 4
        %v1741 = vshll.u32 %v1399, 16
        %v1743 = vrot.slane %v1741, 5
        %v1744 = vsel %vm1408, %v1739, %v1743
        %v1746 = vshrl.u32 %v1400, 16
        %v1748 = vrot.slane %v1746, 4
        %v1749 = vshll.u32 %v1400, 16
        %v1751 = vrot.slane %v1749, 5
        %v1752 = vor.u32 %v1748, %v1751
        %v1753 = vrot.slane %v1752, 4
        %v1755 = vshll.u32 %v1401, 16
        %v1757 = vrot.slane %v1755, 5
        %v1758 = vsel %vm1408, %v1753, %v1757
        %v1759 = vshrl.u32 %v1401, 16
        %v1761 = vrot.slane %v1759, 4
        %v1762 = vor.u32 %v1761, %v1757
        %v1763 = vrot.slane %v1762, 4
        %v1765 = vshll.u32 %v1402, 16
        %v1767 = vrot.slane %v1765, 5
        %v1768 = vsel %vm1408, %v1763, %v1767
        %v1770 = vshrl.u32 %v1403, 16
        %v1772 = vrot.slane %v1770, 4
        %v1773 = vshll.u32 %v1403, 16
        %v1775 = vrot.slane %v1773, 5
        %v1776 = vor.u32 %v1772, %v1775
        %v1777 = vrot.slane %v1776, 4
        %v1779 = vshll.u32 %v1404, 16
        %v1781 = vrot.slane %v1779, 5
        %v1782 = vsel %vm1408, %v1777, %v1781
        %v1783 = vshrl.u32 %v1404, 16
        %v1785 = vrot.slane %v1783, 4
        %v1786 = vor.u32 %v1785, %v1781
        %v1787 = vrot.slane %v1786, 4
        %v1789 = vshll.u32 %v1405, 16
        %v1791 = vrot.slane %v1789, 5
        %v1792 = vsel %vm1408, %v1787, %v1791
        %v1793 = vld [vmem:[#allocation3] sm:$0xff]
        %v1794 = vld [vmem:[#allocation3 + $0x8] sm:$0xff]
        %v1795 = vld [vmem:[#allocation3 + $0x10] sm:$0xff]
        %v1796 = vld [vmem:[#allocation3 + $0x18] sm:$0xff]
        %v1797 = vld [vmem:[#allocation3 + $0x20] sm:$0xff]
        %v1798 = vld [vmem:[#allocation3 + $0x28] sm:$0xff]
        %v1799 = vld [vmem:[#allocation3 + $0x30] sm:$0xff]
        %v1800 = vld [vmem:[#allocation3 + $0x38] sm:$0xff]
        %v1801 = vld [vmem:[#allocation3 + $0x40] sm:$0xff]
        %v1802 = vld [vmem:[#allocation3 + $0x48] sm:$0xff]
        %v1803 = vld [vmem:[#allocation3 + $0x50] sm:$0xff]
        %v1804 = vld [vmem:[#allocation3 + $0x58] sm:$0xff]
        %v1805 = vld [vmem:[#allocation3 + $0x60] sm:$0xff]
        %v1806 = vld [vmem:[#allocation3 + $0x68] sm:$0xff]
        %v1807 = vld [vmem:[#allocation3 + $0x70] sm:$0xff]
        %v1808 = vld [vmem:[#allocation3 + $0x78] sm:$0xff]
        %v1809 = vld [vmem:[#allocation3 + $0x80] sm:$0xff]
        %v1810 = vld [vmem:[#allocation3 + $0x88] sm:$0xff]
        %v1811 = vld [vmem:[#allocation3 + $0x90] sm:$0xff]
        %v1812 = vld [vmem:[#allocation3 + $0x98] sm:$0xff]
        %v1813 = vld [vmem:[#allocation3 + $0xa0] sm:$0xff]
        %v1814 = vld [vmem:[#allocation3 + $0xa8] sm:$0xff]
        %v1815 = vld [vmem:[#allocation3 + $0xb0] sm:$0xff]
        %v1816 = vld [vmem:[#allocation3 + $0xb8] sm:$0xff]
        %v1817 = vld [vmem:[#allocation3 + $0xc0] sm:$0xff]
        %v1818 = vld [vmem:[#allocation3 + $0xc8] sm:$0xff]
        %v1819 = vld [vmem:[#allocation3 + $0xd0] sm:$0xff]
        %v1820 = vld [vmem:[#allocation3 + $0xd8] sm:$0xff]
        %v1821 = vld [vmem:[#allocation3 + $0xe0] sm:$0xff]
        %v1822 = vld [vmem:[#allocation3 + $0xe8] sm:$0xff]
        %v1823 = vld [vmem:[#allocation3 + $0xf0] sm:$0xff]
        %v1824 = vld [vmem:[#allocation3 + $0xf8] sm:$0xff]
        %s1825 = scalar_lea.vmem [#allocation4], 64
        %v1826 = vld [vmem:[%s1825] sm:$0xf]
        %v1827 = vld [vmem:[%s1825 + $0x4] sm:$0xf]
        %v1828 = vld [vmem:[%s1825 + $0x8] sm:$0xf]
        %v1829 = vld [vmem:[%s1825 + $0xc] sm:$0xf]
        %v1830 = vld [vmem:[%s1825 + $0x10] sm:$0xf]
        %v1831 = vld [vmem:[%s1825 + $0x14] sm:$0xf]
        %v1832 = vld [vmem:[%s1825 + $0x18] sm:$0xf]
        %v1833 = vld [vmem:[%s1825 + $0x1c] sm:$0xf]
        %v1834 = vld [vmem:[%s1825 + $0x20] sm:$0xf]
        %v1835 = vld [vmem:[%s1825 + $0x24] sm:$0xf]
        %v1836 = vld [vmem:[%s1825 + $0x28] sm:$0xf]
        %v1837 = vld [vmem:[%s1825 + $0x2c] sm:$0xf]
        %v1838 = vld [vmem:[%s1825 + $0x30] sm:$0xf]
        %v1839 = vld [vmem:[%s1825 + $0x34] sm:$0xf]
        %v1840 = vld [vmem:[%s1825 + $0x38] sm:$0xf]
        %v1841 = vld [vmem:[%s1825 + $0x3c] sm:$0xf]
        %v1842 = vunpack.c.l.b16 %v1422
        %v1843 = vunpack.c.l.b16 %v1432
        %v1844 = vunpack.c.l.b16 %v1446
        %v1845 = vunpack.c.l.b16 %v1456
        %v1846 = vunpack.c.l.b16 %v1470
        %v1847 = vunpack.c.l.b16 %v1480
        %v1848 = vunpack.c.l.b16 %v1494
        %v1849 = vunpack.c.l.b16 %v1504
        %v1850 = vunpack.c.l.b16 %v1518
        %v1851 = vunpack.c.l.b16 %v1528
        %v1852 = vunpack.c.l.b16 %v1542
        %v1853 = vunpack.c.l.b16 %v1552
        %v1854 = vunpack.c.l.b16 %v1566
        %v1855 = vunpack.c.l.b16 %v1576
        %v1856 = vunpack.c.l.b16 %v1590
        %v1857 = vunpack.c.l.b16 %v1600
        %v1858 = vunpack.c.l.b16 %v1614
        %v1859 = vunpack.c.l.b16 %v1624
        %v1860 = vunpack.c.l.b16 %v1638
        %v1861 = vunpack.c.l.b16 %v1648
        %v1862 = vunpack.c.l.b16 %v1662
        %v1863 = vunpack.c.l.b16 %v1672
        %v1864 = vunpack.c.l.b16 %v1686
        %v1865 = vunpack.c.l.b16 %v1696
        %v1866 = vunpack.c.l.b16 %v1710
        %v1867 = vunpack.c.l.b16 %v1720
        %v1868 = vunpack.c.l.b16 %v1734
        %v1869 = vunpack.c.l.b16 %v1744
        %v1870 = vunpack.c.l.b16 %v1758
        %v1871 = vunpack.c.l.b16 %v1768
        %v1872 = vunpack.c.l.b16 %v1782
        %v1873 = vunpack.c.l.b16 %v1792
        %v1874 = vpack.c.b16 %v1843, %v1842
        %v1875 = vpack.c.b16 %v1845, %v1844
        %v1876 = vpack.c.b16 %v1847, %v1846
        %v1877 = vpack.c.b16 %v1849, %v1848
        %v1878 = vpack.c.b16 %v1851, %v1850
        %v1879 = vpack.c.b16 %v1853, %v1852
        %v1880 = vpack.c.b16 %v1855, %v1854
        %v1881 = vpack.c.b16 %v1857, %v1856
        %v1882 = vpack.c.b16 %v1859, %v1858
        %v1883 = vpack.c.b16 %v1861, %v1860
        %v1884 = vpack.c.b16 %v1863, %v1862
        %v1885 = vpack.c.b16 %v1865, %v1864
        %v1886 = vpack.c.b16 %v1867, %v1866
        %v1887 = vpack.c.b16 %v1869, %v1868
        %v1888 = vpack.c.b16 %v1871, %v1870
        %v1889 = vpack.c.b16 %v1873, %v1872
        %v1922 = vunpack.c.l.b16 %v1826
        %v1923 = vunpack.c.l.b16 %v1827
        %v1924 = vunpack.c.l.b16 %v1828
        %v1925 = vunpack.c.l.b16 %v1829
        %v1926 = vunpack.c.l.b16 %v1830
        %v1927 = vunpack.c.l.b16 %v1831
        %v1928 = vunpack.c.l.b16 %v1832
        %v1929 = vunpack.c.l.b16 %v1833
        %v1930 = vunpack.c.l.b16 %v1834
        %v1931 = vunpack.c.l.b16 %v1835
        %v1932 = vunpack.c.l.b16 %v1836
        %v1933 = vunpack.c.l.b16 %v1837
        %v1934 = vunpack.c.l.b16 %v1838
        %v1935 = vunpack.c.l.b16 %v1839
        %v1936 = vunpack.c.l.b16 %v1840
        %v1937 = vunpack.c.l.b16 %v1841
        %v1938 = vpack.c.b16 %v1923, %v1922
        %v1939 = vpack.c.b16 %v1925, %v1924
        %v1940 = vpack.c.b16 %v1927, %v1926
        %v1941 = vpack.c.b16 %v1929, %v1928
        %v1942 = vpack.c.b16 %v1931, %v1930
        %v1943 = vpack.c.b16 %v1933, %v1932
        %v1944 = vpack.c.b16 %v1935, %v1934
        %v1945 = vpack.c.b16 %v1937, %v1936
        %1954 = vmatpush.bf16.msra.mxu0 %v1945
        %1955 = vmatpush.bf16.msra.mxu0 %v1944
        %1956 = vmatpush.bf16.msra.mxu0 %v1943
        %1957 = vmatpush.bf16.msra.mxu0 %v1942
        %1958 = vmatpush.bf16.msra.mxu0 %v1941
        %1959 = vmatpush.bf16.msra.mxu0 %v1940
        %1960 = vmatpush.bf16.msra.mxu0 %v1939
        %1961 = vmatpush.bf16.msra.mxu0 %v1938
        %1962 = vmatmul.bf16.gmra.mxu0 %v1874
        %v1963 = vpop.f32.mrf.mxu0
        %v1964 = vadd.f32 0.0, %v1963
        %v1965 = vpop.f32.mrf.mxu0
        %v1966 = vadd.f32 0.0, %v1965
        %1967 = vmatmul.bf16.gmra.mxu0 %v1875
        %v1968 = vpop.f32.mrf.mxu0
        %v1969 = vadd.f32 0.0, %v1968
        %v1970 = vpop.f32.mrf.mxu0
        %v1971 = vadd.f32 0.0, %v1970
        %1972 = vmatmul.bf16.gmra.mxu0 %v1876
        %v1973 = vpop.f32.mrf.mxu0
        %v1974 = vadd.f32 0.0, %v1973
        %v1975 = vpop.f32.mrf.mxu0
        %v1976 = vadd.f32 0.0, %v1975
        %1977 = vmatmul.bf16.gmra.mxu0 %v1877
        %v1978 = vpop.f32.mrf.mxu0
        %v1979 = vadd.f32 0.0, %v1978
        %v1980 = vpop.f32.mrf.mxu0
        %v1981 = vadd.f32 0.0, %v1980
        %1982 = vmatmul.bf16.gmra.mxu0 %v1878
        %v1983 = vpop.f32.mrf.mxu0
        %v1984 = vadd.f32 0.0, %v1983
        %v1985 = vpop.f32.mrf.mxu0
        %v1986 = vadd.f32 0.0, %v1985
        %1987 = vmatmul.bf16.gmra.mxu0 %v1879
        %v1988 = vpop.f32.mrf.mxu0
        %v1989 = vadd.f32 0.0, %v1988
        %v1990 = vpop.f32.mrf.mxu0
        %v1991 = vadd.f32 0.0, %v1990
        %1992 = vmatmul.bf16.gmra.mxu0 %v1880
        %v1993 = vpop.f32.mrf.mxu0
        %v1994 = vadd.f32 0.0, %v1993
        %v1995 = vpop.f32.mrf.mxu0
        %v1996 = vadd.f32 0.0, %v1995
        %1997 = vmatmul.bf16.gmra.mxu0 %v1881
        %v1998 = vpop.f32.mrf.mxu0
        %v1999 = vadd.f32 0.0, %v1998
        %v2000 = vpop.f32.mrf.mxu0
        %v2001 = vadd.f32 0.0, %v2000
        %2002 = vmatmul.bf16.gmra.mxu0 %v1882
        %v2003 = vpop.f32.mrf.mxu0
        %v2004 = vadd.f32 0.0, %v2003
        %v2005 = vpop.f32.mrf.mxu0
        %v2006 = vadd.f32 0.0, %v2005
        %2007 = vmatmul.bf16.gmra.mxu0 %v1883
        %v2008 = vpop.f32.mrf.mxu0
        %v2009 = vadd.f32 0.0, %v2008
        %v2010 = vpop.f32.mrf.mxu0
        %v2011 = vadd.f32 0.0, %v2010
        %2012 = vmatmul.bf16.gmra.mxu0 %v1884
        %v2013 = vpop.f32.mrf.mxu0
        %v2014 = vadd.f32 0.0, %v2013
        %v2015 = vpop.f32.mrf.mxu0
        %v2016 = vadd.f32 0.0, %v2015
        %2017 = vmatmul.bf16.gmra.mxu0 %v1885
        %v2018 = vpop.f32.mrf.mxu0
        %v2019 = vadd.f32 0.0, %v2018
        %v2020 = vpop.f32.mrf.mxu0
        %v2021 = vadd.f32 0.0, %v2020
        %2022 = vmatmul.bf16.gmra.mxu0 %v1886
        %v2023 = vpop.f32.mrf.mxu0
        %v2024 = vadd.f32 0.0, %v2023
        %v2025 = vpop.f32.mrf.mxu0
        %v2026 = vadd.f32 0.0, %v2025
        %2027 = vmatmul.bf16.gmra.mxu0 %v1887
        %v2028 = vpop.f32.mrf.mxu0
        %v2029 = vadd.f32 0.0, %v2028
        %v2030 = vpop.f32.mrf.mxu0
        %v2031 = vadd.f32 0.0, %v2030
        %2032 = vmatmul.bf16.gmra.mxu0 %v1888
        %v2033 = vpop.f32.mrf.mxu0
        %v2034 = vadd.f32 0.0, %v2033
        %v2035 = vpop.f32.mrf.mxu0
        %v2036 = vadd.f32 0.0, %v2035
        %2037 = vmatmul.bf16.gmra.mxu0 %v1889
        %v2038 = vpop.f32.mrf.mxu0
        %v2039 = vadd.f32 0.0, %v2038
        %v2040 = vpop.f32.mrf.mxu0
        %v2041 = vadd.f32 0.0, %v2040
        %2042 = vdwg.mxu0
        %v2043 = vadd.f32 %v1793, %v1964
        %v2044 = vadd.f32 %v1794, %v1966
        %v2045 = vadd.f32 %v1795, %v1969
        %v2046 = vadd.f32 %v1796, %v1971
        %v2047 = vadd.f32 %v1797, %v1974
        %v2048 = vadd.f32 %v1798, %v1976
        %v2049 = vadd.f32 %v1799, %v1979
        %v2050 = vadd.f32 %v1800, %v1981
        %v2051 = vadd.f32 %v1801, %v1984
        %v2052 = vadd.f32 %v1802, %v1986
        %v2053 = vadd.f32 %v1803, %v1989
        %v2054 = vadd.f32 %v1804, %v1991
        %v2055 = vadd.f32 %v1805, %v1994
        %v2056 = vadd.f32 %v1806, %v1996
        %v2057 = vadd.f32 %v1807, %v1999
        %v2058 = vadd.f32 %v1808, %v2001
        %v2059 = vadd.f32 %v1809, %v2004
        %v2060 = vadd.f32 %v1810, %v2006
        %v2061 = vadd.f32 %v1811, %v2009
        %v2062 = vadd.f32 %v1812, %v2011
        %v2063 = vadd.f32 %v1813, %v2014
        %v2064 = vadd.f32 %v1814, %v2016
        %v2065 = vadd.f32 %v1815, %v2019
        %v2066 = vadd.f32 %v1816, %v2021
        %v2067 = vadd.f32 %v1817, %v2024
        %v2068 = vadd.f32 %v1818, %v2026
        %v2069 = vadd.f32 %v1819, %v2029
        %v2070 = vadd.f32 %v1820, %v2031
        %v2071 = vadd.f32 %v1821, %v2034
        %v2072 = vadd.f32 %v1822, %v2036
        %v2073 = vadd.f32 %v1823, %v2039
        %v2074 = vadd.f32 %v1824, %v2041
        %2075 = vst [vmem:[#allocation3] sm:$0xff] %v2043
        %2076 = vst [vmem:[#allocation3 + $0x8] sm:$0xff] %v2044
        %2077 = vst [vmem:[#allocation3 + $0x10] sm:$0xff] %v2045
        %2078 = vst [vmem:[#allocation3 + $0x18] sm:$0xff] %v2046
        %2079 = vst [vmem:[#allocation3 + $0x20] sm:$0xff] %v2047
        %2080 = vst [vmem:[#allocation3 + $0x28] sm:$0xff] %v2048
        %2081 = vst [vmem:[#allocation3 + $0x30] sm:$0xff] %v2049
        %2082 = vst [vmem:[#allocation3 + $0x38] sm:$0xff] %v2050
        %2083 = vst [vmem:[#allocation3 + $0x40] sm:$0xff] %v2051
        %2084 = vst [vmem:[#allocation3 + $0x48] sm:$0xff] %v2052
        %2085 = vst [vmem:[#allocation3 + $0x50] sm:$0xff] %v2053
        %2086 = vst [vmem:[#allocation3 + $0x58] sm:$0xff] %v2054
        %2087 = vst [vmem:[#allocation3 + $0x60] sm:$0xff] %v2055
        %2088 = vst [vmem:[#allocation3 + $0x68] sm:$0xff] %v2056
        %2089 = vst [vmem:[#allocation3 + $0x70] sm:$0xff] %v2057
        %2090 = vst [vmem:[#allocation3 + $0x78] sm:$0xff] %v2058
        %2091 = vst [vmem:[#allocation3 + $0x80] sm:$0xff] %v2059
        %2092 = vst [vmem:[#allocation3 + $0x88] sm:$0xff] %v2060
        %2093 = vst [vmem:[#allocation3 + $0x90] sm:$0xff] %v2061
        %2094 = vst [vmem:[#allocation3 + $0x98] sm:$0xff] %v2062
        %2095 = vst [vmem:[#allocation3 + $0xa0] sm:$0xff] %v2063
        %2096 = vst [vmem:[#allocation3 + $0xa8] sm:$0xff] %v2064
        %2097 = vst [vmem:[#allocation3 + $0xb0] sm:$0xff] %v2065
        %2098 = vst [vmem:[#allocation3 + $0xb8] sm:$0xff] %v2066
        %2099 = vst [vmem:[#allocation3 + $0xc0] sm:$0xff] %v2067
        %2100 = vst [vmem:[#allocation3 + $0xc8] sm:$0xff] %v2068
        %2101 = vst [vmem:[#allocation3 + $0xd0] sm:$0xff] %v2069
        %2102 = vst [vmem:[#allocation3 + $0xd8] sm:$0xff] %v2070
        %2103 = vst [vmem:[#allocation3 + $0xe0] sm:$0xff] %v2071
        %2104 = vst [vmem:[#allocation3 + $0xe8] sm:$0xff] %v2072
        %2105 = vst [vmem:[#allocation3 + $0xf0] sm:$0xff] %v2073
        %2106 = vst [vmem:[#allocation3 + $0xf8] sm:$0xff] %v2074
        %v2107 = vld [vmem:[#allocation2] sm:$0xe]
        %v2108 = vld [vmem:[#allocation2 + $0x4] sm:$0xf]
        %v2109 = vld [vmem:[#allocation2 + $0x8] sm:$0x1]
        %v2110 = vld [vmem:[#allocation2 + $0xc] sm:$0xe]
        %v2111 = vld [vmem:[#allocation2 + $0x10] sm:$0xf]
        %v2112 = vld [vmem:[#allocation2 + $0x14] sm:$0x1]
        %v2113 = vld [vmem:[#allocation2 + $0x18] sm:$0xe]
        %v2114 = vld [vmem:[#allocation2 + $0x1c] sm:$0xf]
        %v2115 = vld [vmem:[#allocation2 + $0x20] sm:$0x1]
        %v2116 = vld [vmem:[#allocation2 + $0x24] sm:$0xe]
        %v2117 = vld [vmem:[#allocation2 + $0x28] sm:$0xf]
        %v2118 = vld [vmem:[#allocation2 + $0x2c] sm:$0x1]
        %v2119 = vld [vmem:[#allocation2 + $0x30] sm:$0xe]
        %v2120 = vld [vmem:[#allocation2 + $0x34] sm:$0xf]
        %v2121 = vld [vmem:[#allocation2 + $0x38] sm:$0x1]
        %v2122 = vld [vmem:[#allocation2 + $0x3c] sm:$0xe]
        %v2123 = vld [vmem:[#allocation2 + $0x40] sm:$0xf]
        %v2124 = vld [vmem:[#allocation2 + $0x44] sm:$0x1]
        %v2125 = vld [vmem:[#allocation2 + $0x48] sm:$0xe]
        %v2126 = vld [vmem:[#allocation2 + $0x4c] sm:$0xf]
        %v2127 = vld [vmem:[#allocation2 + $0x50] sm:$0x1]
        %v2128 = vld [vmem:[#allocation2 + $0x54] sm:$0xe]
        %v2129 = vld [vmem:[#allocation2 + $0x58] sm:$0xf]
        %v2130 = vld [vmem:[#allocation2 + $0x5c] sm:$0x1]
        %v2131 = vld [vmem:[#allocation2 + $0x60] sm:$0xe]
        %v2132 = vld [vmem:[#allocation2 + $0x64] sm:$0xf]
        %v2133 = vld [vmem:[#allocation2 + $0x68] sm:$0x1]
        %v2134 = vld [vmem:[#allocation2 + $0x6c] sm:$0xe]
        %v2135 = vld [vmem:[#allocation2 + $0x70] sm:$0xf]
        %v2136 = vld [vmem:[#allocation2 + $0x74] sm:$0x1]
        %v2137 = vld [vmem:[#allocation2 + $0x78] sm:$0xe]
        %v2138 = vld [vmem:[#allocation2 + $0x7c] sm:$0xf]
        %v2139 = vld [vmem:[#allocation2 + $0x80] sm:$0x1]
        %v2140 = vld [vmem:[#allocation2 + $0x84] sm:$0xe]
        %v2141 = vld [vmem:[#allocation2 + $0x88] sm:$0xf]
        %v2142 = vld [vmem:[#allocation2 + $0x8c] sm:$0x1]
        %v2143 = vld [vmem:[#allocation2 + $0x90] sm:$0xe]
        %v2144 = vld [vmem:[#allocation2 + $0x94] sm:$0xf]
        %v2145 = vld [vmem:[#allocation2 + $0x98] sm:$0x1]
        %v2146 = vld [vmem:[#allocation2 + $0x9c] sm:$0xe]
        %v2147 = vld [vmem:[#allocation2 + $0xa0] sm:$0xf]
        %v2148 = vld [vmem:[#allocation2 + $0xa4] sm:$0x1]
        %v2149 = vld [vmem:[#allocation2 + $0xa8] sm:$0xe]
        %v2150 = vld [vmem:[#allocation2 + $0xac] sm:$0xf]
        %v2151 = vld [vmem:[#allocation2 + $0xb0] sm:$0x1]
        %v2152 = vld [vmem:[#allocation2 + $0xb4] sm:$0xe]
        %v2153 = vld [vmem:[#allocation2 + $0xb8] sm:$0xf]
        %v2154 = vld [vmem:[#allocation2 + $0xbc] sm:$0x1]
        %vm2203 = vcmask 1042432
        %vm2204 = vcmask 1046532
        %vm2205 = vmor %vm2203, %vm2204
        %v2206 = vrot.slane %v2107, 5
        %v2207 = vrot.slane %v2206, 4
        %v2208 = vrot.slane %v2108, 5
        %v2209 = vsel %vm2205, %v2207, %v2208
        %v2210 = vrot.slane %v2208, 4
        %v2211 = vrot.slane %v2109, 5
        %v2212 = vsel %vm2205, %v2210, %v2211
        %v2213 = vrot.slane %v2110, 5
        %v2214 = vrot.slane %v2213, 4
        %v2215 = vrot.slane %v2111, 5
        %v2216 = vsel %vm2205, %v2214, %v2215
        %v2217 = vrot.slane %v2215, 4
        %v2218 = vrot.slane %v2112, 5
        %v2219 = vsel %vm2205, %v2217, %v2218
        %v2220 = vrot.slane %v2113, 5
        %v2221 = vrot.slane %v2220, 4
        %v2222 = vrot.slane %v2114, 5
        %v2223 = vsel %vm2205, %v2221, %v2222
        %v2224 = vrot.slane %v2222, 4
        %v2225 = vrot.slane %v2115, 5
        %v2226 = vsel %vm2205, %v2224, %v2225
        %v2227 = vrot.slane %v2116, 5
        %v2228 = vrot.slane %v2227, 4
        %v2229 = vrot.slane %v2117, 5
        %v2230 = vsel %vm2205, %v2228, %v2229
        %v2231 = vrot.slane %v2229, 4
        %v2232 = vrot.slane %v2118, 5
        %v2233 = vsel %vm2205, %v2231, %v2232
        %v2234 = vrot.slane %v2119, 5
        %v2235 = vrot.slane %v2234, 4
        %v2236 = vrot.slane %v2120, 5
        %v2237 = vsel %vm2205, %v2235, %v2236
        %v2238 = vrot.slane %v2236, 4
        %v2239 = vrot.slane %v2121, 5
        %v2240 = vsel %vm2205, %v2238, %v2239
        %v2241 = vrot.slane %v2122, 5
        %v2242 = vrot.slane %v2241, 4
        %v2243 = vrot.slane %v2123, 5
        %v2244 = vsel %vm2205, %v2242, %v2243
        %v2245 = vrot.slane %v2243, 4
        %v2246 = vrot.slane %v2124, 5
        %v2247 = vsel %vm2205, %v2245, %v2246
        %v2248 = vrot.slane %v2125, 5
        %v2249 = vrot.slane %v2248, 4
        %v2250 = vrot.slane %v2126, 5
        %v2251 = vsel %vm2205, %v2249, %v2250
        %v2252 = vrot.slane %v2250, 4
        %v2253 = vrot.slane %v2127, 5
        %v2254 = vsel %vm2205, %v2252, %v2253
        %v2255 = vrot.slane %v2128, 5
        %v2256 = vrot.slane %v2255, 4
        %v2257 = vrot.slane %v2129, 5
        %v2258 = vsel %vm2205, %v2256, %v2257
        %v2259 = vrot.slane %v2257, 4
        %v2260 = vrot.slane %v2130, 5
        %v2261 = vsel %vm2205, %v2259, %v2260
        %v2262 = vrot.slane %v2131, 5
        %v2263 = vrot.slane %v2262, 4
        %v2264 = vrot.slane %v2132, 5
        %v2265 = vsel %vm2205, %v2263, %v2264
        %v2266 = vrot.slane %v2264, 4
        %v2267 = vrot.slane %v2133, 5
        %v2268 = vsel %vm2205, %v2266, %v2267
        %v2269 = vrot.slane %v2134, 5
        %v2270 = vrot.slane %v2269, 4
        %v2271 = vrot.slane %v2135, 5
        %v2272 = vsel %vm2205, %v2270, %v2271
        %v2273 = vrot.slane %v2271, 4
        %v2274 = vrot.slane %v2136, 5
        %v2275 = vsel %vm2205, %v2273, %v2274
        %v2276 = vrot.slane %v2137, 5
        %v2277 = vrot.slane %v2276, 4
        %v2278 = vrot.slane %v2138, 5
        %v2279 = vsel %vm2205, %v2277, %v2278
        %v2280 = vrot.slane %v2278, 4
        %v2281 = vrot.slane %v2139, 5
        %v2282 = vsel %vm2205, %v2280, %v2281
        %v2283 = vrot.slane %v2140, 5
        %v2284 = vrot.slane %v2283, 4
        %v2285 = vrot.slane %v2141, 5
        %v2286 = vsel %vm2205, %v2284, %v2285
        %v2287 = vrot.slane %v2285, 4
        %v2288 = vrot.slane %v2142, 5
        %v2289 = vsel %vm2205, %v2287, %v2288
        %v2290 = vrot.slane %v2143, 5
        %v2291 = vrot.slane %v2290, 4
        %v2292 = vrot.slane %v2144, 5
        %v2293 = vsel %vm2205, %v2291, %v2292
        %v2294 = vrot.slane %v2292, 4
        %v2295 = vrot.slane %v2145, 5
        %v2296 = vsel %vm2205, %v2294, %v2295
        %v2297 = vrot.slane %v2146, 5
        %v2298 = vrot.slane %v2297, 4
        %v2299 = vrot.slane %v2147, 5
        %v2300 = vsel %vm2205, %v2298, %v2299
        %v2301 = vrot.slane %v2299, 4
        %v2302 = vrot.slane %v2148, 5
        %v2303 = vsel %vm2205, %v2301, %v2302
        %v2304 = vrot.slane %v2149, 5
        %v2305 = vrot.slane %v2304, 4
        %v2306 = vrot.slane %v2150, 5
        %v2307 = vsel %vm2205, %v2305, %v2306
        %v2308 = vrot.slane %v2306, 4
        %v2309 = vrot.slane %v2151, 5
        %v2310 = vsel %vm2205, %v2308, %v2309
        %v2311 = vrot.slane %v2152, 5
        %v2312 = vrot.slane %v2311, 4
        %v2313 = vrot.slane %v2153, 5
        %v2314 = vsel %vm2205, %v2312, %v2313
        %v2315 = vrot.slane %v2313, 4
        %v2316 = vrot.slane %v2154, 5
        %v2317 = vsel %vm2205, %v2315, %v2316
        %v2318 = vld [vmem:[#allocation3] sm:$0xff]
        %v2319 = vld [vmem:[#allocation3 + $0x8] sm:$0xff]
        %v2320 = vld [vmem:[#allocation3 + $0x10] sm:$0xff]
        %v2321 = vld [vmem:[#allocation3 + $0x18] sm:$0xff]
        %v2322 = vld [vmem:[#allocation3 + $0x20] sm:$0xff]
        %v2323 = vld [vmem:[#allocation3 + $0x28] sm:$0xff]
        %v2324 = vld [vmem:[#allocation3 + $0x30] sm:$0xff]
        %v2325 = vld [vmem:[#allocation3 + $0x38] sm:$0xff]
        %v2326 = vld [vmem:[#allocation3 + $0x40] sm:$0xff]
        %v2327 = vld [vmem:[#allocation3 + $0x48] sm:$0xff]
        %v2328 = vld [vmem:[#allocation3 + $0x50] sm:$0xff]
        %v2329 = vld [vmem:[#allocation3 + $0x58] sm:$0xff]
        %v2330 = vld [vmem:[#allocation3 + $0x60] sm:$0xff]
        %v2331 = vld [vmem:[#allocation3 + $0x68] sm:$0xff]
        %v2332 = vld [vmem:[#allocation3 + $0x70] sm:$0xff]
        %v2333 = vld [vmem:[#allocation3 + $0x78] sm:$0xff]
        %v2334 = vld [vmem:[#allocation3 + $0x80] sm:$0xff]
        %v2335 = vld [vmem:[#allocation3 + $0x88] sm:$0xff]
        %v2336 = vld [vmem:[#allocation3 + $0x90] sm:$0xff]
        %v2337 = vld [vmem:[#allocation3 + $0x98] sm:$0xff]
        %v2338 = vld [vmem:[#allocation3 + $0xa0] sm:$0xff]
        %v2339 = vld [vmem:[#allocation3 + $0xa8] sm:$0xff]
        %v2340 = vld [vmem:[#allocation3 + $0xb0] sm:$0xff]
        %v2341 = vld [vmem:[#allocation3 + $0xb8] sm:$0xff]
        %v2342 = vld [vmem:[#allocation3 + $0xc0] sm:$0xff]
        %v2343 = vld [vmem:[#allocation3 + $0xc8] sm:$0xff]
        %v2344 = vld [vmem:[#allocation3 + $0xd0] sm:$0xff]
        %v2345 = vld [vmem:[#allocation3 + $0xd8] sm:$0xff]
        %v2346 = vld [vmem:[#allocation3 + $0xe0] sm:$0xff]
        %v2347 = vld [vmem:[#allocation3 + $0xe8] sm:$0xff]
        %v2348 = vld [vmem:[#allocation3 + $0xf0] sm:$0xff]
        %v2349 = vld [vmem:[#allocation3 + $0xf8] sm:$0xff]
        %s2350 = scalar_lea.vmem [#allocation4], 128
        %v2351 = vld [vmem:[%s2350] sm:$0xf]
        %v2352 = vld [vmem:[%s2350 + $0x4] sm:$0xf]
        %v2353 = vld [vmem:[%s2350 + $0x8] sm:$0xf]
        %v2354 = vld [vmem:[%s2350 + $0xc] sm:$0xf]
        %v2355 = vld [vmem:[%s2350 + $0x10] sm:$0xf]
        %v2356 = vld [vmem:[%s2350 + $0x14] sm:$0xf]
        %v2357 = vld [vmem:[%s2350 + $0x18] sm:$0xf]
        %v2358 = vld [vmem:[%s2350 + $0x1c] sm:$0xf]
        %v2359 = vld [vmem:[%s2350 + $0x20] sm:$0xf]
        %v2360 = vld [vmem:[%s2350 + $0x24] sm:$0xf]
        %v2361 = vld [vmem:[%s2350 + $0x28] sm:$0xf]
        %v2362 = vld [vmem:[%s2350 + $0x2c] sm:$0xf]
        %v2363 = vld [vmem:[%s2350 + $0x30] sm:$0xf]
        %v2364 = vld [vmem:[%s2350 + $0x34] sm:$0xf]
        %v2365 = vld [vmem:[%s2350 + $0x38] sm:$0xf]
        %v2366 = vld [vmem:[%s2350 + $0x3c] sm:$0xf]
        %v2367 = vunpack.c.l.b16 %v2209
        %v2368 = vunpack.c.l.b16 %v2212
        %v2369 = vunpack.c.l.b16 %v2216
        %v2370 = vunpack.c.l.b16 %v2219
        %v2371 = vunpack.c.l.b16 %v2223
        %v2372 = vunpack.c.l.b16 %v2226
        %v2373 = vunpack.c.l.b16 %v2230
        %v2374 = vunpack.c.l.b16 %v2233
        %v2375 = vunpack.c.l.b16 %v2237
        %v2376 = vunpack.c.l.b16 %v2240
        %v2377 = vunpack.c.l.b16 %v2244
        %v2378 = vunpack.c.l.b16 %v2247
        %v2379 = vunpack.c.l.b16 %v2251
        %v2380 = vunpack.c.l.b16 %v2254
        %v2381 = vunpack.c.l.b16 %v2258
        %v2382 = vunpack.c.l.b16 %v2261
        %v2383 = vunpack.c.l.b16 %v2265
        %v2384 = vunpack.c.l.b16 %v2268
        %v2385 = vunpack.c.l.b16 %v2272
        %v2386 = vunpack.c.l.b16 %v2275
        %v2387 = vunpack.c.l.b16 %v2279
        %v2388 = vunpack.c.l.b16 %v2282
        %v2389 = vunpack.c.l.b16 %v2286
        %v2390 = vunpack.c.l.b16 %v2289
        %v2391 = vunpack.c.l.b16 %v2293
        %v2392 = vunpack.c.l.b16 %v2296
        %v2393 = vunpack.c.l.b16 %v2300
        %v2394 = vunpack.c.l.b16 %v2303
        %v2395 = vunpack.c.l.b16 %v2307
        %v2396 = vunpack.c.l.b16 %v2310
        %v2397 = vunpack.c.l.b16 %v2314
        %v2398 = vunpack.c.l.b16 %v2317
        %v2399 = vpack.c.b16 %v2368, %v2367
        %v2400 = vpack.c.b16 %v2370, %v2369
        %v2401 = vpack.c.b16 %v2372, %v2371
        %v2402 = vpack.c.b16 %v2374, %v2373
        %v2403 = vpack.c.b16 %v2376, %v2375
        %v2404 = vpack.c.b16 %v2378, %v2377
        %v2405 = vpack.c.b16 %v2380, %v2379
        %v2406 = vpack.c.b16 %v2382, %v2381
        %v2407 = vpack.c.b16 %v2384, %v2383
        %v2408 = vpack.c.b16 %v2386, %v2385
        %v2409 = vpack.c.b16 %v2388, %v2387
        %v2410 = vpack.c.b16 %v2390, %v2389
        %v2411 = vpack.c.b16 %v2392, %v2391
        %v2412 = vpack.c.b16 %v2394, %v2393
        %v2413 = vpack.c.b16 %v2396, %v2395
        %v2414 = vpack.c.b16 %v2398, %v2397
        %v2447 = vunpack.c.l.b16 %v2351
        %v2448 = vunpack.c.l.b16 %v2352
        %v2449 = vunpack.c.l.b16 %v2353
        %v2450 = vunpack.c.l.b16 %v2354
        %v2451 = vunpack.c.l.b16 %v2355
        %v2452 = vunpack.c.l.b16 %v2356
        %v2453 = vunpack.c.l.b16 %v2357
        %v2454 = vunpack.c.l.b16 %v2358
        %v2455 = vunpack.c.l.b16 %v2359
        %v2456 = vunpack.c.l.b16 %v2360
        %v2457 = vunpack.c.l.b16 %v2361
        %v2458 = vunpack.c.l.b16 %v2362
        %v2459 = vunpack.c.l.b16 %v2363
        %v2460 = vunpack.c.l.b16 %v2364
        %v2461 = vunpack.c.l.b16 %v2365
        %v2462 = vunpack.c.l.b16 %v2366
        %v2463 = vpack.c.b16 %v2448, %v2447
        %v2464 = vpack.c.b16 %v2450, %v2449
        %v2465 = vpack.c.b16 %v2452, %v2451
        %v2466 = vpack.c.b16 %v2454, %v2453
        %v2467 = vpack.c.b16 %v2456, %v2455
        %v2468 = vpack.c.b16 %v2458, %v2457
        %v2469 = vpack.c.b16 %v2460, %v2459
        %v2470 = vpack.c.b16 %v2462, %v2461
        %2479 = vmatpush.bf16.msra.mxu0 %v2470
        %2480 = vmatpush.bf16.msra.mxu0 %v2469
        %2481 = vmatpush.bf16.msra.mxu0 %v2468
        %2482 = vmatpush.bf16.msra.mxu0 %v2467
        %2483 = vmatpush.bf16.msra.mxu0 %v2466
        %2484 = vmatpush.bf16.msra.mxu0 %v2465
        %2485 = vmatpush.bf16.msra.mxu0 %v2464
        %2486 = vmatpush.bf16.msra.mxu0 %v2463
        %2487 = vmatmul.bf16.gmra.mxu0 %v2399
        %v2488 = vpop.f32.mrf.mxu0
        %v2489 = vadd.f32 0.0, %v2488
        %v2490 = vpop.f32.mrf.mxu0
        %v2491 = vadd.f32 0.0, %v2490
        %2492 = vmatmul.bf16.gmra.mxu0 %v2400
        %v2493 = vpop.f32.mrf.mxu0
        %v2494 = vadd.f32 0.0, %v2493
        %v2495 = vpop.f32.mrf.mxu0
        %v2496 = vadd.f32 0.0, %v2495
        %2497 = vmatmul.bf16.gmra.mxu0 %v2401
        %v2498 = vpop.f32.mrf.mxu0
        %v2499 = vadd.f32 0.0, %v2498
        %v2500 = vpop.f32.mrf.mxu0
        %v2501 = vadd.f32 0.0, %v2500
        %2502 = vmatmul.bf16.gmra.mxu0 %v2402
        %v2503 = vpop.f32.mrf.mxu0
        %v2504 = vadd.f32 0.0, %v2503
        %v2505 = vpop.f32.mrf.mxu0
        %v2506 = vadd.f32 0.0, %v2505
        %2507 = vmatmul.bf16.gmra.mxu0 %v2403
        %v2508 = vpop.f32.mrf.mxu0
        %v2509 = vadd.f32 0.0, %v2508
        %v2510 = vpop.f32.mrf.mxu0
        %v2511 = vadd.f32 0.0, %v2510
        %2512 = vmatmul.bf16.gmra.mxu0 %v2404
        %v2513 = vpop.f32.mrf.mxu0
        %v2514 = vadd.f32 0.0, %v2513
        %v2515 = vpop.f32.mrf.mxu0
        %v2516 = vadd.f32 0.0, %v2515
        %2517 = vmatmul.bf16.gmra.mxu0 %v2405
        %v2518 = vpop.f32.mrf.mxu0
        %v2519 = vadd.f32 0.0, %v2518
        %v2520 = vpop.f32.mrf.mxu0
        %v2521 = vadd.f32 0.0, %v2520
        %2522 = vmatmul.bf16.gmra.mxu0 %v2406
        %v2523 = vpop.f32.mrf.mxu0
        %v2524 = vadd.f32 0.0, %v2523
        %v2525 = vpop.f32.mrf.mxu0
        %v2526 = vadd.f32 0.0, %v2525
        %2527 = vmatmul.bf16.gmra.mxu0 %v2407
        %v2528 = vpop.f32.mrf.mxu0
        %v2529 = vadd.f32 0.0, %v2528
        %v2530 = vpop.f32.mrf.mxu0
        %v2531 = vadd.f32 0.0, %v2530
        %2532 = vmatmul.bf16.gmra.mxu0 %v2408
        %v2533 = vpop.f32.mrf.mxu0
        %v2534 = vadd.f32 0.0, %v2533
        %v2535 = vpop.f32.mrf.mxu0
        %v2536 = vadd.f32 0.0, %v2535
        %2537 = vmatmul.bf16.gmra.mxu0 %v2409
        %v2538 = vpop.f32.mrf.mxu0
        %v2539 = vadd.f32 0.0, %v2538
        %v2540 = vpop.f32.mrf.mxu0
        %v2541 = vadd.f32 0.0, %v2540
        %2542 = vmatmul.bf16.gmra.mxu0 %v2410
        %v2543 = vpop.f32.mrf.mxu0
        %v2544 = vadd.f32 0.0, %v2543
        %v2545 = vpop.f32.mrf.mxu0
        %v2546 = vadd.f32 0.0, %v2545
        %2547 = vmatmul.bf16.gmra.mxu0 %v2411
        %v2548 = vpop.f32.mrf.mxu0
        %v2549 = vadd.f32 0.0, %v2548
        %v2550 = vpop.f32.mrf.mxu0
        %v2551 = vadd.f32 0.0, %v2550
        %2552 = vmatmul.bf16.gmra.mxu0 %v2412
        %v2553 = vpop.f32.mrf.mxu0
        %v2554 = vadd.f32 0.0, %v2553
        %v2555 = vpop.f32.mrf.mxu0
        %v2556 = vadd.f32 0.0, %v2555
        %2557 = vmatmul.bf16.gmra.mxu0 %v2413
        %v2558 = vpop.f32.mrf.mxu0
        %v2559 = vadd.f32 0.0, %v2558
        %v2560 = vpop.f32.mrf.mxu0
        %v2561 = vadd.f32 0.0, %v2560
        %2562 = vmatmul.bf16.gmra.mxu0 %v2414
        %v2563 = vpop.f32.mrf.mxu0
        %v2564 = vadd.f32 0.0, %v2563
        %v2565 = vpop.f32.mrf.mxu0
        %v2566 = vadd.f32 0.0, %v2565
        %2567 = vdwg.mxu0
        %v2568 = vadd.f32 %v2318, %v2489
        %v2569 = vadd.f32 %v2319, %v2491
        %v2570 = vadd.f32 %v2320, %v2494
        %v2571 = vadd.f32 %v2321, %v2496
        %v2572 = vadd.f32 %v2322, %v2499
        %v2573 = vadd.f32 %v2323, %v2501
        %v2574 = vadd.f32 %v2324, %v2504
        %v2575 = vadd.f32 %v2325, %v2506
        %v2576 = vadd.f32 %v2326, %v2509
        %v2577 = vadd.f32 %v2327, %v2511
        %v2578 = vadd.f32 %v2328, %v2514
        %v2579 = vadd.f32 %v2329, %v2516
        %v2580 = vadd.f32 %v2330, %v2519
        %v2581 = vadd.f32 %v2331, %v2521
        %v2582 = vadd.f32 %v2332, %v2524
        %v2583 = vadd.f32 %v2333, %v2526
        %v2584 = vadd.f32 %v2334, %v2529
        %v2585 = vadd.f32 %v2335, %v2531
        %v2586 = vadd.f32 %v2336, %v2534
        %v2587 = vadd.f32 %v2337, %v2536
        %v2588 = vadd.f32 %v2338, %v2539
        %v2589 = vadd.f32 %v2339, %v2541
        %v2590 = vadd.f32 %v2340, %v2544
        %v2591 = vadd.f32 %v2341, %v2546
        %v2592 = vadd.f32 %v2342, %v2549
        %v2593 = vadd.f32 %v2343, %v2551
        %v2594 = vadd.f32 %v2344, %v2554
        %v2595 = vadd.f32 %v2345, %v2556
        %v2596 = vadd.f32 %v2346, %v2559
        %v2597 = vadd.f32 %v2347, %v2561
        %v2598 = vadd.f32 %v2348, %v2564
        %v2599 = vadd.f32 %v2349, %v2566
        %2600 = vst [vmem:[#allocation3] sm:$0xff] %v2568
        %2601 = vst [vmem:[#allocation3 + $0x8] sm:$0xff] %v2569
        %2602 = vst [vmem:[#allocation3 + $0x10] sm:$0xff] %v2570
        %2603 = vst [vmem:[#allocation3 + $0x18] sm:$0xff] %v2571
        %2604 = vst [vmem:[#allocation3 + $0x20] sm:$0xff] %v2572
        %2605 = vst [vmem:[#allocation3 + $0x28] sm:$0xff] %v2573
        %2606 = vst [vmem:[#allocation3 + $0x30] sm:$0xff] %v2574
        %2607 = vst [vmem:[#allocation3 + $0x38] sm:$0xff] %v2575
        %2608 = vst [vmem:[#allocation3 + $0x40] sm:$0xff] %v2576
        %2609 = vst [vmem:[#allocation3 + $0x48] sm:$0xff] %v2577
        %2610 = vst [vmem:[#allocation3 + $0x50] sm:$0xff] %v2578
        %2611 = vst [vmem:[#allocation3 + $0x58] sm:$0xff] %v2579
        %2612 = vst [vmem:[#allocation3 + $0x60] sm:$0xff] %v2580
        %2613 = vst [vmem:[#allocation3 + $0x68] sm:$0xff] %v2581
        %2614 = vst [vmem:[#allocation3 + $0x70] sm:$0xff] %v2582
        %2615 = vst [vmem:[#allocation3 + $0x78] sm:$0xff] %v2583
        %2616 = vst [vmem:[#allocation3 + $0x80] sm:$0xff] %v2584
        %2617 = vst [vmem:[#allocation3 + $0x88] sm:$0xff] %v2585
        %2618 = vst [vmem:[#allocation3 + $0x90] sm:$0xff] %v2586
        %2619 = vst [vmem:[#allocation3 + $0x98] sm:$0xff] %v2587
        %2620 = vst [vmem:[#allocation3 + $0xa0] sm:$0xff] %v2588
        %2621 = vst [vmem:[#allocation3 + $0xa8] sm:$0xff] %v2589
        %2622 = vst [vmem:[#allocation3 + $0xb0] sm:$0xff] %v2590
        %2623 = vst [vmem:[#allocation3 + $0xb8] sm:$0xff] %v2591
        %2624 = vst [vmem:[#allocation3 + $0xc0] sm:$0xff] %v2592
        %2625 = vst [vmem:[#allocation3 + $0xc8] sm:$0xff] %v2593
        %2626 = vst [vmem:[#allocation3 + $0xd0] sm:$0xff] %v2594
        %2627 = vst [vmem:[#allocation3 + $0xd8] sm:$0xff] %v2595
        %2628 = vst [vmem:[#allocation3 + $0xe0] sm:$0xff] %v2596
        %2629 = vst [vmem:[#allocation3 + $0xe8] sm:$0xff] %v2597
        %2630 = vst [vmem:[#allocation3 + $0xf0] sm:$0xff] %v2598
        %2631 = vst [vmem:[#allocation3 + $0xf8] sm:$0xff] %v2599
        %v2632 = vld [vmem:[%s831] sm:$0xf]
        %v2633 = vld [vmem:[%s831 + $0x4] sm:$0xf]
        %v2634 = vld [vmem:[%s831 + $0xc] sm:$0xf]
        %v2635 = vld [vmem:[%s831 + $0x10] sm:$0xf]
        %v2636 = vld [vmem:[%s831 + $0x18] sm:$0xf]
        %v2637 = vld [vmem:[%s831 + $0x1c] sm:$0xf]
        %v2638 = vld [vmem:[%s831 + $0x24] sm:$0xf]
        %v2639 = vld [vmem:[%s831 + $0x28] sm:$0xf]
        %v2640 = vld [vmem:[%s831 + $0x30] sm:$0xf]
        %v2641 = vld [vmem:[%s831 + $0x34] sm:$0xf]
        %v2642 = vld [vmem:[%s831 + $0x3c] sm:$0xf]
        %v2643 = vld [vmem:[%s831 + $0x40] sm:$0xf]
        %v2644 = vld [vmem:[%s831 + $0x48] sm:$0xf]
        %v2645 = vld [vmem:[%s831 + $0x4c] sm:$0xf]
        %v2646 = vld [vmem:[%s831 + $0x54] sm:$0xf]
        %v2647 = vld [vmem:[%s831 + $0x58] sm:$0xf]
        %v2648 = vld [vmem:[%s831 + $0x60] sm:$0xf]
        %v2649 = vld [vmem:[%s831 + $0x64] sm:$0xf]
        %v2650 = vld [vmem:[%s831 + $0x6c] sm:$0xf]
        %v2651 = vld [vmem:[%s831 + $0x70] sm:$0xf]
        %v2652 = vld [vmem:[%s831 + $0x78] sm:$0xf]
        %v2653 = vld [vmem:[%s831 + $0x7c] sm:$0xf]
        %v2654 = vld [vmem:[%s831 + $0x84] sm:$0xf]
        %v2655 = vld [vmem:[%s831 + $0x88] sm:$0xf]
        %v2656 = vld [vmem:[%s831 + $0x90] sm:$0xf]
        %v2657 = vld [vmem:[%s831 + $0x94] sm:$0xf]
        %v2658 = vld [vmem:[%s831 + $0x9c] sm:$0xf]
        %v2659 = vld [vmem:[%s831 + $0xa0] sm:$0xf]
        %v2660 = vld [vmem:[%s831 + $0xa8] sm:$0xf]
        %v2661 = vld [vmem:[%s831 + $0xac] sm:$0xf]
        %v2662 = vld [vmem:[%s831 + $0xb4] sm:$0xf]
        %v2663 = vld [vmem:[%s831 + $0xb8] sm:$0xf]
        %v2664 = vld [vmem:[#allocation3] sm:$0xff]
        %v2665 = vld [vmem:[#allocation3 + $0x8] sm:$0xff]
        %v2666 = vld [vmem:[#allocation3 + $0x10] sm:$0xff]
        %v2667 = vld [vmem:[#allocation3 + $0x18] sm:$0xff]
        %v2668 = vld [vmem:[#allocation3 + $0x20] sm:$0xff]
        %v2669 = vld [vmem:[#allocation3 + $0x28] sm:$0xff]
        %v2670 = vld [vmem:[#allocation3 + $0x30] sm:$0xff]
        %v2671 = vld [vmem:[#allocation3 + $0x38] sm:$0xff]
        %v2672 = vld [vmem:[#allocation3 + $0x40] sm:$0xff]
        %v2673 = vld [vmem:[#allocation3 + $0x48] sm:$0xff]
        %v2674 = vld [vmem:[#allocation3 + $0x50] sm:$0xff]
        %v2675 = vld [vmem:[#allocation3 + $0x58] sm:$0xff]
        %v2676 = vld [vmem:[#allocation3 + $0x60] sm:$0xff]
        %v2677 = vld [vmem:[#allocation3 + $0x68] sm:$0xff]
        %v2678 = vld [vmem:[#allocation3 + $0x70] sm:$0xff]
        %v2679 = vld [vmem:[#allocation3 + $0x78] sm:$0xff]
        %v2680 = vld [vmem:[#allocation3 + $0x80] sm:$0xff]
        %v2681 = vld [vmem:[#allocation3 + $0x88] sm:$0xff]
        %v2682 = vld [vmem:[#allocation3 + $0x90] sm:$0xff]
        %v2683 = vld [vmem:[#allocation3 + $0x98] sm:$0xff]
        %v2684 = vld [vmem:[#allocation3 + $0xa0] sm:$0xff]
        %v2685 = vld [vmem:[#allocation3 + $0xa8] sm:$0xff]
        %v2686 = vld [vmem:[#allocation3 + $0xb0] sm:$0xff]
        %v2687 = vld [vmem:[#allocation3 + $0xb8] sm:$0xff]
        %v2688 = vld [vmem:[#allocation3 + $0xc0] sm:$0xff]
        %v2689 = vld [vmem:[#allocation3 + $0xc8] sm:$0xff]
        %v2690 = vld [vmem:[#allocation3 + $0xd0] sm:$0xff]
        %v2691 = vld [vmem:[#allocation3 + $0xd8] sm:$0xff]
        %v2692 = vld [vmem:[#allocation3 + $0xe0] sm:$0xff]
        %v2693 = vld [vmem:[#allocation3 + $0xe8] sm:$0xff]
        %v2694 = vld [vmem:[#allocation3 + $0xf0] sm:$0xff]
        %v2695 = vld [vmem:[#allocation3 + $0xf8] sm:$0xff]
        %s2696 = scalar_lea.vmem [#allocation4], 192
        %v2697 = vld [vmem:[%s2696] sm:$0xf]
        %v2698 = vld [vmem:[%s2696 + $0x4] sm:$0xf]
        %v2699 = vld [vmem:[%s2696 + $0x8] sm:$0xf]
        %v2700 = vld [vmem:[%s2696 + $0xc] sm:$0xf]
        %v2701 = vld [vmem:[%s2696 + $0x10] sm:$0xf]
        %v2702 = vld [vmem:[%s2696 + $0x14] sm:$0xf]
        %v2703 = vld [vmem:[%s2696 + $0x18] sm:$0xf]
        %v2704 = vld [vmem:[%s2696 + $0x1c] sm:$0xf]
        %v2705 = vld [vmem:[%s2696 + $0x20] sm:$0xf]
        %v2706 = vld [vmem:[%s2696 + $0x24] sm:$0xf]
        %v2707 = vld [vmem:[%s2696 + $0x28] sm:$0xf]
        %v2708 = vld [vmem:[%s2696 + $0x2c] sm:$0xf]
        %v2709 = vld [vmem:[%s2696 + $0x30] sm:$0xf]
        %v2710 = vld [vmem:[%s2696 + $0x34] sm:$0xf]
        %v2711 = vld [vmem:[%s2696 + $0x38] sm:$0xf]
        %v2712 = vld [vmem:[%s2696 + $0x3c] sm:$0xf]
        %v2745 = vunpack.c.l.b16 %v2632
        %v2746 = vunpack.c.l.b16 %v2633
        %v2747 = vunpack.c.l.b16 %v2634
        %v2748 = vunpack.c.l.b16 %v2635
        %v2749 = vunpack.c.l.b16 %v2636
        %v2750 = vunpack.c.l.b16 %v2637
        %v2751 = vunpack.c.l.b16 %v2638
        %v2752 = vunpack.c.l.b16 %v2639
        %v2753 = vunpack.c.l.b16 %v2640
        %v2754 = vunpack.c.l.b16 %v2641
        %v2755 = vunpack.c.l.b16 %v2642
        %v2756 = vunpack.c.l.b16 %v2643
        %v2757 = vunpack.c.l.b16 %v2644
        %v2758 = vunpack.c.l.b16 %v2645
        %v2759 = vunpack.c.l.b16 %v2646
        %v2760 = vunpack.c.l.b16 %v2647
        %v2761 = vunpack.c.l.b16 %v2648
        %v2762 = vunpack.c.l.b16 %v2649
        %v2763 = vunpack.c.l.b16 %v2650
        %v2764 = vunpack.c.l.b16 %v2651
        %v2765 = vunpack.c.l.b16 %v2652
        %v2766 = vunpack.c.l.b16 %v2653
        %v2767 = vunpack.c.l.b16 %v2654
        %v2768 = vunpack.c.l.b16 %v2655
        %v2769 = vunpack.c.l.b16 %v2656
        %v2770 = vunpack.c.l.b16 %v2657
        %v2771 = vunpack.c.l.b16 %v2658
        %v2772 = vunpack.c.l.b16 %v2659
        %v2773 = vunpack.c.l.b16 %v2660
        %v2774 = vunpack.c.l.b16 %v2661
        %v2775 = vunpack.c.l.b16 %v2662
        %v2776 = vunpack.c.l.b16 %v2663
        %v2777 = vpack.c.b16 %v2746, %v2745
        %v2778 = vpack.c.b16 %v2748, %v2747
        %v2779 = vpack.c.b16 %v2750, %v2749
        %v2780 = vpack.c.b16 %v2752, %v2751
        %v2781 = vpack.c.b16 %v2754, %v2753
        %v2782 = vpack.c.b16 %v2756, %v2755
        %v2783 = vpack.c.b16 %v2758, %v2757
        %v2784 = vpack.c.b16 %v2760, %v2759
        %v2785 = vpack.c.b16 %v2762, %v2761
        %v2786 = vpack.c.b16 %v2764, %v2763
        %v2787 = vpack.c.b16 %v2766, %v2765
        %v2788 = vpack.c.b16 %v2768, %v2767
        %v2789 = vpack.c.b16 %v2770, %v2769
        %v2790 = vpack.c.b16 %v2772, %v2771
        %v2791 = vpack.c.b16 %v2774, %v2773
        %v2792 = vpack.c.b16 %v2776, %v2775
        %v2825 = vunpack.c.l.b16 %v2697
        %v2826 = vunpack.c.l.b16 %v2698
        %v2827 = vunpack.c.l.b16 %v2699
        %v2828 = vunpack.c.l.b16 %v2700
        %v2829 = vunpack.c.l.b16 %v2701
        %v2830 = vunpack.c.l.b16 %v2702
        %v2831 = vunpack.c.l.b16 %v2703
        %v2832 = vunpack.c.l.b16 %v2704
        %v2833 = vunpack.c.l.b16 %v2705
        %v2834 = vunpack.c.l.b16 %v2706
        %v2835 = vunpack.c.l.b16 %v2707
        %v2836 = vunpack.c.l.b16 %v2708
        %v2837 = vunpack.c.l.b16 %v2709
        %v2838 = vunpack.c.l.b16 %v2710
        %v2839 = vunpack.c.l.b16 %v2711
        %v2840 = vunpack.c.l.b16 %v2712
        %v2841 = vpack.c.b16 %v2826, %v2825
        %v2842 = vpack.c.b16 %v2828, %v2827
        %v2843 = vpack.c.b16 %v2830, %v2829
        %v2844 = vpack.c.b16 %v2832, %v2831
        %v2845 = vpack.c.b16 %v2834, %v2833
        %v2846 = vpack.c.b16 %v2836, %v2835
        %v2847 = vpack.c.b16 %v2838, %v2837
        %v2848 = vpack.c.b16 %v2840, %v2839
        %2857 = vmatpush.bf16.msra.mxu0 %v2848
        %2858 = vmatpush.bf16.msra.mxu0 %v2847
        %2859 = vmatpush.bf16.msra.mxu0 %v2846
        %2860 = vmatpush.bf16.msra.mxu0 %v2845
        %2861 = vmatpush.bf16.msra.mxu0 %v2844
        %2862 = vmatpush.bf16.msra.mxu0 %v2843
        %2863 = vmatpush.bf16.msra.mxu0 %v2842
        %2864 = vmatpush.bf16.msra.mxu0 %v2841
        %2865 = vmatmul.bf16.gmra.mxu0 %v2777
        %v2866 = vpop.f32.mrf.mxu0
        %v2867 = vadd.f32 0.0, %v2866
        %v2868 = vpop.f32.mrf.mxu0
        %v2869 = vadd.f32 0.0, %v2868
        %2870 = vmatmul.bf16.gmra.mxu0 %v2778
        %v2871 = vpop.f32.mrf.mxu0
        %v2872 = vadd.f32 0.0, %v2871
        %v2873 = vpop.f32.mrf.mxu0
        %v2874 = vadd.f32 0.0, %v2873
        %2875 = vmatmul.bf16.gmra.mxu0 %v2779
        %v2876 = vpop.f32.mrf.mxu0
        %v2877 = vadd.f32 0.0, %v2876
        %v2878 = vpop.f32.mrf.mxu0
        %v2879 = vadd.f32 0.0, %v2878
        %2880 = vmatmul.bf16.gmra.mxu0 %v2780
        %v2881 = vpop.f32.mrf.mxu0
        %v2882 = vadd.f32 0.0, %v2881
        %v2883 = vpop.f32.mrf.mxu0
        %v2884 = vadd.f32 0.0, %v2883
        %2885 = vmatmul.bf16.gmra.mxu0 %v2781
        %v2886 = vpop.f32.mrf.mxu0
        %v2887 = vadd.f32 0.0, %v2886
        %v2888 = vpop.f32.mrf.mxu0
        %v2889 = vadd.f32 0.0, %v2888
        %2890 = vmatmul.bf16.gmra.mxu0 %v2782
        %v2891 = vpop.f32.mrf.mxu0
        %v2892 = vadd.f32 0.0, %v2891
        %v2893 = vpop.f32.mrf.mxu0
        %v2894 = vadd.f32 0.0, %v2893
        %2895 = vmatmul.bf16.gmra.mxu0 %v2783
        %v2896 = vpop.f32.mrf.mxu0
        %v2897 = vadd.f32 0.0, %v2896
        %v2898 = vpop.f32.mrf.mxu0
        %v2899 = vadd.f32 0.0, %v2898
        %2900 = vmatmul.bf16.gmra.mxu0 %v2784
        %v2901 = vpop.f32.mrf.mxu0
        %v2902 = vadd.f32 0.0, %v2901
        %v2903 = vpop.f32.mrf.mxu0
        %v2904 = vadd.f32 0.0, %v2903
        %2905 = vmatmul.bf16.gmra.mxu0 %v2785
        %v2906 = vpop.f32.mrf.mxu0
        %v2907 = vadd.f32 0.0, %v2906
        %v2908 = vpop.f32.mrf.mxu0
        %v2909 = vadd.f32 0.0, %v2908
        %2910 = vmatmul.bf16.gmra.mxu0 %v2786
        %v2911 = vpop.f32.mrf.mxu0
        %v2912 = vadd.f32 0.0, %v2911
        %v2913 = vpop.f32.mrf.mxu0
        %v2914 = vadd.f32 0.0, %v2913
        %2915 = vmatmul.bf16.gmra.mxu0 %v2787
        %v2916 = vpop.f32.mrf.mxu0
        %v2917 = vadd.f32 0.0, %v2916
        %v2918 = vpop.f32.mrf.mxu0
        %v2919 = vadd.f32 0.0, %v2918
        %2920 = vmatmul.bf16.gmra.mxu0 %v2788
        %v2921 = vpop.f32.mrf.mxu0
        %v2922 = vadd.f32 0.0, %v2921
        %v2923 = vpop.f32.mrf.mxu0
        %v2924 = vadd.f32 0.0, %v2923
        %2925 = vmatmul.bf16.gmra.mxu0 %v2789
        %v2926 = vpop.f32.mrf.mxu0
        %v2927 = vadd.f32 0.0, %v2926
        %v2928 = vpop.f32.mrf.mxu0
        %v2929 = vadd.f32 0.0, %v2928
        %2930 = vmatmul.bf16.gmra.mxu0 %v2790
        %v2931 = vpop.f32.mrf.mxu0
        %v2932 = vadd.f32 0.0, %v2931
        %v2933 = vpop.f32.mrf.mxu0
        %v2934 = vadd.f32 0.0, %v2933
        %2935 = vmatmul.bf16.gmra.mxu0 %v2791
        %v2936 = vpop.f32.mrf.mxu0
        %v2937 = vadd.f32 0.0, %v2936
        %v2938 = vpop.f32.mrf.mxu0
        %v2939 = vadd.f32 0.0, %v2938
        %2940 = vmatmul.bf16.gmra.mxu0 %v2792
        %v2941 = vpop.f32.mrf.mxu0
        %v2942 = vadd.f32 0.0, %v2941
        %v2943 = vpop.f32.mrf.mxu0
        %v2944 = vadd.f32 0.0, %v2943
        %2945 = vdwg.mxu0
        %v2946 = vadd.f32 %v2664, %v2867
        %v2947 = vadd.f32 %v2665, %v2869
        %v2948 = vadd.f32 %v2666, %v2872
        %v2949 = vadd.f32 %v2667, %v2874
        %v2950 = vadd.f32 %v2668, %v2877
        %v2951 = vadd.f32 %v2669, %v2879
        %v2952 = vadd.f32 %v2670, %v2882
        %v2953 = vadd.f32 %v2671, %v2884
        %v2954 = vadd.f32 %v2672, %v2887
        %v2955 = vadd.f32 %v2673, %v2889
        %v2956 = vadd.f32 %v2674, %v2892
        %v2957 = vadd.f32 %v2675, %v2894
        %v2958 = vadd.f32 %v2676, %v2897
        %v2959 = vadd.f32 %v2677, %v2899
        %v2960 = vadd.f32 %v2678, %v2902
        %v2961 = vadd.f32 %v2679, %v2904
        %v2962 = vadd.f32 %v2680, %v2907
        %v2963 = vadd.f32 %v2681, %v2909
        %v2964 = vadd.f32 %v2682, %v2912
        %v2965 = vadd.f32 %v2683, %v2914
        %v2966 = vadd.f32 %v2684, %v2917
        %v2967 = vadd.f32 %v2685, %v2919
        %v2968 = vadd.f32 %v2686, %v2922
        %v2969 = vadd.f32 %v2687, %v2924
        %v2970 = vadd.f32 %v2688, %v2927
        %v2971 = vadd.f32 %v2689, %v2929
        %v2972 = vadd.f32 %v2690, %v2932
        %v2973 = vadd.f32 %v2691, %v2934
        %v2974 = vadd.f32 %v2692, %v2937
        %v2975 = vadd.f32 %v2693, %v2939
        %v2976 = vadd.f32 %v2694, %v2942
        %v2977 = vadd.f32 %v2695, %v2944
        %2978 = vst [vmem:[#allocation3] sm:$0xff] %v2946
        %2979 = vst [vmem:[#allocation3 + $0x8] sm:$0xff] %v2947
        %2980 = vst [vmem:[#allocation3 + $0x10] sm:$0xff] %v2948
        %2981 = vst [vmem:[#allocation3 + $0x18] sm:$0xff] %v2949
        %2982 = vst [vmem:[#allocation3 + $0x20] sm:$0xff] %v2950
        %2983 = vst [vmem:[#allocation3 + $0x28] sm:$0xff] %v2951
        %2984 = vst [vmem:[#allocation3 + $0x30] sm:$0xff] %v2952
        %2985 = vst [vmem:[#allocation3 + $0x38] sm:$0xff] %v2953
        %2986 = vst [vmem:[#allocation3 + $0x40] sm:$0xff] %v2954
        %2987 = vst [vmem:[#allocation3 + $0x48] sm:$0xff] %v2955
        %2988 = vst [vmem:[#allocation3 + $0x50] sm:$0xff] %v2956
        %2989 = vst [vmem:[#allocation3 + $0x58] sm:$0xff] %v2957
        %2990 = vst [vmem:[#allocation3 + $0x60] sm:$0xff] %v2958
        %2991 = vst [vmem:[#allocation3 + $0x68] sm:$0xff] %v2959
        %2992 = vst [vmem:[#allocation3 + $0x70] sm:$0xff] %v2960
        %2993 = vst [vmem:[#allocation3 + $0x78] sm:$0xff] %v2961
        %2994 = vst [vmem:[#allocation3 + $0x80] sm:$0xff] %v2962
        %2995 = vst [vmem:[#allocation3 + $0x88] sm:$0xff] %v2963
        %2996 = vst [vmem:[#allocation3 + $0x90] sm:$0xff] %v2964
        %2997 = vst [vmem:[#allocation3 + $0x98] sm:$0xff] %v2965
        %2998 = vst [vmem:[#allocation3 + $0xa0] sm:$0xff] %v2966
        %2999 = vst [vmem:[#allocation3 + $0xa8] sm:$0xff] %v2967
        %3000 = vst [vmem:[#allocation3 + $0xb0] sm:$0xff] %v2968
        %3001 = vst [vmem:[#allocation3 + $0xb8] sm:$0xff] %v2969
        %3002 = vst [vmem:[#allocation3 + $0xc0] sm:$0xff] %v2970
        %3003 = vst [vmem:[#allocation3 + $0xc8] sm:$0xff] %v2971
        %3004 = vst [vmem:[#allocation3 + $0xd0] sm:$0xff] %v2972
        %3005 = vst [vmem:[#allocation3 + $0xd8] sm:$0xff] %v2973
        %3006 = vst [vmem:[#allocation3 + $0xe0] sm:$0xff] %v2974
        %3007 = vst [vmem:[#allocation3 + $0xe8] sm:$0xff] %v2975
        %3008 = vst [vmem:[#allocation3 + $0xf0] sm:$0xff] %v2976
        %3009 = vst [vmem:[#allocation3 + $0xf8] sm:$0xff] %v2977
        %v3010 = vld [vmem:[%s831] sm:$0xf]
        %v3011 = vld [vmem:[%s831 + $0x4] sm:$0xf]
        %v3012 = vld [vmem:[%s831 + $0x8] sm:$0x1]
        %v3013 = vld [vmem:[%s831 + $0xc] sm:$0xf]
        %v3014 = vld [vmem:[%s831 + $0x10] sm:$0xf]
        %v3015 = vld [vmem:[%s831 + $0x14] sm:$0x1]
        %v3016 = vld [vmem:[%s831 + $0x18] sm:$0xf]
        %v3017 = vld [vmem:[%s831 + $0x1c] sm:$0xf]
        %v3018 = vld [vmem:[%s831 + $0x20] sm:$0x1]
        %v3019 = vld [vmem:[%s831 + $0x24] sm:$0xf]
        %v3020 = vld [vmem:[%s831 + $0x28] sm:$0xf]
        %v3021 = vld [vmem:[%s831 + $0x2c] sm:$0x1]
        %v3022 = vld [vmem:[%s831 + $0x30] sm:$0xf]
        %v3023 = vld [vmem:[%s831 + $0x34] sm:$0xf]
        %v3024 = vld [vmem:[%s831 + $0x38] sm:$0x1]
        %v3025 = vld [vmem:[%s831 + $0x3c] sm:$0xf]
        %v3026 = vld [vmem:[%s831 + $0x40] sm:$0xf]
        %v3027 = vld [vmem:[%s831 + $0x44] sm:$0x1]
        %v3028 = vld [vmem:[%s831 + $0x48] sm:$0xf]
        %v3029 = vld [vmem:[%s831 + $0x4c] sm:$0xf]
        %v3030 = vld [vmem:[%s831 + $0x50] sm:$0x1]
        %v3031 = vld [vmem:[%s831 + $0x54] sm:$0xf]
        %v3032 = vld [vmem:[%s831 + $0x58] sm:$0xf]
        %v3033 = vld [vmem:[%s831 + $0x5c] sm:$0x1]
        %v3034 = vld [vmem:[%s831 + $0x60] sm:$0xf]
        %v3035 = vld [vmem:[%s831 + $0x64] sm:$0xf]
        %v3036 = vld [vmem:[%s831 + $0x68] sm:$0x1]
        %v3037 = vld [vmem:[%s831 + $0x6c] sm:$0xf]
        %v3038 = vld [vmem:[%s831 + $0x70] sm:$0xf]
        %v3039 = vld [vmem:[%s831 + $0x74] sm:$0x1]
        %v3040 = vld [vmem:[%s831 + $0x78] sm:$0xf]
        %v3041 = vld [vmem:[%s831 + $0x7c] sm:$0xf]
        %v3042 = vld [vmem:[%s831 + $0x80] sm:$0x1]
        %v3043 = vld [vmem:[%s831 + $0x84] sm:$0xf]
        %v3044 = vld [vmem:[%s831 + $0x88] sm:$0xf]
        %v3045 = vld [vmem:[%s831 + $0x8c] sm:$0x1]
        %v3046 = vld [vmem:[%s831 + $0x90] sm:$0xf]
        %v3047 = vld [vmem:[%s831 + $0x94] sm:$0xf]
        %v3048 = vld [vmem:[%s831 + $0x98] sm:$0x1]
        %v3049 = vld [vmem:[%s831 + $0x9c] sm:$0xf]
        %v3050 = vld [vmem:[%s831 + $0xa0] sm:$0xf]
        %v3051 = vld [vmem:[%s831 + $0xa4] sm:$0x1]
        %v3052 = vld [vmem:[%s831 + $0xa8] sm:$0xf]
        %v3053 = vld [vmem:[%s831 + $0xac] sm:$0xf]
        %v3054 = vld [vmem:[%s831 + $0xb0] sm:$0x1]
        %v3055 = vld [vmem:[%s831 + $0xb4] sm:$0xf]
        %v3056 = vld [vmem:[%s831 + $0xb8] sm:$0xf]
        %v3057 = vld [vmem:[%s831 + $0xbc] sm:$0x1]
        %v3059 = vshrl.u32 %v3010, 16
        %v3061 = vrot.slane %v3059, 4
        %v3062 = vshll.u32 %v3010, 16
        %v3064 = vrot.slane %v3062, 5
        %v3065 = vor.u32 %v3061, %v3064
        %v3066 = vrot.slane %v3065, 4
        %v3068 = vshll.u32 %v3011, 16
        %v3070 = vrot.slane %v3068, 5
        %v3071 = vsel %vm1408, %v3066, %v3070
        %v3072 = vshrl.u32 %v3011, 16
        %v3074 = vrot.slane %v3072, 4
        %v3075 = vor.u32 %v3074, %v3070
        %v3076 = vrot.slane %v3075, 4
        %v3078 = vshll.u32 %v3012, 16
        %v3080 = vrot.slane %v3078, 5
        %v3081 = vsel %vm1408, %v3076, %v3080
        %v3083 = vshrl.u32 %v3013, 16
        %v3085 = vrot.slane %v3083, 4
        %v3086 = vshll.u32 %v3013, 16
        %v3088 = vrot.slane %v3086, 5
        %v3089 = vor.u32 %v3085, %v3088
        %v3090 = vrot.slane %v3089, 4
        %v3092 = vshll.u32 %v3014, 16
        %v3094 = vrot.slane %v3092, 5
        %v3095 = vsel %vm1408, %v3090, %v3094
        %v3096 = vshrl.u32 %v3014, 16
        %v3098 = vrot.slane %v3096, 4
        %v3099 = vor.u32 %v3098, %v3094
        %v3100 = vrot.slane %v3099, 4
        %v3102 = vshll.u32 %v3015, 16
        %v3104 = vrot.slane %v3102, 5
        %v3105 = vsel %vm1408, %v3100, %v3104
        %v3107 = vshrl.u32 %v3016, 16
        %v3109 = vrot.slane %v3107, 4
        %v3110 = vshll.u32 %v3016, 16
        %v3112 = vrot.slane %v3110, 5
        %v3113 = vor.u32 %v3109, %v3112
        %v3114 = vrot.slane %v3113, 4
        %v3116 = vshll.u32 %v3017, 16
        %v3118 = vrot.slane %v3116, 5
        %v3119 = vsel %vm1408, %v3114, %v3118
        %v3120 = vshrl.u32 %v3017, 16
        %v3122 = vrot.slane %v3120, 4
        %v3123 = vor.u32 %v3122, %v3118
        %v3124 = vrot.slane %v3123, 4
        %v3126 = vshll.u32 %v3018, 16
        %v3128 = vrot.slane %v3126, 5
        %v3129 = vsel %vm1408, %v3124, %v3128
        %v3131 = vshrl.u32 %v3019, 16
        %v3133 = vrot.slane %v3131, 4
        %v3134 = vshll.u32 %v3019, 16
        %v3136 = vrot.slane %v3134, 5
        %v3137 = vor.u32 %v3133, %v3136
        %v3138 = vrot.slane %v3137, 4
        %v3140 = vshll.u32 %v3020, 16
        %v3142 = vrot.slane %v3140, 5
        %v3143 = vsel %vm1408, %v3138, %v3142
        %v3144 = vshrl.u32 %v3020, 16
        %v3146 = vrot.slane %v3144, 4
        %v3147 = vor.u32 %v3146, %v3142
        %v3148 = vrot.slane %v3147, 4
        %v3150 = vshll.u32 %v3021, 16
        %v3152 = vrot.slane %v3150, 5
        %v3153 = vsel %vm1408, %v3148, %v3152
        %v3155 = vshrl.u32 %v3022, 16
        %v3157 = vrot.slane %v3155, 4
        %v3158 = vshll.u32 %v3022, 16
        %v3160 = vrot.slane %v3158, 5
        %v3161 = vor.u32 %v3157, %v3160
        %v3162 = vrot.slane %v3161, 4
        %v3164 = vshll.u32 %v3023, 16
        %v3166 = vrot.slane %v3164, 5
        %v3167 = vsel %vm1408, %v3162, %v3166
        %v3168 = vshrl.u32 %v3023, 16
        %v3170 = vrot.slane %v3168, 4
        %v3171 = vor.u32 %v3170, %v3166
        %v3172 = vrot.slane %v3171, 4
        %v3174 = vshll.u32 %v3024, 16
        %v3176 = vrot.slane %v3174, 5
        %v3177 = vsel %vm1408, %v3172, %v3176
        %v3179 = vshrl.u32 %v3025, 16
        %v3181 = vrot.slane %v3179, 4
        %v3182 = vshll.u32 %v3025, 16
        %v3184 = vrot.slane %v3182, 5
        %v3185 = vor.u32 %v3181, %v3184
        %v3186 = vrot.slane %v3185, 4
        %v3188 = vshll.u32 %v3026, 16
        %v3190 = vrot.slane %v3188, 5
        %v3191 = vsel %vm1408, %v3186, %v3190
        %v3192 = vshrl.u32 %v3026, 16
        %v3194 = vrot.slane %v3192, 4
        %v3195 = vor.u32 %v3194, %v3190
        %v3196 = vrot.slane %v3195, 4
        %v3198 = vshll.u32 %v3027, 16
        %v3200 = vrot.slane %v3198, 5
        %v3201 = vsel %vm1408, %v3196, %v3200
        %v3203 = vshrl.u32 %v3028, 16
        %v3205 = vrot.slane %v3203, 4
        %v3206 = vshll.u32 %v3028, 16
        %v3208 = vrot.slane %v3206, 5
        %v3209 = vor.u32 %v3205, %v3208
        %v3210 = vrot.slane %v3209, 4
        %v3212 = vshll.u32 %v3029, 16
        %v3214 = vrot.slane %v3212, 5
        %v3215 = vsel %vm1408, %v3210, %v3214
        %v3216 = vshrl.u32 %v3029, 16
        %v3218 = vrot.slane %v3216, 4
        %v3219 = vor.u32 %v3218, %v3214
        %v3220 = vrot.slane %v3219, 4
        %v3222 = vshll.u32 %v3030, 16
        %v3224 = vrot.slane %v3222, 5
        %v3225 = vsel %vm1408, %v3220, %v3224
        %v3227 = vshrl.u32 %v3031, 16
        %v3229 = vrot.slane %v3227, 4
        %v3230 = vshll.u32 %v3031, 16
        %v3232 = vrot.slane %v3230, 5
        %v3233 = vor.u32 %v3229, %v3232
        %v3234 = vrot.slane %v3233, 4
        %v3236 = vshll.u32 %v3032, 16
        %v3238 = vrot.slane %v3236, 5
        %v3239 = vsel %vm1408, %v3234, %v3238
        %v3240 = vshrl.u32 %v3032, 16
        %v3242 = vrot.slane %v3240, 4
        %v3243 = vor.u32 %v3242, %v3238
        %v3244 = vrot.slane %v3243, 4
        %v3246 = vshll.u32 %v3033, 16
        %v3248 = vrot.slane %v3246, 5
        %v3249 = vsel %vm1408, %v3244, %v3248
        %v3251 = vshrl.u32 %v3034, 16
        %v3253 = vrot.slane %v3251, 4
        %v3254 = vshll.u32 %v3034, 16
        %v3256 = vrot.slane %v3254, 5
        %v3257 = vor.u32 %v3253, %v3256
        %v3258 = vrot.slane %v3257, 4
        %v3260 = vshll.u32 %v3035, 16
        %v3262 = vrot.slane %v3260, 5
        %v3263 = vsel %vm1408, %v3258, %v3262
        %v3264 = vshrl.u32 %v3035, 16
        %v3266 = vrot.slane %v3264, 4
        %v3267 = vor.u32 %v3266, %v3262
        %v3268 = vrot.slane %v3267, 4
        %v3270 = vshll.u32 %v3036, 16
        %v3272 = vrot.slane %v3270, 5
        %v3273 = vsel %vm1408, %v3268, %v3272
        %v3275 = vshrl.u32 %v3037, 16
        %v3277 = vrot.slane %v3275, 4
        %v3278 = vshll.u32 %v3037, 16
        %v3280 = vrot.slane %v3278, 5
        %v3281 = vor.u32 %v3277, %v3280
        %v3282 = vrot.slane %v3281, 4
        %v3284 = vshll.u32 %v3038, 16
        %v3286 = vrot.slane %v3284, 5
        %v3287 = vsel %vm1408, %v3282, %v3286
        %v3288 = vshrl.u32 %v3038, 16
        %v3290 = vrot.slane %v3288, 4
        %v3291 = vor.u32 %v3290, %v3286
        %v3292 = vrot.slane %v3291, 4
        %v3294 = vshll.u32 %v3039, 16
        %v3296 = vrot.slane %v3294, 5
        %v3297 = vsel %vm1408, %v3292, %v3296
        %v3299 = vshrl.u32 %v3040, 16
        %v3301 = vrot.slane %v3299, 4
        %v3302 = vshll.u32 %v3040, 16
        %v3304 = vrot.slane %v3302, 5
        %v3305 = vor.u32 %v3301, %v3304
        %v3306 = vrot.slane %v3305, 4
        %v3308 = vshll.u32 %v3041, 16
        %v3310 = vrot.slane %v3308, 5
        %v3311 = vsel %vm1408, %v3306, %v3310
        %v3312 = vshrl.u32 %v3041, 16
        %v3314 = vrot.slane %v3312, 4
        %v3315 = vor.u32 %v3314, %v3310
        %v3316 = vrot.slane %v3315, 4
        %v3318 = vshll.u32 %v3042, 16
        %v3320 = vrot.slane %v3318, 5
        %v3321 = vsel %vm1408, %v3316, %v3320
        %v3323 = vshrl.u32 %v3043, 16
        %v3325 = vrot.slane %v3323, 4
        %v3326 = vshll.u32 %v3043, 16
        %v3328 = vrot.slane %v3326, 5
        %v3329 = vor.u32 %v3325, %v3328
        %v3330 = vrot.slane %v3329, 4
        %v3332 = vshll.u32 %v3044, 16
        %v3334 = vrot.slane %v3332, 5
        %v3335 = vsel %vm1408, %v3330, %v3334
        %v3336 = vshrl.u32 %v3044, 16
        %v3338 = vrot.slane %v3336, 4
        %v3339 = vor.u32 %v3338, %v3334
        %v3340 = vrot.slane %v3339, 4
        %v3342 = vshll.u32 %v3045, 16
        %v3344 = vrot.slane %v3342, 5
        %v3345 = vsel %vm1408, %v3340, %v3344
        %v3347 = vshrl.u32 %v3046, 16
        %v3349 = vrot.slane %v3347, 4
        %v3350 = vshll.u32 %v3046, 16
        %v3352 = vrot.slane %v3350, 5
        %v3353 = vor.u32 %v3349, %v3352
        %v3354 = vrot.slane %v3353, 4
        %v3356 = vshll.u32 %v3047, 16
        %v3358 = vrot.slane %v3356, 5
        %v3359 = vsel %vm1408, %v3354, %v3358
        %v3360 = vshrl.u32 %v3047, 16
        %v3362 = vrot.slane %v3360, 4
        %v3363 = vor.u32 %v3362, %v3358
        %v3364 = vrot.slane %v3363, 4
        %v3366 = vshll.u32 %v3048, 16
        %v3368 = vrot.slane %v3366, 5
        %v3369 = vsel %vm1408, %v3364, %v3368
        %v3371 = vshrl.u32 %v3049, 16
        %v3373 = vrot.slane %v3371, 4
        %v3374 = vshll.u32 %v3049, 16
        %v3376 = vrot.slane %v3374, 5
        %v3377 = vor.u32 %v3373, %v3376
        %v3378 = vrot.slane %v3377, 4
        %v3380 = vshll.u32 %v3050, 16
        %v3382 = vrot.slane %v3380, 5
        %v3383 = vsel %vm1408, %v3378, %v3382
        %v3384 = vshrl.u32 %v3050, 16
        %v3386 = vrot.slane %v3384, 4
        %v3387 = vor.u32 %v3386, %v3382
        %v3388 = vrot.slane %v3387, 4
        %v3390 = vshll.u32 %v3051, 16
        %v3392 = vrot.slane %v3390, 5
        %v3393 = vsel %vm1408, %v3388, %v3392
        %v3395 = vshrl.u32 %v3052, 16
        %v3397 = vrot.slane %v3395, 4
        %v3398 = vshll.u32 %v3052, 16
        %v3400 = vrot.slane %v3398, 5
        %v3401 = vor.u32 %v3397, %v3400
        %v3402 = vrot.slane %v3401, 4
        %v3404 = vshll.u32 %v3053, 16
        %v3406 = vrot.slane %v3404, 5
        %v3407 = vsel %vm1408, %v3402, %v3406
        %v3408 = vshrl.u32 %v3053, 16
        %v3410 = vrot.slane %v3408, 4
        %v3411 = vor.u32 %v3410, %v3406
        %v3412 = vrot.slane %v3411, 4
        %v3414 = vshll.u32 %v3054, 16
        %v3416 = vrot.slane %v3414, 5
        %v3417 = vsel %vm1408, %v3412, %v3416
        %v3419 = vshrl.u32 %v3055, 16
        %v3421 = vrot.slane %v3419, 4
        %v3422 = vshll.u32 %v3055, 16
        %v3424 = vrot.slane %v3422, 5
        %v3425 = vor.u32 %v3421, %v3424
        %v3426 = vrot.slane %v3425, 4
        %v3428 = vshll.u32 %v3056, 16
        %v3430 = vrot.slane %v3428, 5
        %v3431 = vsel %vm1408, %v3426, %v3430
        %v3432 = vshrl.u32 %v3056, 16
        %v3434 = vrot.slane %v3432, 4
        %v3435 = vor.u32 %v3434, %v3430
        %v3436 = vrot.slane %v3435, 4
        %v3438 = vshll.u32 %v3057, 16
        %v3440 = vrot.slane %v3438, 5
        %v3441 = vsel %vm1408, %v3436, %v3440
        %v3442 = vld [vmem:[#allocation3] sm:$0xff]
        %v3443 = vld [vmem:[#allocation3 + $0x8] sm:$0xff]
        %v3444 = vld [vmem:[#allocation3 + $0x10] sm:$0xff]
        %v3445 = vld [vmem:[#allocation3 + $0x18] sm:$0xff]
        %v3446 = vld [vmem:[#allocation3 + $0x20] sm:$0xff]
        %v3447 = vld [vmem:[#allocation3 + $0x28] sm:$0xff]
        %v3448 = vld [vmem:[#allocation3 + $0x30] sm:$0xff]
        %v3449 = vld [vmem:[#allocation3 + $0x38] sm:$0xff]
        %v3450 = vld [vmem:[#allocation3 + $0x40] sm:$0xff]
        %v3451 = vld [vmem:[#allocation3 + $0x48] sm:$0xff]
        %v3452 = vld [vmem:[#allocation3 + $0x50] sm:$0xff]
        %v3453 = vld [vmem:[#allocation3 + $0x58] sm:$0xff]
        %v3454 = vld [vmem:[#allocation3 + $0x60] sm:$0xff]
        %v3455 = vld [vmem:[#allocation3 + $0x68] sm:$0xff]
        %v3456 = vld [vmem:[#allocation3 + $0x70] sm:$0xff]
        %v3457 = vld [vmem:[#allocation3 + $0x78] sm:$0xff]
        %v3458 = vld [vmem:[#allocation3 + $0x80] sm:$0xff]
        %v3459 = vld [vmem:[#allocation3 + $0x88] sm:$0xff]
        %v3460 = vld [vmem:[#allocation3 + $0x90] sm:$0xff]
        %v3461 = vld [vmem:[#allocation3 + $0x98] sm:$0xff]
        %v3462 = vld [vmem:[#allocation3 + $0xa0] sm:$0xff]
        %v3463 = vld [vmem:[#allocation3 + $0xa8] sm:$0xff]
        %v3464 = vld [vmem:[#allocation3 + $0xb0] sm:$0xff]
        %v3465 = vld [vmem:[#allocation3 + $0xb8] sm:$0xff]
        %v3466 = vld [vmem:[#allocation3 + $0xc0] sm:$0xff]
        %v3467 = vld [vmem:[#allocation3 + $0xc8] sm:$0xff]
        %v3468 = vld [vmem:[#allocation3 + $0xd0] sm:$0xff]
        %v3469 = vld [vmem:[#allocation3 + $0xd8] sm:$0xff]
        %v3470 = vld [vmem:[#allocation3 + $0xe0] sm:$0xff]
        %v3471 = vld [vmem:[#allocation3 + $0xe8] sm:$0xff]
        %v3472 = vld [vmem:[#allocation3 + $0xf0] sm:$0xff]
        %v3473 = vld [vmem:[#allocation3 + $0xf8] sm:$0xff]
        %s3474 = scalar_lea.vmem [#allocation4], 256
        %v3475 = vld [vmem:[%s3474] sm:$0xf]
        %v3476 = vld [vmem:[%s3474 + $0x4] sm:$0xf]
        %v3477 = vld [vmem:[%s3474 + $0x8] sm:$0xf]
        %v3478 = vld [vmem:[%s3474 + $0xc] sm:$0xf]
        %v3479 = vld [vmem:[%s3474 + $0x10] sm:$0xf]
        %v3480 = vld [vmem:[%s3474 + $0x14] sm:$0xf]
        %v3481 = vld [vmem:[%s3474 + $0x18] sm:$0xf]
        %v3482 = vld [vmem:[%s3474 + $0x1c] sm:$0xf]
        %v3483 = vld [vmem:[%s3474 + $0x20] sm:$0xf]
        %v3484 = vld [vmem:[%s3474 + $0x24] sm:$0xf]
        %v3485 = vld [vmem:[%s3474 + $0x28] sm:$0xf]
        %v3486 = vld [vmem:[%s3474 + $0x2c] sm:$0xf]
        %v3487 = vld [vmem:[%s3474 + $0x30] sm:$0xf]
        %v3488 = vld [vmem:[%s3474 + $0x34] sm:$0xf]
        %v3489 = vld [vmem:[%s3474 + $0x38] sm:$0xf]
        %v3490 = vld [vmem:[%s3474 + $0x3c] sm:$0xf]
        %v3491 = vunpack.c.l.b16 %v3071
        %v3492 = vunpack.c.l.b16 %v3081
        %v3493 = vunpack.c.l.b16 %v3095
        %v3494 = vunpack.c.l.b16 %v3105
        %v3495 = vunpack.c.l.b16 %v3119
        %v3496 = vunpack.c.l.b16 %v3129
        %v3497 = vunpack.c.l.b16 %v3143
        %v3498 = vunpack.c.l.b16 %v3153
        %v3499 = vunpack.c.l.b16 %v3167
        %v3500 = vunpack.c.l.b16 %v3177
        %v3501 = vunpack.c.l.b16 %v3191
        %v3502 = vunpack.c.l.b16 %v3201
        %v3503 = vunpack.c.l.b16 %v3215
        %v3504 = vunpack.c.l.b16 %v3225
        %v3505 = vunpack.c.l.b16 %v3239
        %v3506 = vunpack.c.l.b16 %v3249
        %v3507 = vunpack.c.l.b16 %v3263
        %v3508 = vunpack.c.l.b16 %v3273
        %v3509 = vunpack.c.l.b16 %v3287
        %v3510 = vunpack.c.l.b16 %v3297
        %v3511 = vunpack.c.l.b16 %v3311
        %v3512 = vunpack.c.l.b16 %v3321
        %v3513 = vunpack.c.l.b16 %v3335
        %v3514 = vunpack.c.l.b16 %v3345
        %v3515 = vunpack.c.l.b16 %v3359
        %v3516 = vunpack.c.l.b16 %v3369
        %v3517 = vunpack.c.l.b16 %v3383
        %v3518 = vunpack.c.l.b16 %v3393
        %v3519 = vunpack.c.l.b16 %v3407
        %v3520 = vunpack.c.l.b16 %v3417
        %v3521 = vunpack.c.l.b16 %v3431
        %v3522 = vunpack.c.l.b16 %v3441
        %v3523 = vpack.c.b16 %v3492, %v3491
        %v3524 = vpack.c.b16 %v3494, %v3493
        %v3525 = vpack.c.b16 %v3496, %v3495
        %v3526 = vpack.c.b16 %v3498, %v3497
        %v3527 = vpack.c.b16 %v3500, %v3499
        %v3528 = vpack.c.b16 %v3502, %v3501
        %v3529 = vpack.c.b16 %v3504, %v3503
        %v3530 = vpack.c.b16 %v3506, %v3505
        %v3531 = vpack.c.b16 %v3508, %v3507
        %v3532 = vpack.c.b16 %v3510, %v3509
        %v3533 = vpack.c.b16 %v3512, %v3511
        %v3534 = vpack.c.b16 %v3514, %v3513
        %v3535 = vpack.c.b16 %v3516, %v3515
        %v3536 = vpack.c.b16 %v3518, %v3517
        %v3537 = vpack.c.b16 %v3520, %v3519
        %v3538 = vpack.c.b16 %v3522, %v3521
        %v3571 = vunpack.c.l.b16 %v3475
        %v3572 = vunpack.c.l.b16 %v3476
        %v3573 = vunpack.c.l.b16 %v3477
        %v3574 = vunpack.c.l.b16 %v3478
        %v3575 = vunpack.c.l.b16 %v3479
        %v3576 = vunpack.c.l.b16 %v3480
        %v3577 = vunpack.c.l.b16 %v3481
        %v3578 = vunpack.c.l.b16 %v3482
        %v3579 = vunpack.c.l.b16 %v3483
        %v3580 = vunpack.c.l.b16 %v3484
        %v3581 = vunpack.c.l.b16 %v3485
        %v3582 = vunpack.c.l.b16 %v3486
        %v3583 = vunpack.c.l.b16 %v3487
        %v3584 = vunpack.c.l.b16 %v3488
        %v3585 = vunpack.c.l.b16 %v3489
        %v3586 = vunpack.c.l.b16 %v3490
        %v3587 = vpack.c.b16 %v3572, %v3571
        %v3588 = vpack.c.b16 %v3574, %v3573
        %v3589 = vpack.c.b16 %v3576, %v3575
        %v3590 = vpack.c.b16 %v3578, %v3577
        %v3591 = vpack.c.b16 %v3580, %v3579
        %v3592 = vpack.c.b16 %v3582, %v3581
        %v3593 = vpack.c.b16 %v3584, %v3583
        %v3594 = vpack.c.b16 %v3586, %v3585
        %3603 = vmatpush.bf16.msra.mxu0 %v3594
        %3604 = vmatpush.bf16.msra.mxu0 %v3593
        %3605 = vmatpush.bf16.msra.mxu0 %v3592
        %3606 = vmatpush.bf16.msra.mxu0 %v3591
        %3607 = vmatpush.bf16.msra.mxu0 %v3590
        %3608 = vmatpush.bf16.msra.mxu0 %v3589
        %3609 = vmatpush.bf16.msra.mxu0 %v3588
        %3610 = vmatpush.bf16.msra.mxu0 %v3587
        %3611 = vmatmul.bf16.gmra.mxu0 %v3523
        %v3612 = vpop.f32.mrf.mxu0
        %v3613 = vadd.f32 0.0, %v3612
        %v3614 = vpop.f32.mrf.mxu0
        %v3615 = vadd.f32 0.0, %v3614
        %3616 = vmatmul.bf16.gmra.mxu0 %v3524
        %v3617 = vpop.f32.mrf.mxu0
        %v3618 = vadd.f32 0.0, %v3617
        %v3619 = vpop.f32.mrf.mxu0
        %v3620 = vadd.f32 0.0, %v3619
        %3621 = vmatmul.bf16.gmra.mxu0 %v3525
        %v3622 = vpop.f32.mrf.mxu0
        %v3623 = vadd.f32 0.0, %v3622
        %v3624 = vpop.f32.mrf.mxu0
        %v3625 = vadd.f32 0.0, %v3624
        %3626 = vmatmul.bf16.gmra.mxu0 %v3526
        %v3627 = vpop.f32.mrf.mxu0
        %v3628 = vadd.f32 0.0, %v3627
        %v3629 = vpop.f32.mrf.mxu0
        %v3630 = vadd.f32 0.0, %v3629
        %3631 = vmatmul.bf16.gmra.mxu0 %v3527
        %v3632 = vpop.f32.mrf.mxu0
        %v3633 = vadd.f32 0.0, %v3632
        %v3634 = vpop.f32.mrf.mxu0
        %v3635 = vadd.f32 0.0, %v3634
        %3636 = vmatmul.bf16.gmra.mxu0 %v3528
        %v3637 = vpop.f32.mrf.mxu0
        %v3638 = vadd.f32 0.0, %v3637
        %v3639 = vpop.f32.mrf.mxu0
        %v3640 = vadd.f32 0.0, %v3639
        %3641 = vmatmul.bf16.gmra.mxu0 %v3529
        %v3642 = vpop.f32.mrf.mxu0
        %v3643 = vadd.f32 0.0, %v3642
        %v3644 = vpop.f32.mrf.mxu0
        %v3645 = vadd.f32 0.0, %v3644
        %3646 = vmatmul.bf16.gmra.mxu0 %v3530
        %v3647 = vpop.f32.mrf.mxu0
        %v3648 = vadd.f32 0.0, %v3647
        %v3649 = vpop.f32.mrf.mxu0
        %v3650 = vadd.f32 0.0, %v3649
        %3651 = vmatmul.bf16.gmra.mxu0 %v3531
        %v3652 = vpop.f32.mrf.mxu0
        %v3653 = vadd.f32 0.0, %v3652
        %v3654 = vpop.f32.mrf.mxu0
        %v3655 = vadd.f32 0.0, %v3654
        %3656 = vmatmul.bf16.gmra.mxu0 %v3532
        %v3657 = vpop.f32.mrf.mxu0
        %v3658 = vadd.f32 0.0, %v3657
        %v3659 = vpop.f32.mrf.mxu0
        %v3660 = vadd.f32 0.0, %v3659
        %3661 = vmatmul.bf16.gmra.mxu0 %v3533
        %v3662 = vpop.f32.mrf.mxu0
        %v3663 = vadd.f32 0.0, %v3662
        %v3664 = vpop.f32.mrf.mxu0
        %v3665 = vadd.f32 0.0, %v3664
        %3666 = vmatmul.bf16.gmra.mxu0 %v3534
        %v3667 = vpop.f32.mrf.mxu0
        %v3668 = vadd.f32 0.0, %v3667
        %v3669 = vpop.f32.mrf.mxu0
        %v3670 = vadd.f32 0.0, %v3669
        %3671 = vmatmul.bf16.gmra.mxu0 %v3535
        %v3672 = vpop.f32.mrf.mxu0
        %v3673 = vadd.f32 0.0, %v3672
        %v3674 = vpop.f32.mrf.mxu0
        %v3675 = vadd.f32 0.0, %v3674
        %3676 = vmatmul.bf16.gmra.mxu0 %v3536
        %v3677 = vpop.f32.mrf.mxu0
        %v3678 = vadd.f32 0.0, %v3677
        %v3679 = vpop.f32.mrf.mxu0
        %v3680 = vadd.f32 0.0, %v3679
        %3681 = vmatmul.bf16.gmra.mxu0 %v3537
        %v3682 = vpop.f32.mrf.mxu0
        %v3683 = vadd.f32 0.0, %v3682
        %v3684 = vpop.f32.mrf.mxu0
        %v3685 = vadd.f32 0.0, %v3684
        %3686 = vmatmul.bf16.gmra.mxu0 %v3538
        %v3687 = vpop.f32.mrf.mxu0
        %v3688 = vadd.f32 0.0, %v3687
        %v3689 = vpop.f32.mrf.mxu0
        %v3690 = vadd.f32 0.0, %v3689
        %3691 = vdwg.mxu0
        %v3692 = vadd.f32 %v3442, %v3613
        %v3693 = vadd.f32 %v3443, %v3615
        %v3694 = vadd.f32 %v3444, %v3618
        %v3695 = vadd.f32 %v3445, %v3620
        %v3696 = vadd.f32 %v3446, %v3623
        %v3697 = vadd.f32 %v3447, %v3625
        %v3698 = vadd.f32 %v3448, %v3628
        %v3699 = vadd.f32 %v3449, %v3630
        %v3700 = vadd.f32 %v3450, %v3633
        %v3701 = vadd.f32 %v3451, %v3635
        %v3702 = vadd.f32 %v3452, %v3638
        %v3703 = vadd.f32 %v3453, %v3640
        %v3704 = vadd.f32 %v3454, %v3643
        %v3705 = vadd.f32 %v3455, %v3645
        %v3706 = vadd.f32 %v3456, %v3648
        %v3707 = vadd.f32 %v3457, %v3650
        %v3708 = vadd.f32 %v3458, %v3653
        %v3709 = vadd.f32 %v3459, %v3655
        %v3710 = vadd.f32 %v3460, %v3658
        %v3711 = vadd.f32 %v3461, %v3660
        %v3712 = vadd.f32 %v3462, %v3663
        %v3713 = vadd.f32 %v3463, %v3665
        %v3714 = vadd.f32 %v3464, %v3668
        %v3715 = vadd.f32 %v3465, %v3670
        %v3716 = vadd.f32 %v3466, %v3673
        %v3717 = vadd.f32 %v3467, %v3675
        %v3718 = vadd.f32 %v3468, %v3678
        %v3719 = vadd.f32 %v3469, %v3680
        %v3720 = vadd.f32 %v3470, %v3683
        %v3721 = vadd.f32 %v3471, %v3685
        %v3722 = vadd.f32 %v3472, %v3688
        %v3723 = vadd.f32 %v3473, %v3690
        %3724 = vst [vmem:[#allocation3] sm:$0xff] %v3692
        %3725 = vst [vmem:[#allocation3 + $0x8] sm:$0xff] %v3693
        %3726 = vst [vmem:[#allocation3 + $0x10] sm:$0xff] %v3694
        %3727 = vst [vmem:[#allocation3 + $0x18] sm:$0xff] %v3695
        %3728 = vst [vmem:[#allocation3 + $0x20] sm:$0xff] %v3696
        %3729 = vst [vmem:[#allocation3 + $0x28] sm:$0xff] %v3697
        %3730 = vst [vmem:[#allocation3 + $0x30] sm:$0xff] %v3698
        %3731 = vst [vmem:[#allocation3 + $0x38] sm:$0xff] %v3699
        %3732 = vst [vmem:[#allocation3 + $0x40] sm:$0xff] %v3700
        %3733 = vst [vmem:[#allocation3 + $0x48] sm:$0xff] %v3701
        %3734 = vst [vmem:[#allocation3 + $0x50] sm:$0xff] %v3702
        %3735 = vst [vmem:[#allocation3 + $0x58] sm:$0xff] %v3703
        %3736 = vst [vmem:[#allocation3 + $0x60] sm:$0xff] %v3704
        %3737 = vst [vmem:[#allocation3 + $0x68] sm:$0xff] %v3705
        %3738 = vst [vmem:[#allocation3 + $0x70] sm:$0xff] %v3706
        %3739 = vst [vmem:[#allocation3 + $0x78] sm:$0xff] %v3707
        %3740 = vst [vmem:[#allocation3 + $0x80] sm:$0xff] %v3708
        %3741 = vst [vmem:[#allocation3 + $0x88] sm:$0xff] %v3709
        %3742 = vst [vmem:[#allocation3 + $0x90] sm:$0xff] %v3710
        %3743 = vst [vmem:[#allocation3 + $0x98] sm:$0xff] %v3711
        %3744 = vst [vmem:[#allocation3 + $0xa0] sm:$0xff] %v3712
        %3745 = vst [vmem:[#allocation3 + $0xa8] sm:$0xff] %v3713
        %3746 = vst [vmem:[#allocation3 + $0xb0] sm:$0xff] %v3714
        %3747 = vst [vmem:[#allocation3 + $0xb8] sm:$0xff] %v3715
        %3748 = vst [vmem:[#allocation3 + $0xc0] sm:$0xff] %v3716
        %3749 = vst [vmem:[#allocation3 + $0xc8] sm:$0xff] %v3717
        %3750 = vst [vmem:[#allocation3 + $0xd0] sm:$0xff] %v3718
        %3751 = vst [vmem:[#allocation3 + $0xd8] sm:$0xff] %v3719
        %3752 = vst [vmem:[#allocation3 + $0xe0] sm:$0xff] %v3720
        %3753 = vst [vmem:[#allocation3 + $0xe8] sm:$0xff] %v3721
        %3754 = vst [vmem:[#allocation3 + $0xf0] sm:$0xff] %v3722
        %3755 = vst [vmem:[#allocation3 + $0xf8] sm:$0xff] %v3723
        %v3756 = vld [vmem:[%s831] sm:$0xe]
        %v3757 = vld [vmem:[%s831 + $0x4] sm:$0xf]
        %v3758 = vld [vmem:[%s831 + $0x8] sm:$0x1]
        %v3759 = vld [vmem:[%s831 + $0xc] sm:$0xe]
        %v3760 = vld [vmem:[%s831 + $0x10] sm:$0xf]
        %v3761 = vld [vmem:[%s831 + $0x14] sm:$0x1]
        %v3762 = vld [vmem:[%s831 + $0x18] sm:$0xe]
        %v3763 = vld [vmem:[%s831 + $0x1c] sm:$0xf]
        %v3764 = vld [vmem:[%s831 + $0x20] sm:$0x1]
        %v3765 = vld [vmem:[%s831 + $0x24] sm:$0xe]
        %v3766 = vld [vmem:[%s831 + $0x28] sm:$0xf]
        %v3767 = vld [vmem:[%s831 + $0x2c] sm:$0x1]
        %v3768 = vld [vmem:[%s831 + $0x30] sm:$0xe]
        %v3769 = vld [vmem:[%s831 + $0x34] sm:$0xf]
        %v3770 = vld [vmem:[%s831 + $0x38] sm:$0x1]
        %v3771 = vld [vmem:[%s831 + $0x3c] sm:$0xe]
        %v3772 = vld [vmem:[%s831 + $0x40] sm:$0xf]
        %v3773 = vld [vmem:[%s831 + $0x44] sm:$0x1]
        %v3774 = vld [vmem:[%s831 + $0x48] sm:$0xe]
        %v3775 = vld [vmem:[%s831 + $0x4c] sm:$0xf]
        %v3776 = vld [vmem:[%s831 + $0x50] sm:$0x1]
        %v3777 = vld [vmem:[%s831 + $0x54] sm:$0xe]
        %v3778 = vld [vmem:[%s831 + $0x58] sm:$0xf]
        %v3779 = vld [vmem:[%s831 + $0x5c] sm:$0x1]
        %v3780 = vld [vmem:[%s831 + $0x60] sm:$0xe]
        %v3781 = vld [vmem:[%s831 + $0x64] sm:$0xf]
        %v3782 = vld [vmem:[%s831 + $0x68] sm:$0x1]
        %v3783 = vld [vmem:[%s831 + $0x6c] sm:$0xe]
        %v3784 = vld [vmem:[%s831 + $0x70] sm:$0xf]
        %v3785 = vld [vmem:[%s831 + $0x74] sm:$0x1]
        %v3786 = vld [vmem:[%s831 + $0x78] sm:$0xe]
        %v3787 = vld [vmem:[%s831 + $0x7c] sm:$0xf]
        %v3788 = vld [vmem:[%s831 + $0x80] sm:$0x1]
        %v3789 = vld [vmem:[%s831 + $0x84] sm:$0xe]
        %v3790 = vld [vmem:[%s831 + $0x88] sm:$0xf]
        %v3791 = vld [vmem:[%s831 + $0x8c] sm:$0x1]
        %v3792 = vld [vmem:[%s831 + $0x90] sm:$0xe]
        %v3793 = vld [vmem:[%s831 + $0x94] sm:$0xf]
        %v3794 = vld [vmem:[%s831 + $0x98] sm:$0x1]
        %v3795 = vld [vmem:[%s831 + $0x9c] sm:$0xe]
        %v3796 = vld [vmem:[%s831 + $0xa0] sm:$0xf]
        %v3797 = vld [vmem:[%s831 + $0xa4] sm:$0x1]
        %v3798 = vld [vmem:[%s831 + $0xa8] sm:$0xe]
        %v3799 = vld [vmem:[%s831 + $0xac] sm:$0xf]
        %v3800 = vld [vmem:[%s831 + $0xb0] sm:$0x1]
        %v3801 = vld [vmem:[%s831 + $0xb4] sm:$0xe]
        %v3802 = vld [vmem:[%s831 + $0xb8] sm:$0xf]
        %v3803 = vld [vmem:[%s831 + $0xbc] sm:$0x1]
        %v3852 = vrot.slane %v3756, 5
        %v3853 = vrot.slane %v3852, 4
        %v3854 = vrot.slane %v3757, 5
        %v3855 = vsel %vm2205, %v3853, %v3854
        %v3856 = vrot.slane %v3854, 4
        %v3857 = vrot.slane %v3758, 5
        %v3858 = vsel %vm2205, %v3856, %v3857
        %v3859 = vrot.slane %v3759, 5
        %v3860 = vrot.slane %v3859, 4
        %v3861 = vrot.slane %v3760, 5
        %v3862 = vsel %vm2205, %v3860, %v3861
        %v3863 = vrot.slane %v3861, 4
        %v3864 = vrot.slane %v3761, 5
        %v3865 = vsel %vm2205, %v3863, %v3864
        %v3866 = vrot.slane %v3762, 5
        %v3867 = vrot.slane %v3866, 4
        %v3868 = vrot.slane %v3763, 5
        %v3869 = vsel %vm2205, %v3867, %v3868
        %v3870 = vrot.slane %v3868, 4
        %v3871 = vrot.slane %v3764, 5
        %v3872 = vsel %vm2205, %v3870, %v3871
        %v3873 = vrot.slane %v3765, 5
        %v3874 = vrot.slane %v3873, 4
        %v3875 = vrot.slane %v3766, 5
        %v3876 = vsel %vm2205, %v3874, %v3875
        %v3877 = vrot.slane %v3875, 4
        %v3878 = vrot.slane %v3767, 5
        %v3879 = vsel %vm2205, %v3877, %v3878
        %v3880 = vrot.slane %v3768, 5
        %v3881 = vrot.slane %v3880, 4
        %v3882 = vrot.slane %v3769, 5
        %v3883 = vsel %vm2205, %v3881, %v3882
        %v3884 = vrot.slane %v3882, 4
        %v3885 = vrot.slane %v3770, 5
        %v3886 = vsel %vm2205, %v3884, %v3885
        %v3887 = vrot.slane %v3771, 5
        %v3888 = vrot.slane %v3887, 4
        %v3889 = vrot.slane %v3772, 5
        %v3890 = vsel %vm2205, %v3888, %v3889
        %v3891 = vrot.slane %v3889, 4
        %v3892 = vrot.slane %v3773, 5
        %v3893 = vsel %vm2205, %v3891, %v3892
        %v3894 = vrot.slane %v3774, 5
        %v3895 = vrot.slane %v3894, 4
        %v3896 = vrot.slane %v3775, 5
        %v3897 = vsel %vm2205, %v3895, %v3896
        %v3898 = vrot.slane %v3896, 4
        %v3899 = vrot.slane %v3776, 5
        %v3900 = vsel %vm2205, %v3898, %v3899
        %v3901 = vrot.slane %v3777, 5
        %v3902 = vrot.slane %v3901, 4
        %v3903 = vrot.slane %v3778, 5
        %v3904 = vsel %vm2205, %v3902, %v3903
        %v3905 = vrot.slane %v3903, 4
        %v3906 = vrot.slane %v3779, 5
        %v3907 = vsel %vm2205, %v3905, %v3906
        %v3908 = vrot.slane %v3780, 5
        %v3909 = vrot.slane %v3908, 4
        %v3910 = vrot.slane %v3781, 5
        %v3911 = vsel %vm2205, %v3909, %v3910
        %v3912 = vrot.slane %v3910, 4
        %v3913 = vrot.slane %v3782, 5
        %v3914 = vsel %vm2205, %v3912, %v3913
        %v3915 = vrot.slane %v3783, 5
        %v3916 = vrot.slane %v3915, 4
        %v3917 = vrot.slane %v3784, 5
        %v3918 = vsel %vm2205, %v3916, %v3917
        %v3919 = vrot.slane %v3917, 4
        %v3920 = vrot.slane %v3785, 5
        %v3921 = vsel %vm2205, %v3919, %v3920
        %v3922 = vrot.slane %v3786, 5
        %v3923 = vrot.slane %v3922, 4
        %v3924 = vrot.slane %v3787, 5
        %v3925 = vsel %vm2205, %v3923, %v3924
        %v3926 = vrot.slane %v3924, 4
        %v3927 = vrot.slane %v3788, 5
        %v3928 = vsel %vm2205, %v3926, %v3927
        %v3929 = vrot.slane %v3789, 5
        %v3930 = vrot.slane %v3929, 4
        %v3931 = vrot.slane %v3790, 5
        %v3932 = vsel %vm2205, %v3930, %v3931
        %v3933 = vrot.slane %v3931, 4
        %v3934 = vrot.slane %v3791, 5
        %v3935 = vsel %vm2205, %v3933, %v3934
        %v3936 = vrot.slane %v3792, 5
        %v3937 = vrot.slane %v3936, 4
        %v3938 = vrot.slane %v3793, 5
        %v3939 = vsel %vm2205, %v3937, %v3938
        %v3940 = vrot.slane %v3938, 4
        %v3941 = vrot.slane %v3794, 5
        %v3942 = vsel %vm2205, %v3940, %v3941
        %v3943 = vrot.slane %v3795, 5
        %v3944 = vrot.slane %v3943, 4
        %v3945 = vrot.slane %v3796, 5
        %v3946 = vsel %vm2205, %v3944, %v3945
        %v3947 = vrot.slane %v3945, 4
        %v3948 = vrot.slane %v3797, 5
        %v3949 = vsel %vm2205, %v3947, %v3948
        %v3950 = vrot.slane %v3798, 5
        %v3951 = vrot.slane %v3950, 4
        %v3952 = vrot.slane %v3799, 5
        %v3953 = vsel %vm2205, %v3951, %v3952
        %v3954 = vrot.slane %v3952, 4
        %v3955 = vrot.slane %v3800, 5
        %v3956 = vsel %vm2205, %v3954, %v3955
        %v3957 = vrot.slane %v3801, 5
        %v3958 = vrot.slane %v3957, 4
        %v3959 = vrot.slane %v3802, 5
        %v3960 = vsel %vm2205, %v3958, %v3959
        %v3961 = vrot.slane %v3959, 4
        %v3962 = vrot.slane %v3803, 5
        %v3963 = vsel %vm2205, %v3961, %v3962
        %v3964 = vld [vmem:[#allocation3] sm:$0xff]
        %v3965 = vld [vmem:[#allocation3 + $0x8] sm:$0xff]
        %v3966 = vld [vmem:[#allocation3 + $0x10] sm:$0xff]
        %v3967 = vld [vmem:[#allocation3 + $0x18] sm:$0xff]
        %v3968 = vld [vmem:[#allocation3 + $0x20] sm:$0xff]
        %v3969 = vld [vmem:[#allocation3 + $0x28] sm:$0xff]
        %v3970 = vld [vmem:[#allocation3 + $0x30] sm:$0xff]
        %v3971 = vld [vmem:[#allocation3 + $0x38] sm:$0xff]
        %v3972 = vld [vmem:[#allocation3 + $0x40] sm:$0xff]
        %v3973 = vld [vmem:[#allocation3 + $0x48] sm:$0xff]
        %v3974 = vld [vmem:[#allocation3 + $0x50] sm:$0xff]
        %v3975 = vld [vmem:[#allocation3 + $0x58] sm:$0xff]
        %v3976 = vld [vmem:[#allocation3 + $0x60] sm:$0xff]
        %v3977 = vld [vmem:[#allocation3 + $0x68] sm:$0xff]
        %v3978 = vld [vmem:[#allocation3 + $0x70] sm:$0xff]
        %v3979 = vld [vmem:[#allocation3 + $0x78] sm:$0xff]
        %v3980 = vld [vmem:[#allocation3 + $0x80] sm:$0xff]
        %v3981 = vld [vmem:[#allocation3 + $0x88] sm:$0xff]
        %v3982 = vld [vmem:[#allocation3 + $0x90] sm:$0xff]
        %v3983 = vld [vmem:[#allocation3 + $0x98] sm:$0xff]
        %v3984 = vld [vmem:[#allocation3 + $0xa0] sm:$0xff]
        %v3985 = vld [vmem:[#allocation3 + $0xa8] sm:$0xff]
        %v3986 = vld [vmem:[#allocation3 + $0xb0] sm:$0xff]
        %v3987 = vld [vmem:[#allocation3 + $0xb8] sm:$0xff]
        %v3988 = vld [vmem:[#allocation3 + $0xc0] sm:$0xff]
        %v3989 = vld [vmem:[#allocation3 + $0xc8] sm:$0xff]
        %v3990 = vld [vmem:[#allocation3 + $0xd0] sm:$0xff]
        %v3991 = vld [vmem:[#allocation3 + $0xd8] sm:$0xff]
        %v3992 = vld [vmem:[#allocation3 + $0xe0] sm:$0xff]
        %v3993 = vld [vmem:[#allocation3 + $0xe8] sm:$0xff]
        %v3994 = vld [vmem:[#allocation3 + $0xf0] sm:$0xff]
        %v3995 = vld [vmem:[#allocation3 + $0xf8] sm:$0xff]
        %s3996 = scalar_lea.vmem [#allocation4], 320
        %v3997 = vld [vmem:[%s3996] sm:$0xf]
        %v3998 = vld [vmem:[%s3996 + $0x4] sm:$0xf]
        %v3999 = vld [vmem:[%s3996 + $0x8] sm:$0xf]
        %v4000 = vld [vmem:[%s3996 + $0xc] sm:$0xf]
        %v4001 = vld [vmem:[%s3996 + $0x10] sm:$0xf]
        %v4002 = vld [vmem:[%s3996 + $0x14] sm:$0xf]
        %v4003 = vld [vmem:[%s3996 + $0x18] sm:$0xf]
        %v4004 = vld [vmem:[%s3996 + $0x1c] sm:$0xf]
        %v4005 = vld [vmem:[%s3996 + $0x20] sm:$0xf]
        %v4006 = vld [vmem:[%s3996 + $0x24] sm:$0xf]
        %v4007 = vld [vmem:[%s3996 + $0x28] sm:$0xf]
        %v4008 = vld [vmem:[%s3996 + $0x2c] sm:$0xf]
        %v4009 = vld [vmem:[%s3996 + $0x30] sm:$0xf]
        %v4010 = vld [vmem:[%s3996 + $0x34] sm:$0xf]
        %v4011 = vld [vmem:[%s3996 + $0x38] sm:$0xf]
        %v4012 = vld [vmem:[%s3996 + $0x3c] sm:$0xf]
        %v4013 = vunpack.c.l.b16 %v3855
        %v4014 = vunpack.c.l.b16 %v3858
        %v4015 = vunpack.c.l.b16 %v3862
        %v4016 = vunpack.c.l.b16 %v3865
        %v4017 = vunpack.c.l.b16 %v3869
        %v4018 = vunpack.c.l.b16 %v3872
        %v4019 = vunpack.c.l.b16 %v3876
        %v4020 = vunpack.c.l.b16 %v3879
        %v4021 = vunpack.c.l.b16 %v3883
        %v4022 = vunpack.c.l.b16 %v3886
        %v4023 = vunpack.c.l.b16 %v3890
        %v4024 = vunpack.c.l.b16 %v3893
        %v4025 = vunpack.c.l.b16 %v3897
        %v4026 = vunpack.c.l.b16 %v3900
        %v4027 = vunpack.c.l.b16 %v3904
        %v4028 = vunpack.c.l.b16 %v3907
        %v4029 = vunpack.c.l.b16 %v3911
        %v4030 = vunpack.c.l.b16 %v3914
        %v4031 = vunpack.c.l.b16 %v3918
        %v4032 = vunpack.c.l.b16 %v3921
        %v4033 = vunpack.c.l.b16 %v3925
        %v4034 = vunpack.c.l.b16 %v3928
        %v4035 = vunpack.c.l.b16 %v3932
        %v4036 = vunpack.c.l.b16 %v3935
        %v4037 = vunpack.c.l.b16 %v3939
        %v4038 = vunpack.c.l.b16 %v3942
        %v4039 = vunpack.c.l.b16 %v3946
        %v4040 = vunpack.c.l.b16 %v3949
        %v4041 = vunpack.c.l.b16 %v3953
        %v4042 = vunpack.c.l.b16 %v3956
        %v4043 = vunpack.c.l.b16 %v3960
        %v4044 = vunpack.c.l.b16 %v3963
        %v4045 = vpack.c.b16 %v4014, %v4013
        %v4046 = vpack.c.b16 %v4016, %v4015
        %v4047 = vpack.c.b16 %v4018, %v4017
        %v4048 = vpack.c.b16 %v4020, %v4019
        %v4049 = vpack.c.b16 %v4022, %v4021
        %v4050 = vpack.c.b16 %v4024, %v4023
        %v4051 = vpack.c.b16 %v4026, %v4025
        %v4052 = vpack.c.b16 %v4028, %v4027
        %v4053 = vpack.c.b16 %v4030, %v4029
        %v4054 = vpack.c.b16 %v4032, %v4031
        %v4055 = vpack.c.b16 %v4034, %v4033
        %v4056 = vpack.c.b16 %v4036, %v4035
        %v4057 = vpack.c.b16 %v4038, %v4037
        %v4058 = vpack.c.b16 %v4040, %v4039
        %v4059 = vpack.c.b16 %v4042, %v4041
        %v4060 = vpack.c.b16 %v4044, %v4043
        %v4093 = vunpack.c.l.b16 %v3997
        %v4094 = vunpack.c.l.b16 %v3998
        %v4095 = vunpack.c.l.b16 %v3999
        %v4096 = vunpack.c.l.b16 %v4000
        %v4097 = vunpack.c.l.b16 %v4001
        %v4098 = vunpack.c.l.b16 %v4002
        %v4099 = vunpack.c.l.b16 %v4003
        %v4100 = vunpack.c.l.b16 %v4004
        %v4101 = vunpack.c.l.b16 %v4005
        %v4102 = vunpack.c.l.b16 %v4006
        %v4103 = vunpack.c.l.b16 %v4007
        %v4104 = vunpack.c.l.b16 %v4008
        %v4105 = vunpack.c.l.b16 %v4009
        %v4106 = vunpack.c.l.b16 %v4010
        %v4107 = vunpack.c.l.b16 %v4011
        %v4108 = vunpack.c.l.b16 %v4012
        %v4109 = vpack.c.b16 %v4094, %v4093
        %v4110 = vpack.c.b16 %v4096, %v4095
        %v4111 = vpack.c.b16 %v4098, %v4097
        %v4112 = vpack.c.b16 %v4100, %v4099
        %v4113 = vpack.c.b16 %v4102, %v4101
        %v4114 = vpack.c.b16 %v4104, %v4103
        %v4115 = vpack.c.b16 %v4106, %v4105
        %v4116 = vpack.c.b16 %v4108, %v4107
        %4125 = vmatpush.bf16.msra.mxu0 %v4116
        %4126 = vmatpush.bf16.msra.mxu0 %v4115
        %4127 = vmatpush.bf16.msra.mxu0 %v4114
        %4128 = vmatpush.bf16.msra.mxu0 %v4113
        %4129 = vmatpush.bf16.msra.mxu0 %v4112
        %4130 = vmatpush.bf16.msra.mxu0 %v4111
        %4131 = vmatpush.bf16.msra.mxu0 %v4110
        %4132 = vmatpush.bf16.msra.mxu0 %v4109
        %4133 = vmatmul.bf16.gmra.mxu0 %v4045
        %v4134 = vpop.f32.mrf.mxu0
        %v4135 = vadd.f32 0.0, %v4134
        %v4136 = vpop.f32.mrf.mxu0
        %v4137 = vadd.f32 0.0, %v4136
        %4138 = vmatmul.bf16.gmra.mxu0 %v4046
        %v4139 = vpop.f32.mrf.mxu0
        %v4140 = vadd.f32 0.0, %v4139
        %v4141 = vpop.f32.mrf.mxu0
        %v4142 = vadd.f32 0.0, %v4141
        %4143 = vmatmul.bf16.gmra.mxu0 %v4047
        %v4144 = vpop.f32.mrf.mxu0
        %v4145 = vadd.f32 0.0, %v4144
        %v4146 = vpop.f32.mrf.mxu0
        %v4147 = vadd.f32 0.0, %v4146
        %4148 = vmatmul.bf16.gmra.mxu0 %v4048
        %v4149 = vpop.f32.mrf.mxu0
        %v4150 = vadd.f32 0.0, %v4149
        %v4151 = vpop.f32.mrf.mxu0
        %v4152 = vadd.f32 0.0, %v4151
        %4153 = vmatmul.bf16.gmra.mxu0 %v4049
        %v4154 = vpop.f32.mrf.mxu0
        %v4155 = vadd.f32 0.0, %v4154
        %v4156 = vpop.f32.mrf.mxu0
        %v4157 = vadd.f32 0.0, %v4156
        %4158 = vmatmul.bf16.gmra.mxu0 %v4050
        %v4159 = vpop.f32.mrf.mxu0
        %v4160 = vadd.f32 0.0, %v4159
        %v4161 = vpop.f32.mrf.mxu0
        %v4162 = vadd.f32 0.0, %v4161
        %4163 = vmatmul.bf16.gmra.mxu0 %v4051
        %v4164 = vpop.f32.mrf.mxu0
        %v4165 = vadd.f32 0.0, %v4164
        %v4166 = vpop.f32.mrf.mxu0
        %v4167 = vadd.f32 0.0, %v4166
        %4168 = vmatmul.bf16.gmra.mxu0 %v4052
        %v4169 = vpop.f32.mrf.mxu0
        %v4170 = vadd.f32 0.0, %v4169
        %v4171 = vpop.f32.mrf.mxu0
        %v4172 = vadd.f32 0.0, %v4171
        %4173 = vmatmul.bf16.gmra.mxu0 %v4053
        %v4174 = vpop.f32.mrf.mxu0
        %v4175 = vadd.f32 0.0, %v4174
        %v4176 = vpop.f32.mrf.mxu0
        %v4177 = vadd.f32 0.0, %v4176
        %4178 = vmatmul.bf16.gmra.mxu0 %v4054
        %v4179 = vpop.f32.mrf.mxu0
        %v4180 = vadd.f32 0.0, %v4179
        %v4181 = vpop.f32.mrf.mxu0
        %v4182 = vadd.f32 0.0, %v4181
        %4183 = vmatmul.bf16.gmra.mxu0 %v4055
        %v4184 = vpop.f32.mrf.mxu0
        %v4185 = vadd.f32 0.0, %v4184
        %v4186 = vpop.f32.mrf.mxu0
        %v4187 = vadd.f32 0.0, %v4186
        %4188 = vmatmul.bf16.gmra.mxu0 %v4056
        %v4189 = vpop.f32.mrf.mxu0
        %v4190 = vadd.f32 0.0, %v4189
        %v4191 = vpop.f32.mrf.mxu0
        %v4192 = vadd.f32 0.0, %v4191
        %4193 = vmatmul.bf16.gmra.mxu0 %v4057
        %v4194 = vpop.f32.mrf.mxu0
        %v4195 = vadd.f32 0.0, %v4194
        %v4196 = vpop.f32.mrf.mxu0
        %v4197 = vadd.f32 0.0, %v4196
        %4198 = vmatmul.bf16.gmra.mxu0 %v4058
        %v4199 = vpop.f32.mrf.mxu0
        %v4200 = vadd.f32 0.0, %v4199
        %v4201 = vpop.f32.mrf.mxu0
        %v4202 = vadd.f32 0.0, %v4201
        %4203 = vmatmul.bf16.gmra.mxu0 %v4059
        %v4204 = vpop.f32.mrf.mxu0
        %v4205 = vadd.f32 0.0, %v4204
        %v4206 = vpop.f32.mrf.mxu0
        %v4207 = vadd.f32 0.0, %v4206
        %4208 = vmatmul.bf16.gmra.mxu0 %v4060
        %v4209 = vpop.f32.mrf.mxu0
        %v4210 = vadd.f32 0.0, %v4209
        %v4211 = vpop.f32.mrf.mxu0
        %v4212 = vadd.f32 0.0, %v4211
        %4213 = vdwg.mxu0
        %v4214 = vadd.f32 %v3964, %v4135
        %v4215 = vadd.f32 %v3965, %v4137
        %v4216 = vadd.f32 %v3966, %v4140
        %v4217 = vadd.f32 %v3967, %v4142
        %v4218 = vadd.f32 %v3968, %v4145
        %v4219 = vadd.f32 %v3969, %v4147
        %v4220 = vadd.f32 %v3970, %v4150
        %v4221 = vadd.f32 %v3971, %v4152
        %v4222 = vadd.f32 %v3972, %v4155
        %v4223 = vadd.f32 %v3973, %v4157
        %v4224 = vadd.f32 %v3974, %v4160
        %v4225 = vadd.f32 %v3975, %v4162
        %v4226 = vadd.f32 %v3976, %v4165
        %v4227 = vadd.f32 %v3977, %v4167
        %v4228 = vadd.f32 %v3978, %v4170
        %v4229 = vadd.f32 %v3979, %v4172
        %v4230 = vadd.f32 %v3980, %v4175
        %v4231 = vadd.f32 %v3981, %v4177
        %v4232 = vadd.f32 %v3982, %v4180
        %v4233 = vadd.f32 %v3983, %v4182
        %v4234 = vadd.f32 %v3984, %v4185
        %v4235 = vadd.f32 %v3985, %v4187
        %v4236 = vadd.f32 %v3986, %v4190
        %v4237 = vadd.f32 %v3987, %v4192
        %v4238 = vadd.f32 %v3988, %v4195
        %v4239 = vadd.f32 %v3989, %v4197
        %v4240 = vadd.f32 %v3990, %v4200
        %v4241 = vadd.f32 %v3991, %v4202
        %v4242 = vadd.f32 %v3992, %v4205
        %v4243 = vadd.f32 %v3993, %v4207
        %v4244 = vadd.f32 %v3994, %v4210
        %v4245 = vadd.f32 %v3995, %v4212
        %4246 = vst [vmem:[#allocation3] sm:$0xff] %v4214
        %4247 = vst [vmem:[#allocation3 + $0x8] sm:$0xff] %v4215
        %4248 = vst [vmem:[#allocation3 + $0x10] sm:$0xff] %v4216
        %4249 = vst [vmem:[#allocation3 + $0x18] sm:$0xff] %v4217
        %4250 = vst [vmem:[#allocation3 + $0x20] sm:$0xff] %v4218
        %4251 = vst [vmem:[#allocation3 + $0x28] sm:$0xff] %v4219
        %4252 = vst [vmem:[#allocation3 + $0x30] sm:$0xff] %v4220
        %4253 = vst [vmem:[#allocation3 + $0x38] sm:$0xff] %v4221
        %4254 = vst [vmem:[#allocation3 + $0x40] sm:$0xff] %v4222
        %4255 = vst [vmem:[#allocation3 + $0x48] sm:$0xff] %v4223
        %4256 = vst [vmem:[#allocation3 + $0x50] sm:$0xff] %v4224
        %4257 = vst [vmem:[#allocation3 + $0x58] sm:$0xff] %v4225
        %4258 = vst [vmem:[#allocation3 + $0x60] sm:$0xff] %v4226
        %4259 = vst [vmem:[#allocation3 + $0x68] sm:$0xff] %v4227
        %4260 = vst [vmem:[#allocation3 + $0x70] sm:$0xff] %v4228
        %4261 = vst [vmem:[#allocation3 + $0x78] sm:$0xff] %v4229
        %4262 = vst [vmem:[#allocation3 + $0x80] sm:$0xff] %v4230
        %4263 = vst [vmem:[#allocation3 + $0x88] sm:$0xff] %v4231
        %4264 = vst [vmem:[#allocation3 + $0x90] sm:$0xff] %v4232
        %4265 = vst [vmem:[#allocation3 + $0x98] sm:$0xff] %v4233
        %4266 = vst [vmem:[#allocation3 + $0xa0] sm:$0xff] %v4234
        %4267 = vst [vmem:[#allocation3 + $0xa8] sm:$0xff] %v4235
        %4268 = vst [vmem:[#allocation3 + $0xb0] sm:$0xff] %v4236
        %4269 = vst [vmem:[#allocation3 + $0xb8] sm:$0xff] %v4237
        %4270 = vst [vmem:[#allocation3 + $0xc0] sm:$0xff] %v4238
        %4271 = vst [vmem:[#allocation3 + $0xc8] sm:$0xff] %v4239
        %4272 = vst [vmem:[#allocation3 + $0xd0] sm:$0xff] %v4240
        %4273 = vst [vmem:[#allocation3 + $0xd8] sm:$0xff] %v4241
        %4274 = vst [vmem:[#allocation3 + $0xe0] sm:$0xff] %v4242
        %4275 = vst [vmem:[#allocation3 + $0xe8] sm:$0xff] %v4243
        %4276 = vst [vmem:[#allocation3 + $0xf0] sm:$0xff] %v4244
        %4277 = vst [vmem:[#allocation3 + $0xf8] sm:$0xff] %v4245
        %s4278 = scalar_lea.vmem [#allocation2], 24
        %v4279 = vld [vmem:[%s4278] sm:$0xf]
        %v4280 = vld [vmem:[%s4278 + $0x4] sm:$0xf]
        %v4281 = vld [vmem:[%s4278 + $0xc] sm:$0xf]
        %v4282 = vld [vmem:[%s4278 + $0x10] sm:$0xf]
        %v4283 = vld [vmem:[%s4278 + $0x18] sm:$0xf]
        %v4284 = vld [vmem:[%s4278 + $0x1c] sm:$0xf]
        %v4285 = vld [vmem:[%s4278 + $0x24] sm:$0xf]
        %v4286 = vld [vmem:[%s4278 + $0x28] sm:$0xf]
        %v4287 = vld [vmem:[%s4278 + $0x30] sm:$0xf]
        %v4288 = vld [vmem:[%s4278 + $0x34] sm:$0xf]
        %v4289 = vld [vmem:[%s4278 + $0x3c] sm:$0xf]
        %v4290 = vld [vmem:[%s4278 + $0x40] sm:$0xf]
        %v4291 = vld [vmem:[%s4278 + $0x48] sm:$0xf]
        %v4292 = vld [vmem:[%s4278 + $0x4c] sm:$0xf]
        %v4293 = vld [vmem:[%s4278 + $0x54] sm:$0xf]
        %v4294 = vld [vmem:[%s4278 + $0x58] sm:$0xf]
        %v4295 = vld [vmem:[%s4278 + $0x60] sm:$0xf]
        %v4296 = vld [vmem:[%s4278 + $0x64] sm:$0xf]
        %v4297 = vld [vmem:[%s4278 + $0x6c] sm:$0xf]
        %v4298 = vld [vmem:[%s4278 + $0x70] sm:$0xf]
        %v4299 = vld [vmem:[%s4278 + $0x78] sm:$0xf]
        %v4300 = vld [vmem:[%s4278 + $0x7c] sm:$0xf]
        %v4301 = vld [vmem:[%s4278 + $0x84] sm:$0xf]
        %v4302 = vld [vmem:[%s4278 + $0x88] sm:$0xf]
        %v4303 = vld [vmem:[%s4278 + $0x90] sm:$0xf]
        %v4304 = vld [vmem:[%s4278 + $0x94] sm:$0xf]
        %v4305 = vld [vmem:[%s4278 + $0x9c] sm:$0xf]
        %v4306 = vld [vmem:[%s4278 + $0xa0] sm:$0xf]
        %v4307 = vld [vmem:[%s4278 + $0xa8] sm:$0xf]
        %v4308 = vld [vmem:[%s4278 + $0xac] sm:$0xf]
        %v4309 = vld [vmem:[%s4278 + $0xb4] sm:$0xf]
        %v4310 = vld [vmem:[%s4278 + $0xb8] sm:$0xf]
        %v4311 = vld [vmem:[#allocation3] sm:$0xff]
        %v4312 = vld [vmem:[#allocation3 + $0x8] sm:$0xff]
        %v4313 = vld [vmem:[#allocation3 + $0x10] sm:$0xff]
        %v4314 = vld [vmem:[#allocation3 + $0x18] sm:$0xff]
        %v4315 = vld [vmem:[#allocation3 + $0x20] sm:$0xff]
        %v4316 = vld [vmem:[#allocation3 + $0x28] sm:$0xff]
        %v4317 = vld [vmem:[#allocation3 + $0x30] sm:$0xff]
        %v4318 = vld [vmem:[#allocation3 + $0x38] sm:$0xff]
        %v4319 = vld [vmem:[#allocation3 + $0x40] sm:$0xff]
        %v4320 = vld [vmem:[#allocation3 + $0x48] sm:$0xff]
        %v4321 = vld [vmem:[#allocation3 + $0x50] sm:$0xff]
        %v4322 = vld [vmem:[#allocation3 + $0x58] sm:$0xff]
        %v4323 = vld [vmem:[#allocation3 + $0x60] sm:$0xff]
        %v4324 = vld [vmem:[#allocation3 + $0x68] sm:$0xff]
        %v4325 = vld [vmem:[#allocation3 + $0x70] sm:$0xff]
        %v4326 = vld [vmem:[#allocation3 + $0x78] sm:$0xff]
        %v4327 = vld [vmem:[#allocation3 + $0x80] sm:$0xff]
        %v4328 = vld [vmem:[#allocation3 + $0x88] sm:$0xff]
        %v4329 = vld [vmem:[#allocation3 + $0x90] sm:$0xff]
        %v4330 = vld [vmem:[#allocation3 + $0x98] sm:$0xff]
        %v4331 = vld [vmem:[#allocation3 + $0xa0] sm:$0xff]
        %v4332 = vld [vmem:[#allocation3 + $0xa8] sm:$0xff]
        %v4333 = vld [vmem:[#allocation3 + $0xb0] sm:$0xff]
        %v4334 = vld [vmem:[#allocation3 + $0xb8] sm:$0xff]
        %v4335 = vld [vmem:[#allocation3 + $0xc0] sm:$0xff]
        %v4336 = vld [vmem:[#allocation3 + $0xc8] sm:$0xff]
        %v4337 = vld [vmem:[#allocation3 + $0xd0] sm:$0xff]
        %v4338 = vld [vmem:[#allocation3 + $0xd8] sm:$0xff]
        %v4339 = vld [vmem:[#allocation3 + $0xe0] sm:$0xff]
        %v4340 = vld [vmem:[#allocation3 + $0xe8] sm:$0xff]
        %v4341 = vld [vmem:[#allocation3 + $0xf0] sm:$0xff]
        %v4342 = vld [vmem:[#allocation3 + $0xf8] sm:$0xff]
        %s4343 = scalar_lea.vmem [#allocation4], 384
        %v4344 = vld [vmem:[%s4343] sm:$0xf]
        %v4345 = vld [vmem:[%s4343 + $0x4] sm:$0xf]
        %v4346 = vld [vmem:[%s4343 + $0x8] sm:$0xf]
        %v4347 = vld [vmem:[%s4343 + $0xc] sm:$0xf]
        %v4348 = vld [vmem:[%s4343 + $0x10] sm:$0xf]
        %v4349 = vld [vmem:[%s4343 + $0x14] sm:$0xf]
        %v4350 = vld [vmem:[%s4343 + $0x18] sm:$0xf]
        %v4351 = vld [vmem:[%s4343 + $0x1c] sm:$0xf]
        %v4352 = vld [vmem:[%s4343 + $0x20] sm:$0xf]
        %v4353 = vld [vmem:[%s4343 + $0x24] sm:$0xf]
        %v4354 = vld [vmem:[%s4343 + $0x28] sm:$0xf]
        %v4355 = vld [vmem:[%s4343 + $0x2c] sm:$0xf]
        %v4356 = vld [vmem:[%s4343 + $0x30] sm:$0xf]
        %v4357 = vld [vmem:[%s4343 + $0x34] sm:$0xf]
        %v4358 = vld [vmem:[%s4343 + $0x38] sm:$0xf]
        %v4359 = vld [vmem:[%s4343 + $0x3c] sm:$0xf]
        %v4392 = vunpack.c.l.b16 %v4279
        %v4393 = vunpack.c.l.b16 %v4280
        %v4394 = vunpack.c.l.b16 %v4281
        %v4395 = vunpack.c.l.b16 %v4282
        %v4396 = vunpack.c.l.b16 %v4283
        %v4397 = vunpack.c.l.b16 %v4284
        %v4398 = vunpack.c.l.b16 %v4285
        %v4399 = vunpack.c.l.b16 %v4286
        %v4400 = vunpack.c.l.b16 %v4287
        %v4401 = vunpack.c.l.b16 %v4288
        %v4402 = vunpack.c.l.b16 %v4289
        %v4403 = vunpack.c.l.b16 %v4290
        %v4404 = vunpack.c.l.b16 %v4291
        %v4405 = vunpack.c.l.b16 %v4292
        %v4406 = vunpack.c.l.b16 %v4293
        %v4407 = vunpack.c.l.b16 %v4294
        %v4408 = vunpack.c.l.b16 %v4295
        %v4409 = vunpack.c.l.b16 %v4296
        %v4410 = vunpack.c.l.b16 %v4297
        %v4411 = vunpack.c.l.b16 %v4298
        %v4412 = vunpack.c.l.b16 %v4299
        %v4413 = vunpack.c.l.b16 %v4300
        %v4414 = vunpack.c.l.b16 %v4301
        %v4415 = vunpack.c.l.b16 %v4302
        %v4416 = vunpack.c.l.b16 %v4303
        %v4417 = vunpack.c.l.b16 %v4304
        %v4418 = vunpack.c.l.b16 %v4305
        %v4419 = vunpack.c.l.b16 %v4306
        %v4420 = vunpack.c.l.b16 %v4307
        %v4421 = vunpack.c.l.b16 %v4308
        %v4422 = vunpack.c.l.b16 %v4309
        %v4423 = vunpack.c.l.b16 %v4310
        %v4424 = vpack.c.b16 %v4393, %v4392
        %v4425 = vpack.c.b16 %v4395, %v4394
        %v4426 = vpack.c.b16 %v4397, %v4396
        %v4427 = vpack.c.b16 %v4399, %v4398
        %v4428 = vpack.c.b16 %v4401, %v4400
        %v4429 = vpack.c.b16 %v4403, %v4402
        %v4430 = vpack.c.b16 %v4405, %v4404
        %v4431 = vpack.c.b16 %v4407, %v4406
        %v4432 = vpack.c.b16 %v4409, %v4408
        %v4433 = vpack.c.b16 %v4411, %v4410
        %v4434 = vpack.c.b16 %v4413, %v4412
        %v4435 = vpack.c.b16 %v4415, %v4414
        %v4436 = vpack.c.b16 %v4417, %v4416
        %v4437 = vpack.c.b16 %v4419, %v4418
        %v4438 = vpack.c.b16 %v4421, %v4420
        %v4439 = vpack.c.b16 %v4423, %v4422
        %v4472 = vunpack.c.l.b16 %v4344
        %v4473 = vunpack.c.l.b16 %v4345
        %v4474 = vunpack.c.l.b16 %v4346
        %v4475 = vunpack.c.l.b16 %v4347
        %v4476 = vunpack.c.l.b16 %v4348
        %v4477 = vunpack.c.l.b16 %v4349
        %v4478 = vunpack.c.l.b16 %v4350
        %v4479 = vunpack.c.l.b16 %v4351
        %v4480 = vunpack.c.l.b16 %v4352
        %v4481 = vunpack.c.l.b16 %v4353
        %v4482 = vunpack.c.l.b16 %v4354
        %v4483 = vunpack.c.l.b16 %v4355
        %v4484 = vunpack.c.l.b16 %v4356
        %v4485 = vunpack.c.l.b16 %v4357
        %v4486 = vunpack.c.l.b16 %v4358
        %v4487 = vunpack.c.l.b16 %v4359
        %v4488 = vpack.c.b16 %v4473, %v4472
        %v4489 = vpack.c.b16 %v4475, %v4474
        %v4490 = vpack.c.b16 %v4477, %v4476
        %v4491 = vpack.c.b16 %v4479, %v4478
        %v4492 = vpack.c.b16 %v4481, %v4480
        %v4493 = vpack.c.b16 %v4483, %v4482
        %v4494 = vpack.c.b16 %v4485, %v4484
        %v4495 = vpack.c.b16 %v4487, %v4486
        %4504 = vmatpush.bf16.msra.mxu0 %v4495
        %4505 = vmatpush.bf16.msra.mxu0 %v4494
        %4506 = vmatpush.bf16.msra.mxu0 %v4493
        %4507 = vmatpush.bf16.msra.mxu0 %v4492
        %4508 = vmatpush.bf16.msra.mxu0 %v4491
        %4509 = vmatpush.bf16.msra.mxu0 %v4490
        %4510 = vmatpush.bf16.msra.mxu0 %v4489
        %4511 = vmatpush.bf16.msra.mxu0 %v4488
        %4512 = vmatmul.bf16.gmra.mxu0 %v4424
        %v4513 = vpop.f32.mrf.mxu0
        %v4514 = vadd.f32 0.0, %v4513
        %v4515 = vpop.f32.mrf.mxu0
        %v4516 = vadd.f32 0.0, %v4515
        %4517 = vmatmul.bf16.gmra.mxu0 %v4425
        %v4518 = vpop.f32.mrf.mxu0
        %v4519 = vadd.f32 0.0, %v4518
        %v4520 = vpop.f32.mrf.mxu0
        %v4521 = vadd.f32 0.0, %v4520
        %4522 = vmatmul.bf16.gmra.mxu0 %v4426
        %v4523 = vpop.f32.mrf.mxu0
        %v4524 = vadd.f32 0.0, %v4523
        %v4525 = vpop.f32.mrf.mxu0
        %v4526 = vadd.f32 0.0, %v4525
        %4527 = vmatmul.bf16.gmra.mxu0 %v4427
        %v4528 = vpop.f32.mrf.mxu0
        %v4529 = vadd.f32 0.0, %v4528
        %v4530 = vpop.f32.mrf.mxu0
        %v4531 = vadd.f32 0.0, %v4530
        %4532 = vmatmul.bf16.gmra.mxu0 %v4428
        %v4533 = vpop.f32.mrf.mxu0
        %v4534 = vadd.f32 0.0, %v4533
        %v4535 = vpop.f32.mrf.mxu0
        %v4536 = vadd.f32 0.0, %v4535
        %4537 = vmatmul.bf16.gmra.mxu0 %v4429
        %v4538 = vpop.f32.mrf.mxu0
        %v4539 = vadd.f32 0.0, %v4538
        %v4540 = vpop.f32.mrf.mxu0
        %v4541 = vadd.f32 0.0, %v4540
        %4542 = vmatmul.bf16.gmra.mxu0 %v4430
        %v4543 = vpop.f32.mrf.mxu0
        %v4544 = vadd.f32 0.0, %v4543
        %v4545 = vpop.f32.mrf.mxu0
        %v4546 = vadd.f32 0.0, %v4545
        %4547 = vmatmul.bf16.gmra.mxu0 %v4431
        %v4548 = vpop.f32.mrf.mxu0
        %v4549 = vadd.f32 0.0, %v4548
        %v4550 = vpop.f32.mrf.mxu0
        %v4551 = vadd.f32 0.0, %v4550
        %4552 = vmatmul.bf16.gmra.mxu0 %v4432
        %v4553 = vpop.f32.mrf.mxu0
        %v4554 = vadd.f32 0.0, %v4553
        %v4555 = vpop.f32.mrf.mxu0
        %v4556 = vadd.f32 0.0, %v4555
        %4557 = vmatmul.bf16.gmra.mxu0 %v4433
        %v4558 = vpop.f32.mrf.mxu0
        %v4559 = vadd.f32 0.0, %v4558
        %v4560 = vpop.f32.mrf.mxu0
        %v4561 = vadd.f32 0.0, %v4560
        %4562 = vmatmul.bf16.gmra.mxu0 %v4434
        %v4563 = vpop.f32.mrf.mxu0
        %v4564 = vadd.f32 0.0, %v4563
        %v4565 = vpop.f32.mrf.mxu0
        %v4566 = vadd.f32 0.0, %v4565
        %4567 = vmatmul.bf16.gmra.mxu0 %v4435
        %v4568 = vpop.f32.mrf.mxu0
        %v4569 = vadd.f32 0.0, %v4568
        %v4570 = vpop.f32.mrf.mxu0
        %v4571 = vadd.f32 0.0, %v4570
        %4572 = vmatmul.bf16.gmra.mxu0 %v4436
        %v4573 = vpop.f32.mrf.mxu0
        %v4574 = vadd.f32 0.0, %v4573
        %v4575 = vpop.f32.mrf.mxu0
        %v4576 = vadd.f32 0.0, %v4575
        %4577 = vmatmul.bf16.gmra.mxu0 %v4437
        %v4578 = vpop.f32.mrf.mxu0
        %v4579 = vadd.f32 0.0, %v4578
        %v4580 = vpop.f32.mrf.mxu0
        %v4581 = vadd.f32 0.0, %v4580
        %4582 = vmatmul.bf16.gmra.mxu0 %v4438
        %v4583 = vpop.f32.mrf.mxu0
        %v4584 = vadd.f32 0.0, %v4583
        %v4585 = vpop.f32.mrf.mxu0
        %v4586 = vadd.f32 0.0, %v4585
        %4587 = vmatmul.bf16.gmra.mxu0 %v4439
        %v4588 = vpop.f32.mrf.mxu0
        %v4589 = vadd.f32 0.0, %v4588
        %v4590 = vpop.f32.mrf.mxu0
        %v4591 = vadd.f32 0.0, %v4590
        %4592 = vdwg.mxu0
        %v4593 = vadd.f32 %v4311, %v4514
        %v4594 = vadd.f32 %v4312, %v4516
        %v4595 = vadd.f32 %v4313, %v4519
        %v4596 = vadd.f32 %v4314, %v4521
        %v4597 = vadd.f32 %v4315, %v4524
        %v4598 = vadd.f32 %v4316, %v4526
        %v4599 = vadd.f32 %v4317, %v4529
        %v4600 = vadd.f32 %v4318, %v4531
        %v4601 = vadd.f32 %v4319, %v4534
        %v4602 = vadd.f32 %v4320, %v4536
        %v4603 = vadd.f32 %v4321, %v4539
        %v4604 = vadd.f32 %v4322, %v4541
        %v4605 = vadd.f32 %v4323, %v4544
        %v4606 = vadd.f32 %v4324, %v4546
        %v4607 = vadd.f32 %v4325, %v4549
        %v4608 = vadd.f32 %v4326, %v4551
        %v4609 = vadd.f32 %v4327, %v4554
        %v4610 = vadd.f32 %v4328, %v4556
        %v4611 = vadd.f32 %v4329, %v4559
        %v4612 = vadd.f32 %v4330, %v4561
        %v4613 = vadd.f32 %v4331, %v4564
        %v4614 = vadd.f32 %v4332, %v4566
        %v4615 = vadd.f32 %v4333, %v4569
        %v4616 = vadd.f32 %v4334, %v4571
        %v4617 = vadd.f32 %v4335, %v4574
        %v4618 = vadd.f32 %v4336, %v4576
        %v4619 = vadd.f32 %v4337, %v4579
        %v4620 = vadd.f32 %v4338, %v4581
        %v4621 = vadd.f32 %v4339, %v4584
        %v4622 = vadd.f32 %v4340, %v4586
        %v4623 = vadd.f32 %v4341, %v4589
        %v4624 = vadd.f32 %v4342, %v4591
        %4625 = vst [vmem:[#allocation3] sm:$0xff] %v4593
        %4626 = vst [vmem:[#allocation3 + $0x8] sm:$0xff] %v4594
        %4627 = vst [vmem:[#allocation3 + $0x10] sm:$0xff] %v4595
        %4628 = vst [vmem:[#allocation3 + $0x18] sm:$0xff] %v4596
        %4629 = vst [vmem:[#allocation3 + $0x20] sm:$0xff] %v4597
        %4630 = vst [vmem:[#allocation3 + $0x28] sm:$0xff] %v4598
        %4631 = vst [vmem:[#allocation3 + $0x30] sm:$0xff] %v4599
        %4632 = vst [vmem:[#allocation3 + $0x38] sm:$0xff] %v4600
        %4633 = vst [vmem:[#allocation3 + $0x40] sm:$0xff] %v4601
        %4634 = vst [vmem:[#allocation3 + $0x48] sm:$0xff] %v4602
        %4635 = vst [vmem:[#allocation3 + $0x50] sm:$0xff] %v4603
        %4636 = vst [vmem:[#allocation3 + $0x58] sm:$0xff] %v4604
        %4637 = vst [vmem:[#allocation3 + $0x60] sm:$0xff] %v4605
        %4638 = vst [vmem:[#allocation3 + $0x68] sm:$0xff] %v4606
        %4639 = vst [vmem:[#allocation3 + $0x70] sm:$0xff] %v4607
        %4640 = vst [vmem:[#allocation3 + $0x78] sm:$0xff] %v4608
        %4641 = vst [vmem:[#allocation3 + $0x80] sm:$0xff] %v4609
        %4642 = vst [vmem:[#allocation3 + $0x88] sm:$0xff] %v4610
        %4643 = vst [vmem:[#allocation3 + $0x90] sm:$0xff] %v4611
        %4644 = vst [vmem:[#allocation3 + $0x98] sm:$0xff] %v4612
        %4645 = vst [vmem:[#allocation3 + $0xa0] sm:$0xff] %v4613
        %4646 = vst [vmem:[#allocation3 + $0xa8] sm:$0xff] %v4614
        %4647 = vst [vmem:[#allocation3 + $0xb0] sm:$0xff] %v4615
        %4648 = vst [vmem:[#allocation3 + $0xb8] sm:$0xff] %v4616
        %4649 = vst [vmem:[#allocation3 + $0xc0] sm:$0xff] %v4617
        %4650 = vst [vmem:[#allocation3 + $0xc8] sm:$0xff] %v4618
        %4651 = vst [vmem:[#allocation3 + $0xd0] sm:$0xff] %v4619
        %4652 = vst [vmem:[#allocation3 + $0xd8] sm:$0xff] %v4620
        %4653 = vst [vmem:[#allocation3 + $0xe0] sm:$0xff] %v4621
        %4654 = vst [vmem:[#allocation3 + $0xe8] sm:$0xff] %v4622
        %4655 = vst [vmem:[#allocation3 + $0xf0] sm:$0xff] %v4623
        %4656 = vst [vmem:[#allocation3 + $0xf8] sm:$0xff] %v4624
        %v4657 = vld [vmem:[%s4278] sm:$0xf]
        %v4658 = vld [vmem:[%s4278 + $0x4] sm:$0xf]
        %v4659 = vld [vmem:[%s4278 + $0x8] sm:$0x1]
        %v4660 = vld [vmem:[%s4278 + $0xc] sm:$0xf]
        %v4661 = vld [vmem:[%s4278 + $0x10] sm:$0xf]
        %v4662 = vld [vmem:[%s4278 + $0x14] sm:$0x1]
        %v4663 = vld [vmem:[%s4278 + $0x18] sm:$0xf]
        %v4664 = vld [vmem:[%s4278 + $0x1c] sm:$0xf]
        %v4665 = vld [vmem:[%s4278 + $0x20] sm:$0x1]
        %v4666 = vld [vmem:[%s4278 + $0x24] sm:$0xf]
        %v4667 = vld [vmem:[%s4278 + $0x28] sm:$0xf]
        %v4668 = vld [vmem:[%s4278 + $0x2c] sm:$0x1]
        %v4669 = vld [vmem:[%s4278 + $0x30] sm:$0xf]
        %v4670 = vld [vmem:[%s4278 + $0x34] sm:$0xf]
        %v4671 = vld [vmem:[%s4278 + $0x38] sm:$0x1]
        %v4672 = vld [vmem:[%s4278 + $0x3c] sm:$0xf]
        %v4673 = vld [vmem:[%s4278 + $0x40] sm:$0xf]
        %v4674 = vld [vmem:[%s4278 + $0x44] sm:$0x1]
        %v4675 = vld [vmem:[%s4278 + $0x48] sm:$0xf]
        %v4676 = vld [vmem:[%s4278 + $0x4c] sm:$0xf]
        %v4677 = vld [vmem:[%s4278 + $0x50] sm:$0x1]
        %v4678 = vld [vmem:[%s4278 + $0x54] sm:$0xf]
        %v4679 = vld [vmem:[%s4278 + $0x58] sm:$0xf]
        %v4680 = vld [vmem:[%s4278 + $0x5c] sm:$0x1]
        %v4681 = vld [vmem:[%s4278 + $0x60] sm:$0xf]
        %v4682 = vld [vmem:[%s4278 + $0x64] sm:$0xf]
        %v4683 = vld [vmem:[%s4278 + $0x68] sm:$0x1]
        %v4684 = vld [vmem:[%s4278 + $0x6c] sm:$0xf]
        %v4685 = vld [vmem:[%s4278 + $0x70] sm:$0xf]
        %v4686 = vld [vmem:[%s4278 + $0x74] sm:$0x1]
        %v4687 = vld [vmem:[%s4278 + $0x78] sm:$0xf]
        %v4688 = vld [vmem:[%s4278 + $0x7c] sm:$0xf]
        %v4689 = vld [vmem:[%s4278 + $0x80] sm:$0x1]
        %v4690 = vld [vmem:[%s4278 + $0x84] sm:$0xf]
        %v4691 = vld [vmem:[%s4278 + $0x88] sm:$0xf]
        %v4692 = vld [vmem:[%s4278 + $0x8c] sm:$0x1]
        %v4693 = vld [vmem:[%s4278 + $0x90] sm:$0xf]
        %v4694 = vld [vmem:[%s4278 + $0x94] sm:$0xf]
        %v4695 = vld [vmem:[%s4278 + $0x98] sm:$0x1]
        %v4696 = vld [vmem:[%s4278 + $0x9c] sm:$0xf]
        %v4697 = vld [vmem:[%s4278 + $0xa0] sm:$0xf]
        %v4698 = vld [vmem:[%s4278 + $0xa4] sm:$0x1]
        %v4699 = vld [vmem:[%s4278 + $0xa8] sm:$0xf]
        %v4700 = vld [vmem:[%s4278 + $0xac] sm:$0xf]
        %v4701 = vld [vmem:[%s4278 + $0xb0] sm:$0x1]
        %v4702 = vld [vmem:[%s4278 + $0xb4] sm:$0xf]
        %v4703 = vld [vmem:[%s4278 + $0xb8] sm:$0xf]
        %v4704 = vld [vmem:[%s4278 + $0xbc] sm:$0x1]
        %v4706 = vshrl.u32 %v4657, 16
        %v4708 = vrot.slane %v4706, 4
        %v4709 = vshll.u32 %v4657, 16
        %v4711 = vrot.slane %v4709, 5
        %v4712 = vor.u32 %v4708, %v4711
        %v4713 = vrot.slane %v4712, 4
        %v4715 = vshll.u32 %v4658, 16
        %v4717 = vrot.slane %v4715, 5
        %v4718 = vsel %vm1408, %v4713, %v4717
        %v4719 = vshrl.u32 %v4658, 16
        %v4721 = vrot.slane %v4719, 4
        %v4722 = vor.u32 %v4721, %v4717
        %v4723 = vrot.slane %v4722, 4
        %v4725 = vshll.u32 %v4659, 16
        %v4727 = vrot.slane %v4725, 5
        %v4728 = vsel %vm1408, %v4723, %v4727
        %v4730 = vshrl.u32 %v4660, 16
        %v4732 = vrot.slane %v4730, 4
        %v4733 = vshll.u32 %v4660, 16
        %v4735 = vrot.slane %v4733, 5
        %v4736 = vor.u32 %v4732, %v4735
        %v4737 = vrot.slane %v4736, 4
        %v4739 = vshll.u32 %v4661, 16
        %v4741 = vrot.slane %v4739, 5
        %v4742 = vsel %vm1408, %v4737, %v4741
        %v4743 = vshrl.u32 %v4661, 16
        %v4745 = vrot.slane %v4743, 4
        %v4746 = vor.u32 %v4745, %v4741
        %v4747 = vrot.slane %v4746, 4
        %v4749 = vshll.u32 %v4662, 16
        %v4751 = vrot.slane %v4749, 5
        %v4752 = vsel %vm1408, %v4747, %v4751
        %v4754 = vshrl.u32 %v4663, 16
        %v4756 = vrot.slane %v4754, 4
        %v4757 = vshll.u32 %v4663, 16
        %v4759 = vrot.slane %v4757, 5
        %v4760 = vor.u32 %v4756, %v4759
        %v4761 = vrot.slane %v4760, 4
        %v4763 = vshll.u32 %v4664, 16
        %v4765 = vrot.slane %v4763, 5
        %v4766 = vsel %vm1408, %v4761, %v4765
        %v4767 = vshrl.u32 %v4664, 16
        %v4769 = vrot.slane %v4767, 4
        %v4770 = vor.u32 %v4769, %v4765
        %v4771 = vrot.slane %v4770, 4
        %v4773 = vshll.u32 %v4665, 16
        %v4775 = vrot.slane %v4773, 5
        %v4776 = vsel %vm1408, %v4771, %v4775
        %v4778 = vshrl.u32 %v4666, 16
        %v4780 = vrot.slane %v4778, 4
        %v4781 = vshll.u32 %v4666, 16
        %v4783 = vrot.slane %v4781, 5
        %v4784 = vor.u32 %v4780, %v4783
        %v4785 = vrot.slane %v4784, 4
        %v4787 = vshll.u32 %v4667, 16
        %v4789 = vrot.slane %v4787, 5
        %v4790 = vsel %vm1408, %v4785, %v4789
        %v4791 = vshrl.u32 %v4667, 16
        %v4793 = vrot.slane %v4791, 4
        %v4794 = vor.u32 %v4793, %v4789
        %v4795 = vrot.slane %v4794, 4
        %v4797 = vshll.u32 %v4668, 16
        %v4799 = vrot.slane %v4797, 5
        %v4800 = vsel %vm1408, %v4795, %v4799
        %v4802 = vshrl.u32 %v4669, 16
        %v4804 = vrot.slane %v4802, 4
        %v4805 = vshll.u32 %v4669, 16
        %v4807 = vrot.slane %v4805, 5
        %v4808 = vor.u32 %v4804, %v4807
        %v4809 = vrot.slane %v4808, 4
        %v4811 = vshll.u32 %v4670, 16
        %v4813 = vrot.slane %v4811, 5
        %v4814 = vsel %vm1408, %v4809, %v4813
        %v4815 = vshrl.u32 %v4670, 16
        %v4817 = vrot.slane %v4815, 4
        %v4818 = vor.u32 %v4817, %v4813
        %v4819 = vrot.slane %v4818, 4
        %v4821 = vshll.u32 %v4671, 16
        %v4823 = vrot.slane %v4821, 5
        %v4824 = vsel %vm1408, %v4819, %v4823
        %v4826 = vshrl.u32 %v4672, 16
        %v4828 = vrot.slane %v4826, 4
        %v4829 = vshll.u32 %v4672, 16
        %v4831 = vrot.slane %v4829, 5
        %v4832 = vor.u32 %v4828, %v4831
        %v4833 = vrot.slane %v4832, 4
        %v4835 = vshll.u32 %v4673, 16
        %v4837 = vrot.slane %v4835, 5
        %v4838 = vsel %vm1408, %v4833, %v4837
        %v4839 = vshrl.u32 %v4673, 16
        %v4841 = vrot.slane %v4839, 4
        %v4842 = vor.u32 %v4841, %v4837
        %v4843 = vrot.slane %v4842, 4
        %v4845 = vshll.u32 %v4674, 16
        %v4847 = vrot.slane %v4845, 5
        %v4848 = vsel %vm1408, %v4843, %v4847
        %v4850 = vshrl.u32 %v4675, 16
        %v4852 = vrot.slane %v4850, 4
        %v4853 = vshll.u32 %v4675, 16
        %v4855 = vrot.slane %v4853, 5
        %v4856 = vor.u32 %v4852, %v4855
        %v4857 = vrot.slane %v4856, 4
        %v4859 = vshll.u32 %v4676, 16
        %v4861 = vrot.slane %v4859, 5
        %v4862 = vsel %vm1408, %v4857, %v4861
        %v4863 = vshrl.u32 %v4676, 16
        %v4865 = vrot.slane %v4863, 4
        %v4866 = vor.u32 %v4865, %v4861
        %v4867 = vrot.slane %v4866, 4
        %v4869 = vshll.u32 %v4677, 16
        %v4871 = vrot.slane %v4869, 5
        %v4872 = vsel %vm1408, %v4867, %v4871
        %v4874 = vshrl.u32 %v4678, 16
        %v4876 = vrot.slane %v4874, 4
        %v4877 = vshll.u32 %v4678, 16
        %v4879 = vrot.slane %v4877, 5
        %v4880 = vor.u32 %v4876, %v4879
        %v4881 = vrot.slane %v4880, 4
        %v4883 = vshll.u32 %v4679, 16
        %v4885 = vrot.slane %v4883, 5
        %v4886 = vsel %vm1408, %v4881, %v4885
        %v4887 = vshrl.u32 %v4679, 16
        %v4889 = vrot.slane %v4887, 4
        %v4890 = vor.u32 %v4889, %v4885
        %v4891 = vrot.slane %v4890, 4
        %v4893 = vshll.u32 %v4680, 16
        %v4895 = vrot.slane %v4893, 5
        %v4896 = vsel %vm1408, %v4891, %v4895
        %v4898 = vshrl.u32 %v4681, 16
        %v4900 = vrot.slane %v4898, 4
        %v4901 = vshll.u32 %v4681, 16
        %v4903 = vrot.slane %v4901, 5
        %v4904 = vor.u32 %v4900, %v4903
        %v4905 = vrot.slane %v4904, 4
        %v4907 = vshll.u32 %v4682, 16
        %v4909 = vrot.slane %v4907, 5
        %v4910 = vsel %vm1408, %v4905, %v4909
        %v4911 = vshrl.u32 %v4682, 16
        %v4913 = vrot.slane %v4911, 4
        %v4914 = vor.u32 %v4913, %v4909
        %v4915 = vrot.slane %v4914, 4
        %v4917 = vshll.u32 %v4683, 16
        %v4919 = vrot.slane %v4917, 5
        %v4920 = vsel %vm1408, %v4915, %v4919
        %v4922 = vshrl.u32 %v4684, 16
        %v4924 = vrot.slane %v4922, 4
        %v4925 = vshll.u32 %v4684, 16
        %v4927 = vrot.slane %v4925, 5
        %v4928 = vor.u32 %v4924, %v4927
        %v4929 = vrot.slane %v4928, 4
        %v4931 = vshll.u32 %v4685, 16
        %v4933 = vrot.slane %v4931, 5
        %v4934 = vsel %vm1408, %v4929, %v4933
        %v4935 = vshrl.u32 %v4685, 16
        %v4937 = vrot.slane %v4935, 4
        %v4938 = vor.u32 %v4937, %v4933
        %v4939 = vrot.slane %v4938, 4
        %v4941 = vshll.u32 %v4686, 16
        %v4943 = vrot.slane %v4941, 5
        %v4944 = vsel %vm1408, %v4939, %v4943
        %v4946 = vshrl.u32 %v4687, 16
        %v4948 = vrot.slane %v4946, 4
        %v4949 = vshll.u32 %v4687, 16
        %v4951 = vrot.slane %v4949, 5
        %v4952 = vor.u32 %v4948, %v4951
        %v4953 = vrot.slane %v4952, 4
        %v4955 = vshll.u32 %v4688, 16
        %v4957 = vrot.slane %v4955, 5
        %v4958 = vsel %vm1408, %v4953, %v4957
        %v4959 = vshrl.u32 %v4688, 16
        %v4961 = vrot.slane %v4959, 4
        %v4962 = vor.u32 %v4961, %v4957
        %v4963 = vrot.slane %v4962, 4
        %v4965 = vshll.u32 %v4689, 16
        %v4967 = vrot.slane %v4965, 5
        %v4968 = vsel %vm1408, %v4963, %v4967
        %v4970 = vshrl.u32 %v4690, 16
        %v4972 = vrot.slane %v4970, 4
        %v4973 = vshll.u32 %v4690, 16
        %v4975 = vrot.slane %v4973, 5
        %v4976 = vor.u32 %v4972, %v4975
        %v4977 = vrot.slane %v4976, 4
        %v4979 = vshll.u32 %v4691, 16
        %v4981 = vrot.slane %v4979, 5
        %v4982 = vsel %vm1408, %v4977, %v4981
        %v4983 = vshrl.u32 %v4691, 16
        %v4985 = vrot.slane %v4983, 4
        %v4986 = vor.u32 %v4985, %v4981
        %v4987 = vrot.slane %v4986, 4
        %v4989 = vshll.u32 %v4692, 16
        %v4991 = vrot.slane %v4989, 5
        %v4992 = vsel %vm1408, %v4987, %v4991
        %v4994 = vshrl.u32 %v4693, 16
        %v4996 = vrot.slane %v4994, 4
        %v4997 = vshll.u32 %v4693, 16
        %v4999 = vrot.slane %v4997, 5
        %v5000 = vor.u32 %v4996, %v4999
        %v5001 = vrot.slane %v5000, 4
        %v5003 = vshll.u32 %v4694, 16
        %v5005 = vrot.slane %v5003, 5
        %v5006 = vsel %vm1408, %v5001, %v5005
        %v5007 = vshrl.u32 %v4694, 16
        %v5009 = vrot.slane %v5007, 4
        %v5010 = vor.u32 %v5009, %v5005
        %v5011 = vrot.slane %v5010, 4
        %v5013 = vshll.u32 %v4695, 16
        %v5015 = vrot.slane %v5013, 5
        %v5016 = vsel %vm1408, %v5011, %v5015
        %v5018 = vshrl.u32 %v4696, 16
        %v5020 = vrot.slane %v5018, 4
        %v5021 = vshll.u32 %v4696, 16
        %v5023 = vrot.slane %v5021, 5
        %v5024 = vor.u32 %v5020, %v5023
        %v5025 = vrot.slane %v5024, 4
        %v5027 = vshll.u32 %v4697, 16
        %v5029 = vrot.slane %v5027, 5
        %v5030 = vsel %vm1408, %v5025, %v5029
        %v5031 = vshrl.u32 %v4697, 16
        %v5033 = vrot.slane %v5031, 4
        %v5034 = vor.u32 %v5033, %v5029
        %v5035 = vrot.slane %v5034, 4
        %v5037 = vshll.u32 %v4698, 16
        %v5039 = vrot.slane %v5037, 5
        %v5040 = vsel %vm1408, %v5035, %v5039
        %v5042 = vshrl.u32 %v4699, 16
        %v5044 = vrot.slane %v5042, 4
        %v5045 = vshll.u32 %v4699, 16
        %v5047 = vrot.slane %v5045, 5
        %v5048 = vor.u32 %v5044, %v5047
        %v5049 = vrot.slane %v5048, 4
        %v5051 = vshll.u32 %v4700, 16
        %v5053 = vrot.slane %v5051, 5
        %v5054 = vsel %vm1408, %v5049, %v5053
        %v5055 = vshrl.u32 %v4700, 16
        %v5057 = vrot.slane %v5055, 4
        %v5058 = vor.u32 %v5057, %v5053
        %v5059 = vrot.slane %v5058, 4
        %v5061 = vshll.u32 %v4701, 16
        %v5063 = vrot.slane %v5061, 5
        %v5064 = vsel %vm1408, %v5059, %v5063
        %v5066 = vshrl.u32 %v4702, 16
        %v5068 = vrot.slane %v5066, 4
        %v5069 = vshll.u32 %v4702, 16
        %v5071 = vrot.slane %v5069, 5
        %v5072 = vor.u32 %v5068, %v5071
        %v5073 = vrot.slane %v5072, 4
        %v5075 = vshll.u32 %v4703, 16
        %v5077 = vrot.slane %v5075, 5
        %v5078 = vsel %vm1408, %v5073, %v5077
        %v5079 = vshrl.u32 %v4703, 16
        %v5081 = vrot.slane %v5079, 4
        %v5082 = vor.u32 %v5081, %v5077
        %v5083 = vrot.slane %v5082, 4
        %v5085 = vshll.u32 %v4704, 16
        %v5087 = vrot.slane %v5085, 5
        %v5088 = vsel %vm1408, %v5083, %v5087
        %v5089 = vld [vmem:[#allocation3] sm:$0xff]
        %v5090 = vld [vmem:[#allocation3 + $0x8] sm:$0xff]
        %v5091 = vld [vmem:[#allocation3 + $0x10] sm:$0xff]
        %v5092 = vld [vmem:[#allocation3 + $0x18] sm:$0xff]
        %v5093 = vld [vmem:[#allocation3 + $0x20] sm:$0xff]
        %v5094 = vld [vmem:[#allocation3 + $0x28] sm:$0xff]
        %v5095 = vld [vmem:[#allocation3 + $0x30] sm:$0xff]
        %v5096 = vld [vmem:[#allocation3 + $0x38] sm:$0xff]
        %v5097 = vld [vmem:[#allocation3 + $0x40] sm:$0xff]
        %v5098 = vld [vmem:[#allocation3 + $0x48] sm:$0xff]
        %v5099 = vld [vmem:[#allocation3 + $0x50] sm:$0xff]
        %v5100 = vld [vmem:[#allocation3 + $0x58] sm:$0xff]
        %v5101 = vld [vmem:[#allocation3 + $0x60] sm:$0xff]
        %v5102 = vld [vmem:[#allocation3 + $0x68] sm:$0xff]
        %v5103 = vld [vmem:[#allocation3 + $0x70] sm:$0xff]
        %v5104 = vld [vmem:[#allocation3 + $0x78] sm:$0xff]
        %v5105 = vld [vmem:[#allocation3 + $0x80] sm:$0xff]
        %v5106 = vld [vmem:[#allocation3 + $0x88] sm:$0xff]
        %v5107 = vld [vmem:[#allocation3 + $0x90] sm:$0xff]
        %v5108 = vld [vmem:[#allocation3 + $0x98] sm:$0xff]
        %v5109 = vld [vmem:[#allocation3 + $0xa0] sm:$0xff]
        %v5110 = vld [vmem:[#allocation3 + $0xa8] sm:$0xff]
        %v5111 = vld [vmem:[#allocation3 + $0xb0] sm:$0xff]
        %v5112 = vld [vmem:[#allocation3 + $0xb8] sm:$0xff]
        %v5113 = vld [vmem:[#allocation3 + $0xc0] sm:$0xff]
        %v5114 = vld [vmem:[#allocation3 + $0xc8] sm:$0xff]
        %v5115 = vld [vmem:[#allocation3 + $0xd0] sm:$0xff]
        %v5116 = vld [vmem:[#allocation3 + $0xd8] sm:$0xff]
        %v5117 = vld [vmem:[#allocation3 + $0xe0] sm:$0xff]
        %v5118 = vld [vmem:[#allocation3 + $0xe8] sm:$0xff]
        %v5119 = vld [vmem:[#allocation3 + $0xf0] sm:$0xff]
        %v5120 = vld [vmem:[#allocation3 + $0xf8] sm:$0xff]
        %s5121 = scalar_lea.vmem [#allocation4], 448
        %v5122 = vld [vmem:[%s5121] sm:$0xf]
        %v5123 = vld [vmem:[%s5121 + $0x4] sm:$0xf]
        %v5124 = vld [vmem:[%s5121 + $0x8] sm:$0xf]
        %v5125 = vld [vmem:[%s5121 + $0xc] sm:$0xf]
        %v5126 = vld [vmem:[%s5121 + $0x10] sm:$0xf]
        %v5127 = vld [vmem:[%s5121 + $0x14] sm:$0xf]
        %v5128 = vld [vmem:[%s5121 + $0x18] sm:$0xf]
        %v5129 = vld [vmem:[%s5121 + $0x1c] sm:$0xf]
        %v5130 = vld [vmem:[%s5121 + $0x20] sm:$0xf]
        %v5131 = vld [vmem:[%s5121 + $0x24] sm:$0xf]
        %v5132 = vld [vmem:[%s5121 + $0x28] sm:$0xf]
        %v5133 = vld [vmem:[%s5121 + $0x2c] sm:$0xf]
        %v5134 = vld [vmem:[%s5121 + $0x30] sm:$0xf]
        %v5135 = vld [vmem:[%s5121 + $0x34] sm:$0xf]
        %v5136 = vld [vmem:[%s5121 + $0x38] sm:$0xf]
        %v5137 = vld [vmem:[%s5121 + $0x3c] sm:$0xf]
        %v5138 = vunpack.c.l.b16 %v4718
        %v5139 = vunpack.c.l.b16 %v4728
        %v5140 = vunpack.c.l.b16 %v4742
        %v5141 = vunpack.c.l.b16 %v4752
        %v5142 = vunpack.c.l.b16 %v4766
        %v5143 = vunpack.c.l.b16 %v4776
        %v5144 = vunpack.c.l.b16 %v4790
        %v5145 = vunpack.c.l.b16 %v4800
        %v5146 = vunpack.c.l.b16 %v4814
        %v5147 = vunpack.c.l.b16 %v4824
        %v5148 = vunpack.c.l.b16 %v4838
        %v5149 = vunpack.c.l.b16 %v4848
        %v5150 = vunpack.c.l.b16 %v4862
        %v5151 = vunpack.c.l.b16 %v4872
        %v5152 = vunpack.c.l.b16 %v4886
        %v5153 = vunpack.c.l.b16 %v4896
        %v5154 = vunpack.c.l.b16 %v4910
        %v5155 = vunpack.c.l.b16 %v4920
        %v5156 = vunpack.c.l.b16 %v4934
        %v5157 = vunpack.c.l.b16 %v4944
        %v5158 = vunpack.c.l.b16 %v4958
        %v5159 = vunpack.c.l.b16 %v4968
        %v5160 = vunpack.c.l.b16 %v4982
        %v5161 = vunpack.c.l.b16 %v4992
        %v5162 = vunpack.c.l.b16 %v5006
        %v5163 = vunpack.c.l.b16 %v5016
        %v5164 = vunpack.c.l.b16 %v5030
        %v5165 = vunpack.c.l.b16 %v5040
        %v5166 = vunpack.c.l.b16 %v5054
        %v5167 = vunpack.c.l.b16 %v5064
        %v5168 = vunpack.c.l.b16 %v5078
        %v5169 = vunpack.c.l.b16 %v5088
        %v5170 = vpack.c.b16 %v5139, %v5138
        %v5171 = vpack.c.b16 %v5141, %v5140
        %v5172 = vpack.c.b16 %v5143, %v5142
        %v5173 = vpack.c.b16 %v5145, %v5144
        %v5174 = vpack.c.b16 %v5147, %v5146
        %v5175 = vpack.c.b16 %v5149, %v5148
        %v5176 = vpack.c.b16 %v5151, %v5150
        %v5177 = vpack.c.b16 %v5153, %v5152
        %v5178 = vpack.c.b16 %v5155, %v5154
        %v5179 = vpack.c.b16 %v5157, %v5156
        %v5180 = vpack.c.b16 %v5159, %v5158
        %v5181 = vpack.c.b16 %v5161, %v5160
        %v5182 = vpack.c.b16 %v5163, %v5162
        %v5183 = vpack.c.b16 %v5165, %v5164
        %v5184 = vpack.c.b16 %v5167, %v5166
        %v5185 = vpack.c.b16 %v5169, %v5168
        %v5218 = vunpack.c.l.b16 %v5122
        %v5219 = vunpack.c.l.b16 %v5123
        %v5220 = vunpack.c.l.b16 %v5124
        %v5221 = vunpack.c.l.b16 %v5125
        %v5222 = vunpack.c.l.b16 %v5126
        %v5223 = vunpack.c.l.b16 %v5127
        %v5224 = vunpack.c.l.b16 %v5128
        %v5225 = vunpack.c.l.b16 %v5129
        %v5226 = vunpack.c.l.b16 %v5130
        %v5227 = vunpack.c.l.b16 %v5131
        %v5228 = vunpack.c.l.b16 %v5132
        %v5229 = vunpack.c.l.b16 %v5133
        %v5230 = vunpack.c.l.b16 %v5134
        %v5231 = vunpack.c.l.b16 %v5135
        %v5232 = vunpack.c.l.b16 %v5136
        %v5233 = vunpack.c.l.b16 %v5137
        %v5234 = vpack.c.b16 %v5219, %v5218
        %v5235 = vpack.c.b16 %v5221, %v5220
        %v5236 = vpack.c.b16 %v5223, %v5222
        %v5237 = vpack.c.b16 %v5225, %v5224
        %v5238 = vpack.c.b16 %v5227, %v5226
        %v5239 = vpack.c.b16 %v5229, %v5228
        %v5240 = vpack.c.b16 %v5231, %v5230
        %v5241 = vpack.c.b16 %v5233, %v5232
        %5250 = vmatpush.bf16.msra.mxu0 %v5241
        %5251 = vmatpush.bf16.msra.mxu0 %v5240
        %5252 = vmatpush.bf16.msra.mxu0 %v5239
        %5253 = vmatpush.bf16.msra.mxu0 %v5238
        %5254 = vmatpush.bf16.msra.mxu0 %v5237
        %5255 = vmatpush.bf16.msra.mxu0 %v5236
        %5256 = vmatpush.bf16.msra.mxu0 %v5235
        %5257 = vmatpush.bf16.msra.mxu0 %v5234
        %5258 = vmatmul.bf16.gmra.mxu0 %v5170
        %v5259 = vpop.f32.mrf.mxu0
        %v5260 = vadd.f32 0.0, %v5259
        %v5261 = vpop.f32.mrf.mxu0
        %v5262 = vadd.f32 0.0, %v5261
        %5263 = vmatmul.bf16.gmra.mxu0 %v5171
        %v5264 = vpop.f32.mrf.mxu0
        %v5265 = vadd.f32 0.0, %v5264
        %v5266 = vpop.f32.mrf.mxu0
        %v5267 = vadd.f32 0.0, %v5266
        %5268 = vmatmul.bf16.gmra.mxu0 %v5172
        %v5269 = vpop.f32.mrf.mxu0
        %v5270 = vadd.f32 0.0, %v5269
        %v5271 = vpop.f32.mrf.mxu0
        %v5272 = vadd.f32 0.0, %v5271
        %5273 = vmatmul.bf16.gmra.mxu0 %v5173
        %v5274 = vpop.f32.mrf.mxu0
        %v5275 = vadd.f32 0.0, %v5274
        %v5276 = vpop.f32.mrf.mxu0
        %v5277 = vadd.f32 0.0, %v5276
        %5278 = vmatmul.bf16.gmra.mxu0 %v5174
        %v5279 = vpop.f32.mrf.mxu0
        %v5280 = vadd.f32 0.0, %v5279
        %v5281 = vpop.f32.mrf.mxu0
        %v5282 = vadd.f32 0.0, %v5281
        %5283 = vmatmul.bf16.gmra.mxu0 %v5175
        %v5284 = vpop.f32.mrf.mxu0
        %v5285 = vadd.f32 0.0, %v5284
        %v5286 = vpop.f32.mrf.mxu0
        %v5287 = vadd.f32 0.0, %v5286
        %5288 = vmatmul.bf16.gmra.mxu0 %v5176
        %v5289 = vpop.f32.mrf.mxu0
        %v5290 = vadd.f32 0.0, %v5289
        %v5291 = vpop.f32.mrf.mxu0
        %v5292 = vadd.f32 0.0, %v5291
        %5293 = vmatmul.bf16.gmra.mxu0 %v5177
        %v5294 = vpop.f32.mrf.mxu0
        %v5295 = vadd.f32 0.0, %v5294
        %v5296 = vpop.f32.mrf.mxu0
        %v5297 = vadd.f32 0.0, %v5296
        %5298 = vmatmul.bf16.gmra.mxu0 %v5178
        %v5299 = vpop.f32.mrf.mxu0
        %v5300 = vadd.f32 0.0, %v5299
        %v5301 = vpop.f32.mrf.mxu0
        %v5302 = vadd.f32 0.0, %v5301
        %5303 = vmatmul.bf16.gmra.mxu0 %v5179
        %v5304 = vpop.f32.mrf.mxu0
        %v5305 = vadd.f32 0.0, %v5304
        %v5306 = vpop.f32.mrf.mxu0
        %v5307 = vadd.f32 0.0, %v5306
        %5308 = vmatmul.bf16.gmra.mxu0 %v5180
        %v5309 = vpop.f32.mrf.mxu0
        %v5310 = vadd.f32 0.0, %v5309
        %v5311 = vpop.f32.mrf.mxu0
        %v5312 = vadd.f32 0.0, %v5311
        %5313 = vmatmul.bf16.gmra.mxu0 %v5181
        %v5314 = vpop.f32.mrf.mxu0
        %v5315 = vadd.f32 0.0, %v5314
        %v5316 = vpop.f32.mrf.mxu0
        %v5317 = vadd.f32 0.0, %v5316
        %5318 = vmatmul.bf16.gmra.mxu0 %v5182
        %v5319 = vpop.f32.mrf.mxu0
        %v5320 = vadd.f32 0.0, %v5319
        %v5321 = vpop.f32.mrf.mxu0
        %v5322 = vadd.f32 0.0, %v5321
        %5323 = vmatmul.bf16.gmra.mxu0 %v5183
        %v5324 = vpop.f32.mrf.mxu0
        %v5325 = vadd.f32 0.0, %v5324
        %v5326 = vpop.f32.mrf.mxu0
        %v5327 = vadd.f32 0.0, %v5326
        %5328 = vmatmul.bf16.gmra.mxu0 %v5184
        %v5329 = vpop.f32.mrf.mxu0
        %v5330 = vadd.f32 0.0, %v5329
        %v5331 = vpop.f32.mrf.mxu0
        %v5332 = vadd.f32 0.0, %v5331
        %5333 = vmatmul.bf16.gmra.mxu0 %v5185
        %v5334 = vpop.f32.mrf.mxu0
        %v5335 = vadd.f32 0.0, %v5334
        %v5336 = vpop.f32.mrf.mxu0
        %v5337 = vadd.f32 0.0, %v5336
        %5338 = vdwg.mxu0
        %v5339 = vadd.f32 %v5089, %v5260
        %v5340 = vadd.f32 %v5090, %v5262
        %v5341 = vadd.f32 %v5091, %v5265
        %v5342 = vadd.f32 %v5092, %v5267
        %v5343 = vadd.f32 %v5093, %v5270
        %v5344 = vadd.f32 %v5094, %v5272
        %v5345 = vadd.f32 %v5095, %v5275
        %v5346 = vadd.f32 %v5096, %v5277
        %v5347 = vadd.f32 %v5097, %v5280
        %v5348 = vadd.f32 %v5098, %v5282
        %v5349 = vadd.f32 %v5099, %v5285
        %v5350 = vadd.f32 %v5100, %v5287
        %v5351 = vadd.f32 %v5101, %v5290
        %v5352 = vadd.f32 %v5102, %v5292
        %v5353 = vadd.f32 %v5103, %v5295
        %v5354 = vadd.f32 %v5104, %v5297
        %v5355 = vadd.f32 %v5105, %v5300
        %v5356 = vadd.f32 %v5106, %v5302
        %v5357 = vadd.f32 %v5107, %v5305
        %v5358 = vadd.f32 %v5108, %v5307
        %v5359 = vadd.f32 %v5109, %v5310
        %v5360 = vadd.f32 %v5110, %v5312
        %v5361 = vadd.f32 %v5111, %v5315
        %v5362 = vadd.f32 %v5112, %v5317
        %v5363 = vadd.f32 %v5113, %v5320
        %v5364 = vadd.f32 %v5114, %v5322
        %v5365 = vadd.f32 %v5115, %v5325
        %v5366 = vadd.f32 %v5116, %v5327
        %v5367 = vadd.f32 %v5117, %v5330
        %v5368 = vadd.f32 %v5118, %v5332
        %v5369 = vadd.f32 %v5119, %v5335
        %v5370 = vadd.f32 %v5120, %v5337
        %5371 = vst [vmem:[#allocation3] sm:$0xff] %v5339
        %5372 = vst [vmem:[#allocation3 + $0x8] sm:$0xff] %v5340
        %5373 = vst [vmem:[#allocation3 + $0x10] sm:$0xff] %v5341
        %5374 = vst [vmem:[#allocation3 + $0x18] sm:$0xff] %v5342
        %5375 = vst [vmem:[#allocation3 + $0x20] sm:$0xff] %v5343
        %5376 = vst [vmem:[#allocation3 + $0x28] sm:$0xff] %v5344
        %5377 = vst [vmem:[#allocation3 + $0x30] sm:$0xff] %v5345
        %5378 = vst [vmem:[#allocation3 + $0x38] sm:$0xff] %v5346
        %5379 = vst [vmem:[#allocation3 + $0x40] sm:$0xff] %v5347
        %5380 = vst [vmem:[#allocation3 + $0x48] sm:$0xff] %v5348
        %5381 = vst [vmem:[#allocation3 + $0x50] sm:$0xff] %v5349
        %5382 = vst [vmem:[#allocation3 + $0x58] sm:$0xff] %v5350
        %5383 = vst [vmem:[#allocation3 + $0x60] sm:$0xff] %v5351
        %5384 = vst [vmem:[#allocation3 + $0x68] sm:$0xff] %v5352
        %5385 = vst [vmem:[#allocation3 + $0x70] sm:$0xff] %v5353
        %5386 = vst [vmem:[#allocation3 + $0x78] sm:$0xff] %v5354
        %5387 = vst [vmem:[#allocation3 + $0x80] sm:$0xff] %v5355
        %5388 = vst [vmem:[#allocation3 + $0x88] sm:$0xff] %v5356
        %5389 = vst [vmem:[#allocation3 + $0x90] sm:$0xff] %v5357
        %5390 = vst [vmem:[#allocation3 + $0x98] sm:$0xff] %v5358
        %5391 = vst [vmem:[#allocation3 + $0xa0] sm:$0xff] %v5359
        %5392 = vst [vmem:[#allocation3 + $0xa8] sm:$0xff] %v5360
        %5393 = vst [vmem:[#allocation3 + $0xb0] sm:$0xff] %v5361
        %5394 = vst [vmem:[#allocation3 + $0xb8] sm:$0xff] %v5362
        %5395 = vst [vmem:[#allocation3 + $0xc0] sm:$0xff] %v5363
        %5396 = vst [vmem:[#allocation3 + $0xc8] sm:$0xff] %v5364
        %5397 = vst [vmem:[#allocation3 + $0xd0] sm:$0xff] %v5365
        %5398 = vst [vmem:[#allocation3 + $0xd8] sm:$0xff] %v5366
        %5399 = vst [vmem:[#allocation3 + $0xe0] sm:$0xff] %v5367
        %5400 = vst [vmem:[#allocation3 + $0xe8] sm:$0xff] %v5368
        %5401 = vst [vmem:[#allocation3 + $0xf0] sm:$0xff] %v5369
        %5402 = vst [vmem:[#allocation3 + $0xf8] sm:$0xff] %v5370
        %v5403 = vld [vmem:[%s4278] sm:$0xe]
        %v5404 = vld [vmem:[%s4278 + $0x4] sm:$0xf]
        %v5405 = vld [vmem:[%s4278 + $0x8] sm:$0x1]
        %v5406 = vld [vmem:[%s4278 + $0xc] sm:$0xe]
        %v5407 = vld [vmem:[%s4278 + $0x10] sm:$0xf]
        %v5408 = vld [vmem:[%s4278 + $0x14] sm:$0x1]
        %v5409 = vld [vmem:[%s4278 + $0x18] sm:$0xe]
        %v5410 = vld [vmem:[%s4278 + $0x1c] sm:$0xf]
        %v5411 = vld [vmem:[%s4278 + $0x20] sm:$0x1]
        %v5412 = vld [vmem:[%s4278 + $0x24] sm:$0xe]
        %v5413 = vld [vmem:[%s4278 + $0x28] sm:$0xf]
        %v5414 = vld [vmem:[%s4278 + $0x2c] sm:$0x1]
        %v5415 = vld [vmem:[%s4278 + $0x30] sm:$0xe]
        %v5416 = vld [vmem:[%s4278 + $0x34] sm:$0xf]
        %v5417 = vld [vmem:[%s4278 + $0x38] sm:$0x1]
        %v5418 = vld [vmem:[%s4278 + $0x3c] sm:$0xe]
        %v5419 = vld [vmem:[%s4278 + $0x40] sm:$0xf]
        %v5420 = vld [vmem:[%s4278 + $0x44] sm:$0x1]
        %v5421 = vld [vmem:[%s4278 + $0x48] sm:$0xe]
        %v5422 = vld [vmem:[%s4278 + $0x4c] sm:$0xf]
        %v5423 = vld [vmem:[%s4278 + $0x50] sm:$0x1]
        %v5424 = vld [vmem:[%s4278 + $0x54] sm:$0xe]
        %v5425 = vld [vmem:[%s4278 + $0x58] sm:$0xf]
        %v5426 = vld [vmem:[%s4278 + $0x5c] sm:$0x1]
        %v5427 = vld [vmem:[%s4278 + $0x60] sm:$0xe]
        %v5428 = vld [vmem:[%s4278 + $0x64] sm:$0xf]
        %v5429 = vld [vmem:[%s4278 + $0x68] sm:$0x1]
        %v5430 = vld [vmem:[%s4278 + $0x6c] sm:$0xe]
        %v5431 = vld [vmem:[%s4278 + $0x70] sm:$0xf]
        %v5432 = vld [vmem:[%s4278 + $0x74] sm:$0x1]
        %v5433 = vld [vmem:[%s4278 + $0x78] sm:$0xe]
        %v5434 = vld [vmem:[%s4278 + $0x7c] sm:$0xf]
        %v5435 = vld [vmem:[%s4278 + $0x80] sm:$0x1]
        %v5436 = vld [vmem:[%s4278 + $0x84] sm:$0xe]
        %v5437 = vld [vmem:[%s4278 + $0x88] sm:$0xf]
        %v5438 = vld [vmem:[%s4278 + $0x8c] sm:$0x1]
        %v5439 = vld [vmem:[%s4278 + $0x90] sm:$0xe]
        %v5440 = vld [vmem:[%s4278 + $0x94] sm:$0xf]
        %v5441 = vld [vmem:[%s4278 + $0x98] sm:$0x1]
        %v5442 = vld [vmem:[%s4278 + $0x9c] sm:$0xe]
        %v5443 = vld [vmem:[%s4278 + $0xa0] sm:$0xf]
        %v5444 = vld [vmem:[%s4278 + $0xa4] sm:$0x1]
        %v5445 = vld [vmem:[%s4278 + $0xa8] sm:$0xe]
        %v5446 = vld [vmem:[%s4278 + $0xac] sm:$0xf]
        %v5447 = vld [vmem:[%s4278 + $0xb0] sm:$0x1]
        %v5448 = vld [vmem:[%s4278 + $0xb4] sm:$0xe]
        %v5449 = vld [vmem:[%s4278 + $0xb8] sm:$0xf]
        %v5450 = vld [vmem:[%s4278 + $0xbc] sm:$0x1]
        %v5499 = vrot.slane %v5403, 5
        %v5500 = vrot.slane %v5499, 4
        %v5501 = vrot.slane %v5404, 5
        %v5502 = vsel %vm2205, %v5500, %v5501
        %v5503 = vrot.slane %v5501, 4
        %v5504 = vrot.slane %v5405, 5
        %v5505 = vsel %vm2205, %v5503, %v5504
        %v5506 = vrot.slane %v5406, 5
        %v5507 = vrot.slane %v5506, 4
        %v5508 = vrot.slane %v5407, 5
        %v5509 = vsel %vm2205, %v5507, %v5508
        %v5510 = vrot.slane %v5508, 4
        %v5511 = vrot.slane %v5408, 5
        %v5512 = vsel %vm2205, %v5510, %v5511
        %v5513 = vrot.slane %v5409, 5
        %v5514 = vrot.slane %v5513, 4
        %v5515 = vrot.slane %v5410, 5
        %v5516 = vsel %vm2205, %v5514, %v5515
        %v5517 = vrot.slane %v5515, 4
        %v5518 = vrot.slane %v5411, 5
        %v5519 = vsel %vm2205, %v5517, %v5518
        %v5520 = vrot.slane %v5412, 5
        %v5521 = vrot.slane %v5520, 4
        %v5522 = vrot.slane %v5413, 5
        %v5523 = vsel %vm2205, %v5521, %v5522
        %v5524 = vrot.slane %v5522, 4
        %v5525 = vrot.slane %v5414, 5
        %v5526 = vsel %vm2205, %v5524, %v5525
        %v5527 = vrot.slane %v5415, 5
        %v5528 = vrot.slane %v5527, 4
        %v5529 = vrot.slane %v5416, 5
        %v5530 = vsel %vm2205, %v5528, %v5529
        %v5531 = vrot.slane %v5529, 4
        %v5532 = vrot.slane %v5417, 5
        %v5533 = vsel %vm2205, %v5531, %v5532
        %v5534 = vrot.slane %v5418, 5
        %v5535 = vrot.slane %v5534, 4
        %v5536 = vrot.slane %v5419, 5
        %v5537 = vsel %vm2205, %v5535, %v5536
        %v5538 = vrot.slane %v5536, 4
        %v5539 = vrot.slane %v5420, 5
        %v5540 = vsel %vm2205, %v5538, %v5539
        %v5541 = vrot.slane %v5421, 5
        %v5542 = vrot.slane %v5541, 4
        %v5543 = vrot.slane %v5422, 5
        %v5544 = vsel %vm2205, %v5542, %v5543
        %v5545 = vrot.slane %v5543, 4
        %v5546 = vrot.slane %v5423, 5
        %v5547 = vsel %vm2205, %v5545, %v5546
        %v5548 = vrot.slane %v5424, 5
        %v5549 = vrot.slane %v5548, 4
        %v5550 = vrot.slane %v5425, 5
        %v5551 = vsel %vm2205, %v5549, %v5550
        %v5552 = vrot.slane %v5550, 4
        %v5553 = vrot.slane %v5426, 5
        %v5554 = vsel %vm2205, %v5552, %v5553
        %v5555 = vrot.slane %v5427, 5
        %v5556 = vrot.slane %v5555, 4
        %v5557 = vrot.slane %v5428, 5
        %v5558 = vsel %vm2205, %v5556, %v5557
        %v5559 = vrot.slane %v5557, 4
        %v5560 = vrot.slane %v5429, 5
        %v5561 = vsel %vm2205, %v5559, %v5560
        %v5562 = vrot.slane %v5430, 5
        %v5563 = vrot.slane %v5562, 4
        %v5564 = vrot.slane %v5431, 5
        %v5565 = vsel %vm2205, %v5563, %v5564
        %v5566 = vrot.slane %v5564, 4
        %v5567 = vrot.slane %v5432, 5
        %v5568 = vsel %vm2205, %v5566, %v5567
        %v5569 = vrot.slane %v5433, 5
        %v5570 = vrot.slane %v5569, 4
        %v5571 = vrot.slane %v5434, 5
        %v5572 = vsel %vm2205, %v5570, %v5571
        %v5573 = vrot.slane %v5571, 4
        %v5574 = vrot.slane %v5435, 5
        %v5575 = vsel %vm2205, %v5573, %v5574
        %v5576 = vrot.slane %v5436, 5
        %v5577 = vrot.slane %v5576, 4
        %v5578 = vrot.slane %v5437, 5
        %v5579 = vsel %vm2205, %v5577, %v5578
        %v5580 = vrot.slane %v5578, 4
        %v5581 = vrot.slane %v5438, 5
        %v5582 = vsel %vm2205, %v5580, %v5581
        %v5583 = vrot.slane %v5439, 5
        %v5584 = vrot.slane %v5583, 4
        %v5585 = vrot.slane %v5440, 5
        %v5586 = vsel %vm2205, %v5584, %v5585
        %v5587 = vrot.slane %v5585, 4
        %v5588 = vrot.slane %v5441, 5
        %v5589 = vsel %vm2205, %v5587, %v5588
        %v5590 = vrot.slane %v5442, 5
        %v5591 = vrot.slane %v5590, 4
        %v5592 = vrot.slane %v5443, 5
        %v5593 = vsel %vm2205, %v5591, %v5592
        %v5594 = vrot.slane %v5592, 4
        %v5595 = vrot.slane %v5444, 5
        %v5596 = vsel %vm2205, %v5594, %v5595
        %v5597 = vrot.slane %v5445, 5
        %v5598 = vrot.slane %v5597, 4
        %v5599 = vrot.slane %v5446, 5
        %v5600 = vsel %vm2205, %v5598, %v5599
        %v5601 = vrot.slane %v5599, 4
        %v5602 = vrot.slane %v5447, 5
        %v5603 = vsel %vm2205, %v5601, %v5602
        %v5604 = vrot.slane %v5448, 5
        %v5605 = vrot.slane %v5604, 4
        %v5606 = vrot.slane %v5449, 5
        %v5607 = vsel %vm2205, %v5605, %v5606
        %v5608 = vrot.slane %v5606, 4
        %v5609 = vrot.slane %v5450, 5
        %v5610 = vsel %vm2205, %v5608, %v5609
        %v5611 = vld [vmem:[#allocation3] sm:$0xff]
        %v5612 = vld [vmem:[#allocation3 + $0x8] sm:$0xff]
        %v5613 = vld [vmem:[#allocation3 + $0x10] sm:$0xff]
        %v5614 = vld [vmem:[#allocation3 + $0x18] sm:$0xff]
        %v5615 = vld [vmem:[#allocation3 + $0x20] sm:$0xff]
        %v5616 = vld [vmem:[#allocation3 + $0x28] sm:$0xff]
        %v5617 = vld [vmem:[#allocation3 + $0x30] sm:$0xff]
        %v5618 = vld [vmem:[#allocation3 + $0x38] sm:$0xff]
        %v5619 = vld [vmem:[#allocation3 + $0x40] sm:$0xff]
        %v5620 = vld [vmem:[#allocation3 + $0x48] sm:$0xff]
        %v5621 = vld [vmem:[#allocation3 + $0x50] sm:$0xff]
        %v5622 = vld [vmem:[#allocation3 + $0x58] sm:$0xff]
        %v5623 = vld [vmem:[#allocation3 + $0x60] sm:$0xff]
        %v5624 = vld [vmem:[#allocation3 + $0x68] sm:$0xff]
        %v5625 = vld [vmem:[#allocation3 + $0x70] sm:$0xff]
        %v5626 = vld [vmem:[#allocation3 + $0x78] sm:$0xff]
        %v5627 = vld [vmem:[#allocation3 + $0x80] sm:$0xff]
        %v5628 = vld [vmem:[#allocation3 + $0x88] sm:$0xff]
        %v5629 = vld [vmem:[#allocation3 + $0x90] sm:$0xff]
        %v5630 = vld [vmem:[#allocation3 + $0x98] sm:$0xff]
        %v5631 = vld [vmem:[#allocation3 + $0xa0] sm:$0xff]
        %v5632 = vld [vmem:[#allocation3 + $0xa8] sm:$0xff]
        %v5633 = vld [vmem:[#allocation3 + $0xb0] sm:$0xff]
        %v5634 = vld [vmem:[#allocation3 + $0xb8] sm:$0xff]
        %v5635 = vld [vmem:[#allocation3 + $0xc0] sm:$0xff]
        %v5636 = vld [vmem:[#allocation3 + $0xc8] sm:$0xff]
        %v5637 = vld [vmem:[#allocation3 + $0xd0] sm:$0xff]
        %v5638 = vld [vmem:[#allocation3 + $0xd8] sm:$0xff]
        %v5639 = vld [vmem:[#allocation3 + $0xe0] sm:$0xff]
        %v5640 = vld [vmem:[#allocation3 + $0xe8] sm:$0xff]
        %v5641 = vld [vmem:[#allocation3 + $0xf0] sm:$0xff]
        %v5642 = vld [vmem:[#allocation3 + $0xf8] sm:$0xff]
        %s5643 = scalar_lea.vmem [#allocation4], 512
        %v5644 = vld [vmem:[%s5643] sm:$0xf]
        %v5645 = vld [vmem:[%s5643 + $0x4] sm:$0xf]
        %v5646 = vld [vmem:[%s5643 + $0x8] sm:$0xf]
        %v5647 = vld [vmem:[%s5643 + $0xc] sm:$0xf]
        %v5648 = vld [vmem:[%s5643 + $0x10] sm:$0xf]
        %v5649 = vld [vmem:[%s5643 + $0x14] sm:$0xf]
        %v5650 = vld [vmem:[%s5643 + $0x18] sm:$0xf]
        %v5651 = vld [vmem:[%s5643 + $0x1c] sm:$0xf]
        %v5652 = vld [vmem:[%s5643 + $0x20] sm:$0xf]
        %v5653 = vld [vmem:[%s5643 + $0x24] sm:$0xf]
        %v5654 = vld [vmem:[%s5643 + $0x28] sm:$0xf]
        %v5655 = vld [vmem:[%s5643 + $0x2c] sm:$0xf]
        %v5656 = vld [vmem:[%s5643 + $0x30] sm:$0xf]
        %v5657 = vld [vmem:[%s5643 + $0x34] sm:$0xf]
        %v5658 = vld [vmem:[%s5643 + $0x38] sm:$0xf]
        %v5659 = vld [vmem:[%s5643 + $0x3c] sm:$0xf]
        %v5660 = vunpack.c.l.b16 %v5502
        %v5661 = vunpack.c.l.b16 %v5505
        %v5662 = vunpack.c.l.b16 %v5509
        %v5663 = vunpack.c.l.b16 %v5512
        %v5664 = vunpack.c.l.b16 %v5516
        %v5665 = vunpack.c.l.b16 %v5519
        %v5666 = vunpack.c.l.b16 %v5523
        %v5667 = vunpack.c.l.b16 %v5526
        %v5668 = vunpack.c.l.b16 %v5530
        %v5669 = vunpack.c.l.b16 %v5533
        %v5670 = vunpack.c.l.b16 %v5537
        %v5671 = vunpack.c.l.b16 %v5540
        %v5672 = vunpack.c.l.b16 %v5544
        %v5673 = vunpack.c.l.b16 %v5547
        %v5674 = vunpack.c.l.b16 %v5551
        %v5675 = vunpack.c.l.b16 %v5554
        %v5676 = vunpack.c.l.b16 %v5558
        %v5677 = vunpack.c.l.b16 %v5561
        %v5678 = vunpack.c.l.b16 %v5565
        %v5679 = vunpack.c.l.b16 %v5568
        %v5680 = vunpack.c.l.b16 %v5572
        %v5681 = vunpack.c.l.b16 %v5575
        %v5682 = vunpack.c.l.b16 %v5579
        %v5683 = vunpack.c.l.b16 %v5582
        %v5684 = vunpack.c.l.b16 %v5586
        %v5685 = vunpack.c.l.b16 %v5589
        %v5686 = vunpack.c.l.b16 %v5593
        %v5687 = vunpack.c.l.b16 %v5596
        %v5688 = vunpack.c.l.b16 %v5600
        %v5689 = vunpack.c.l.b16 %v5603
        %v5690 = vunpack.c.l.b16 %v5607
        %v5691 = vunpack.c.l.b16 %v5610
        %v5692 = vpack.c.b16 %v5661, %v5660
        %v5693 = vpack.c.b16 %v5663, %v5662
        %v5694 = vpack.c.b16 %v5665, %v5664
        %v5695 = vpack.c.b16 %v5667, %v5666
        %v5696 = vpack.c.b16 %v5669, %v5668
        %v5697 = vpack.c.b16 %v5671, %v5670
        %v5698 = vpack.c.b16 %v5673, %v5672
        %v5699 = vpack.c.b16 %v5675, %v5674
        %v5700 = vpack.c.b16 %v5677, %v5676
        %v5701 = vpack.c.b16 %v5679, %v5678
        %v5702 = vpack.c.b16 %v5681, %v5680
        %v5703 = vpack.c.b16 %v5683, %v5682
        %v5704 = vpack.c.b16 %v5685, %v5684
        %v5705 = vpack.c.b16 %v5687, %v5686
        %v5706 = vpack.c.b16 %v5689, %v5688
        %v5707 = vpack.c.b16 %v5691, %v5690
        %v5740 = vunpack.c.l.b16 %v5644
        %v5741 = vunpack.c.l.b16 %v5645
        %v5742 = vunpack.c.l.b16 %v5646
        %v5743 = vunpack.c.l.b16 %v5647
        %v5744 = vunpack.c.l.b16 %v5648
        %v5745 = vunpack.c.l.b16 %v5649
        %v5746 = vunpack.c.l.b16 %v5650
        %v5747 = vunpack.c.l.b16 %v5651
        %v5748 = vunpack.c.l.b16 %v5652
        %v5749 = vunpack.c.l.b16 %v5653
        %v5750 = vunpack.c.l.b16 %v5654
        %v5751 = vunpack.c.l.b16 %v5655
        %v5752 = vunpack.c.l.b16 %v5656
        %v5753 = vunpack.c.l.b16 %v5657
        %v5754 = vunpack.c.l.b16 %v5658
        %v5755 = vunpack.c.l.b16 %v5659
        %v5756 = vpack.c.b16 %v5741, %v5740
        %v5757 = vpack.c.b16 %v5743, %v5742
        %v5758 = vpack.c.b16 %v5745, %v5744
        %v5759 = vpack.c.b16 %v5747, %v5746
        %v5760 = vpack.c.b16 %v5749, %v5748
        %v5761 = vpack.c.b16 %v5751, %v5750
        %v5762 = vpack.c.b16 %v5753, %v5752
        %v5763 = vpack.c.b16 %v5755, %v5754
        %5772 = vmatpush.bf16.msra.mxu0 %v5763
        %5773 = vmatpush.bf16.msra.mxu0 %v5762
        %5774 = vmatpush.bf16.msra.mxu0 %v5761
        %5775 = vmatpush.bf16.msra.mxu0 %v5760
        %5776 = vmatpush.bf16.msra.mxu0 %v5759
        %5777 = vmatpush.bf16.msra.mxu0 %v5758
        %5778 = vmatpush.bf16.msra.mxu0 %v5757
        %5779 = vmatpush.bf16.msra.mxu0 %v5756
        %5780 = vmatmul.bf16.gmra.mxu0 %v5692
        %v5781 = vpop.f32.mrf.mxu0
        %v5782 = vadd.f32 0.0, %v5781
        %v5783 = vpop.f32.mrf.mxu0
        %v5784 = vadd.f32 0.0, %v5783
        %5785 = vmatmul.bf16.gmra.mxu0 %v5693
        %v5786 = vpop.f32.mrf.mxu0
        %v5787 = vadd.f32 0.0, %v5786
        %v5788 = vpop.f32.mrf.mxu0
        %v5789 = vadd.f32 0.0, %v5788
        %5790 = vmatmul.bf16.gmra.mxu0 %v5694
        %v5791 = vpop.f32.mrf.mxu0
        %v5792 = vadd.f32 0.0, %v5791
        %v5793 = vpop.f32.mrf.mxu0
        %v5794 = vadd.f32 0.0, %v5793
        %5795 = vmatmul.bf16.gmra.mxu0 %v5695
        %v5796 = vpop.f32.mrf.mxu0
        %v5797 = vadd.f32 0.0, %v5796
        %v5798 = vpop.f32.mrf.mxu0
        %v5799 = vadd.f32 0.0, %v5798
        %5800 = vmatmul.bf16.gmra.mxu0 %v5696
        %v5801 = vpop.f32.mrf.mxu0
        %v5802 = vadd.f32 0.0, %v5801
        %v5803 = vpop.f32.mrf.mxu0
        %v5804 = vadd.f32 0.0, %v5803
        %5805 = vmatmul.bf16.gmra.mxu0 %v5697
        %v5806 = vpop.f32.mrf.mxu0
        %v5807 = vadd.f32 0.0, %v5806
        %v5808 = vpop.f32.mrf.mxu0
        %v5809 = vadd.f32 0.0, %v5808
        %5810 = vmatmul.bf16.gmra.mxu0 %v5698
        %v5811 = vpop.f32.mrf.mxu0
        %v5812 = vadd.f32 0.0, %v5811
        %v5813 = vpop.f32.mrf.mxu0
        %v5814 = vadd.f32 0.0, %v5813
        %5815 = vmatmul.bf16.gmra.mxu0 %v5699
        %v5816 = vpop.f32.mrf.mxu0
        %v5817 = vadd.f32 0.0, %v5816
        %v5818 = vpop.f32.mrf.mxu0
        %v5819 = vadd.f32 0.0, %v5818
        %5820 = vmatmul.bf16.gmra.mxu0 %v5700
        %v5821 = vpop.f32.mrf.mxu0
        %v5822 = vadd.f32 0.0, %v5821
        %v5823 = vpop.f32.mrf.mxu0
        %v5824 = vadd.f32 0.0, %v5823
        %5825 = vmatmul.bf16.gmra.mxu0 %v5701
        %v5826 = vpop.f32.mrf.mxu0
        %v5827 = vadd.f32 0.0, %v5826
        %v5828 = vpop.f32.mrf.mxu0
        %v5829 = vadd.f32 0.0, %v5828
        %5830 = vmatmul.bf16.gmra.mxu0 %v5702
        %v5831 = vpop.f32.mrf.mxu0
        %v5832 = vadd.f32 0.0, %v5831
        %v5833 = vpop.f32.mrf.mxu0
        %v5834 = vadd.f32 0.0, %v5833
        %5835 = vmatmul.bf16.gmra.mxu0 %v5703
        %v5836 = vpop.f32.mrf.mxu0
        %v5837 = vadd.f32 0.0, %v5836
        %v5838 = vpop.f32.mrf.mxu0
        %v5839 = vadd.f32 0.0, %v5838
        %5840 = vmatmul.bf16.gmra.mxu0 %v5704
        %v5841 = vpop.f32.mrf.mxu0
        %v5842 = vadd.f32 0.0, %v5841
        %v5843 = vpop.f32.mrf.mxu0
        %v5844 = vadd.f32 0.0, %v5843
        %5845 = vmatmul.bf16.gmra.mxu0 %v5705
        %v5846 = vpop.f32.mrf.mxu0
        %v5847 = vadd.f32 0.0, %v5846
        %v5848 = vpop.f32.mrf.mxu0
        %v5849 = vadd.f32 0.0, %v5848
        %5850 = vmatmul.bf16.gmra.mxu0 %v5706
        %v5851 = vpop.f32.mrf.mxu0
        %v5852 = vadd.f32 0.0, %v5851
        %v5853 = vpop.f32.mrf.mxu0
        %v5854 = vadd.f32 0.0, %v5853
        %5855 = vmatmul.bf16.gmra.mxu0 %v5707
        %v5856 = vpop.f32.mrf.mxu0
        %v5857 = vadd.f32 0.0, %v5856
        %v5858 = vpop.f32.mrf.mxu0
        %v5859 = vadd.f32 0.0, %v5858
        %5860 = vdwg.mxu0
        %v5861 = vadd.f32 %v5611, %v5782
        %v5862 = vadd.f32 %v5612, %v5784
        %v5863 = vadd.f32 %v5613, %v5787
        %v5864 = vadd.f32 %v5614, %v5789
        %v5865 = vadd.f32 %v5615, %v5792
        %v5866 = vadd.f32 %v5616, %v5794
        %v5867 = vadd.f32 %v5617, %v5797
        %v5868 = vadd.f32 %v5618, %v5799
        %v5869 = vadd.f32 %v5619, %v5802
        %v5870 = vadd.f32 %v5620, %v5804
        %v5871 = vadd.f32 %v5621, %v5807
        %v5872 = vadd.f32 %v5622, %v5809
        %v5873 = vadd.f32 %v5623, %v5812
        %v5874 = vadd.f32 %v5624, %v5814
        %v5875 = vadd.f32 %v5625, %v5817
        %v5876 = vadd.f32 %v5626, %v5819
        %v5877 = vadd.f32 %v5627, %v5822
        %v5878 = vadd.f32 %v5628, %v5824
        %v5879 = vadd.f32 %v5629, %v5827
        %v5880 = vadd.f32 %v5630, %v5829
        %v5881 = vadd.f32 %v5631, %v5832
        %v5882 = vadd.f32 %v5632, %v5834
        %v5883 = vadd.f32 %v5633, %v5837
        %v5884 = vadd.f32 %v5634, %v5839
        %v5885 = vadd.f32 %v5635, %v5842
        %v5886 = vadd.f32 %v5636, %v5844
        %v5887 = vadd.f32 %v5637, %v5847
        %v5888 = vadd.f32 %v5638, %v5849
        %v5889 = vadd.f32 %v5639, %v5852
        %v5890 = vadd.f32 %v5640, %v5854
        %v5891 = vadd.f32 %v5641, %v5857
        %v5892 = vadd.f32 %v5642, %v5859
        %5893 = vst [vmem:[#allocation3] sm:$0xff] %v5861
        %5894 = vst [vmem:[#allocation3 + $0x8] sm:$0xff] %v5862
        %5895 = vst [vmem:[#allocation3 + $0x10] sm:$0xff] %v5863
        %5896 = vst [vmem:[#allocation3 + $0x18] sm:$0xff] %v5864
        %5897 = vst [vmem:[#allocation3 + $0x20] sm:$0xff] %v5865
        %5898 = vst [vmem:[#allocation3 + $0x28] sm:$0xff] %v5866
        %5899 = vst [vmem:[#allocation3 + $0x30] sm:$0xff] %v5867
        %5900 = vst [vmem:[#allocation3 + $0x38] sm:$0xff] %v5868
        %5901 = vst [vmem:[#allocation3 + $0x40] sm:$0xff] %v5869
        %5902 = vst [vmem:[#allocation3 + $0x48] sm:$0xff] %v5870
        %5903 = vst [vmem:[#allocation3 + $0x50] sm:$0xff] %v5871
        %5904 = vst [vmem:[#allocation3 + $0x58] sm:$0xff] %v5872
        %5905 = vst [vmem:[#allocation3 + $0x60] sm:$0xff] %v5873
        %5906 = vst [vmem:[#allocation3 + $0x68] sm:$0xff] %v5874
        %5907 = vst [vmem:[#allocation3 + $0x70] sm:$0xff] %v5875
        %5908 = vst [vmem:[#allocation3 + $0x78] sm:$0xff] %v5876
        %5909 = vst [vmem:[#allocation3 + $0x80] sm:$0xff] %v5877
        %5910 = vst [vmem:[#allocation3 + $0x88] sm:$0xff] %v5878
        %5911 = vst [vmem:[#allocation3 + $0x90] sm:$0xff] %v5879
        %5912 = vst [vmem:[#allocation3 + $0x98] sm:$0xff] %v5880
        %5913 = vst [vmem:[#allocation3 + $0xa0] sm:$0xff] %v5881
        %5914 = vst [vmem:[#allocation3 + $0xa8] sm:$0xff] %v5882
        %5915 = vst [vmem:[#allocation3 + $0xb0] sm:$0xff] %v5883
        %5916 = vst [vmem:[#allocation3 + $0xb8] sm:$0xff] %v5884
        %5917 = vst [vmem:[#allocation3 + $0xc0] sm:$0xff] %v5885
        %5918 = vst [vmem:[#allocation3 + $0xc8] sm:$0xff] %v5886
        %5919 = vst [vmem:[#allocation3 + $0xd0] sm:$0xff] %v5887
        %5920 = vst [vmem:[#allocation3 + $0xd8] sm:$0xff] %v5888
        %5921 = vst [vmem:[#allocation3 + $0xe0] sm:$0xff] %v5889
        %5922 = vst [vmem:[#allocation3 + $0xe8] sm:$0xff] %v5890
        %5923 = vst [vmem:[#allocation3 + $0xf0] sm:$0xff] %v5891
        %5924 = vst [vmem:[#allocation3 + $0xf8] sm:$0xff] %v5892
        %v5925 = vld [vmem:[#allocation3] sm:$0xff]
        %v5926 = vld [vmem:[#allocation3 + $0x8] sm:$0xff]
        %v5927 = vld [vmem:[#allocation3 + $0x10] sm:$0xff]
        %v5928 = vld [vmem:[#allocation3 + $0x18] sm:$0xff]
        %v5929 = vld [vmem:[#allocation3 + $0x20] sm:$0xff]
        %v5930 = vld [vmem:[#allocation3 + $0x28] sm:$0xff]
        %v5931 = vld [vmem:[#allocation3 + $0x30] sm:$0xff]
        %v5932 = vld [vmem:[#allocation3 + $0x38] sm:$0xff]
        %v5933 = vld [vmem:[#allocation3 + $0x40] sm:$0xff]
        %v5934 = vld [vmem:[#allocation3 + $0x48] sm:$0xff]
        %v5935 = vld [vmem:[#allocation3 + $0x50] sm:$0xff]
        %v5936 = vld [vmem:[#allocation3 + $0x58] sm:$0xff]
        %v5937 = vld [vmem:[#allocation3 + $0x60] sm:$0xff]
        %v5938 = vld [vmem:[#allocation3 + $0x68] sm:$0xff]
        %v5939 = vld [vmem:[#allocation3 + $0x70] sm:$0xff]
        %v5940 = vld [vmem:[#allocation3 + $0x78] sm:$0xff]
        %v5941 = vld [vmem:[#allocation3 + $0x80] sm:$0xff]
        %v5942 = vld [vmem:[#allocation3 + $0x88] sm:$0xff]
        %v5943 = vld [vmem:[#allocation3 + $0x90] sm:$0xff]
        %v5944 = vld [vmem:[#allocation3 + $0x98] sm:$0xff]
        %v5945 = vld [vmem:[#allocation3 + $0xa0] sm:$0xff]
        %v5946 = vld [vmem:[#allocation3 + $0xa8] sm:$0xff]
        %v5947 = vld [vmem:[#allocation3 + $0xb0] sm:$0xff]
        %v5948 = vld [vmem:[#allocation3 + $0xb8] sm:$0xff]
        %v5949 = vld [vmem:[#allocation3 + $0xc0] sm:$0xff]
        %v5950 = vld [vmem:[#allocation3 + $0xc8] sm:$0xff]
        %v5951 = vld [vmem:[#allocation3 + $0xd0] sm:$0xff]
        %v5952 = vld [vmem:[#allocation3 + $0xd8] sm:$0xff]
        %v5953 = vld [vmem:[#allocation3 + $0xe0] sm:$0xff]
        %v5954 = vld [vmem:[#allocation3 + $0xe8] sm:$0xff]
        %v5955 = vld [vmem:[#allocation3 + $0xf0] sm:$0xff]
        %v5956 = vld [vmem:[#allocation3 + $0xf8] sm:$0xff]
        %v5957 = vpack.c.bf16 %v5925, %v5925
        %v5958 = vpack.c.bf16 %v5926, %v5926
        %v5959 = vpack.c.bf16 %v5927, %v5927
        %v5960 = vpack.c.bf16 %v5928, %v5928
        %v5961 = vpack.c.bf16 %v5929, %v5929
        %v5962 = vpack.c.bf16 %v5930, %v5930
        %v5963 = vpack.c.bf16 %v5931, %v5931
        %v5964 = vpack.c.bf16 %v5932, %v5932
        %v5965 = vpack.c.bf16 %v5933, %v5933
        %v5966 = vpack.c.bf16 %v5934, %v5934
        %v5967 = vpack.c.bf16 %v5935, %v5935
        %v5968 = vpack.c.bf16 %v5936, %v5936
        %v5969 = vpack.c.bf16 %v5937, %v5937
        %v5970 = vpack.c.bf16 %v5938, %v5938
        %v5971 = vpack.c.bf16 %v5939, %v5939
        %v5972 = vpack.c.bf16 %v5940, %v5940
        %v5973 = vpack.c.bf16 %v5941, %v5941
        %v5974 = vpack.c.bf16 %v5942, %v5942
        %v5975 = vpack.c.bf16 %v5943, %v5943
        %v5976 = vpack.c.bf16 %v5944, %v5944
        %v5977 = vpack.c.bf16 %v5945, %v5945
        %v5978 = vpack.c.bf16 %v5946, %v5946
        %v5979 = vpack.c.bf16 %v5947, %v5947
        %v5980 = vpack.c.bf16 %v5948, %v5948
        %v5981 = vpack.c.bf16 %v5949, %v5949
        %v5982 = vpack.c.bf16 %v5950, %v5950
        %v5983 = vpack.c.bf16 %v5951, %v5951
        %v5984 = vpack.c.bf16 %v5952, %v5952
        %v5985 = vpack.c.bf16 %v5953, %v5953
        %v5986 = vpack.c.bf16 %v5954, %v5954
        %v5987 = vpack.c.bf16 %v5955, %v5955
        %v5988 = vpack.c.bf16 %v5956, %v5956
        %5989 = vst [vmem:[%s248] sm:$0xf] %v5957
        %5990 = vst [vmem:[%s248 + $0x4] sm:$0xf] %v5958
        %5991 = vst [vmem:[%s248 + $0x8] sm:$0xf] %v5959
        %5992 = vst [vmem:[%s248 + $0xc] sm:$0xf] %v5960
        %5993 = vst [vmem:[%s248 + $0x10] sm:$0xf] %v5961
        %5994 = vst [vmem:[%s248 + $0x14] sm:$0xf] %v5962
        %5995 = vst [vmem:[%s248 + $0x18] sm:$0xf] %v5963
        %5996 = vst [vmem:[%s248 + $0x1c] sm:$0xf] %v5964
        %5997 = vst [vmem:[%s248 + $0x20] sm:$0xf] %v5965
        %5998 = vst [vmem:[%s248 + $0x24] sm:$0xf] %v5966
        %5999 = vst [vmem:[%s248 + $0x28] sm:$0xf] %v5967
        %6000 = vst [vmem:[%s248 + $0x2c] sm:$0xf] %v5968
        %6001 = vst [vmem:[%s248 + $0x30] sm:$0xf] %v5969
        %6002 = vst [vmem:[%s248 + $0x34] sm:$0xf] %v5970
        %6003 = vst [vmem:[%s248 + $0x38] sm:$0xf] %v5971
        %6004 = vst [vmem:[%s248 + $0x3c] sm:$0xf] %v5972
        %6005 = vst [vmem:[%s248 + $0x40] sm:$0xf] %v5973
        %6006 = vst [vmem:[%s248 + $0x44] sm:$0xf] %v5974
        %6007 = vst [vmem:[%s248 + $0x48] sm:$0xf] %v5975
        %6008 = vst [vmem:[%s248 + $0x4c] sm:$0xf] %v5976
        %6009 = vst [vmem:[%s248 + $0x50] sm:$0xf] %v5977
        %6010 = vst [vmem:[%s248 + $0x54] sm:$0xf] %v5978
        %6011 = vst [vmem:[%s248 + $0x58] sm:$0xf] %v5979
        %6012 = vst [vmem:[%s248 + $0x5c] sm:$0xf] %v5980
        %6013 = vst [vmem:[%s248 + $0x60] sm:$0xf] %v5981
        %6014 = vst [vmem:[%s248 + $0x64] sm:$0xf] %v5982
        %6015 = vst [vmem:[%s248 + $0x68] sm:$0xf] %v5983
        %6016 = vst [vmem:[%s248 + $0x6c] sm:$0xf] %v5984
        %6017 = vst [vmem:[%s248 + $0x70] sm:$0xf] %v5985
        %6018 = vst [vmem:[%s248 + $0x74] sm:$0xf] %v5986
        %6019 = vst [vmem:[%s248 + $0x78] sm:$0xf] %v5987
        %6020 = vst [vmem:[%s248 + $0x7c] sm:$0xf] %v5988
        %v6021 = vadd.f32 %v5925, %v5926
        %v6022 = vadd.f32 %v6021, %v5927
        %v6023 = vadd.f32 %v6022, %v5928
        %v6024 = vadd.f32 %v6023, %v5929
        %v6025 = vadd.f32 %v6024, %v5930
        %v6026 = vadd.f32 %v6025, %v5931
        %v6027 = vadd.f32 %v6026, %v5932
        %v6028 = vadd.f32 %v6027, %v5933
        %v6029 = vadd.f32 %v6028, %v5934
        %v6030 = vadd.f32 %v6029, %v5935
        %v6031 = vadd.f32 %v6030, %v5936
        %v6032 = vadd.f32 %v6031, %v5937
        %v6033 = vadd.f32 %v6032, %v5938
        %v6034 = vadd.f32 %v6033, %v5939
        %v6035 = vadd.f32 %v6034, %v5940
        %v6036 = vadd.f32 %v6035, %v5941
        %v6037 = vadd.f32 %v6036, %v5942
        %v6038 = vadd.f32 %v6037, %v5943
        %v6039 = vadd.f32 %v6038, %v5944
        %v6040 = vadd.f32 %v6039, %v5945
        %v6041 = vadd.f32 %v6040, %v5946
        %v6042 = vadd.f32 %v6041, %v5947
        %v6043 = vadd.f32 %v6042, %v5948
        %v6044 = vadd.f32 %v6043, %v5949
        %v6045 = vadd.f32 %v6044, %v5950
        %v6046 = vadd.f32 %v6045, %v5951
        %v6047 = vadd.f32 %v6046, %v5952
        %v6048 = vadd.f32 %v6047, %v5953
        %v6049 = vadd.f32 %v6048, %v5954
        %v6050 = vadd.f32 %v6049, %v5955
        %v6051 = vadd.f32 %v6050, %v5956
        %v6052 = vrot.slane %v6051, 4
        %v6053 = vadd.f32 %v6051, %v6052
        %v6054 = vrot.slane %v6053, 2
        %v6055 = vadd.f32 %v6053, %v6054
        %v6056 = vrot.slane %v6055, 1
        %v6057 = vadd.f32 %v6055, %v6056
        %v6058 = vmul.f32 %v6057, 0.00390625
        %v6059 = vsub.f32 %v5925, %v6058
        %v6060 = vsub.f32 %v5926, %v6058
        %v6061 = vsub.f32 %v5927, %v6058
        %v6062 = vsub.f32 %v5928, %v6058
        %v6063 = vsub.f32 %v5929, %v6058
        %v6064 = vsub.f32 %v5930, %v6058
        %v6065 = vsub.f32 %v5931, %v6058
        %v6066 = vsub.f32 %v5932, %v6058
        %v6067 = vsub.f32 %v5933, %v6058
        %v6068 = vsub.f32 %v5934, %v6058
        %v6069 = vsub.f32 %v5935, %v6058
        %v6070 = vsub.f32 %v5936, %v6058
        %v6071 = vsub.f32 %v5937, %v6058
        %v6072 = vsub.f32 %v5938, %v6058
        %v6073 = vsub.f32 %v5939, %v6058
        %v6074 = vsub.f32 %v5940, %v6058
        %v6075 = vsub.f32 %v5941, %v6058
        %v6076 = vsub.f32 %v5942, %v6058
        %v6077 = vsub.f32 %v5943, %v6058
        %v6078 = vsub.f32 %v5944, %v6058
        %v6079 = vsub.f32 %v5945, %v6058
        %v6080 = vsub.f32 %v5946, %v6058
        %v6081 = vsub.f32 %v5947, %v6058
        %v6082 = vsub.f32 %v5948, %v6058
        %v6083 = vsub.f32 %v5949, %v6058
        %v6084 = vsub.f32 %v5950, %v6058
        %v6085 = vsub.f32 %v5951, %v6058
        %v6086 = vsub.f32 %v5952, %v6058
        %v6087 = vsub.f32 %v5953, %v6058
        %v6088 = vsub.f32 %v5954, %v6058
        %v6089 = vsub.f32 %v5955, %v6058
        %v6090 = vsub.f32 %v5956, %v6058
        %v6091 = vmul.f32 %v6059, %v6059
        %v6092 = vmul.f32 %v6060, %v6060
        %v6093 = vmul.f32 %v6061, %v6061
        %v6094 = vmul.f32 %v6062, %v6062
        %v6095 = vmul.f32 %v6063, %v6063
        %v6096 = vmul.f32 %v6064, %v6064
        %v6097 = vmul.f32 %v6065, %v6065
        %v6098 = vmul.f32 %v6066, %v6066
        %v6099 = vmul.f32 %v6067, %v6067
        %v6100 = vmul.f32 %v6068, %v6068
        %v6101 = vmul.f32 %v6069, %v6069
        %v6102 = vmul.f32 %v6070, %v6070
        %v6103 = vmul.f32 %v6071, %v6071
        %v6104 = vmul.f32 %v6072, %v6072
        %v6105 = vmul.f32 %v6073, %v6073
        %v6106 = vmul.f32 %v6074, %v6074
        %v6107 = vmul.f32 %v6075, %v6075
        %v6108 = vmul.f32 %v6076, %v6076
        %v6109 = vmul.f32 %v6077, %v6077
        %v6110 = vmul.f32 %v6078, %v6078
        %v6111 = vmul.f32 %v6079, %v6079
        %v6112 = vmul.f32 %v6080, %v6080
        %v6113 = vmul.f32 %v6081, %v6081
        %v6114 = vmul.f32 %v6082, %v6082
        %v6115 = vmul.f32 %v6083, %v6083
        %v6116 = vmul.f32 %v6084, %v6084
        %v6117 = vmul.f32 %v6085, %v6085
        %v6118 = vmul.f32 %v6086, %v6086
        %v6119 = vmul.f32 %v6087, %v6087
        %v6120 = vmul.f32 %v6088, %v6088
        %v6121 = vmul.f32 %v6089, %v6089
        %v6122 = vmul.f32 %v6090, %v6090
        %v6123 = vadd.f32 %v6091, %v6092
        %v6124 = vadd.f32 %v6123, %v6093
        %v6125 = vadd.f32 %v6124, %v6094
        %v6126 = vadd.f32 %v6125, %v6095
        %v6127 = vadd.f32 %v6126, %v6096
        %v6128 = vadd.f32 %v6127, %v6097
        %v6129 = vadd.f32 %v6128, %v6098
        %v6130 = vadd.f32 %v6129, %v6099
        %v6131 = vadd.f32 %v6130, %v6100
        %v6132 = vadd.f32 %v6131, %v6101
        %v6133 = vadd.f32 %v6132, %v6102
        %v6134 = vadd.f32 %v6133, %v6103
        %v6135 = vadd.f32 %v6134, %v6104
        %v6136 = vadd.f32 %v6135, %v6105
        %v6137 = vadd.f32 %v6136, %v6106
        %v6138 = vadd.f32 %v6137, %v6107
        %v6139 = vadd.f32 %v6138, %v6108
        %v6140 = vadd.f32 %v6139, %v6109
        %v6141 = vadd.f32 %v6140, %v6110
        %v6142 = vadd.f32 %v6141, %v6111
        %v6143 = vadd.f32 %v6142, %v6112
        %v6144 = vadd.f32 %v6143, %v6113
        %v6145 = vadd.f32 %v6144, %v6114
        %v6146 = vadd.f32 %v6145, %v6115
        %v6147 = vadd.f32 %v6146, %v6116
        %v6148 = vadd.f32 %v6147, %v6117
        %v6149 = vadd.f32 %v6148, %v6118
        %v6150 = vadd.f32 %v6149, %v6119
        %v6151 = vadd.f32 %v6150, %v6120
        %v6152 = vadd.f32 %v6151, %v6121
        %v6153 = vadd.f32 %v6152, %v6122
        %v6154 = vrot.slane %v6153, 4
        %v6155 = vadd.f32 %v6153, %v6154
        %v6156 = vrot.slane %v6155, 2
        %v6157 = vadd.f32 %v6155, %v6156
        %v6158 = vrot.slane %v6157, 1
        %v6159 = vadd.f32 %v6157, %v6158
        %vm6160 = vcmask 1040384
        %v6161 = vsel %vm6160, %v6057, %v6159
        %6162 = vst [vmem:[%s252] sm:$0x3] %v6161
        %p6163 = scmp.lt.s32.totalorder %s18, 1
        %s6164 = scalar_select %p6163, %s18, 1
        %s6165 = smul.addr %s6164, 32
        %s6166 = smul.addr %s6165, 4
        %s6167 = scalar_lea.vmem %s4, %s6166
        %p6168 = scmp.lt.s32.totalorder %s18, 1
        %s6169 = scalar_select %p6168, %s18, 1
        %s6170 = smul.addr %s6169, 2
        %s6171 = scalar_lea.vmem %s5, %s6170
        // Predicated region
        $region41: #{bottleneck_forward_nhwc.5} parent=35 // pred_check
          %p6172 = pneg %p125
        $region42: #{bottleneck_forward_nhwc.5} parent=35 // pred_check_branch
          %6174 = sbr.rel (%p6172) target = $region44
        $region43: #{bottleneck_forward_nhwc.5} parent=35 // pred_region
          _
        $region44: #{bottleneck_forward_nhwc.5} parent=35 // pred_fallthru
          _
        // Predicated region
        $region45: #{bottleneck_forward_nhwc.5} parent=35 // pred_check
          %p6175 = pneg %p151
        $region46: #{bottleneck_forward_nhwc.5} parent=35 // pred_check_branch
          %6177 = sbr.rel (%p6175) target = $region48
        $region47: #{bottleneck_forward_nhwc.5} parent=35 // pred_region
          _
        $region48: #{bottleneck_forward_nhwc.5} parent=35 // pred_fallthru
          _
      $region36: #{bottleneck_forward_nhwc.5} parent=5 // pred_fallthru
        _
      %p6178 = scmp.le.s32.totalorder 2, %s13
      // Predicated region
      $region49: #{bottleneck_forward_nhwc.5} parent=5 // pred_check
        %p6179 = pneg %p6178
      $region50: #{bottleneck_forward_nhwc.5} parent=5 // pred_check_branch
        %6181 = sbr.rel (%p6179) target = $region52
      $region51: #{bottleneck_forward_nhwc.5} parent=5 // pred_region
        %s6182 = ssub.s32 %s13, 2
        // Predicated region
        $region53: #{bottleneck_forward_nhwc.5} parent=51 // pred_check
          %p6183 = pneg %p131
        $region54: #{bottleneck_forward_nhwc.5} parent=51 // pred_check_branch
          %6185 = sbr.rel (%p6183) target = $region56
        $region55: #{bottleneck_forward_nhwc.5} parent=51 // pred_region
          %p6186 = scmp.lt.s32.totalorder %s19, 1
          %s6187 = scalar_select %p6186, %s19, 1
          %s6188 = smul.addr %s6187, 32
          %s6189 = smul.addr %s6188, 4
          %s6190 = scalar_lea.vmem %s4, %s6189
        $region56: #{bottleneck_forward_nhwc.5} parent=51 // pred_fallthru
          _
        // Predicated region
        $region57: #{bottleneck_forward_nhwc.5} parent=51 // pred_check
          %p6191 = pneg %p157
        $region58: #{bottleneck_forward_nhwc.5} parent=51 // pred_check_branch
          %6193 = sbr.rel (%p6191) target = $region60
        $region59: #{bottleneck_forward_nhwc.5} parent=51 // pred_region
          %p6194 = scmp.lt.s32.totalorder %s19, 1
          %s6195 = scalar_select %p6194, %s19, 1
          %s6196 = smul.addr %s6195, 2
          %s6197 = scalar_lea.vmem %s5, %s6196
        $region60: #{bottleneck_forward_nhwc.5} parent=51 // pred_fallthru
          _
      $region52: #{bottleneck_forward_nhwc.5} parent=5 // pred_fallthru
        _
    $region6: #{bottleneck_forward_nhwc.5} parent=1 // loop_footer
      %s17 = sadd.s32 1, %s13
    $region7: #{bottleneck_forward_nhwc.5} parent=1 // loop_footer_branch
      %12 = sbr.rel target = $region3
    $region8: #{bottleneck_forward_nhwc.5} parent=1 // loop_exit
      _
    %6198 = vsyncpa [#allocation5], 1
    %s6199 = scalar_lea.sflag [#allocation5], 1
    %6200 = vsyncpa %s6199, 1

</llo_original>
